<compile_context>
chip_gen: v5e
topology: v5e:2x2
jax: 0.10.0
libtpu: 0.0.40
codegen_flags: <defaults>
</compile_context>

<pallas_src>
import functools

import jax
import jax.numpy as jnp
from jax import lax
from jax.experimental import pallas as pl
from jax.experimental.pallas import tpu as pltpu


# Channel bookkeeping (fixed by the module definition).
C_IN = 320                    # block input / output channels
C_B0 = 32                     # branch0 1x1 out
C_B1A = 32                    # branch1 1x1 out
C_B2A = 32                    # branch2 1x1 out
C_MID_IN = C_B1A + C_B2A      # 64  (inputs of the merged 3x3 stage)
C_B1B = 32                    # branch1 3x3 out
C_B2B = 48                    # branch2 first 3x3 out
C_MID_OUT = C_B1B + C_B2B     # 80  (outputs of the merged 3x3 stage)
C_B2C = 64                    # branch2 second 3x3 out
C_S1 = C_MID_IN + C_B0        # 96  (merged first-stage output: [b1a | b2a | b0])
C_CAT = C_B0 + C_B1B + C_B2C  # 128


# ------------------------------ fused kernel ------------------------------- #

def _block_a_kernel(x_ref,                       # [1, H*W, 320] f32 (input + residual)
                    w1_ref, b1_ref,              # [320, 96] bf16, [1, 96] f32
                    wmid_ref, bmid_ref,          # [9, 64, 80] bf16, [1, 80] f32
                    w2c_ref, b2c_ref,            # [9, 48, 64] bf16, [1, 64] f32
                    wf0_ref, wf1_ref, wf2_ref,   # [32,320],[32,320],[64,320] bf16
                    bf_ref,                      # [1, 320] f32
                    o_ref,                       # [1, H*W, 320] f32
                    pad_mid, pad_b2b,            # VMEM scratch (zero-padded spatial bufs)
                    *, H, W):
    M = H * W
    xf = x_ref[0]                                # [M, 320] f32 (residual, kept exact)
    xb = xf.astype(jnp.bfloat16)

    # -- stage 1: merged 1x1 convs of all three branches (BN folded into w1) --
    a1 = jnp.dot(xb, w1_ref[...], preferred_element_type=jnp.float32)      # [M, 96]
    a1 = jnp.maximum(a1 + b1_ref[...], 0.0)      # columns: [b1a-out | b2a-out | b0-out]

    mid_in = a1[:, :C_MID_IN]                    # [M, 64] -> inputs of the two 3x3 convs
    x0 = a1[:, C_MID_IN:]                        # [M, 32] branch0 output

    # -- stage 2: branch1 3x3 (32->32) and branch2 first 3x3 (32->48) fused as a
    #    block-diagonal 64->80 conv; padding=1 via shifted slices of VMEM scratch --
    pad_mid[...] = jnp.zeros_like(pad_mid)
    pad_mid[1:H + 1, 1:W + 1, :] = mid_in.reshape(H, W, C_MID_IN)
    acc = jnp.zeros((M, C_MID_OUT), jnp.float32)
    for dh in range(3):
        for dw in range(3):
            tap = pad_mid[dh:dh + H, dw:dw + W, :].reshape(M, C_MID_IN)
            acc = acc + jnp.dot(tap.astype(jnp.bfloat16),
                                wmid_ref[dh * 3 + dw],
                                preferred_element_type=jnp.float32)
    mid = jnp.maximum(acc + bmid_ref[...], 0.0)  # [M, 80] columns: [x1 | b2b-out]
    x1 = mid[:, :C_B1B]                          # [M, 32]
    a2b = mid[:, C_B1B:]                         # [M, 48]

    # -- stage 3: branch2 second 3x3 (48 -> 64) --
    pad_b2b[...] = jnp.zeros_like(pad_b2b)
    pad_b2b[1:H + 1, 1:W + 1, :] = a2b.reshape(H, W, C_B2B)
    acc2 = jnp.zeros((M, C_B2C), jnp.float32)
    for dh in range(3):
        for dw in range(3):
            tap = pad_b2b[dh:dh + H, dw:dw + W, :].reshape(M, C_B2B)
            acc2 = acc2 + jnp.dot(tap.astype(jnp.bfloat16),
                                  w2c_ref[dh * 3 + dw],
                                  preferred_element_type=jnp.float32)
    x2 = jnp.maximum(acc2 + b2c_ref[...], 0.0)   # [M, 64]

    # -- final 1x1 (128->320, residual scale pre-folded) as 3 accumulating matmuls,
    #    then bias + residual + ReLU (no concat materialized) --
    out = jnp.dot(x0.astype(jnp.bfloat16), wf0_ref[...],
                  preferred_element_type=jnp.float32)
    out = out + jnp.dot(x1.astype(jnp.bfloat16), wf1_ref[...],
                        preferred_element_type=jnp.float32)
    out = out + jnp.dot(x2.astype(jnp.bfloat16), wf2_ref[...],
                        preferred_element_type=jnp.float32)
    o_ref[0] = jnp.maximum(out + bf_ref[...] + xf, 0.0)


# --------------------------- host-side param prep --------------------------- #

def _fold_params(p, scale):
    """Fold eval-mode BN scale + residual scale into bf16 weights; keep biases f32."""
    kp = {}
    # merged first-stage 1x1: column order [b1a | b2a | b0]
    w1 = jnp.concatenate([p["b1a_w"] * p["b1a_s"],
                          p["b2a_w"] * p["b2a_s"],
                          p["b0_w"] * p["b0_s"]], axis=1)
    b1 = jnp.concatenate([p["b1a_b"], p["b2a_b"], p["b0_b"]])
    kp["w1"] = w1.astype(jnp.bfloat16)
    kp["b1"] = b1.reshape(1, C_S1).astype(jnp.float32)

    # merged block-diagonal 3x3 (64 -> 80): inputs [b1a|b2a], outputs [b1b|b2b]
    wmid = jnp.zeros((3, 3, C_MID_IN, C_MID_OUT), jnp.float32)
    wmid = wmid.at[:, :, :C_B1A, :C_B1B].set(p["b1b_w"] * p["b1b_s"])
    wmid = wmid.at[:, :, C_B1A:, C_B1B:].set(p["b2b_w"] * p["b2b_s"])
    kp["wmid"] = wmid.reshape(9, C_MID_IN, C_MID_OUT).astype(jnp.bfloat16)
    kp["bmid"] = jnp.concatenate([p["b1b_b"], p["b2b_b"]]).reshape(1, C_MID_OUT) \
                    .astype(jnp.float32)

    # branch2 second 3x3 (48 -> 64)
    kp["w2c"] = (p["b2c_w"] * p["b2c_s"]).reshape(9, C_B2B, C_B2C).astype(jnp.bfloat16)
    kp["b2c"] = p["b2c_b"].reshape(1, C_B2C).astype(jnp.float32)

    # final 1x1 (128 -> 320) with residual scale folded; split by concat blocks
    w2 = p["c2_w"] * scale
    kp["wf0"] = w2[:C_B0].astype(jnp.bfloat16)
    kp["wf1"] = w2[C_B0:C_B0 + C_B1B].astype(jnp.bfloat16)
    kp["wf2"] = w2[C_B0 + C_B1B:].astype(jnp.bfloat16)
    kp["bf"] = (p["c2_b"] * scale).reshape(1, C_IN).astype(jnp.float32)
    return kp


def block_a_forward(x_nchw, p, scale=1.0):
    N, C, H, W = x_nchw.shape
    assert C == C_IN
    assert W % 8 == 0, "fused kernel assumes W % 8 == 0 (layout-preserving reshapes)"
    kp = _fold_params(p, float(scale))

    x = jnp.transpose(x_nchw, (0, 2, 3, 1)).astype(jnp.float32)   # NHWC
    M = H * W
    xf = x.reshape(N, M, C)

    kernel = functools.partial(_block_a_kernel, H=H, W=W)
    out = pl.pallas_call(
        kernel,
        out_shape=jax.ShapeDtypeStruct((N, M, C), jnp.float32),
        grid_spec=pltpu.PrefetchScalarGridSpec(
            num_scalar_prefetch=0,
            grid=(N,),
            in_specs=[
                pl.BlockSpec((1, M, C), lambda n: (n, 0, 0)),
                pl.BlockSpec(kp["w1"].shape, lambda n: (0, 0)),
                pl.BlockSpec(kp["b1"].shape, lambda n: (0, 0)),
                pl.BlockSpec(kp["wmid"].shape, lambda n: (0, 0, 0)),
                pl.BlockSpec(kp["bmid"].shape, lambda n: (0, 0)),
                pl.BlockSpec(kp["w2c"].shape, lambda n: (0, 0, 0)),
                pl.BlockSpec(kp["b2c"].shape, lambda n: (0, 0)),
                pl.BlockSpec(kp["wf0"].shape, lambda n: (0, 0)),
                pl.BlockSpec(kp["wf1"].shape, lambda n: (0, 0)),
                pl.BlockSpec(kp["wf2"].shape, lambda n: (0, 0)),
                pl.BlockSpec(kp["bf"].shape, lambda n: (0, 0)),
            ],
            out_specs=pl.BlockSpec((1, M, C), lambda n: (n, 0, 0)),
            scratch_shapes=[
                pltpu.VMEM((H + 2, W + 2, C_MID_IN), jnp.float32),
                pltpu.VMEM((H + 2, W + 2, C_B2B), jnp.float32),
            ],
        ),
        compiler_params=pltpu.CompilerParams(
            dimension_semantics=("parallel",)),
    )(xf, kp["w1"], kp["b1"], kp["wmid"], kp["bmid"], kp["w2c"], kp["b2c"],
      kp["wf0"], kp["wf1"], kp["wf2"], kp["bf"])

    return jnp.transpose(out.reshape(N, H, W, C), (0, 3, 1, 2))   # back to NCHW


# -------------------------- reference (plain JAX) --------------------------- #

def ref_forward(x_nchw, p, scale=1.0):
    x = jnp.transpose(x_nchw, (0, 2, 3, 1)).astype(jnp.float32)
    dn = ("NHWC", "HWIO", "NHWC")

    def conv(inp, w_hwio, pad):
        return lax.conv_general_dilated(inp, w_hwio, (1, 1), pad,
                                        dimension_numbers=dn)

    def bnrelu(y, s, b):
        return jnp.maximum(y * s.reshape(1, 1, 1, -1) + b.reshape(1, 1, 1, -1), 0.0)

    pad1 = ((1, 1), (1, 1))
    x0 = bnrelu(conv(x, p["b0_w"].reshape(1, 1, C_IN, C_B0), "VALID"),
                p["b0_s"], p["b0_b"])
    y1 = bnrelu(conv(x, p["b1a_w"].reshape(1, 1, C_IN, C_B1A), "VALID"),
                p["b1a_s"], p["b1a_b"])
    x1 = bnrelu(conv(y1, p["b1b_w"], pad1), p["b1b_s"], p["b1b_b"])
    y2 = bnrelu(conv(x, p["b2a_w"].reshape(1, 1, C_IN, C_B2A), "VALID"),
                p["b2a_s"], p["b2a_b"])
    y2 = bnrelu(conv(y2, p["b2b_w"], pad1), p["b2b_s"], p["b2b_b"])
    x2 = bnrelu(conv(y2, p["b2c_w"], pad1), p["b2c_s"], p["b2c_b"])
    cat = jnp.concatenate([x0, x1, x2], axis=-1)
    out = conv(cat, p["c2_w"].reshape(1, 1, C_CAT, C_IN), "VALID") \
        + p["c2_b"].reshape(1, 1, 1, -1)
    out = jnp.maximum(out * scale + x, 0.0)
    return jnp.transpose(out, (0, 3, 1, 2))


# ------------------------------ parameters ---------------------------------- #

def init_params(key):
    ks = jax.random.split(key, 14)

    def conv_w(k, shape, fan_in):
        return jax.random.normal(k, shape, jnp.float32) / jnp.sqrt(fan_in)

    def bn(k, c, eps=0.001):
        k1, k2, k3, k4 = jax.random.split(k, 4)
        gamma = 1.0 + 0.1 * jax.random.normal(k1, (c,), jnp.float32)
        beta = 0.1 * jax.random.normal(k2, (c,), jnp.float32)
        mean = 0.1 * jax.random.normal(k3, (c,), jnp.float32)
        var = jax.random.uniform(k4, (c,), jnp.float32, 0.5, 1.5)
        s = gamma / jnp.sqrt(var + eps)     # folded eval-mode BN
        b = beta - mean * s
        return s, b

    p = {}
    p["b0_w"] = conv_w(ks[0], (C_IN, C_B0), C_IN)             # branch0 1x1
    p["b0_s"], p["b0_b"] = bn(ks[1], C_B0)
    p["b1a_w"] = conv_w(ks[2], (C_IN, C_B1A), C_IN)           # branch1 1x1
    p["b1a_s"], p["b1a_b"] = bn(ks[3], C_B1A)
    p["b1b_w"] = conv_w(ks[4], (3, 3, C_B1A, C_B1B), 9 * C_B1A)   # branch1 3x3 (HWIO)
    p["b1b_s"], p["b1b_b"] = bn(ks[5], C_B1B)
    p["b2a_w"] = conv_w(ks[6], (C_IN, C_B2A), C_IN)           # branch2 1x1
    p["b2a_s"], p["b2a_b"] = bn(ks[7], C_B2A)
    p["b2b_w"] = conv_w(ks[8], (3, 3, C_B2A, C_B2B), 9 * C_B2A)   # branch2 3x3 #1
    p["b2b_s"], p["b2b_b"] = bn(ks[9], C_B2B)
    p["b2c_w"] = conv_w(ks[10], (3, 3, C_B2B, C_B2C), 9 * C_B2B)  # branch2 3x3 #2
    p["b2c_s"], p["b2c_b"] = bn(ks[11], C_B2C)
    p["c2_w"] = conv_w(ks[12], (C_CAT, C_IN), C_CAT)          # final 1x1 (with bias)
    p["c2_b"] = 0.1 * jax.random.normal(ks[13], (C_IN,), jnp.float32)
    return p


# --------------------------------- main ------------------------------------ #

if __name__ == "__main__":
    key = jax.random.PRNGKey(0)
    kx, kparam = jax.random.split(key)

    # channel count fixed at 320 by the module (residual add); small spatial size
    N, C, H, W = 2, 320, 16, 16
    x = jax.random.normal(kx, (N, C, H, W), jnp.float32)
    params = init_params(kparam)
    scale = 0.17   # module default is 1.0; any value exercises the same path

    out = jax.block_until_ready(block_a_forward(x, params, scale))
    ref = jax.block_until_ready(ref_forward(x, params, scale))

    err = float(jnp.max(jnp.abs(out - ref)))
    rmax = float(jnp.max(jnp.abs(ref)))
    if not (out.shape == (N, C, H, W) and err <= 0.03 + 0.03 * rmax):
        raise AssertionError(f"mismatch: max|diff|={err:.4e}, max|ref|={rmax:.4e}")

    print("KERNEL_OK")
</pallas_src>

<mosaic_0001>
module attributes {stable_mosaic.version = 11 : i64} {
  func.func @_block_a_kernel(%arg0: i32, %arg1: memref<1x256x320xf32, #tpu.memory_space<vmem>>, %arg2: memref<320x96xbf16, #tpu.memory_space<vmem>>, %arg3: memref<1x96xf32, #tpu.memory_space<vmem>>, %arg4: memref<9x64x80xbf16, #tpu.memory_space<vmem>>, %arg5: memref<1x80xf32, #tpu.memory_space<vmem>>, %arg6: memref<9x48x64xbf16, #tpu.memory_space<vmem>>, %arg7: memref<1x64xf32, #tpu.memory_space<vmem>>, %arg8: memref<32x320xbf16, #tpu.memory_space<vmem>>, %arg9: memref<32x320xbf16, #tpu.memory_space<vmem>>, %arg10: memref<64x320xbf16, #tpu.memory_space<vmem>>, %arg11: memref<1x320xf32, #tpu.memory_space<vmem>>, %arg12: memref<1x256x320xf32, #tpu.memory_space<vmem>>, %arg13: memref<18x18x64xf32, #tpu.memory_space<vmem>>, %arg14: memref<18x18x48xf32, #tpu.memory_space<vmem>>) attributes {dimension_semantics = [#tpu.dimension_semantics<parallel>], iteration_bounds = array<i64: 2>, scalar_prefetch = 0 : i64, scratch_operands = 2 : i64, tpu.core_type = #tpu.core_type<tc>, window_params = [{transform_indices = @transform_0, window_bounds = array<i64: 1, 256, 320>}, {pipeline_mode = #tpu.pipeline_mode<synchronous>, transform_indices = @transform_1, window_bounds = array<i64: 320, 96>}, {pipeline_mode = #tpu.pipeline_mode<synchronous>, transform_indices = @transform_2, window_bounds = array<i64: 1, 96>}, {pipeline_mode = #tpu.pipeline_mode<synchronous>, transform_indices = @transform_3, window_bounds = array<i64: 9, 64, 80>}, {pipeline_mode = #tpu.pipeline_mode<synchronous>, transform_indices = @transform_4, window_bounds = array<i64: 1, 80>}, {pipeline_mode = #tpu.pipeline_mode<synchronous>, transform_indices = @transform_5, window_bounds = array<i64: 9, 48, 64>}, {pipeline_mode = #tpu.pipeline_mode<synchronous>, transform_indices = @transform_6, window_bounds = array<i64: 1, 64>}, {pipeline_mode = #tpu.pipeline_mode<synchronous>, transform_indices = @transform_7, window_bounds = array<i64: 32, 320>}, {pipeline_mode = #tpu.pipeline_mode<synchronous>, transform_indices = @transform_8, window_bounds = array<i64: 32, 320>}, {pipeline_mode = #tpu.pipeline_mode<synchronous>, transform_indices = @transform_9, window_bounds = array<i64: 64, 320>}, {pipeline_mode = #tpu.pipeline_mode<synchronous>, transform_indices = @transform_10, window_bounds = array<i64: 1, 320>}, {transform_indices = @transform_11, window_bounds = array<i64: 1, 256, 320>}]} {
    %c0 = arith.constant 0 : index
    %c0_0 = arith.constant 0 : index
    %c0_1 = arith.constant 0 : index
    %0 = vector.load %arg1[%c0, %c0_0, %c0_1] : memref<1x256x320xf32, #tpu.memory_space<vmem>>, vector<1x256x320xf32>
    %1 = vector.shape_cast %0 : vector<1x256x320xf32> to vector<256x320xf32>
    %2 = arith.truncf %1 : vector<256x320xf32> to vector<256x320xbf16>
    %c0_2 = arith.constant 0 : index
    %c0_3 = arith.constant 0 : index
    %3 = vector.load %arg2[%c0_2, %c0_3] : memref<320x96xbf16, #tpu.memory_space<vmem>>, vector<320x96xbf16>
    %cst = arith.constant dense<0.000000e+00> : vector<256x96xf32>
    %4 = tpu.matmul %2, %3, %cst {dimension_numbers = #tpu.dot_dimension_numbers<[1], [0], [0], [1], [0, 0, 1, 1], [], []>} : vector<256x320xbf16>, vector<320x96xbf16>, vector<256x96xf32> -> vector<256x96xf32>
    %c0_4 = arith.constant 0 : index
    %c0_5 = arith.constant 0 : index
    %5 = vector.load %arg3[%c0_4, %c0_5] : memref<1x96xf32, #tpu.memory_space<vmem>>, vector<1x96xf32>
    %6 = vector.broadcast %5 : vector<1x96xf32> to vector<256x96xf32>
    %7 = arith.addf %4, %6 : vector<256x96xf32>
    %cst_6 = arith.constant 0.000000e+00 : f32
    %8 = vector.broadcast %cst_6 : f32 to vector<256x96xf32>
    %9 = arith.maximumf %7, %8 : vector<256x96xf32>
    %10 = vector.extract_strided_slice %9 {offsets = [0, 0], sizes = [256, 64], strides = [1, 1]} : vector<256x96xf32> to vector<256x64xf32>
    %11 = vector.extract_strided_slice %9 {offsets = [0, 64], sizes = [256, 32], strides = [1, 1]} : vector<256x96xf32> to vector<256x32xf32>
    %cst_7 = arith.constant 0.000000e+00 : f32
    %12 = vector.broadcast %cst_7 : f32 to vector<18x18x64xf32>
    %c0_8 = arith.constant 0 : index
    %c0_9 = arith.constant 0 : index
    %c0_10 = arith.constant 0 : index
    %13 = vector.load %arg13[%c0_8, %c0_9, %c0_10] : memref<18x18x64xf32, #tpu.memory_space<vmem>>, vector<18x18x64xf32>
    tpu.vector_store %arg13[%c0_8, %c0_9, %c0_10], %12 {strides = array<i32>} : memref<18x18x64xf32, #tpu.memory_space<vmem>>, vector<18x18x64xf32>,
    %14 = vector.shape_cast %10 : vector<256x64xf32> to vector<16x16x64xf32>
    %c1 = arith.constant 1 : index
    %c1_11 = arith.constant 1 : index
    %c0_12 = arith.constant 0 : index
    %15 = vector.load %arg13[%c1, %c1_11, %c0_12] : memref<18x18x64xf32, #tpu.memory_space<vmem>>, vector<16x16x64xf32>
    tpu.vector_store %arg13[%c1, %c1_11, %c0_12], %14 {strides = array<i32>} : memref<18x18x64xf32, #tpu.memory_space<vmem>>, vector<16x16x64xf32>,
    %cst_13 = arith.constant 0.000000e+00 : f32
    %16 = vector.broadcast %cst_13 : f32 to vector<256x80xf32>
    %c0_14 = arith.constant 0 : index
    %c0_15 = arith.constant 0 : index
    %c0_16 = arith.constant 0 : index
    %17 = vector.load %arg13[%c0_14, %c0_15, %c0_16] : memref<18x18x64xf32, #tpu.memory_space<vmem>>, vector<16x16x64xf32>
    %18 = vector.shape_cast %17 : vector<16x16x64xf32> to vector<256x64xf32>
    %19 = arith.truncf %18 : vector<256x64xf32> to vector<256x64xbf16>
    %c0_17 = arith.constant 0 : index
    %c0_18 = arith.constant 0 : index
    %c0_19 = arith.constant 0 : index
    %20 = vector.load %arg4[%c0_17, %c0_18, %c0_19] : memref<9x64x80xbf16, #tpu.memory_space<vmem>>, vector<1x64x80xbf16>
    %21 = vector.shape_cast %20 : vector<1x64x80xbf16> to vector<64x80xbf16>
    %cst_20 = arith.constant dense<0.000000e+00> : vector<256x80xf32>
    %22 = tpu.matmul %19, %21, %cst_20 {dimension_numbers = #tpu.dot_dimension_numbers<[1], [0], [0], [1], [0, 0, 1, 1], [], []>} : vector<256x64xbf16>, vector<64x80xbf16>, vector<256x80xf32> -> vector<256x80xf32>
    %23 = arith.addf %16, %22 : vector<256x80xf32>
    %c0_21 = arith.constant 0 : index
    %c1_22 = arith.constant 1 : index
    %c0_23 = arith.constant 0 : index
    %24 = vector.load %arg13[%c0_21, %c1_22, %c0_23] : memref<18x18x64xf32, #tpu.memory_space<vmem>>, vector<16x16x64xf32>
    %25 = vector.shape_cast %24 : vector<16x16x64xf32> to vector<256x64xf32>
    %26 = arith.truncf %25 : vector<256x64xf32> to vector<256x64xbf16>
    %c1_24 = arith.constant 1 : index
    %c0_25 = arith.constant 0 : index
    %c0_26 = arith.constant 0 : index
    %27 = vector.load %arg4[%c1_24, %c0_25, %c0_26] : memref<9x64x80xbf16, #tpu.memory_space<vmem>>, vector<1x64x80xbf16>
    %28 = vector.shape_cast %27 : vector<1x64x80xbf16> to vector<64x80xbf16>
    %cst_27 = arith.constant dense<0.000000e+00> : vector<256x80xf32>
    %29 = tpu.matmul %26, %28, %cst_27 {dimension_numbers = #tpu.dot_dimension_numbers<[1], [0], [0], [1], [0, 0, 1, 1], [], []>} : vector<256x64xbf16>, vector<64x80xbf16>, vector<256x80xf32> -> vector<256x80xf32>
    %30 = arith.addf %23, %29 : vector<256x80xf32>
    %c0_28 = arith.constant 0 : index
    %c2 = arith.constant 2 : index
    %c0_29 = arith.constant 0 : index
    %31 = vector.load %arg13[%c0_28, %c2, %c0_29] : memref<18x18x64xf32, #tpu.memory_space<vmem>>, vector<16x16x64xf32>
    %32 = vector.shape_cast %31 : vector<16x16x64xf32> to vector<256x64xf32>
    %33 = arith.truncf %32 : vector<256x64xf32> to vector<256x64xbf16>
    %c2_30 = arith.constant 2 : index
    %c0_31 = arith.constant 0 : index
    %c0_32 = arith.constant 0 : index
    %34 = vector.load %arg4[%c2_30, %c0_31, %c0_32] : memref<9x64x80xbf16, #tpu.memory_space<vmem>>, vector<1x64x80xbf16>
    %35 = vector.shape_cast %34 : vector<1x64x80xbf16> to vector<64x80xbf16>
    %cst_33 = arith.constant dense<0.000000e+00> : vector<256x80xf32>
    %36 = tpu.matmul %33, %35, %cst_33 {dimension_numbers = #tpu.dot_dimension_numbers<[1], [0], [0], [1], [0, 0, 1, 1], [], []>} : vector<256x64xbf16>, vector<64x80xbf16>, vector<256x80xf32> -> vector<256x80xf32>
    %37 = arith.addf %30, %36 : vector<256x80xf32>
    %c1_34 = arith.constant 1 : index
    %c0_35 = arith.constant 0 : index
    %c0_36 = arith.constant 0 : index
    %38 = vector.load %arg13[%c1_34, %c0_35, %c0_36] : memref<18x18x64xf32, #tpu.memory_space<vmem>>, vector<16x16x64xf32>
    %39 = vector.shape_cast %38 : vector<16x16x64xf32> to vector<256x64xf32>
    %40 = arith.truncf %39 : vector<256x64xf32> to vector<256x64xbf16>
    %c3 = arith.constant 3 : index
    %c0_37 = arith.constant 0 : index
    %c0_38 = arith.constant 0 : index
    %41 = vector.load %arg4[%c3, %c0_37, %c0_38] : memref<9x64x80xbf16, #tpu.memory_space<vmem>>, vector<1x64x80xbf16>
    %42 = vector.shape_cast %41 : vector<1x64x80xbf16> to vector<64x80xbf16>
    %cst_39 = arith.constant dense<0.000000e+00> : vector<256x80xf32>
    %43 = tpu.matmul %40, %42, %cst_39 {dimension_numbers = #tpu.dot_dimension_numbers<[1], [0], [0], [1], [0, 0, 1, 1], [], []>} : vector<256x64xbf16>, vector<64x80xbf16>, vector<256x80xf32> -> vector<256x80xf32>
    %44 = arith.addf %37, %43 : vector<256x80xf32>
    %c1_40 = arith.constant 1 : index
    %c1_41 = arith.constant 1 : index
    %c0_42 = arith.constant 0 : index
    %45 = vector.load %arg13[%c1_40, %c1_41, %c0_42] : memref<18x18x64xf32, #tpu.memory_space<vmem>>, vector<16x16x64xf32>
    %46 = vector.shape_cast %45 : vector<16x16x64xf32> to vector<256x64xf32>
    %47 = arith.truncf %46 : vector<256x64xf32> to vector<256x64xbf16>
    %c4 = arith.constant 4 : index
    %c0_43 = arith.constant 0 : index
    %c0_44 = arith.constant 0 : index
    %48 = vector.load %arg4[%c4, %c0_43, %c0_44] : memref<9x64x80xbf16, #tpu.memory_space<vmem>>, vector<1x64x80xbf16>
    %49 = vector.shape_cast %48 : vector<1x64x80xbf16> to vector<64x80xbf16>
    %cst_45 = arith.constant dense<0.000000e+00> : vector<256x80xf32>
    %50 = tpu.matmul %47, %49, %cst_45 {dimension_numbers = #tpu.dot_dimension_numbers<[1], [0], [0], [1], [0, 0, 1, 1], [], []>} : vector<256x64xbf16>, vector<64x80xbf16>, vector<256x80xf32> -> vector<256x80xf32>
    %51 = arith.addf %44, %50 : vector<256x80xf32>
    %c1_46 = arith.constant 1 : index
    %c2_47 = arith.constant 2 : index
    %c0_48 = arith.constant 0 : index
    %52 = vector.load %arg13[%c1_46, %c2_47, %c0_48] : memref<18x18x64xf32, #tpu.memory_space<vmem>>, vector<16x16x64xf32>
    %53 = vector.shape_cast %52 : vector<16x16x64xf32> to vector<256x64xf32>
    %54 = arith.truncf %53 : vector<256x64xf32> to vector<256x64xbf16>
    %c5 = arith.constant 5 : index
    %c0_49 = arith.constant 0 : index
    %c0_50 = arith.constant 0 : index
    %55 = vector.load %arg4[%c5, %c0_49, %c0_50] : memref<9x64x80xbf16, #tpu.memory_space<vmem>>, vector<1x64x80xbf16>
    %56 = vector.shape_cast %55 : vector<1x64x80xbf16> to vector<64x80xbf16>
    %cst_51 = arith.constant dense<0.000000e+00> : vector<256x80xf32>
    %57 = tpu.matmul %54, %56, %cst_51 {dimension_numbers = #tpu.dot_dimension_numbers<[1], [0], [0], [1], [0, 0, 1, 1], [], []>} : vector<256x64xbf16>, vector<64x80xbf16>, vector<256x80xf32> -> vector<256x80xf32>
    %58 = arith.addf %51, %57 : vector<256x80xf32>
    %c2_52 = arith.constant 2 : index
    %c0_53 = arith.constant 0 : index
    %c0_54 = arith.constant 0 : index
    %59 = vector.load %arg13[%c2_52, %c0_53, %c0_54] : memref<18x18x64xf32, #tpu.memory_space<vmem>>, vector<16x16x64xf32>
    %60 = vector.shape_cast %59 : vector<16x16x64xf32> to vector<256x64xf32>
    %61 = arith.truncf %60 : vector<256x64xf32> to vector<256x64xbf16>
    %c6 = arith.constant 6 : index
    %c0_55 = arith.constant 0 : index
    %c0_56 = arith.constant 0 : index
    %62 = vector.load %arg4[%c6, %c0_55, %c0_56] : memref<9x64x80xbf16, #tpu.memory_space<vmem>>, vector<1x64x80xbf16>
    %63 = vector.shape_cast %62 : vector<1x64x80xbf16> to vector<64x80xbf16>
    %cst_57 = arith.constant dense<0.000000e+00> : vector<256x80xf32>
    %64 = tpu.matmul %61, %63, %cst_57 {dimension_numbers = #tpu.dot_dimension_numbers<[1], [0], [0], [1], [0, 0, 1, 1], [], []>} : vector<256x64xbf16>, vector<64x80xbf16>, vector<256x80xf32> -> vector<256x80xf32>
    %65 = arith.addf %58, %64 : vector<256x80xf32>
    %c2_58 = arith.constant 2 : index
    %c1_59 = arith.constant 1 : index
    %c0_60 = arith.constant 0 : index
    %66 = vector.load %arg13[%c2_58, %c1_59, %c0_60] : memref<18x18x64xf32, #tpu.memory_space<vmem>>, vector<16x16x64xf32>
    %67 = vector.shape_cast %66 : vector<16x16x64xf32> to vector<256x64xf32>
    %68 = arith.truncf %67 : vector<256x64xf32> to vector<256x64xbf16>
    %c7 = arith.constant 7 : index
    %c0_61 = arith.constant 0 : index
    %c0_62 = arith.constant 0 : index
    %69 = vector.load %arg4[%c7, %c0_61, %c0_62] : memref<9x64x80xbf16, #tpu.memory_space<vmem>>, vector<1x64x80xbf16>
    %70 = vector.shape_cast %69 : vector<1x64x80xbf16> to vector<64x80xbf16>
    %cst_63 = arith.constant dense<0.000000e+00> : vector<256x80xf32>
    %71 = tpu.matmul %68, %70, %cst_63 {dimension_numbers = #tpu.dot_dimension_numbers<[1], [0], [0], [1], [0, 0, 1, 1], [], []>} : vector<256x64xbf16>, vector<64x80xbf16>, vector<256x80xf32> -> vector<256x80xf32>
    %72 = arith.addf %65, %71 : vector<256x80xf32>
    %c2_64 = arith.constant 2 : index
    %c2_65 = arith.constant 2 : index
    %c0_66 = arith.constant 0 : index
    %73 = vector.load %arg13[%c2_64, %c2_65, %c0_66] : memref<18x18x64xf32, #tpu.memory_space<vmem>>, vector<16x16x64xf32>
    %74 = vector.shape_cast %73 : vector<16x16x64xf32> to vector<256x64xf32>
    %75 = arith.truncf %74 : vector<256x64xf32> to vector<256x64xbf16>
    %c8 = arith.constant 8 : index
    %c0_67 = arith.constant 0 : index
    %c0_68 = arith.constant 0 : index
    %76 = vector.load %arg4[%c8, %c0_67, %c0_68] : memref<9x64x80xbf16, #tpu.memory_space<vmem>>, vector<1x64x80xbf16>
    %77 = vector.shape_cast %76 : vector<1x64x80xbf16> to vector<64x80xbf16>
    %cst_69 = arith.constant dense<0.000000e+00> : vector<256x80xf32>
    %78 = tpu.matmul %75, %77, %cst_69 {dimension_numbers = #tpu.dot_dimension_numbers<[1], [0], [0], [1], [0, 0, 1, 1], [], []>} : vector<256x64xbf16>, vector<64x80xbf16>, vector<256x80xf32> -> vector<256x80xf32>
    %79 = arith.addf %72, %78 : vector<256x80xf32>
    %c0_70 = arith.constant 0 : index
    %c0_71 = arith.constant 0 : index
    %80 = vector.load %arg5[%c0_70, %c0_71] : memref<1x80xf32, #tpu.memory_space<vmem>>, vector<1x80xf32>
    %81 = vector.broadcast %80 : vector<1x80xf32> to vector<256x80xf32>
    %82 = arith.addf %79, %81 : vector<256x80xf32>
    %cst_72 = arith.constant 0.000000e+00 : f32
    %83 = vector.broadcast %cst_72 : f32 to vector<256x80xf32>
    %84 = arith.maximumf %82, %83 : vector<256x80xf32>
    %85 = vector.extract_strided_slice %84 {offsets = [0, 0], sizes = [256, 32], strides = [1, 1]} : vector<256x80xf32> to vector<256x32xf32>
    %86 = vector.extract_strided_slice %84 {offsets = [0, 32], sizes = [256, 48], strides = [1, 1]} : vector<256x80xf32> to vector<256x48xf32>
    %cst_73 = arith.constant 0.000000e+00 : f32
    %87 = vector.broadcast %cst_73 : f32 to vector<18x18x48xf32>
    %c0_74 = arith.constant 0 : index
    %c0_75 = arith.constant 0 : index
    %c0_76 = arith.constant 0 : index
    %88 = vector.load %arg14[%c0_74, %c0_75, %c0_76] : memref<18x18x48xf32, #tpu.memory_space<vmem>>, vector<18x18x48xf32>
    tpu.vector_store %arg14[%c0_74, %c0_75, %c0_76], %87 {strides = array<i32>} : memref<18x18x48xf32, #tpu.memory_space<vmem>>, vector<18x18x48xf32>,
    %89 = vector.shape_cast %86 : vector<256x48xf32> to vector<16x16x48xf32>
    %c1_77 = arith.constant 1 : index
    %c1_78 = arith.constant 1 : index
    %c0_79 = arith.constant 0 : index
    %90 = vector.load %arg14[%c1_77, %c1_78, %c0_79] : memref<18x18x48xf32, #tpu.memory_space<vmem>>, vector<16x16x48xf32>
    tpu.vector_store %arg14[%c1_77, %c1_78, %c0_79], %89 {strides = array<i32>} : memref<18x18x48xf32, #tpu.memory_space<vmem>>, vector<16x16x48xf32>,
    %cst_80 = arith.constant 0.000000e+00 : f32
    %91 = vector.broadcast %cst_80 : f32 to vector<256x64xf32>
    %c0_81 = arith.constant 0 : index
    %c0_82 = arith.constant 0 : index
    %c0_83 = arith.constant 0 : index
    %92 = vector.load %arg14[%c0_81, %c0_82, %c0_83] : memref<18x18x48xf32, #tpu.memory_space<vmem>>, vector<16x16x48xf32>
    %93 = vector.shape_cast %92 : vector<16x16x48xf32> to vector<256x48xf32>
    %94 = arith.truncf %93 : vector<256x48xf32> to vector<256x48xbf16>
    %c0_84 = arith.constant 0 : index
    %c0_85 = arith.constant 0 : index
    %c0_86 = arith.constant 0 : index
    %95 = vector.load %arg6[%c0_84, %c0_85, %c0_86] : memref<9x48x64xbf16, #tpu.memory_space<vmem>>, vector<1x48x64xbf16>
    %96 = vector.shape_cast %95 : vector<1x48x64xbf16> to vector<48x64xbf16>
    %cst_87 = arith.constant dense<0.000000e+00> : vector<256x64xf32>
    %97 = tpu.matmul %94, %96, %cst_87 {dimension_numbers = #tpu.dot_dimension_numbers<[1], [0], [0], [1], [0, 0, 1, 1], [], []>} : vector<256x48xbf16>, vector<48x64xbf16>, vector<256x64xf32> -> vector<256x64xf32>
    %98 = arith.addf %91, %97 : vector<256x64xf32>
    %c0_88 = arith.constant 0 : index
    %c1_89 = arith.constant 1 : index
    %c0_90 = arith.constant 0 : index
    %99 = vector.load %arg14[%c0_88, %c1_89, %c0_90] : memref<18x18x48xf32, #tpu.memory_space<vmem>>, vector<16x16x48xf32>
    %100 = vector.shape_cast %99 : vector<16x16x48xf32> to vector<256x48xf32>
    %101 = arith.truncf %100 : vector<256x48xf32> to vector<256x48xbf16>
    %c1_91 = arith.constant 1 : index
    %c0_92 = arith.constant 0 : index
    %c0_93 = arith.constant 0 : index
    %102 = vector.load %arg6[%c1_91, %c0_92, %c0_93] : memref<9x48x64xbf16, #tpu.memory_space<vmem>>, vector<1x48x64xbf16>
    %103 = vector.shape_cast %102 : vector<1x48x64xbf16> to vector<48x64xbf16>
    %cst_94 = arith.constant dense<0.000000e+00> : vector<256x64xf32>
    %104 = tpu.matmul %101, %103, %cst_94 {dimension_numbers = #tpu.dot_dimension_numbers<[1], [0], [0], [1], [0, 0, 1, 1], [], []>} : vector<256x48xbf16>, vector<48x64xbf16>, vector<256x64xf32> -> vector<256x64xf32>
    %105 = arith.addf %98, %104 : vector<256x64xf32>
    %c0_95 = arith.constant 0 : index
    %c2_96 = arith.constant 2 : index
    %c0_97 = arith.constant 0 : index
    %106 = vector.load %arg14[%c0_95, %c2_96, %c0_97] : memref<18x18x48xf32, #tpu.memory_space<vmem>>, vector<16x16x48xf32>
    %107 = vector.shape_cast %106 : vector<16x16x48xf32> to vector<256x48xf32>
    %108 = arith.truncf %107 : vector<256x48xf32> to vector<256x48xbf16>
    %c2_98 = arith.constant 2 : index
    %c0_99 = arith.constant 0 : index
    %c0_100 = arith.constant 0 : index
    %109 = vector.load %arg6[%c2_98, %c0_99, %c0_100] : memref<9x48x64xbf16, #tpu.memory_space<vmem>>, vector<1x48x64xbf16>
    %110 = vector.shape_cast %109 : vector<1x48x64xbf16> to vector<48x64xbf16>
    %cst_101 = arith.constant dense<0.000000e+00> : vector<256x64xf32>
    %111 = tpu.matmul %108, %110, %cst_101 {dimension_numbers = #tpu.dot_dimension_numbers<[1], [0], [0], [1], [0, 0, 1, 1], [], []>} : vector<256x48xbf16>, vector<48x64xbf16>, vector<256x64xf32> -> vector<256x64xf32>
    %112 = arith.addf %105, %111 : vector<256x64xf32>
    %c1_102 = arith.constant 1 : index
    %c0_103 = arith.constant 0 : index
    %c0_104 = arith.constant 0 : index
    %113 = vector.load %arg14[%c1_102, %c0_103, %c0_104] : memref<18x18x48xf32, #tpu.memory_space<vmem>>, vector<16x16x48xf32>
    %114 = vector.shape_cast %113 : vector<16x16x48xf32> to vector<256x48xf32>
    %115 = arith.truncf %114 : vector<256x48xf32> to vector<256x48xbf16>
    %c3_105 = arith.constant 3 : index
    %c0_106 = arith.constant 0 : index
    %c0_107 = arith.constant 0 : index
    %116 = vector.load %arg6[%c3_105, %c0_106, %c0_107] : memref<9x48x64xbf16, #tpu.memory_space<vmem>>, vector<1x48x64xbf16>
    %117 = vector.shape_cast %116 : vector<1x48x64xbf16> to vector<48x64xbf16>
    %cst_108 = arith.constant dense<0.000000e+00> : vector<256x64xf32>
    %118 = tpu.matmul %115, %117, %cst_108 {dimension_numbers = #tpu.dot_dimension_numbers<[1], [0], [0], [1], [0, 0, 1, 1], [], []>} : vector<256x48xbf16>, vector<48x64xbf16>, vector<256x64xf32> -> vector<256x64xf32>
    %119 = arith.addf %112, %118 : vector<256x64xf32>
    %c1_109 = arith.constant 1 : index
    %c1_110 = arith.constant 1 : index
    %c0_111 = arith.constant 0 : index
    %120 = vector.load %arg14[%c1_109, %c1_110, %c0_111] : memref<18x18x48xf32, #tpu.memory_space<vmem>>, vector<16x16x48xf32>
    %121 = vector.shape_cast %120 : vector<16x16x48xf32> to vector<256x48xf32>
    %122 = arith.truncf %121 : vector<256x48xf32> to vector<256x48xbf16>
    %c4_112 = arith.constant 4 : index
    %c0_113 = arith.constant 0 : index
    %c0_114 = arith.constant 0 : index
    %123 = vector.load %arg6[%c4_112, %c0_113, %c0_114] : memref<9x48x64xbf16, #tpu.memory_space<vmem>>, vector<1x48x64xbf16>
    %124 = vector.shape_cast %123 : vector<1x48x64xbf16> to vector<48x64xbf16>
    %cst_115 = arith.constant dense<0.000000e+00> : vector<256x64xf32>
    %125 = tpu.matmul %122, %124, %cst_115 {dimension_numbers = #tpu.dot_dimension_numbers<[1], [0], [0], [1], [0, 0, 1, 1], [], []>} : vector<256x48xbf16>, vector<48x64xbf16>, vector<256x64xf32> -> vector<256x64xf32>
    %126 = arith.addf %119, %125 : vector<256x64xf32>
    %c1_116 = arith.constant 1 : index
    %c2_117 = arith.constant 2 : index
    %c0_118 = arith.constant 0 : index
    %127 = vector.load %arg14[%c1_116, %c2_117, %c0_118] : memref<18x18x48xf32, #tpu.memory_space<vmem>>, vector<16x16x48xf32>
    %128 = vector.shape_cast %127 : vector<16x16x48xf32> to vector<256x48xf32>
    %129 = arith.truncf %128 : vector<256x48xf32> to vector<256x48xbf16>
    %c5_119 = arith.constant 5 : index
    %c0_120 = arith.constant 0 : index
    %c0_121 = arith.constant 0 : index
    %130 = vector.load %arg6[%c5_119, %c0_120, %c0_121] : memref<9x48x64xbf16, #tpu.memory_space<vmem>>, vector<1x48x64xbf16>
    %131 = vector.shape_cast %130 : vector<1x48x64xbf16> to vector<48x64xbf16>
    %cst_122 = arith.constant dense<0.000000e+00> : vector<256x64xf32>
    %132 = tpu.matmul %129, %131, %cst_122 {dimension_numbers = #tpu.dot_dimension_numbers<[1], [0], [0], [1], [0, 0, 1, 1], [], []>} : vector<256x48xbf16>, vector<48x64xbf16>, vector<256x64xf32> -> vector<256x64xf32>
    %133 = arith.addf %126, %132 : vector<256x64xf32>
    %c2_123 = arith.constant 2 : index
    %c0_124 = arith.constant 0 : index
    %c0_125 = arith.constant 0 : index
    %134 = vector.load %arg14[%c2_123, %c0_124, %c0_125] : memref<18x18x48xf32, #tpu.memory_space<vmem>>, vector<16x16x48xf32>
    %135 = vector.shape_cast %134 : vector<16x16x48xf32> to vector<256x48xf32>
    %136 = arith.truncf %135 : vector<256x48xf32> to vector<256x48xbf16>
    %c6_126 = arith.constant 6 : index
    %c0_127 = arith.constant 0 : index
    %c0_128 = arith.constant 0 : index
    %137 = vector.load %arg6[%c6_126, %c0_127, %c0_128] : memref<9x48x64xbf16, #tpu.memory_space<vmem>>, vector<1x48x64xbf16>
    %138 = vector.shape_cast %137 : vector<1x48x64xbf16> to vector<48x64xbf16>
    %cst_129 = arith.constant dense<0.000000e+00> : vector<256x64xf32>
    %139 = tpu.matmul %136, %138, %cst_129 {dimension_numbers = #tpu.dot_dimension_numbers<[1], [0], [0], [1], [0, 0, 1, 1], [], []>} : vector<256x48xbf16>, vector<48x64xbf16>, vector<256x64xf32> -> vector<256x64xf32>
    %140 = arith.addf %133, %139 : vector<256x64xf32>
    %c2_130 = arith.constant 2 : index
    %c1_131 = arith.constant 1 : index
    %c0_132 = arith.constant 0 : index
    %141 = vector.load %arg14[%c2_130, %c1_131, %c0_132] : memref<18x18x48xf32, #tpu.memory_space<vmem>>, vector<16x16x48xf32>
    %142 = vector.shape_cast %141 : vector<16x16x48xf32> to vector<256x48xf32>
    %143 = arith.truncf %142 : vector<256x48xf32> to vector<256x48xbf16>
    %c7_133 = arith.constant 7 : index
    %c0_134 = arith.constant 0 : index
    %c0_135 = arith.constant 0 : index
    %144 = vector.load %arg6[%c7_133, %c0_134, %c0_135] : memref<9x48x64xbf16, #tpu.memory_space<vmem>>, vector<1x48x64xbf16>
    %145 = vector.shape_cast %144 : vector<1x48x64xbf16> to vector<48x64xbf16>
    %cst_136 = arith.constant dense<0.000000e+00> : vector<256x64xf32>
    %146 = tpu.matmul %143, %145, %cst_136 {dimension_numbers = #tpu.dot_dimension_numbers<[1], [0], [0], [1], [0, 0, 1, 1], [], []>} : vector<256x48xbf16>, vector<48x64xbf16>, vector<256x64xf32> -> vector<256x64xf32>
    %147 = arith.addf %140, %146 : vector<256x64xf32>
    %c2_137 = arith.constant 2 : index
    %c2_138 = arith.constant 2 : index
    %c0_139 = arith.constant 0 : index
    %148 = vector.load %arg14[%c2_137, %c2_138, %c0_139] : memref<18x18x48xf32, #tpu.memory_space<vmem>>, vector<16x16x48xf32>
    %149 = vector.shape_cast %148 : vector<16x16x48xf32> to vector<256x48xf32>
    %150 = arith.truncf %149 : vector<256x48xf32> to vector<256x48xbf16>
    %c8_140 = arith.constant 8 : index
    %c0_141 = arith.constant 0 : index
    %c0_142 = arith.constant 0 : index
    %151 = vector.load %arg6[%c8_140, %c0_141, %c0_142] : memref<9x48x64xbf16, #tpu.memory_space<vmem>>, vector<1x48x64xbf16>
    %152 = vector.shape_cast %151 : vector<1x48x64xbf16> to vector<48x64xbf16>
    %cst_143 = arith.constant dense<0.000000e+00> : vector<256x64xf32>
    %153 = tpu.matmul %150, %152, %cst_143 {dimension_numbers = #tpu.dot_dimension_numbers<[1], [0], [0], [1], [0, 0, 1, 1], [], []>} : vector<256x48xbf16>, vector<48x64xbf16>, vector<256x64xf32> -> vector<256x64xf32>
    %154 = arith.addf %147, %153 : vector<256x64xf32>
    %c0_144 = arith.constant 0 : index
    %c0_145 = arith.constant 0 : index
    %155 = vector.load %arg7[%c0_144, %c0_145] : memref<1x64xf32, #tpu.memory_space<vmem>>, vector<1x64xf32>
    %156 = vector.broadcast %155 : vector<1x64xf32> to vector<256x64xf32>
    %157 = arith.addf %154, %156 : vector<256x64xf32>
    %cst_146 = arith.constant 0.000000e+00 : f32
    %158 = vector.broadcast %cst_146 : f32 to vector<256x64xf32>
    %159 = arith.maximumf %157, %158 : vector<256x64xf32>
    %160 = arith.truncf %11 : vector<256x32xf32> to vector<256x32xbf16>
    %c0_147 = arith.constant 0 : index
    %c0_148 = arith.constant 0 : index
    %161 = vector.load %arg8[%c0_147, %c0_148] : memref<32x320xbf16, #tpu.memory_space<vmem>>, vector<32x320xbf16>
    %cst_149 = arith.constant dense<0.000000e+00> : vector<256x320xf32>
    %162 = tpu.matmul %160, %161, %cst_149 {dimension_numbers = #tpu.dot_dimension_numbers<[1], [0], [0], [1], [0, 0, 1, 1], [], []>} : vector<256x32xbf16>, vector<32x320xbf16>, vector<256x320xf32> -> vector<256x320xf32>
    %163 = arith.truncf %85 : vector<256x32xf32> to vector<256x32xbf16>
    %c0_150 = arith.constant 0 : index
    %c0_151 = arith.constant 0 : index
    %164 = vector.load %arg9[%c0_150, %c0_151] : memref<32x320xbf16, #tpu.memory_space<vmem>>, vector<32x320xbf16>
    %cst_152 = arith.constant dense<0.000000e+00> : vector<256x320xf32>
    %165 = tpu.matmul %163, %164, %cst_152 {dimension_numbers = #tpu.dot_dimension_numbers<[1], [0], [0], [1], [0, 0, 1, 1], [], []>} : vector<256x32xbf16>, vector<32x320xbf16>, vector<256x320xf32> -> vector<256x320xf32>
    %166 = arith.addf %162, %165 : vector<256x320xf32>
    %167 = arith.truncf %159 : vector<256x64xf32> to vector<256x64xbf16>
    %c0_153 = arith.constant 0 : index
    %c0_154 = arith.constant 0 : index
    %168 = vector.load %arg10[%c0_153, %c0_154] : memref<64x320xbf16, #tpu.memory_space<vmem>>, vector<64x320xbf16>
    %cst_155 = arith.constant dense<0.000000e+00> : vector<256x320xf32>
    %169 = tpu.matmul %167, %168, %cst_155 {dimension_numbers = #tpu.dot_dimension_numbers<[1], [0], [0], [1], [0, 0, 1, 1], [], []>} : vector<256x64xbf16>, vector<64x320xbf16>, vector<256x320xf32> -> vector<256x320xf32>
    %170 = arith.addf %166, %169 : vector<256x320xf32>
    %c0_156 = arith.constant 0 : index
    %c0_157 = arith.constant 0 : index
    %171 = vector.load %arg11[%c0_156, %c0_157] : memref<1x320xf32, #tpu.memory_space<vmem>>, vector<1x320xf32>
    %172 = vector.broadcast %171 : vector<1x320xf32> to vector<256x320xf32>
    %173 = arith.addf %170, %172 : vector<256x320xf32>
    %174 = arith.addf %173, %1 : vector<256x320xf32>
    %cst_158 = arith.constant 0.000000e+00 : f32
    %175 = vector.broadcast %cst_158 : f32 to vector<256x320xf32>
    %176 = arith.maximumf %174, %175 : vector<256x320xf32>
    %c0_159 = arith.constant 0 : index
    %c0_160 = arith.constant 0 : index
    %c0_161 = arith.constant 0 : index
    %177 = vector.load %arg12[%c0_159, %c0_160, %c0_161] : memref<1x256x320xf32, #tpu.memory_space<vmem>>, vector<1x256x320xf32>
    %178 = vector.shape_cast %177 : vector<1x256x320xf32> to vector<256x320xf32>
    %179 = vector.shape_cast %176 : vector<256x320xf32> to vector<1x256x320xf32>
    tpu.vector_store %arg12[%c0_159, %c0_160, %c0_161], %179 {strides = array<i32>} : memref<1x256x320xf32, #tpu.memory_space<vmem>>, vector<1x256x320xf32>,
    return
  }
  func.func @transform_0(%arg0: i32) -> (i32, i32, i32) {
    %c0_i32 = arith.constant 0 : i32
    %c0_i32_0 = arith.constant 0 : i32
    %c0_i32_1 = arith.constant 0 : i32
    return %arg0, %c0_i32, %c0_i32_0 : i32, i32, i32
  }
  func.func @transform_1(%arg0: i32) -> (i32, i32) {
    %c0_i32 = arith.constant 0 : i32
    %c0_i32_0 = arith.constant 0 : i32
    %c0_i32_1 = arith.constant 0 : i32
    return %c0_i32, %c0_i32_0 : i32, i32
  }
  func.func @transform_2(%arg0: i32) -> (i32, i32) {
    %c0_i32 = arith.constant 0 : i32
    %c0_i32_0 = arith.constant 0 : i32
    %c0_i32_1 = arith.constant 0 : i32
    return %c0_i32, %c0_i32_0 : i32, i32
  }
  func.func @transform_3(%arg0: i32) -> (i32, i32, i32) {
    %c0_i32 = arith.constant 0 : i32
    %c0_i32_0 = arith.constant 0 : i32
    %c0_i32_1 = arith.constant 0 : i32
    %c0_i32_2 = arith.constant 0 : i32
    return %c0_i32, %c0_i32_0, %c0_i32_1 : i32, i32, i32
  }
  func.func @transform_4(%arg0: i32) -> (i32, i32) {
    %c0_i32 = arith.constant 0 : i32
    %c0_i32_0 = arith.constant 0 : i32
    %c0_i32_1 = arith.constant 0 : i32
    return %c0_i32, %c0_i32_0 : i32, i32
  }
  func.func @transform_5(%arg0: i32) -> (i32, i32, i32) {
    %c0_i32 = arith.constant 0 : i32
    %c0_i32_0 = arith.constant 0 : i32
    %c0_i32_1 = arith.constant 0 : i32
    %c0_i32_2 = arith.constant 0 : i32
    return %c0_i32, %c0_i32_0, %c0_i32_1 : i32, i32, i32
  }
  func.func @transform_6(%arg0: i32) -> (i32, i32) {
    %c0_i32 = arith.constant 0 : i32
    %c0_i32_0 = arith.constant 0 : i32
    %c0_i32_1 = arith.constant 0 : i32
    return %c0_i32, %c0_i32_0 : i32, i32
  }
  func.func @transform_7(%arg0: i32) -> (i32, i32) {
    %c0_i32 = arith.constant 0 : i32
    %c0_i32_0 = arith.constant 0 : i32
    %c0_i32_1 = arith.constant 0 : i32
    return %c0_i32, %c0_i32_0 : i32, i32
  }
  func.func @transform_8(%arg0: i32) -> (i32, i32) {
    %c0_i32 = arith.constant 0 : i32
    %c0_i32_0 = arith.constant 0 : i32
    %c0_i32_1 = arith.constant 0 : i32
    return %c0_i32, %c0_i32_0 : i32, i32
  }
  func.func @transform_9(%arg0: i32) -> (i32, i32) {
    %c0_i32 = arith.constant 0 : i32
    %c0_i32_0 = arith.constant 0 : i32
    %c0_i32_1 = arith.constant 0 : i32
    return %c0_i32, %c0_i32_0 : i32, i32
  }
  func.func @transform_10(%arg0: i32) -> (i32, i32) {
    %c0_i32 = arith.constant 0 : i32
    %c0_i32_0 = arith.constant 0 : i32
    %c0_i32_1 = arith.constant 0 : i32
    return %c0_i32, %c0_i32_0 : i32, i32
  }
  func.func @transform_11(%arg0: i32) -> (i32, i32, i32) {
    %c0_i32 = arith.constant 0 : i32
    %c0_i32_0 = arith.constant 0 : i32
    %c0_i32_1 = arith.constant 0 : i32
    return %arg0, %c0_i32, %c0_i32_0 : i32, i32, i32
  }
}

</mosaic_0001>

<llo_original>
// kernel: tpu_custom_call.1
$region0: #{tpu_custom_call.1}
  #allocation0 [shape = 'u32[]', space=smem, size = 0x4, offset = 0x4, fixed_abs, tag = 'smem constant byte address 0x4 - core index']
  #allocation1 [shape = 'u32[72,128]{1,0:T(1,128)}', space=vmem, size = 0x9000, scoped, tag = 'internal scratch']
  #allocation2 [shape = 'f32[18,18,64]{2,1,0:T(8,128)}', space=vmem, size = 0x36000, scoped, tag = 'scratch operand']
  #allocation3 [shape = 'f32[18,18,48]{2,1,0:T(8,128)}', space=vmem, size = 0x36000, scoped, tag = 'scratch operand']
  %s0 = inlined_call_operand.vmem [shape: f32[2,256,320], index: 0, kind: input, shape index: {}]
  %s1 = inlined_call_operand.vmem [shape: bf16[320,96], index: 1, kind: input, shape index: {}]
  %s2 = inlined_call_operand.vmem [shape: f32[1,96], index: 2, kind: input, shape index: {}]
  %s3 = inlined_call_operand.vmem [shape: bf16[9,64,80], index: 3, kind: input, shape index: {}]
  %s4 = inlined_call_operand.vmem [shape: f32[1,80], index: 4, kind: input, shape index: {}]
  %s5 = inlined_call_operand.vmem [shape: bf16[9,48,64], index: 5, kind: input, shape index: {}]
  %s6 = inlined_call_operand.vmem [shape: f32[1,64], index: 6, kind: input, shape index: {}]
  %s7 = inlined_call_operand.vmem [shape: bf16[32,320], index: 7, kind: input, shape index: {}]
  %s8 = inlined_call_operand.vmem [shape: bf16[32,320], index: 8, kind: input, shape index: {}]
  %s9 = inlined_call_operand.vmem [shape: bf16[64,320], index: 9, kind: input, shape index: {}]
  %s10 = inlined_call_operand.vmem [shape: f32[1,320], index: 10, kind: input, shape index: {}]
  %s11 = inlined_call_operand.vmem [shape: f32[2,256,320], index: 11, kind: output, shape index: {}]
  %s12 = sld [smem:[#allocation0]]
  $region77: #{tpu_custom_call.1} parent=0
    _
  %s14 = ssub.s32 1, %s12
  %s15 = scalar_select 0, %s14, %s12
  loop: start=0, step=1, limit=4
  $region2: #{tpu_custom_call.1} parent=0 // loop_pre_header
    _
  $region3: #{tpu_custom_call.1} parent=0 // loop_header
    %s17 = sphi 0, %s21
    %p18 = scmp.ge.s32.totalorder %s17, 4
    %s27 = sphi 0, %s29
    %s30 = sphi 0, %s27
    %s31 = sphi 0, %s30
    %s47 = sphi 0, %s31
    %s51 = sphi 0, %s51
    %s53 = sphi 0, %s51
    %s54 = sphi 0, %s53
    %s68 = sphi 0, %s54
    %s72 = sphi 0, %s72
    %s74 = sphi 0, %s72
    %s75 = sphi 0, %s74
    %s89 = sphi 0, %s75
    %s93 = sphi 0, %s93
    %s95 = sphi 0, %s93
    %s96 = sphi 0, %s95
    %s110 = sphi 0, %s96
    %s114 = sphi 0, %s114
    %s116 = sphi 0, %s114
    %s117 = sphi 0, %s116
    %s131 = sphi 0, %s117
    %s135 = sphi 0, %s135
    %s137 = sphi 0, %s135
    %s138 = sphi 0, %s137
    %s152 = sphi 0, %s138
    %s156 = sphi 0, %s156
    %s158 = sphi 0, %s156
    %s159 = sphi 0, %s158
    %s173 = sphi 0, %s159
    %s177 = sphi 0, %s177
    %s179 = sphi 0, %s177
    %s180 = sphi 0, %s179
    %s194 = sphi 0, %s180
    %s198 = sphi 0, %s198
    %s200 = sphi 0, %s198
    %s201 = sphi 0, %s200
    %s215 = sphi 0, %s201
    %s219 = sphi 0, %s219
    %s221 = sphi 0, %s219
    %s222 = sphi 0, %s221
    %s236 = sphi 0, %s222
    %s240 = sphi 0, %s240
    %s242 = sphi 0, %s240
    %s243 = sphi 0, %s242
    %s257 = sphi 0, %s243
    %s263 = sphi 0, %s265
    %s266 = sphi 0, %s263
    %s267 = sphi 0, %s266
    %s283 = sphi 0, %s267
  $region4: #{tpu_custom_call.1} parent=0 // loop_header_branch
    %20 = sbr.rel (%p18) target = $region8
  $region5: #{tpu_custom_call.1} parent=0 // loop_body
    %s22 = ssub.s32 %s17, 1
    %s23 = ssub.s32 %s17, 2
    %s24 = sadd.s32 %s17, 1
    %s25 = ssub.s32 %s17, %s24
    %p26 = scmp.eq.s32.totalorder %s25, 0
    %s28 = sadd.s32 %s27, 1
    %s29 = scalar_select %p26, %s27, %s28
    %p32 = pneg %p26
    %p33 = scmp.eq.s32.totalorder %s17, 1
    %p34 = por %p32, %p33
    %p35 = scmp.ne.s32.totalorder %s27, %s30
    %p36 = scmp.eq.s32.totalorder %s17, 0
    %p37 = por %p35, %p36
    %p38 = scmp.ne.s32.totalorder %s27, %s30
    %p39 = scmp.eq.s32.totalorder %s22, 1
    %p40 = por %p38, %p39
    %p41 = scmp.ne.s32.totalorder %s30, %s31
    %p42 = scmp.eq.s32.totalorder %s22, 0
    %p43 = por %p41, %p42
    %p44 = scmp.ne.s32.totalorder %s30, %s31
    %p45 = scmp.eq.s32.totalorder %s23, 1
    %p46 = por %p44, %p45
    %p48 = scmp.ne.s32.totalorder %s31, %s47
    %p49 = scmp.eq.s32.totalorder %s23, 0
    %p50 = por %p48, %p49
    %s52 = sadd.s32 %s51, 1
    %p55 = scmp.eq.s32.totalorder %s17, 1
    %p56 = scmp.ne.s32.totalorder %s51, %s53
    %p57 = scmp.eq.s32.totalorder %s17, 0
    %p58 = por %p56, %p57
    %p59 = scmp.ne.s32.totalorder %s51, %s53
    %p60 = scmp.eq.s32.totalorder %s22, 1
    %p61 = por %p59, %p60
    %p62 = scmp.ne.s32.totalorder %s53, %s54
    %p63 = scmp.eq.s32.totalorder %s22, 0
    %p64 = por %p62, %p63
    %p65 = scmp.ne.s32.totalorder %s53, %s54
    %p66 = scmp.eq.s32.totalorder %s23, 1
    %p67 = por %p65, %p66
    %p69 = scmp.ne.s32.totalorder %s54, %s68
    %p70 = scmp.eq.s32.totalorder %s23, 0
    %p71 = por %p69, %p70
    %s73 = sadd.s32 %s72, 1
    %p76 = scmp.eq.s32.totalorder %s17, 1
    %p77 = scmp.ne.s32.totalorder %s72, %s74
    %p78 = scmp.eq.s32.totalorder %s17, 0
    %p79 = por %p77, %p78
    %p80 = scmp.ne.s32.totalorder %s72, %s74
    %p81 = scmp.eq.s32.totalorder %s22, 1
    %p82 = por %p80, %p81
    %p83 = scmp.ne.s32.totalorder %s74, %s75
    %p84 = scmp.eq.s32.totalorder %s22, 0
    %p85 = por %p83, %p84
    %p86 = scmp.ne.s32.totalorder %s74, %s75
    %p87 = scmp.eq.s32.totalorder %s23, 1
    %p88 = por %p86, %p87
    %p90 = scmp.ne.s32.totalorder %s75, %s89
    %p91 = scmp.eq.s32.totalorder %s23, 0
    %p92 = por %p90, %p91
    %s94 = sadd.s32 %s93, 1
    %p97 = scmp.eq.s32.totalorder %s17, 1
    %p98 = scmp.ne.s32.totalorder %s93, %s95
    %p99 = scmp.eq.s32.totalorder %s17, 0
    %p100 = por %p98, %p99
    %p101 = scmp.ne.s32.totalorder %s93, %s95
    %p102 = scmp.eq.s32.totalorder %s22, 1
    %p103 = por %p101, %p102
    %p104 = scmp.ne.s32.totalorder %s95, %s96
    %p105 = scmp.eq.s32.totalorder %s22, 0
    %p106 = por %p104, %p105
    %p107 = scmp.ne.s32.totalorder %s95, %s96
    %p108 = scmp.eq.s32.totalorder %s23, 1
    %p109 = por %p107, %p108
    %p111 = scmp.ne.s32.totalorder %s96, %s110
    %p112 = scmp.eq.s32.totalorder %s23, 0
    %p113 = por %p111, %p112
    %s115 = sadd.s32 %s114, 1
    %p118 = scmp.eq.s32.totalorder %s17, 1
    %p119 = scmp.ne.s32.totalorder %s114, %s116
    %p120 = scmp.eq.s32.totalorder %s17, 0
    %p121 = por %p119, %p120
    %p122 = scmp.ne.s32.totalorder %s114, %s116
    %p123 = scmp.eq.s32.totalorder %s22, 1
    %p124 = por %p122, %p123
    %p125 = scmp.ne.s32.totalorder %s116, %s117
    %p126 = scmp.eq.s32.totalorder %s22, 0
    %p127 = por %p125, %p126
    %p128 = scmp.ne.s32.totalorder %s116, %s117
    %p129 = scmp.eq.s32.totalorder %s23, 1
    %p130 = por %p128, %p129
    %p132 = scmp.ne.s32.totalorder %s117, %s131
    %p133 = scmp.eq.s32.totalorder %s23, 0
    %p134 = por %p132, %p133
    %s136 = sadd.s32 %s135, 1
    %p139 = scmp.eq.s32.totalorder %s17, 1
    %p140 = scmp.ne.s32.totalorder %s135, %s137
    %p141 = scmp.eq.s32.totalorder %s17, 0
    %p142 = por %p140, %p141
    %p143 = scmp.ne.s32.totalorder %s135, %s137
    %p144 = scmp.eq.s32.totalorder %s22, 1
    %p145 = por %p143, %p144
    %p146 = scmp.ne.s32.totalorder %s137, %s138
    %p147 = scmp.eq.s32.totalorder %s22, 0
    %p148 = por %p146, %p147
    %p149 = scmp.ne.s32.totalorder %s137, %s138
    %p150 = scmp.eq.s32.totalorder %s23, 1
    %p151 = por %p149, %p150
    %p153 = scmp.ne.s32.totalorder %s138, %s152
    %p154 = scmp.eq.s32.totalorder %s23, 0
    %p155 = por %p153, %p154
    %s157 = sadd.s32 %s156, 1
    %p160 = scmp.eq.s32.totalorder %s17, 1
    %p161 = scmp.ne.s32.totalorder %s156, %s158
    %p162 = scmp.eq.s32.totalorder %s17, 0
    %p163 = por %p161, %p162
    %p164 = scmp.ne.s32.totalorder %s156, %s158
    %p165 = scmp.eq.s32.totalorder %s22, 1
    %p166 = por %p164, %p165
    %p167 = scmp.ne.s32.totalorder %s158, %s159
    %p168 = scmp.eq.s32.totalorder %s22, 0
    %p169 = por %p167, %p168
    %p170 = scmp.ne.s32.totalorder %s158, %s159
    %p171 = scmp.eq.s32.totalorder %s23, 1
    %p172 = por %p170, %p171
    %p174 = scmp.ne.s32.totalorder %s159, %s173
    %p175 = scmp.eq.s32.totalorder %s23, 0
    %p176 = por %p174, %p175
    %s178 = sadd.s32 %s177, 1
    %p181 = scmp.eq.s32.totalorder %s17, 1
    %p182 = scmp.ne.s32.totalorder %s177, %s179
    %p183 = scmp.eq.s32.totalorder %s17, 0
    %p184 = por %p182, %p183
    %p185 = scmp.ne.s32.totalorder %s177, %s179
    %p186 = scmp.eq.s32.totalorder %s22, 1
    %p187 = por %p185, %p186
    %p188 = scmp.ne.s32.totalorder %s179, %s180
    %p189 = scmp.eq.s32.totalorder %s22, 0
    %p190 = por %p188, %p189
    %p191 = scmp.ne.s32.totalorder %s179, %s180
    %p192 = scmp.eq.s32.totalorder %s23, 1
    %p193 = por %p191, %p192
    %p195 = scmp.ne.s32.totalorder %s180, %s194
    %p196 = scmp.eq.s32.totalorder %s23, 0
    %p197 = por %p195, %p196
    %s199 = sadd.s32 %s198, 1
    %p202 = scmp.eq.s32.totalorder %s17, 1
    %p203 = scmp.ne.s32.totalorder %s198, %s200
    %p204 = scmp.eq.s32.totalorder %s17, 0
    %p205 = por %p203, %p204
    %p206 = scmp.ne.s32.totalorder %s198, %s200
    %p207 = scmp.eq.s32.totalorder %s22, 1
    %p208 = por %p206, %p207
    %p209 = scmp.ne.s32.totalorder %s200, %s201
    %p210 = scmp.eq.s32.totalorder %s22, 0
    %p211 = por %p209, %p210
    %p212 = scmp.ne.s32.totalorder %s200, %s201
    %p213 = scmp.eq.s32.totalorder %s23, 1
    %p214 = por %p212, %p213
    %p216 = scmp.ne.s32.totalorder %s201, %s215
    %p217 = scmp.eq.s32.totalorder %s23, 0
    %p218 = por %p216, %p217
    %s220 = sadd.s32 %s219, 1
    %p223 = scmp.eq.s32.totalorder %s17, 1
    %p224 = scmp.ne.s32.totalorder %s219, %s221
    %p225 = scmp.eq.s32.totalorder %s17, 0
    %p226 = por %p224, %p225
    %p227 = scmp.ne.s32.totalorder %s219, %s221
    %p228 = scmp.eq.s32.totalorder %s22, 1
    %p229 = por %p227, %p228
    %p230 = scmp.ne.s32.totalorder %s221, %s222
    %p231 = scmp.eq.s32.totalorder %s22, 0
    %p232 = por %p230, %p231
    %p233 = scmp.ne.s32.totalorder %s221, %s222
    %p234 = scmp.eq.s32.totalorder %s23, 1
    %p235 = por %p233, %p234
    %p237 = scmp.ne.s32.totalorder %s222, %s236
    %p238 = scmp.eq.s32.totalorder %s23, 0
    %p239 = por %p237, %p238
    %s241 = sadd.s32 %s240, 1
    %p244 = scmp.eq.s32.totalorder %s17, 1
    %p245 = scmp.ne.s32.totalorder %s240, %s242
    %p246 = scmp.eq.s32.totalorder %s17, 0
    %p247 = por %p245, %p246
    %p248 = scmp.ne.s32.totalorder %s240, %s242
    %p249 = scmp.eq.s32.totalorder %s22, 1
    %p250 = por %p248, %p249
    %p251 = scmp.ne.s32.totalorder %s242, %s243
    %p252 = scmp.eq.s32.totalorder %s22, 0
    %p253 = por %p251, %p252
    %p254 = scmp.ne.s32.totalorder %s242, %s243
    %p255 = scmp.eq.s32.totalorder %s23, 1
    %p256 = por %p254, %p255
    %p258 = scmp.ne.s32.totalorder %s243, %s257
    %p259 = scmp.eq.s32.totalorder %s23, 0
    %p260 = por %p258, %p259
    %s261 = ssub.s32 %s17, %s24
    %p262 = scmp.eq.s32.totalorder %s261, 0
    %s264 = sadd.s32 %s263, 1
    %s265 = scalar_select %p262, %s263, %s264
    %p268 = pneg %p262
    %p269 = scmp.eq.s32.totalorder %s17, 1
    %p270 = por %p268, %p269
    %p271 = scmp.ne.s32.totalorder %s263, %s266
    %p272 = scmp.eq.s32.totalorder %s17, 0
    %p273 = por %p271, %p272
    %p274 = scmp.ne.s32.totalorder %s263, %s266
    %p275 = scmp.eq.s32.totalorder %s22, 1
    %p276 = por %p274, %p275
    %p277 = scmp.ne.s32.totalorder %s266, %s267
    %p278 = scmp.eq.s32.totalorder %s22, 0
    %p279 = por %p277, %p278
    %p280 = scmp.ne.s32.totalorder %s266, %s267
    %p281 = scmp.eq.s32.totalorder %s23, 1
    %p282 = por %p280, %p281
    %p284 = scmp.ne.s32.totalorder %s267, %s283
    %p285 = scmp.eq.s32.totalorder %s23, 0
    %p286 = por %p284, %p285
    %p287 = scmp.le.s32.totalorder 1, %s17
    %p288 = scmp.lt.s32.totalorder %s17, 3
    %p289 = pnand %p287, %p288
    %p290 = pneg %p289
    // Predicated region
    $region9: #{tpu_custom_call.1} parent=5 // pred_check
      _
    $region10: #{tpu_custom_call.1} parent=5 // pred_check_branch
      %292 = sbr.rel (%p289) target = $region12
    $region11: #{tpu_custom_call.1} parent=5 // pred_region
      %s293 = ssub.s32 %s17, 1
      // Predicated region
      $region13: #{tpu_custom_call.1} parent=11 // pred_check
        %p294 = pneg %p64
      $region14: #{tpu_custom_call.1} parent=11 // pred_check_branch
        %296 = sbr.rel (%p294) target = $region16
      $region15: #{tpu_custom_call.1} parent=11 // pred_region
        _
      $region16: #{tpu_custom_call.1} parent=11 // pred_fallthru
        _
      // Predicated region
      $region17: #{tpu_custom_call.1} parent=11 // pred_check
        %p297 = pneg %p85
      $region18: #{tpu_custom_call.1} parent=11 // pred_check_branch
        %299 = sbr.rel (%p297) target = $region20
      $region19: #{tpu_custom_call.1} parent=11 // pred_region
        _
      $region20: #{tpu_custom_call.1} parent=11 // pred_fallthru
        _
      // Predicated region
      $region21: #{tpu_custom_call.1} parent=11 // pred_check
        %p300 = pneg %p106
      $region22: #{tpu_custom_call.1} parent=11 // pred_check_branch
        %302 = sbr.rel (%p300) target = $region24
      $region23: #{tpu_custom_call.1} parent=11 // pred_region
        _
      $region24: #{tpu_custom_call.1} parent=11 // pred_fallthru
        _
      // Predicated region
      $region25: #{tpu_custom_call.1} parent=11 // pred_check
        %p303 = pneg %p127
      $region26: #{tpu_custom_call.1} parent=11 // pred_check_branch
        %305 = sbr.rel (%p303) target = $region28
      $region27: #{tpu_custom_call.1} parent=11 // pred_region
        _
      $region28: #{tpu_custom_call.1} parent=11 // pred_fallthru
        _
      // Predicated region
      $region29: #{tpu_custom_call.1} parent=11 // pred_check
        %p306 = pneg %p148
      $region30: #{tpu_custom_call.1} parent=11 // pred_check_branch
        %308 = sbr.rel (%p306) target = $region32
      $region31: #{tpu_custom_call.1} parent=11 // pred_region
        _
      $region32: #{tpu_custom_call.1} parent=11 // pred_fallthru
        _
      // Predicated region
      $region33: #{tpu_custom_call.1} parent=11 // pred_check
        %p309 = pneg %p169
      $region34: #{tpu_custom_call.1} parent=11 // pred_check_branch
        %311 = sbr.rel (%p309) target = $region36
      $region35: #{tpu_custom_call.1} parent=11 // pred_region
        _
      $region36: #{tpu_custom_call.1} parent=11 // pred_fallthru
        _
      // Predicated region
      $region37: #{tpu_custom_call.1} parent=11 // pred_check
        %p312 = pneg %p190
      $region38: #{tpu_custom_call.1} parent=11 // pred_check_branch
        %314 = sbr.rel (%p312) target = $region40
      $region39: #{tpu_custom_call.1} parent=11 // pred_region
        _
      $region40: #{tpu_custom_call.1} parent=11 // pred_fallthru
        _
      // Predicated region
      $region41: #{tpu_custom_call.1} parent=11 // pred_check
        %p315 = pneg %p211
      $region42: #{tpu_custom_call.1} parent=11 // pred_check_branch
        %317 = sbr.rel (%p315) target = $region44
      $region43: #{tpu_custom_call.1} parent=11 // pred_region
        _
      $region44: #{tpu_custom_call.1} parent=11 // pred_fallthru
        _
      // Predicated region
      $region45: #{tpu_custom_call.1} parent=11 // pred_check
        %p318 = pneg %p232
      $region46: #{tpu_custom_call.1} parent=11 // pred_check_branch
        %320 = sbr.rel (%p318) target = $region48
      $region47: #{tpu_custom_call.1} parent=11 // pred_region
        _
      $region48: #{tpu_custom_call.1} parent=11 // pred_fallthru
        _
      // Predicated region
      $region49: #{tpu_custom_call.1} parent=11 // pred_check
        %p321 = pneg %p253
      $region50: #{tpu_custom_call.1} parent=11 // pred_check_branch
        %323 = sbr.rel (%p321) target = $region52
      $region51: #{tpu_custom_call.1} parent=11 // pred_region
        _
      $region52: #{tpu_custom_call.1} parent=11 // pred_fallthru
        _
    $region12: #{tpu_custom_call.1} parent=5 // pred_fallthru
      _
    %p324 = scmp.lt.s32.totalorder %s17, 2
    // Predicated region
    $region53: #{tpu_custom_call.1} parent=5 // pred_check
      %p325 = pneg %p324
    $region54: #{tpu_custom_call.1} parent=5 // pred_check_branch
      %327 = sbr.rel (%p325) target = $region56
    $region55: #{tpu_custom_call.1} parent=5 // pred_region
      // Predicated region
      $region57: #{tpu_custom_call.1} parent=55 // pred_check
        %p328 = pneg %p37
      $region58: #{tpu_custom_call.1} parent=55 // pred_check_branch
        %330 = sbr.rel (%p328) target = $region60
      $region59: #{tpu_custom_call.1} parent=55 // pred_region
        %p331 = scmp.lt.s32.totalorder %s17, 1
        %s332 = scalar_select %p331, %s17, 1
        %s333 = smul.addr %s332, 96
        %s334 = smul.addr %s333, 8
        %s335 = scalar_lea.vmem %s0, %s334
      $region60: #{tpu_custom_call.1} parent=55 // pred_fallthru
        _
    $region56: #{tpu_custom_call.1} parent=5 // pred_fallthru
      _
    %p336 = scmp.le.s32.totalorder 1, %s17
    %p337 = scmp.lt.s32.totalorder %s17, 3
    %p338 = pnand %p336, %p337
    %p339 = pneg %p338
    // Predicated region
    $region61: #{tpu_custom_call.1} parent=5 // pred_check
      _
    $region62: #{tpu_custom_call.1} parent=5 // pred_check_branch
      %341 = sbr.rel (%p338) target = $region64
    $region63: #{tpu_custom_call.1} parent=5 // pred_region
      %s342 = ssub.s32 %s17, 1
      %p343 = scmp.lt.s32.totalorder %s22, 1
      %s344 = scalar_select %p343, %s22, 1
      %s345 = smul.addr %s344, 96
      %s346 = smul.addr %s345, 8
      %s347 = scalar_lea.vmem %s0, %s346
      %p348 = pneg %p43
      %p349 = pneg %p40
      %p350 = pneg %p64
      %p351 = pneg %p61
      %p352 = pneg %p85
      %p353 = pneg %p82
      %p354 = pneg %p106
      %p355 = pneg %p103
      %p356 = pneg %p127
      %p357 = pneg %p124
      %p358 = pneg %p148
      %p359 = pneg %p145
      %p360 = pneg %p169
      %p361 = pneg %p166
      %p362 = pneg %p190
      %p363 = pneg %p187
      %p364 = pneg %p211
      %p365 = pneg %p208
      %p366 = pneg %p232
      %p367 = pneg %p229
      %p368 = pneg %p253
      %p369 = pneg %p250
      %p370 = pneg %p279
      %p371 = pneg %p276
      %p372 = scmp.lt.s32.totalorder %s22, 1
      %s373 = scalar_select %p372, %s22, 1
      %s374 = smul.addr %s373, 96
      %s375 = smul.addr %s374, 8
      %s376 = scalar_lea.vmem %s11, %s375
      %p377 = scmp.lt.s32.totalorder %s22, 1
      %s378 = scalar_select %p377, %s22, 1
      %s379 = smul.addr %s378, 96
      %s380 = smul.addr %s379, 8
      %s381 = scalar_lea.vmem %s0, %s380
      %p382 = scmp.lt.s32.totalorder %s22, 1
      %s383 = scalar_select %p382, %s22, 1
      %s384 = smul.addr %s383, 96
      %s385 = smul.addr %s384, 8
      %s386 = scalar_lea.vmem %s11, %s385
      %v388 = vld [vmem:[%s381] sm:$0xff]
      %v389 = vld [vmem:[%s381 + $0x8] sm:$0xff]
      %v390 = vld [vmem:[%s381 + $0x10] sm:$0xff]
      %v391 = vld [vmem:[%s381 + $0x18] sm:$0xff]
      %v392 = vld [vmem:[%s381 + $0x20] sm:$0xff]
      %v393 = vld [vmem:[%s381 + $0x28] sm:$0xff]
      %v394 = vld [vmem:[%s381 + $0x30] sm:$0xff]
      %v395 = vld [vmem:[%s381 + $0x38] sm:$0xff]
      %v396 = vld [vmem:[%s381 + $0x40] sm:$0xff]
      %v397 = vld [vmem:[%s381 + $0x48] sm:$0xff]
      %v398 = vld [vmem:[%s381 + $0x50] sm:$0xff]
      %v399 = vld [vmem:[%s381 + $0x58] sm:$0xff]
      %v400 = vld [vmem:[%s381 + $0x60] sm:$0xff]
      %v401 = vld [vmem:[%s381 + $0x68] sm:$0xff]
      %v402 = vld [vmem:[%s381 + $0x70] sm:$0xff]
      %v403 = vld [vmem:[%s381 + $0x78] sm:$0xff]
      %v404 = vld [vmem:[%s381 + $0x80] sm:$0xff]
      %v405 = vld [vmem:[%s381 + $0x88] sm:$0xff]
      %v406 = vld [vmem:[%s381 + $0x90] sm:$0xff]
      %v407 = vld [vmem:[%s381 + $0x98] sm:$0xff]
      %v408 = vld [vmem:[%s381 + $0xa0] sm:$0xff]
      %v409 = vld [vmem:[%s381 + $0xa8] sm:$0xff]
      %v410 = vld [vmem:[%s381 + $0xb0] sm:$0xff]
      %v411 = vld [vmem:[%s381 + $0xb8] sm:$0xff]
      %v412 = vld [vmem:[%s381 + $0xc0] sm:$0xff]
      %v413 = vld [vmem:[%s381 + $0xc8] sm:$0xff]
      %v414 = vld [vmem:[%s381 + $0xd0] sm:$0xff]
      %v415 = vld [vmem:[%s381 + $0xd8] sm:$0xff]
      %v416 = vld [vmem:[%s381 + $0xe0] sm:$0xff]
      %v417 = vld [vmem:[%s381 + $0xe8] sm:$0xff]
      %v418 = vld [vmem:[%s381 + $0xf0] sm:$0xff]
      %v419 = vld [vmem:[%s381 + $0xf8] sm:$0xff]
      %v420 = vld [vmem:[%s381 + $0x100] sm:$0xff]
      %v421 = vld [vmem:[%s381 + $0x108] sm:$0xff]
      %v422 = vld [vmem:[%s381 + $0x110] sm:$0xff]
      %v423 = vld [vmem:[%s381 + $0x118] sm:$0xff]
      %v424 = vld [vmem:[%s381 + $0x120] sm:$0xff]
      %v425 = vld [vmem:[%s381 + $0x128] sm:$0xff]
      %v426 = vld [vmem:[%s381 + $0x130] sm:$0xff]
      %v427 = vld [vmem:[%s381 + $0x138] sm:$0xff]
      %v428 = vld [vmem:[%s381 + $0x140] sm:$0xff]
      %v429 = vld [vmem:[%s381 + $0x148] sm:$0xff]
      %v430 = vld [vmem:[%s381 + $0x150] sm:$0xff]
      %v431 = vld [vmem:[%s381 + $0x158] sm:$0xff]
      %v432 = vld [vmem:[%s381 + $0x160] sm:$0xff]
      %v433 = vld [vmem:[%s381 + $0x168] sm:$0xff]
      %v434 = vld [vmem:[%s381 + $0x170] sm:$0xff]
      %v435 = vld [vmem:[%s381 + $0x178] sm:$0xff]
      %v436 = vld [vmem:[%s381 + $0x180] sm:$0xff]
      %v437 = vld [vmem:[%s381 + $0x188] sm:$0xff]
      %v438 = vld [vmem:[%s381 + $0x190] sm:$0xff]
      %v439 = vld [vmem:[%s381 + $0x198] sm:$0xff]
      %v440 = vld [vmem:[%s381 + $0x1a0] sm:$0xff]
      %v441 = vld [vmem:[%s381 + $0x1a8] sm:$0xff]
      %v442 = vld [vmem:[%s381 + $0x1b0] sm:$0xff]
      %v443 = vld [vmem:[%s381 + $0x1b8] sm:$0xff]
      %v444 = vld [vmem:[%s381 + $0x1c0] sm:$0xff]
      %v445 = vld [vmem:[%s381 + $0x1c8] sm:$0xff]
      %v446 = vld [vmem:[%s381 + $0x1d0] sm:$0xff]
      %v447 = vld [vmem:[%s381 + $0x1d8] sm:$0xff]
      %v448 = vld [vmem:[%s381 + $0x1e0] sm:$0xff]
      %v449 = vld [vmem:[%s381 + $0x1e8] sm:$0xff]
      %v450 = vld [vmem:[%s381 + $0x1f0] sm:$0xff]
      %v451 = vld [vmem:[%s381 + $0x1f8] sm:$0xff]
      %v452 = vld [vmem:[%s381 + $0x200] sm:$0xff]
      %v453 = vld [vmem:[%s381 + $0x208] sm:$0xff]
      %v454 = vld [vmem:[%s381 + $0x210] sm:$0xff]
      %v455 = vld [vmem:[%s381 + $0x218] sm:$0xff]
      %v456 = vld [vmem:[%s381 + $0x220] sm:$0xff]
      %v457 = vld [vmem:[%s381 + $0x228] sm:$0xff]
      %v458 = vld [vmem:[%s381 + $0x230] sm:$0xff]
      %v459 = vld [vmem:[%s381 + $0x238] sm:$0xff]
      %v460 = vld [vmem:[%s381 + $0x240] sm:$0xff]
      %v461 = vld [vmem:[%s381 + $0x248] sm:$0xff]
      %v462 = vld [vmem:[%s381 + $0x250] sm:$0xff]
      %v463 = vld [vmem:[%s381 + $0x258] sm:$0xff]
      %v464 = vld [vmem:[%s381 + $0x260] sm:$0xff]
      %v465 = vld [vmem:[%s381 + $0x268] sm:$0xff]
      %v466 = vld [vmem:[%s381 + $0x270] sm:$0xff]
      %v467 = vld [vmem:[%s381 + $0x278] sm:$0xff]
      %v468 = vld [vmem:[%s381 + $0x280] sm:$0xff]
      %v469 = vld [vmem:[%s381 + $0x288] sm:$0xff]
      %v470 = vld [vmem:[%s381 + $0x290] sm:$0xff]
      %v471 = vld [vmem:[%s381 + $0x298] sm:$0xff]
      %v472 = vld [vmem:[%s381 + $0x2a0] sm:$0xff]
      %v473 = vld [vmem:[%s381 + $0x2a8] sm:$0xff]
      %v474 = vld [vmem:[%s381 + $0x2b0] sm:$0xff]
      %v475 = vld [vmem:[%s381 + $0x2b8] sm:$0xff]
      %v476 = vld [vmem:[%s381 + $0x2c0] sm:$0xff]
      %v477 = vld [vmem:[%s381 + $0x2c8] sm:$0xff]
      %v478 = vld [vmem:[%s381 + $0x2d0] sm:$0xff]
      %v479 = vld [vmem:[%s381 + $0x2d8] sm:$0xff]
      %v480 = vld [vmem:[%s381 + $0x2e0] sm:$0xff]
      %v481 = vld [vmem:[%s381 + $0x2e8] sm:$0xff]
      %v482 = vld [vmem:[%s381 + $0x2f0] sm:$0xff]
      %v483 = vld [vmem:[%s381 + $0x2f8] sm:$0xff]
      %v484 = vpack.c.bf16 %v391, %v388
      %v485 = vpack.c.bf16 %v392, %v389
      %v486 = vpack.c.bf16 %v393, %v390
      %v487 = vpack.c.bf16 %v397, %v394
      %v488 = vpack.c.bf16 %v398, %v395
      %v489 = vpack.c.bf16 %v399, %v396
      %v490 = vpack.c.bf16 %v403, %v400
      %v491 = vpack.c.bf16 %v404, %v401
      %v492 = vpack.c.bf16 %v405, %v402
      %v493 = vpack.c.bf16 %v409, %v406
      %v494 = vpack.c.bf16 %v410, %v407
      %v495 = vpack.c.bf16 %v411, %v408
      %v496 = vpack.c.bf16 %v415, %v412
      %v497 = vpack.c.bf16 %v416, %v413
      %v498 = vpack.c.bf16 %v417, %v414
      %v499 = vpack.c.bf16 %v421, %v418
      %v500 = vpack.c.bf16 %v422, %v419
      %v501 = vpack.c.bf16 %v423, %v420
      %v502 = vpack.c.bf16 %v427, %v424
      %v503 = vpack.c.bf16 %v428, %v425
      %v504 = vpack.c.bf16 %v429, %v426
      %v505 = vpack.c.bf16 %v433, %v430
      %v506 = vpack.c.bf16 %v434, %v431
      %v507 = vpack.c.bf16 %v435, %v432
      %v508 = vpack.c.bf16 %v439, %v436
      %v509 = vpack.c.bf16 %v440, %v437
      %v510 = vpack.c.bf16 %v441, %v438
      %v511 = vpack.c.bf16 %v445, %v442
      %v512 = vpack.c.bf16 %v446, %v443
      %v513 = vpack.c.bf16 %v447, %v444
      %v514 = vpack.c.bf16 %v451, %v448
      %v515 = vpack.c.bf16 %v452, %v449
      %v516 = vpack.c.bf16 %v453, %v450
      %v517 = vpack.c.bf16 %v457, %v454
      %v518 = vpack.c.bf16 %v458, %v455
      %v519 = vpack.c.bf16 %v459, %v456
      %v520 = vpack.c.bf16 %v463, %v460
      %v521 = vpack.c.bf16 %v464, %v461
      %v522 = vpack.c.bf16 %v465, %v462
      %v523 = vpack.c.bf16 %v469, %v466
      %v524 = vpack.c.bf16 %v470, %v467
      %v525 = vpack.c.bf16 %v471, %v468
      %v526 = vpack.c.bf16 %v475, %v472
      %v527 = vpack.c.bf16 %v476, %v473
      %v528 = vpack.c.bf16 %v477, %v474
      %v529 = vpack.c.bf16 %v481, %v478
      %v530 = vpack.c.bf16 %v482, %v479
      %v531 = vpack.c.bf16 %v483, %v480
      %v532 = vld [vmem:[%s1] sm:$0xf]
      %v533 = vld [vmem:[%s1 + $0x4] sm:$0xf]
      %v534 = vld [vmem:[%s1 + $0x8] sm:$0xf]
      %v535 = vld [vmem:[%s1 + $0xc] sm:$0xf]
      %v536 = vld [vmem:[%s1 + $0x10] sm:$0xf]
      %v537 = vld [vmem:[%s1 + $0x14] sm:$0xf]
      %v538 = vld [vmem:[%s1 + $0x18] sm:$0xf]
      %v539 = vld [vmem:[%s1 + $0x1c] sm:$0xf]
      %v540 = vld [vmem:[%s1 + $0x20] sm:$0xf]
      %v541 = vld [vmem:[%s1 + $0x24] sm:$0xf]
      %v542 = vld [vmem:[%s1 + $0x28] sm:$0xf]
      %v543 = vld [vmem:[%s1 + $0x2c] sm:$0xf]
      %v544 = vld [vmem:[%s1 + $0x30] sm:$0xf]
      %v545 = vld [vmem:[%s1 + $0x34] sm:$0xf]
      %v546 = vld [vmem:[%s1 + $0x38] sm:$0xf]
      %v547 = vld [vmem:[%s1 + $0x3c] sm:$0xf]
      %v548 = vld [vmem:[%s1 + $0x40] sm:$0xf]
      %v549 = vld [vmem:[%s1 + $0x44] sm:$0xf]
      %v550 = vld [vmem:[%s1 + $0x48] sm:$0xf]
      %v551 = vld [vmem:[%s1 + $0x4c] sm:$0xf]
      %v552 = vld [vmem:[%s1 + $0x50] sm:$0xf]
      %v553 = vld [vmem:[%s1 + $0x54] sm:$0xf]
      %v554 = vld [vmem:[%s1 + $0x58] sm:$0xf]
      %v555 = vld [vmem:[%s1 + $0x5c] sm:$0xf]
      %v556 = vld [vmem:[%s1 + $0x60] sm:$0xf]
      %v557 = vld [vmem:[%s1 + $0x64] sm:$0xf]
      %v558 = vld [vmem:[%s1 + $0x68] sm:$0xf]
      %v559 = vld [vmem:[%s1 + $0x6c] sm:$0xf]
      %v560 = vld [vmem:[%s1 + $0x70] sm:$0xf]
      %v561 = vld [vmem:[%s1 + $0x74] sm:$0xf]
      %v562 = vld [vmem:[%s1 + $0x78] sm:$0xf]
      %v563 = vld [vmem:[%s1 + $0x7c] sm:$0xf]
      %v564 = vld [vmem:[%s1 + $0x80] sm:$0xf]
      %v565 = vld [vmem:[%s1 + $0x84] sm:$0xf]
      %v566 = vld [vmem:[%s1 + $0x88] sm:$0xf]
      %v567 = vld [vmem:[%s1 + $0x8c] sm:$0xf]
      %v568 = vld [vmem:[%s1 + $0x90] sm:$0xf]
      %v569 = vld [vmem:[%s1 + $0x94] sm:$0xf]
      %v570 = vld [vmem:[%s1 + $0x98] sm:$0xf]
      %v571 = vld [vmem:[%s1 + $0x9c] sm:$0xf]
      %v572 = vld [vmem:[%s2] sm:$0x1]
      %v574 = vperm.slane %v572, 0
      %v616 = vunpack.c.l.b16 %v532
      %v617 = vunpack.c.l.b16 %v533
      %v618 = vunpack.c.l.b16 %v534
      %v619 = vunpack.c.l.b16 %v535
      %v620 = vunpack.c.l.b16 %v536
      %v621 = vunpack.c.l.b16 %v537
      %v622 = vunpack.c.l.b16 %v538
      %v623 = vunpack.c.l.b16 %v539
      %v624 = vunpack.c.l.b16 %v540
      %v625 = vunpack.c.l.b16 %v541
      %v626 = vunpack.c.l.b16 %v542
      %v627 = vunpack.c.l.b16 %v543
      %v628 = vunpack.c.l.b16 %v544
      %v629 = vunpack.c.l.b16 %v545
      %v630 = vunpack.c.l.b16 %v546
      %v631 = vunpack.c.l.b16 %v547
      %v632 = vunpack.c.l.b16 %v548
      %v633 = vunpack.c.l.b16 %v549
      %v634 = vunpack.c.l.b16 %v550
      %v635 = vunpack.c.l.b16 %v551
      %v636 = vunpack.c.l.b16 %v552
      %v637 = vunpack.c.l.b16 %v553
      %v638 = vunpack.c.l.b16 %v554
      %v639 = vunpack.c.l.b16 %v555
      %v640 = vunpack.c.l.b16 %v556
      %v641 = vunpack.c.l.b16 %v557
      %v642 = vunpack.c.l.b16 %v558
      %v643 = vunpack.c.l.b16 %v559
      %v644 = vunpack.c.l.b16 %v560
      %v645 = vunpack.c.l.b16 %v561
      %v646 = vunpack.c.l.b16 %v562
      %v647 = vunpack.c.l.b16 %v563
      %v648 = vunpack.c.l.b16 %v564
      %v649 = vunpack.c.l.b16 %v565
      %v650 = vunpack.c.l.b16 %v566
      %v651 = vunpack.c.l.b16 %v567
      %v652 = vunpack.c.l.b16 %v568
      %v653 = vunpack.c.l.b16 %v569
      %v654 = vunpack.c.l.b16 %v570
      %v655 = vunpack.c.l.b16 %v571
      %v656 = vpack.c.b16 %v617, %v616
      %v657 = vpack.c.b16 %v619, %v618
      %v658 = vpack.c.b16 %v621, %v620
      %v659 = vpack.c.b16 %v623, %v622
      %v660 = vpack.c.b16 %v625, %v624
      %v661 = vpack.c.b16 %v627, %v626
      %v662 = vpack.c.b16 %v629, %v628
      %v663 = vpack.c.b16 %v631, %v630
      %v664 = vpack.c.b16 %v633, %v632
      %v665 = vpack.c.b16 %v635, %v634
      %v666 = vpack.c.b16 %v637, %v636
      %v667 = vpack.c.b16 %v639, %v638
      %v668 = vpack.c.b16 %v641, %v640
      %v669 = vpack.c.b16 %v643, %v642
      %v670 = vpack.c.b16 %v645, %v644
      %v671 = vpack.c.b16 %v647, %v646
      %v672 = vpack.c.b16 %v649, %v648
      %v673 = vpack.c.b16 %v651, %v650
      %v674 = vpack.c.b16 %v653, %v652
      %v675 = vpack.c.b16 %v655, %v654
      %vm696 = vcmask 523264
      %v698 = vsel %vm696, %v486, 0
      %v701 = vsel %vm696, %v489, 0
      %v704 = vsel %vm696, %v492, 0
      %v707 = vsel %vm696, %v495, 0
      %v710 = vsel %vm696, %v498, 0
      %v713 = vsel %vm696, %v501, 0
      %v716 = vsel %vm696, %v504, 0
      %v719 = vsel %vm696, %v507, 0
      %v722 = vsel %vm696, %v510, 0
      %v725 = vsel %vm696, %v513, 0
      %v728 = vsel %vm696, %v516, 0
      %v731 = vsel %vm696, %v519, 0
      %v734 = vsel %vm696, %v522, 0
      %v737 = vsel %vm696, %v525, 0
      %v740 = vsel %vm696, %v528, 0
      %v743 = vsel %vm696, %v531, 0
      %745 = vmatpush.bf16.msra.mxu0 %v663
      %746 = vmatpush.bf16.msra.mxu0 %v662
      %747 = vmatpush.bf16.msra.mxu0 %v661
      %748 = vmatpush.bf16.msra.mxu0 %v660
      %749 = vmatpush.bf16.msra.mxu0 %v659
      %750 = vmatpush.bf16.msra.mxu0 %v658
      %751 = vmatpush.bf16.msra.mxu0 %v657
      %752 = vmatpush.bf16.msra.mxu0 %v656
      %753 = vmatmul.bf16.gmra.mxu0 %v484
      %v754 = vpop.f32.mrf.mxu0
      %v755 = vadd.f32 %v574, %v754
      %v756 = vpop.f32.mrf.mxu0
      %v757 = vadd.f32 %v574, %v756
      %758 = vmatmul.bf16.gmra.mxu0 %v487
      %v759 = vpop.f32.mrf.mxu0
      %v760 = vadd.f32 %v574, %v759
      %v761 = vpop.f32.mrf.mxu0
      %v762 = vadd.f32 %v574, %v761
      %763 = vmatmul.bf16.gmra.mxu0 %v490
      %v764 = vpop.f32.mrf.mxu0
      %v765 = vadd.f32 %v574, %v764
      %v766 = vpop.f32.mrf.mxu0
      %v767 = vadd.f32 %v574, %v766
      %768 = vmatmul.bf16.gmra.mxu0 %v493
      %v769 = vpop.f32.mrf.mxu0
      %v770 = vadd.f32 %v574, %v769
      %v771 = vpop.f32.mrf.mxu0
      %v772 = vadd.f32 %v574, %v771
      %773 = vmatmul.bf16.gmra.mxu0 %v496
      %v774 = vpop.f32.mrf.mxu0
      %v775 = vadd.f32 %v574, %v774
      %v776 = vpop.f32.mrf.mxu0
      %v777 = vadd.f32 %v574, %v776
      %778 = vmatmul.bf16.gmra.mxu0 %v499
      %v779 = vpop.f32.mrf.mxu0
      %v780 = vadd.f32 %v574, %v779
      %v781 = vpop.f32.mrf.mxu0
      %v782 = vadd.f32 %v574, %v781
      %783 = vmatmul.bf16.gmra.mxu0 %v502
      %v784 = vpop.f32.mrf.mxu0
      %v785 = vadd.f32 %v574, %v784
      %v786 = vpop.f32.mrf.mxu0
      %v787 = vadd.f32 %v574, %v786
      %788 = vmatmul.bf16.gmra.mxu0 %v505
      %v789 = vpop.f32.mrf.mxu0
      %v790 = vadd.f32 %v574, %v789
      %v791 = vpop.f32.mrf.mxu0
      %v792 = vadd.f32 %v574, %v791
      %793 = vmatmul.bf16.gmra.mxu0 %v508
      %v794 = vpop.f32.mrf.mxu0
      %v795 = vadd.f32 %v574, %v794
      %v796 = vpop.f32.mrf.mxu0
      %v797 = vadd.f32 %v574, %v796
      %798 = vmatmul.bf16.gmra.mxu0 %v511
      %v799 = vpop.f32.mrf.mxu0
      %v800 = vadd.f32 %v574, %v799
      %v801 = vpop.f32.mrf.mxu0
      %v802 = vadd.f32 %v574, %v801
      %803 = vmatmul.bf16.gmra.mxu0 %v514
      %v804 = vpop.f32.mrf.mxu0
      %v805 = vadd.f32 %v574, %v804
      %v806 = vpop.f32.mrf.mxu0
      %v807 = vadd.f32 %v574, %v806
      %808 = vmatmul.bf16.gmra.mxu0 %v517
      %v809 = vpop.f32.mrf.mxu0
      %v810 = vadd.f32 %v574, %v809
      %v811 = vpop.f32.mrf.mxu0
      %v812 = vadd.f32 %v574, %v811
      %813 = vmatmul.bf16.gmra.mxu0 %v520
      %v814 = vpop.f32.mrf.mxu0
      %v815 = vadd.f32 %v574, %v814
      %v816 = vpop.f32.mrf.mxu0
      %v817 = vadd.f32 %v574, %v816
      %818 = vmatmul.bf16.gmra.mxu0 %v523
      %v819 = vpop.f32.mrf.mxu0
      %v820 = vadd.f32 %v574, %v819
      %v821 = vpop.f32.mrf.mxu0
      %v822 = vadd.f32 %v574, %v821
      %823 = vmatmul.bf16.gmra.mxu0 %v526
      %v824 = vpop.f32.mrf.mxu0
      %v825 = vadd.f32 %v574, %v824
      %v826 = vpop.f32.mrf.mxu0
      %v827 = vadd.f32 %v574, %v826
      %828 = vmatmul.bf16.gmra.mxu0 %v529
      %v829 = vpop.f32.mrf.mxu0
      %v830 = vadd.f32 %v574, %v829
      %v831 = vpop.f32.mrf.mxu0
      %v832 = vadd.f32 %v574, %v831
      %833 = vdwg.mxu0
      %834 = vmatpush.bf16.msra.mxu0 %v671
      %835 = vmatpush.bf16.msra.mxu0 %v670
      %836 = vmatpush.bf16.msra.mxu0 %v669
      %837 = vmatpush.bf16.msra.mxu0 %v668
      %838 = vmatpush.bf16.msra.mxu0 %v667
      %839 = vmatpush.bf16.msra.mxu0 %v666
      %840 = vmatpush.bf16.msra.mxu0 %v665
      %841 = vmatpush.bf16.msra.mxu0 %v664
      %842 = vmatmul.bf16.gmra.mxu0 %v485
      %v843 = vpop.f32.mrf.mxu0
      %v844 = vadd.f32 %v755, %v843
      %v845 = vpop.f32.mrf.mxu0
      %v846 = vadd.f32 %v757, %v845
      %847 = vmatmul.bf16.gmra.mxu0 %v488
      %v848 = vpop.f32.mrf.mxu0
      %v849 = vadd.f32 %v760, %v848
      %v850 = vpop.f32.mrf.mxu0
      %v851 = vadd.f32 %v762, %v850
      %852 = vmatmul.bf16.gmra.mxu0 %v491
      %v853 = vpop.f32.mrf.mxu0
      %v854 = vadd.f32 %v765, %v853
      %v855 = vpop.f32.mrf.mxu0
      %v856 = vadd.f32 %v767, %v855
      %857 = vmatmul.bf16.gmra.mxu0 %v494
      %v858 = vpop.f32.mrf.mxu0
      %v859 = vadd.f32 %v770, %v858
      %v860 = vpop.f32.mrf.mxu0
      %v861 = vadd.f32 %v772, %v860
      %862 = vmatmul.bf16.gmra.mxu0 %v497
      %v863 = vpop.f32.mrf.mxu0
      %v864 = vadd.f32 %v775, %v863
      %v865 = vpop.f32.mrf.mxu0
      %v866 = vadd.f32 %v777, %v865
      %867 = vmatmul.bf16.gmra.mxu0 %v500
      %v868 = vpop.f32.mrf.mxu0
      %v869 = vadd.f32 %v780, %v868
      %v870 = vpop.f32.mrf.mxu0
      %v871 = vadd.f32 %v782, %v870
      %872 = vmatmul.bf16.gmra.mxu0 %v503
      %v873 = vpop.f32.mrf.mxu0
      %v874 = vadd.f32 %v785, %v873
      %v875 = vpop.f32.mrf.mxu0
      %v876 = vadd.f32 %v787, %v875
      %877 = vmatmul.bf16.gmra.mxu0 %v506
      %v878 = vpop.f32.mrf.mxu0
      %v879 = vadd.f32 %v790, %v878
      %v880 = vpop.f32.mrf.mxu0
      %v881 = vadd.f32 %v792, %v880
      %882 = vmatmul.bf16.gmra.mxu0 %v509
      %v883 = vpop.f32.mrf.mxu0
      %v884 = vadd.f32 %v795, %v883
      %v885 = vpop.f32.mrf.mxu0
      %v886 = vadd.f32 %v797, %v885
      %887 = vmatmul.bf16.gmra.mxu0 %v512
      %v888 = vpop.f32.mrf.mxu0
      %v889 = vadd.f32 %v800, %v888
      %v890 = vpop.f32.mrf.mxu0
      %v891 = vadd.f32 %v802, %v890
      %892 = vmatmul.bf16.gmra.mxu0 %v515
      %v893 = vpop.f32.mrf.mxu0
      %v894 = vadd.f32 %v805, %v893
      %v895 = vpop.f32.mrf.mxu0
      %v896 = vadd.f32 %v807, %v895
      %897 = vmatmul.bf16.gmra.mxu0 %v518
      %v898 = vpop.f32.mrf.mxu0
      %v899 = vadd.f32 %v810, %v898
      %v900 = vpop.f32.mrf.mxu0
      %v901 = vadd.f32 %v812, %v900
      %902 = vmatmul.bf16.gmra.mxu0 %v521
      %v903 = vpop.f32.mrf.mxu0
      %v904 = vadd.f32 %v815, %v903
      %v905 = vpop.f32.mrf.mxu0
      %v906 = vadd.f32 %v817, %v905
      %907 = vmatmul.bf16.gmra.mxu0 %v524
      %v908 = vpop.f32.mrf.mxu0
      %v909 = vadd.f32 %v820, %v908
      %v910 = vpop.f32.mrf.mxu0
      %v911 = vadd.f32 %v822, %v910
      %912 = vmatmul.bf16.gmra.mxu0 %v527
      %v913 = vpop.f32.mrf.mxu0
      %v914 = vadd.f32 %v825, %v913
      %v915 = vpop.f32.mrf.mxu0
      %v916 = vadd.f32 %v827, %v915
      %917 = vmatmul.bf16.gmra.mxu0 %v530
      %v918 = vpop.f32.mrf.mxu0
      %v919 = vadd.f32 %v830, %v918
      %v920 = vpop.f32.mrf.mxu0
      %v921 = vadd.f32 %v832, %v920
      %922 = vdwg.mxu0
      %923 = vmatpush.bf16.msra.mxu0 0
      %924 = vmatpush.bf16.msra.mxu0 0
      %925 = vmatpush.bf16.msra.mxu0 0
      %926 = vmatpush.bf16.msra.mxu0 0
      %927 = vmatpush.bf16.msra.mxu0 %v675
      %928 = vmatpush.bf16.msra.mxu0 %v674
      %929 = vmatpush.bf16.msra.mxu0 %v673
      %930 = vmatpush.bf16.msra.mxu0 %v672
      %931 = vmatmul.bf16.gmra.mxu0 %v698
      %v932 = vpop.f32.mrf.mxu0
      %v933 = vadd.f32 %v844, %v932
      %v934 = vpop.f32.mrf.mxu0
      %v935 = vadd.f32 %v846, %v934
      %936 = vmatmul.bf16.gmra.mxu0 %v701
      %v937 = vpop.f32.mrf.mxu0
      %v938 = vadd.f32 %v849, %v937
      %v939 = vpop.f32.mrf.mxu0
      %v940 = vadd.f32 %v851, %v939
      %941 = vmatmul.bf16.gmra.mxu0 %v704
      %v942 = vpop.f32.mrf.mxu0
      %v943 = vadd.f32 %v854, %v942
      %v944 = vpop.f32.mrf.mxu0
      %v945 = vadd.f32 %v856, %v944
      %946 = vmatmul.bf16.gmra.mxu0 %v707
      %v947 = vpop.f32.mrf.mxu0
      %v948 = vadd.f32 %v859, %v947
      %v949 = vpop.f32.mrf.mxu0
      %v950 = vadd.f32 %v861, %v949
      %951 = vmatmul.bf16.gmra.mxu0 %v710
      %v952 = vpop.f32.mrf.mxu0
      %v953 = vadd.f32 %v864, %v952
      %v954 = vpop.f32.mrf.mxu0
      %v955 = vadd.f32 %v866, %v954
      %956 = vmatmul.bf16.gmra.mxu0 %v713
      %v957 = vpop.f32.mrf.mxu0
      %v958 = vadd.f32 %v869, %v957
      %v959 = vpop.f32.mrf.mxu0
      %v960 = vadd.f32 %v871, %v959
      %961 = vmatmul.bf16.gmra.mxu0 %v716
      %v962 = vpop.f32.mrf.mxu0
      %v963 = vadd.f32 %v874, %v962
      %v964 = vpop.f32.mrf.mxu0
      %v965 = vadd.f32 %v876, %v964
      %966 = vmatmul.bf16.gmra.mxu0 %v719
      %v967 = vpop.f32.mrf.mxu0
      %v968 = vadd.f32 %v879, %v967
      %v969 = vpop.f32.mrf.mxu0
      %v970 = vadd.f32 %v881, %v969
      %971 = vmatmul.bf16.gmra.mxu0 %v722
      %v972 = vpop.f32.mrf.mxu0
      %v973 = vadd.f32 %v884, %v972
      %v974 = vpop.f32.mrf.mxu0
      %v975 = vadd.f32 %v886, %v974
      %976 = vmatmul.bf16.gmra.mxu0 %v725
      %v977 = vpop.f32.mrf.mxu0
      %v978 = vadd.f32 %v889, %v977
      %v979 = vpop.f32.mrf.mxu0
      %v980 = vadd.f32 %v891, %v979
      %981 = vmatmul.bf16.gmra.mxu0 %v728
      %v982 = vpop.f32.mrf.mxu0
      %v983 = vadd.f32 %v894, %v982
      %v984 = vpop.f32.mrf.mxu0
      %v985 = vadd.f32 %v896, %v984
      %986 = vmatmul.bf16.gmra.mxu0 %v731
      %v987 = vpop.f32.mrf.mxu0
      %v988 = vadd.f32 %v899, %v987
      %v989 = vpop.f32.mrf.mxu0
      %v990 = vadd.f32 %v901, %v989
      %991 = vmatmul.bf16.gmra.mxu0 %v734
      %v992 = vpop.f32.mrf.mxu0
      %v993 = vadd.f32 %v904, %v992
      %v994 = vpop.f32.mrf.mxu0
      %v995 = vadd.f32 %v906, %v994
      %996 = vmatmul.bf16.gmra.mxu0 %v737
      %v997 = vpop.f32.mrf.mxu0
      %v998 = vadd.f32 %v909, %v997
      %v999 = vpop.f32.mrf.mxu0
      %v1000 = vadd.f32 %v911, %v999
      %1001 = vmatmul.bf16.gmra.mxu0 %v740
      %v1002 = vpop.f32.mrf.mxu0
      %v1003 = vadd.f32 %v914, %v1002
      %v1004 = vpop.f32.mrf.mxu0
      %v1005 = vadd.f32 %v916, %v1004
      %1006 = vmatmul.bf16.gmra.mxu0 %v743
      %v1007 = vpop.f32.mrf.mxu0
      %v1008 = vadd.f32 %v919, %v1007
      %v1009 = vpop.f32.mrf.mxu0
      %v1010 = vadd.f32 %v921, %v1009
      %1011 = vdwg.mxu0
      %v1012 = vmax.f32 %v933, 0.0
      %v1013 = vmax.f32 %v935, 0.0
      %v1014 = vmax.f32 %v938, 0.0
      %v1015 = vmax.f32 %v940, 0.0
      %v1016 = vmax.f32 %v943, 0.0
      %v1017 = vmax.f32 %v945, 0.0
      %v1018 = vmax.f32 %v948, 0.0
      %v1019 = vmax.f32 %v950, 0.0
      %v1020 = vmax.f32 %v953, 0.0
      %v1021 = vmax.f32 %v955, 0.0
      %v1022 = vmax.f32 %v958, 0.0
      %v1023 = vmax.f32 %v960, 0.0
      %v1024 = vmax.f32 %v963, 0.0
      %v1025 = vmax.f32 %v965, 0.0
      %v1026 = vmax.f32 %v968, 0.0
      %v1027 = vmax.f32 %v970, 0.0
      %v1028 = vmax.f32 %v973, 0.0
      %v1029 = vmax.f32 %v975, 0.0
      %v1030 = vmax.f32 %v978, 0.0
      %v1031 = vmax.f32 %v980, 0.0
      %v1032 = vmax.f32 %v983, 0.0
      %v1033 = vmax.f32 %v985, 0.0
      %v1034 = vmax.f32 %v988, 0.0
      %v1035 = vmax.f32 %v990, 0.0
      %v1036 = vmax.f32 %v993, 0.0
      %v1037 = vmax.f32 %v995, 0.0
      %v1038 = vmax.f32 %v998, 0.0
      %v1039 = vmax.f32 %v1000, 0.0
      %v1040 = vmax.f32 %v1003, 0.0
      %v1041 = vmax.f32 %v1005, 0.0
      %v1042 = vmax.f32 %v1008, 0.0
      %v1043 = vmax.f32 %v1010, 0.0
      %1044 = vst.msk [vmem:[#allocation2] sm:$0xff] %vm696, 0.0
      %1045 = vst.msk [vmem:[#allocation2 + $0x8] sm:$0xff] %vm696, 0.0
      %vm1046 = vcmask 517120
      %1047 = vst.msk [vmem:[#allocation2 + $0x10] sm:$0x3] %vm1046, 0.0
      %1048 = vst.msk [vmem:[#allocation2 + $0x18] sm:$0xff] %vm696, 0.0
      %1049 = vst.msk [vmem:[#allocation2 + $0x20] sm:$0xff] %vm696, 0.0
      %1050 = vst.msk [vmem:[#allocation2 + $0x28] sm:$0x3] %vm1046, 0.0
      %1051 = vst.msk [vmem:[#allocation2 + $0x30] sm:$0xff] %vm696, 0.0
      %1052 = vst.msk [vmem:[#allocation2 + $0x38] sm:$0xff] %vm696, 0.0
      %1053 = vst.msk [vmem:[#allocation2 + $0x40] sm:$0x3] %vm1046, 0.0
      %1054 = vst.msk [vmem:[#allocation2 + $0x48] sm:$0xff] %vm696, 0.0
      %1055 = vst.msk [vmem:[#allocation2 + $0x50] sm:$0xff] %vm696, 0.0
      %1056 = vst.msk [vmem:[#allocation2 + $0x58] sm:$0x3] %vm1046, 0.0
      %1057 = vst.msk [vmem:[#allocation2 + $0x60] sm:$0xff] %vm696, 0.0
      %1058 = vst.msk [vmem:[#allocation2 + $0x68] sm:$0xff] %vm696, 0.0
      %1059 = vst.msk [vmem:[#allocation2 + $0x70] sm:$0x3] %vm1046, 0.0
      %1060 = vst.msk [vmem:[#allocation2 + $0x78] sm:$0xff] %vm696, 0.0
      %1061 = vst.msk [vmem:[#allocation2 + $0x80] sm:$0xff] %vm696, 0.0
      %1062 = vst.msk [vmem:[#allocation2 + $0x88] sm:$0x3] %vm1046, 0.0
      %1063 = vst.msk [vmem:[#allocation2 + $0x90] sm:$0xff] %vm696, 0.0
      %1064 = vst.msk [vmem:[#allocation2 + $0x98] sm:$0xff] %vm696, 0.0
      %1065 = vst.msk [vmem:[#allocation2 + $0xa0] sm:$0x3] %vm1046, 0.0
      %1066 = vst.msk [vmem:[#allocation2 + $0xa8] sm:$0xff] %vm696, 0.0
      %1067 = vst.msk [vmem:[#allocation2 + $0xb0] sm:$0xff] %vm696, 0.0
      %1068 = vst.msk [vmem:[#allocation2 + $0xb8] sm:$0x3] %vm1046, 0.0
      %1069 = vst.msk [vmem:[#allocation2 + $0xc0] sm:$0xff] %vm696, 0.0
      %1070 = vst.msk [vmem:[#allocation2 + $0xc8] sm:$0xff] %vm696, 0.0
      %1071 = vst.msk [vmem:[#allocation2 + $0xd0] sm:$0x3] %vm1046, 0.0
      %1072 = vst.msk [vmem:[#allocation2 + $0xd8] sm:$0xff] %vm696, 0.0
      %1073 = vst.msk [vmem:[#allocation2 + $0xe0] sm:$0xff] %vm696, 0.0
      %1074 = vst.msk [vmem:[#allocation2 + $0xe8] sm:$0x3] %vm1046, 0.0
      %1075 = vst.msk [vmem:[#allocation2 + $0xf0] sm:$0xff] %vm696, 0.0
      %1076 = vst.msk [vmem:[#allocation2 + $0xf8] sm:$0xff] %vm696, 0.0
      %1077 = vst.msk [vmem:[#allocation2 + $0x100] sm:$0x3] %vm1046, 0.0
      %1078 = vst.msk [vmem:[#allocation2 + $0x108] sm:$0xff] %vm696, 0.0
      %1079 = vst.msk [vmem:[#allocation2 + $0x110] sm:$0xff] %vm696, 0.0
      %1080 = vst.msk [vmem:[#allocation2 + $0x118] sm:$0x3] %vm1046, 0.0
      %1081 = vst.msk [vmem:[#allocation2 + $0x120] sm:$0xff] %vm696, 0.0
      %1082 = vst.msk [vmem:[#allocation2 + $0x128] sm:$0xff] %vm696, 0.0
      %1083 = vst.msk [vmem:[#allocation2 + $0x130] sm:$0x3] %vm1046, 0.0
      %1084 = vst.msk [vmem:[#allocation2 + $0x138] sm:$0xff] %vm696, 0.0
      %1085 = vst.msk [vmem:[#allocation2 + $0x140] sm:$0xff] %vm696, 0.0
      %1086 = vst.msk [vmem:[#allocation2 + $0x148] sm:$0x3] %vm1046, 0.0
      %1087 = vst.msk [vmem:[#allocation2 + $0x150] sm:$0xff] %vm696, 0.0
      %1088 = vst.msk [vmem:[#allocation2 + $0x158] sm:$0xff] %vm696, 0.0
      %1089 = vst.msk [vmem:[#allocation2 + $0x160] sm:$0x3] %vm1046, 0.0
      %1090 = vst.msk [vmem:[#allocation2 + $0x168] sm:$0xff] %vm696, 0.0
      %1091 = vst.msk [vmem:[#allocation2 + $0x170] sm:$0xff] %vm696, 0.0
      %1092 = vst.msk [vmem:[#allocation2 + $0x178] sm:$0x3] %vm1046, 0.0
      %1093 = vst.msk [vmem:[#allocation2 + $0x180] sm:$0xff] %vm696, 0.0
      %1094 = vst.msk [vmem:[#allocation2 + $0x188] sm:$0xff] %vm696, 0.0
      %1095 = vst.msk [vmem:[#allocation2 + $0x190] sm:$0x3] %vm1046, 0.0
      %1096 = vst.msk [vmem:[#allocation2 + $0x198] sm:$0xff] %vm696, 0.0
      %1097 = vst.msk [vmem:[#allocation2 + $0x1a0] sm:$0xff] %vm696, 0.0
      %1098 = vst.msk [vmem:[#allocation2 + $0x1a8] sm:$0x3] %vm1046, 0.0
      %s1099 = scalar_lea.vmem [#allocation2], 24
      %1100 = vst.msk [vmem:[%s1099 + $0x1] sm:$0xff] %vm696, %v1012
      %1101 = vst.msk [vmem:[%s1099 + $0x9] sm:$0xff] %vm696, %v1013
      %1102 = vst.msk [vmem:[%s1099 + $0x19] sm:$0xff] %vm696, %v1014
      %1103 = vst.msk [vmem:[%s1099 + $0x21] sm:$0xff] %vm696, %v1015
      %1104 = vst.msk [vmem:[%s1099 + $0x31] sm:$0xff] %vm696, %v1016
      %1105 = vst.msk [vmem:[%s1099 + $0x39] sm:$0xff] %vm696, %v1017
      %1106 = vst.msk [vmem:[%s1099 + $0x49] sm:$0xff] %vm696, %v1018
      %1107 = vst.msk [vmem:[%s1099 + $0x51] sm:$0xff] %vm696, %v1019
      %1108 = vst.msk [vmem:[%s1099 + $0x61] sm:$0xff] %vm696, %v1020
      %1109 = vst.msk [vmem:[%s1099 + $0x69] sm:$0xff] %vm696, %v1021
      %1110 = vst.msk [vmem:[%s1099 + $0x79] sm:$0xff] %vm696, %v1022
      %1111 = vst.msk [vmem:[%s1099 + $0x81] sm:$0xff] %vm696, %v1023
      %1112 = vst.msk [vmem:[%s1099 + $0x91] sm:$0xff] %vm696, %v1024
      %1113 = vst.msk [vmem:[%s1099 + $0x99] sm:$0xff] %vm696, %v1025
      %1114 = vst.msk [vmem:[%s1099 + $0xa9] sm:$0xff] %vm696, %v1026
      %1115 = vst.msk [vmem:[%s1099 + $0xb1] sm:$0xff] %vm696, %v1027
      %1116 = vst.msk [vmem:[%s1099 + $0xc1] sm:$0xff] %vm696, %v1028
      %1117 = vst.msk [vmem:[%s1099 + $0xc9] sm:$0xff] %vm696, %v1029
      %1118 = vst.msk [vmem:[%s1099 + $0xd9] sm:$0xff] %vm696, %v1030
      %1119 = vst.msk [vmem:[%s1099 + $0xe1] sm:$0xff] %vm696, %v1031
      %1120 = vst.msk [vmem:[%s1099 + $0xf1] sm:$0xff] %vm696, %v1032
      %1121 = vst.msk [vmem:[%s1099 + $0xf9] sm:$0xff] %vm696, %v1033
      %1122 = vst.msk [vmem:[%s1099 + $0x109] sm:$0xff] %vm696, %v1034
      %1123 = vst.msk [vmem:[%s1099 + $0x111] sm:$0xff] %vm696, %v1035
      %1124 = vst.msk [vmem:[%s1099 + $0x121] sm:$0xff] %vm696, %v1036
      %1125 = vst.msk [vmem:[%s1099 + $0x129] sm:$0xff] %vm696, %v1037
      %1126 = vst.msk [vmem:[%s1099 + $0x139] sm:$0xff] %vm696, %v1038
      %1127 = vst.msk [vmem:[%s1099 + $0x141] sm:$0xff] %vm696, %v1039
      %1128 = vst.msk [vmem:[%s1099 + $0x151] sm:$0xff] %vm696, %v1040
      %1129 = vst.msk [vmem:[%s1099 + $0x159] sm:$0xff] %vm696, %v1041
      %1130 = vst.msk [vmem:[%s1099 + $0x169] sm:$0xff] %vm696, %v1042
      %1131 = vst.msk [vmem:[%s1099 + $0x171] sm:$0xff] %vm696, %v1043
      %v1132 = vld [vmem:[#allocation2] sm:$0xff]
      %v1133 = vld [vmem:[#allocation2 + $0x8] sm:$0xff]
      %v1134 = vld [vmem:[#allocation2 + $0x18] sm:$0xff]
      %v1135 = vld [vmem:[#allocation2 + $0x20] sm:$0xff]
      %v1136 = vld [vmem:[#allocation2 + $0x30] sm:$0xff]
      %v1137 = vld [vmem:[#allocation2 + $0x38] sm:$0xff]
      %v1138 = vld [vmem:[#allocation2 + $0x48] sm:$0xff]
      %v1139 = vld [vmem:[#allocation2 + $0x50] sm:$0xff]
      %v1140 = vld [vmem:[#allocation2 + $0x60] sm:$0xff]
      %v1141 = vld [vmem:[#allocation2 + $0x68] sm:$0xff]
      %v1142 = vld [vmem:[#allocation2 + $0x78] sm:$0xff]
      %v1143 = vld [vmem:[#allocation2 + $0x80] sm:$0xff]
      %v1144 = vld [vmem:[#allocation2 + $0x90] sm:$0xff]
      %v1145 = vld [vmem:[#allocation2 + $0x98] sm:$0xff]
      %v1146 = vld [vmem:[#allocation2 + $0xa8] sm:$0xff]
      %v1147 = vld [vmem:[#allocation2 + $0xb0] sm:$0xff]
      %v1148 = vld [vmem:[#allocation2 + $0xc0] sm:$0xff]
      %v1149 = vld [vmem:[#allocation2 + $0xc8] sm:$0xff]
      %v1150 = vld [vmem:[#allocation2 + $0xd8] sm:$0xff]
      %v1151 = vld [vmem:[#allocation2 + $0xe0] sm:$0xff]
      %v1152 = vld [vmem:[#allocation2 + $0xf0] sm:$0xff]
      %v1153 = vld [vmem:[#allocation2 + $0xf8] sm:$0xff]
      %v1154 = vld [vmem:[#allocation2 + $0x108] sm:$0xff]
      %v1155 = vld [vmem:[#allocation2 + $0x110] sm:$0xff]
      %v1156 = vld [vmem:[#allocation2 + $0x120] sm:$0xff]
      %v1157 = vld [vmem:[#allocation2 + $0x128] sm:$0xff]
      %v1158 = vld [vmem:[#allocation2 + $0x138] sm:$0xff]
      %v1159 = vld [vmem:[#allocation2 + $0x140] sm:$0xff]
      %v1160 = vld [vmem:[#allocation2 + $0x150] sm:$0xff]
      %v1161 = vld [vmem:[#allocation2 + $0x158] sm:$0xff]
      %v1162 = vld [vmem:[#allocation2 + $0x168] sm:$0xff]
      %v1163 = vld [vmem:[#allocation2 + $0x170] sm:$0xff]
      %v1164 = vpack.c.bf16 %v1133, %v1132
      %v1165 = vpack.c.bf16 %v1135, %v1134
      %v1166 = vpack.c.bf16 %v1137, %v1136
      %v1167 = vpack.c.bf16 %v1139, %v1138
      %v1168 = vpack.c.bf16 %v1141, %v1140
      %v1169 = vpack.c.bf16 %v1143, %v1142
      %v1170 = vpack.c.bf16 %v1145, %v1144
      %v1171 = vpack.c.bf16 %v1147, %v1146
      %v1172 = vpack.c.bf16 %v1149, %v1148
      %v1173 = vpack.c.bf16 %v1151, %v1150
      %v1174 = vpack.c.bf16 %v1153, %v1152
      %v1175 = vpack.c.bf16 %v1155, %v1154
      %v1176 = vpack.c.bf16 %v1157, %v1156
      %v1177 = vpack.c.bf16 %v1159, %v1158
      %v1178 = vpack.c.bf16 %v1161, %v1160
      %v1179 = vpack.c.bf16 %v1163, %v1162
      %v1180 = vld [vmem:[%s3] sm:$0xf]
      %v1181 = vld [vmem:[%s3 + $0x4] sm:$0xf]
      %v1182 = vld [vmem:[%s3 + $0x8] sm:$0xf]
      %v1183 = vld [vmem:[%s3 + $0xc] sm:$0xf]
      %v1184 = vld [vmem:[%s3 + $0x10] sm:$0xf]
      %v1185 = vld [vmem:[%s3 + $0x14] sm:$0xf]
      %v1186 = vld [vmem:[%s3 + $0x18] sm:$0xf]
      %v1187 = vld [vmem:[%s3 + $0x1c] sm:$0xf]
      %v1188 = vld [vmem:[#allocation2 + $0x1] sm:$0xff]
      %v1189 = vld [vmem:[#allocation2 + $0x9] sm:$0xff]
      %v1190 = vld [vmem:[#allocation2 + $0x19] sm:$0xff]
      %v1191 = vld [vmem:[#allocation2 + $0x21] sm:$0xff]
      %v1192 = vld [vmem:[#allocation2 + $0x31] sm:$0xff]
      %v1193 = vld [vmem:[#allocation2 + $0x39] sm:$0xff]
      %v1194 = vld [vmem:[#allocation2 + $0x49] sm:$0xff]
      %v1195 = vld [vmem:[#allocation2 + $0x51] sm:$0xff]
      %v1196 = vld [vmem:[#allocation2 + $0x61] sm:$0xff]
      %v1197 = vld [vmem:[#allocation2 + $0x69] sm:$0xff]
      %v1198 = vld [vmem:[#allocation2 + $0x79] sm:$0xff]
      %v1199 = vld [vmem:[#allocation2 + $0x81] sm:$0xff]
      %v1200 = vld [vmem:[#allocation2 + $0x91] sm:$0xff]
      %v1201 = vld [vmem:[#allocation2 + $0x99] sm:$0xff]
      %v1202 = vld [vmem:[#allocation2 + $0xa9] sm:$0xff]
      %v1203 = vld [vmem:[#allocation2 + $0xb1] sm:$0xff]
      %v1204 = vld [vmem:[#allocation2 + $0xc1] sm:$0xff]
      %v1205 = vld [vmem:[#allocation2 + $0xc9] sm:$0xff]
      %v1206 = vld [vmem:[#allocation2 + $0xd9] sm:$0xff]
      %v1207 = vld [vmem:[#allocation2 + $0xe1] sm:$0xff]
      %v1208 = vld [vmem:[#allocation2 + $0xf1] sm:$0xff]
      %v1209 = vld [vmem:[#allocation2 + $0xf9] sm:$0xff]
      %v1210 = vld [vmem:[#allocation2 + $0x109] sm:$0xff]
      %v1211 = vld [vmem:[#allocation2 + $0x111] sm:$0xff]
      %v1212 = vld [vmem:[#allocation2 + $0x121] sm:$0xff]
      %v1213 = vld [vmem:[#allocation2 + $0x129] sm:$0xff]
      %v1214 = vld [vmem:[#allocation2 + $0x139] sm:$0xff]
      %v1215 = vld [vmem:[#allocation2 + $0x141] sm:$0xff]
      %v1216 = vld [vmem:[#allocation2 + $0x151] sm:$0xff]
      %v1217 = vld [vmem:[#allocation2 + $0x159] sm:$0xff]
      %v1218 = vld [vmem:[#allocation2 + $0x169] sm:$0xff]
      %v1219 = vld [vmem:[#allocation2 + $0x171] sm:$0xff]
      %v1220 = vpack.c.bf16 %v1189, %v1188
      %v1221 = vpack.c.bf16 %v1191, %v1190
      %v1222 = vpack.c.bf16 %v1193, %v1192
      %v1223 = vpack.c.bf16 %v1195, %v1194
      %v1224 = vpack.c.bf16 %v1197, %v1196
      %v1225 = vpack.c.bf16 %v1199, %v1198
      %v1226 = vpack.c.bf16 %v1201, %v1200
      %v1227 = vpack.c.bf16 %v1203, %v1202
      %v1228 = vpack.c.bf16 %v1205, %v1204
      %v1229 = vpack.c.bf16 %v1207, %v1206
      %v1230 = vpack.c.bf16 %v1209, %v1208
      %v1231 = vpack.c.bf16 %v1211, %v1210
      %v1232 = vpack.c.bf16 %v1213, %v1212
      %v1233 = vpack.c.bf16 %v1215, %v1214
      %v1234 = vpack.c.bf16 %v1217, %v1216
      %v1235 = vpack.c.bf16 %v1219, %v1218
      %s1236 = scalar_lea.vmem %s3, 32
      %v1237 = vld [vmem:[%s1236] sm:$0xf]
      %v1238 = vld [vmem:[%s1236 + $0x4] sm:$0xf]
      %v1239 = vld [vmem:[%s1236 + $0x8] sm:$0xf]
      %v1240 = vld [vmem:[%s1236 + $0xc] sm:$0xf]
      %v1241 = vld [vmem:[%s1236 + $0x10] sm:$0xf]
      %v1242 = vld [vmem:[%s1236 + $0x14] sm:$0xf]
      %v1243 = vld [vmem:[%s1236 + $0x18] sm:$0xf]
      %v1244 = vld [vmem:[%s1236 + $0x1c] sm:$0xf]
      %v1253 = vunpack.c.l.b16 %v1237
      %v1254 = vunpack.c.l.b16 %v1238
      %v1255 = vunpack.c.l.b16 %v1239
      %v1256 = vunpack.c.l.b16 %v1240
      %v1257 = vunpack.c.l.b16 %v1241
      %v1258 = vunpack.c.l.b16 %v1242
      %v1259 = vunpack.c.l.b16 %v1243
      %v1260 = vunpack.c.l.b16 %v1244
      %v1261 = vpack.c.b16 %v1254, %v1253
      %v1262 = vpack.c.b16 %v1256, %v1255
      %v1263 = vpack.c.b16 %v1258, %v1257
      %v1264 = vpack.c.b16 %v1260, %v1259
      %v1270 = vsel %vm696, %v1220, 0
      %v1273 = vsel %vm696, %v1221, 0
      %v1276 = vsel %vm696, %v1222, 0
      %v1279 = vsel %vm696, %v1223, 0
      %v1282 = vsel %vm696, %v1224, 0
      %v1285 = vsel %vm696, %v1225, 0
      %v1288 = vsel %vm696, %v1226, 0
      %v1291 = vsel %vm696, %v1227, 0
      %v1294 = vsel %vm696, %v1228, 0
      %v1297 = vsel %vm696, %v1229, 0
      %v1300 = vsel %vm696, %v1230, 0
      %v1303 = vsel %vm696, %v1231, 0
      %v1306 = vsel %vm696, %v1232, 0
      %v1309 = vsel %vm696, %v1233, 0
      %v1312 = vsel %vm696, %v1234, 0
      %v1315 = vsel %vm696, %v1235, 0
      %1317 = vmatpush.bf16.msra.mxu0 0
      %1318 = vmatpush.bf16.msra.mxu0 0
      %1319 = vmatpush.bf16.msra.mxu0 0
      %1320 = vmatpush.bf16.msra.mxu0 0
      %1321 = vmatpush.bf16.msra.mxu0 %v1264
      %1322 = vmatpush.bf16.msra.mxu0 %v1263
      %1323 = vmatpush.bf16.msra.mxu0 %v1262
      %1324 = vmatpush.bf16.msra.mxu0 %v1261
      %1325 = vmatmul.bf16.gmra.mxu0 %v1270
      %v1326 = vpop.f32.mrf.mxu0
      %v1327 = vadd.f32 0.0, %v1326
      %v1328 = vpop.f32.mrf.mxu0
      %v1329 = vadd.f32 0.0, %v1328
      %1330 = vmatmul.bf16.gmra.mxu0 %v1273
      %v1331 = vpop.f32.mrf.mxu0
      %v1332 = vadd.f32 0.0, %v1331
      %v1333 = vpop.f32.mrf.mxu0
      %v1334 = vadd.f32 0.0, %v1333
      %1335 = vmatmul.bf16.gmra.mxu0 %v1276
      %v1336 = vpop.f32.mrf.mxu0
      %v1337 = vadd.f32 0.0, %v1336
      %v1338 = vpop.f32.mrf.mxu0
      %v1339 = vadd.f32 0.0, %v1338
      %1340 = vmatmul.bf16.gmra.mxu0 %v1279
      %v1341 = vpop.f32.mrf.mxu0
      %v1342 = vadd.f32 0.0, %v1341
      %v1343 = vpop.f32.mrf.mxu0
      %v1344 = vadd.f32 0.0, %v1343
      %1345 = vmatmul.bf16.gmra.mxu0 %v1282
      %v1346 = vpop.f32.mrf.mxu0
      %v1347 = vadd.f32 0.0, %v1346
      %v1348 = vpop.f32.mrf.mxu0
      %v1349 = vadd.f32 0.0, %v1348
      %1350 = vmatmul.bf16.gmra.mxu0 %v1285
      %v1351 = vpop.f32.mrf.mxu0
      %v1352 = vadd.f32 0.0, %v1351
      %v1353 = vpop.f32.mrf.mxu0
      %v1354 = vadd.f32 0.0, %v1353
      %1355 = vmatmul.bf16.gmra.mxu0 %v1288
      %v1356 = vpop.f32.mrf.mxu0
      %v1357 = vadd.f32 0.0, %v1356
      %v1358 = vpop.f32.mrf.mxu0
      %v1359 = vadd.f32 0.0, %v1358
      %1360 = vmatmul.bf16.gmra.mxu0 %v1291
      %v1361 = vpop.f32.mrf.mxu0
      %v1362 = vadd.f32 0.0, %v1361
      %v1363 = vpop.f32.mrf.mxu0
      %v1364 = vadd.f32 0.0, %v1363
      %1365 = vmatmul.bf16.gmra.mxu0 %v1294
      %v1366 = vpop.f32.mrf.mxu0
      %v1367 = vadd.f32 0.0, %v1366
      %v1368 = vpop.f32.mrf.mxu0
      %v1369 = vadd.f32 0.0, %v1368
      %1370 = vmatmul.bf16.gmra.mxu0 %v1297
      %v1371 = vpop.f32.mrf.mxu0
      %v1372 = vadd.f32 0.0, %v1371
      %v1373 = vpop.f32.mrf.mxu0
      %v1374 = vadd.f32 0.0, %v1373
      %1375 = vmatmul.bf16.gmra.mxu0 %v1300
      %v1376 = vpop.f32.mrf.mxu0
      %v1377 = vadd.f32 0.0, %v1376
      %v1378 = vpop.f32.mrf.mxu0
      %v1379 = vadd.f32 0.0, %v1378
      %1380 = vmatmul.bf16.gmra.mxu0 %v1303
      %v1381 = vpop.f32.mrf.mxu0
      %v1382 = vadd.f32 0.0, %v1381
      %v1383 = vpop.f32.mrf.mxu0
      %v1384 = vadd.f32 0.0, %v1383
      %1385 = vmatmul.bf16.gmra.mxu0 %v1306
      %v1386 = vpop.f32.mrf.mxu0
      %v1387 = vadd.f32 0.0, %v1386
      %v1388 = vpop.f32.mrf.mxu0
      %v1389 = vadd.f32 0.0, %v1388
      %1390 = vmatmul.bf16.gmra.mxu0 %v1309
      %v1391 = vpop.f32.mrf.mxu0
      %v1392 = vadd.f32 0.0, %v1391
      %v1393 = vpop.f32.mrf.mxu0
      %v1394 = vadd.f32 0.0, %v1393
      %1395 = vmatmul.bf16.gmra.mxu0 %v1312
      %v1396 = vpop.f32.mrf.mxu0
      %v1397 = vadd.f32 0.0, %v1396
      %v1398 = vpop.f32.mrf.mxu0
      %v1399 = vadd.f32 0.0, %v1398
      %1400 = vmatmul.bf16.gmra.mxu0 %v1315
      %v1401 = vpop.f32.mrf.mxu0
      %v1402 = vadd.f32 0.0, %v1401
      %v1403 = vpop.f32.mrf.mxu0
      %v1404 = vadd.f32 0.0, %v1403
      %1405 = vdwg.mxu0
      %v1414 = vunpack.c.l.b16 %v1180
      %v1415 = vunpack.c.l.b16 %v1181
      %v1416 = vunpack.c.l.b16 %v1182
      %v1417 = vunpack.c.l.b16 %v1183
      %v1418 = vunpack.c.l.b16 %v1184
      %v1419 = vunpack.c.l.b16 %v1185
      %v1420 = vunpack.c.l.b16 %v1186
      %v1421 = vunpack.c.l.b16 %v1187
      %v1422 = vpack.c.b16 %v1415, %v1414
      %v1423 = vpack.c.b16 %v1417, %v1416
      %v1424 = vpack.c.b16 %v1419, %v1418
      %v1425 = vpack.c.b16 %v1421, %v1420
      %v1431 = vsel %vm696, %v1164, 0
      %v1434 = vsel %vm696, %v1165, 0
      %v1437 = vsel %vm696, %v1166, 0
      %v1440 = vsel %vm696, %v1167, 0
      %v1443 = vsel %vm696, %v1168, 0
      %v1446 = vsel %vm696, %v1169, 0
      %v1449 = vsel %vm696, %v1170, 0
      %v1452 = vsel %vm696, %v1171, 0
      %v1455 = vsel %vm696, %v1172, 0
      %v1458 = vsel %vm696, %v1173, 0
      %v1461 = vsel %vm696, %v1174, 0
      %v1464 = vsel %vm696, %v1175, 0
      %v1467 = vsel %vm696, %v1176, 0
      %v1470 = vsel %vm696, %v1177, 0
      %v1473 = vsel %vm696, %v1178, 0
      %v1476 = vsel %vm696, %v1179, 0
      %1478 = vmatpush.bf16.msra.mxu0 0
      %1479 = vmatpush.bf16.msra.mxu0 0
      %1480 = vmatpush.bf16.msra.mxu0 0
      %1481 = vmatpush.bf16.msra.mxu0 0
      %1482 = vmatpush.bf16.msra.mxu0 %v1425
      %1483 = vmatpush.bf16.msra.mxu0 %v1424
      %1484 = vmatpush.bf16.msra.mxu0 %v1423
      %1485 = vmatpush.bf16.msra.mxu0 %v1422
      %1486 = vmatmul.bf16.gmra.mxu0 %v1431
      %v1487 = vpop.f32.mrf.mxu0
      %v1488 = vadd.f32 %v1327, %v1487
      %v1489 = vpop.f32.mrf.mxu0
      %v1490 = vadd.f32 %v1329, %v1489
      %1491 = vmatmul.bf16.gmra.mxu0 %v1434
      %v1492 = vpop.f32.mrf.mxu0
      %v1493 = vadd.f32 %v1332, %v1492
      %v1494 = vpop.f32.mrf.mxu0
      %v1495 = vadd.f32 %v1334, %v1494
      %1496 = vmatmul.bf16.gmra.mxu0 %v1437
      %v1497 = vpop.f32.mrf.mxu0
      %v1498 = vadd.f32 %v1337, %v1497
      %v1499 = vpop.f32.mrf.mxu0
      %v1500 = vadd.f32 %v1339, %v1499
      %1501 = vmatmul.bf16.gmra.mxu0 %v1440
      %v1502 = vpop.f32.mrf.mxu0
      %v1503 = vadd.f32 %v1342, %v1502
      %v1504 = vpop.f32.mrf.mxu0
      %v1505 = vadd.f32 %v1344, %v1504
      %1506 = vmatmul.bf16.gmra.mxu0 %v1443
      %v1507 = vpop.f32.mrf.mxu0
      %v1508 = vadd.f32 %v1347, %v1507
      %v1509 = vpop.f32.mrf.mxu0
      %v1510 = vadd.f32 %v1349, %v1509
      %1511 = vmatmul.bf16.gmra.mxu0 %v1446
      %v1512 = vpop.f32.mrf.mxu0
      %v1513 = vadd.f32 %v1352, %v1512
      %v1514 = vpop.f32.mrf.mxu0
      %v1515 = vadd.f32 %v1354, %v1514
      %1516 = vmatmul.bf16.gmra.mxu0 %v1449
      %v1517 = vpop.f32.mrf.mxu0
      %v1518 = vadd.f32 %v1357, %v1517
      %v1519 = vpop.f32.mrf.mxu0
      %v1520 = vadd.f32 %v1359, %v1519
      %1521 = vmatmul.bf16.gmra.mxu0 %v1452
      %v1522 = vpop.f32.mrf.mxu0
      %v1523 = vadd.f32 %v1362, %v1522
      %v1524 = vpop.f32.mrf.mxu0
      %v1525 = vadd.f32 %v1364, %v1524
      %1526 = vmatmul.bf16.gmra.mxu0 %v1455
      %v1527 = vpop.f32.mrf.mxu0
      %v1528 = vadd.f32 %v1367, %v1527
      %v1529 = vpop.f32.mrf.mxu0
      %v1530 = vadd.f32 %v1369, %v1529
      %1531 = vmatmul.bf16.gmra.mxu0 %v1458
      %v1532 = vpop.f32.mrf.mxu0
      %v1533 = vadd.f32 %v1372, %v1532
      %v1534 = vpop.f32.mrf.mxu0
      %v1535 = vadd.f32 %v1374, %v1534
      %1536 = vmatmul.bf16.gmra.mxu0 %v1461
      %v1537 = vpop.f32.mrf.mxu0
      %v1538 = vadd.f32 %v1377, %v1537
      %v1539 = vpop.f32.mrf.mxu0
      %v1540 = vadd.f32 %v1379, %v1539
      %1541 = vmatmul.bf16.gmra.mxu0 %v1464
      %v1542 = vpop.f32.mrf.mxu0
      %v1543 = vadd.f32 %v1382, %v1542
      %v1544 = vpop.f32.mrf.mxu0
      %v1545 = vadd.f32 %v1384, %v1544
      %1546 = vmatmul.bf16.gmra.mxu0 %v1467
      %v1547 = vpop.f32.mrf.mxu0
      %v1548 = vadd.f32 %v1387, %v1547
      %v1549 = vpop.f32.mrf.mxu0
      %v1550 = vadd.f32 %v1389, %v1549
      %1551 = vmatmul.bf16.gmra.mxu0 %v1470
      %v1552 = vpop.f32.mrf.mxu0
      %v1553 = vadd.f32 %v1392, %v1552
      %v1554 = vpop.f32.mrf.mxu0
      %v1555 = vadd.f32 %v1394, %v1554
      %1556 = vmatmul.bf16.gmra.mxu0 %v1473
      %v1557 = vpop.f32.mrf.mxu0
      %v1558 = vadd.f32 %v1397, %v1557
      %v1559 = vpop.f32.mrf.mxu0
      %v1560 = vadd.f32 %v1399, %v1559
      %1561 = vmatmul.bf16.gmra.mxu0 %v1476
      %v1562 = vpop.f32.mrf.mxu0
      %v1563 = vadd.f32 %v1402, %v1562
      %v1564 = vpop.f32.mrf.mxu0
      %v1565 = vadd.f32 %v1404, %v1564
      %1566 = vdwg.mxu0
      %v1567 = vld [vmem:[#allocation2 + $0x2] sm:$0xff]
      %v1568 = vld [vmem:[#allocation2 + $0xa] sm:$0xff]
      %v1569 = vld [vmem:[#allocation2 + $0x1a] sm:$0xff]
      %v1570 = vld [vmem:[#allocation2 + $0x22] sm:$0xff]
      %v1571 = vld [vmem:[#allocation2 + $0x32] sm:$0xff]
      %v1572 = vld [vmem:[#allocation2 + $0x3a] sm:$0xff]
      %v1573 = vld [vmem:[#allocation2 + $0x4a] sm:$0xff]
      %v1574 = vld [vmem:[#allocation2 + $0x52] sm:$0xff]
      %v1575 = vld [vmem:[#allocation2 + $0x62] sm:$0xff]
      %v1576 = vld [vmem:[#allocation2 + $0x6a] sm:$0xff]
      %v1577 = vld [vmem:[#allocation2 + $0x7a] sm:$0xff]
      %v1578 = vld [vmem:[#allocation2 + $0x82] sm:$0xff]
      %v1579 = vld [vmem:[#allocation2 + $0x92] sm:$0xff]
      %v1580 = vld [vmem:[#allocation2 + $0x9a] sm:$0xff]
      %v1581 = vld [vmem:[#allocation2 + $0xaa] sm:$0xff]
      %v1582 = vld [vmem:[#allocation2 + $0xb2] sm:$0xff]
      %v1583 = vld [vmem:[#allocation2 + $0xc2] sm:$0xff]
      %v1584 = vld [vmem:[#allocation2 + $0xca] sm:$0xff]
      %v1585 = vld [vmem:[#allocation2 + $0xda] sm:$0xff]
      %v1586 = vld [vmem:[#allocation2 + $0xe2] sm:$0xff]
      %v1587 = vld [vmem:[#allocation2 + $0xf2] sm:$0xff]
      %v1588 = vld [vmem:[#allocation2 + $0xfa] sm:$0xff]
      %v1589 = vld [vmem:[#allocation2 + $0x10a] sm:$0xff]
      %v1590 = vld [vmem:[#allocation2 + $0x112] sm:$0xff]
      %v1591 = vld [vmem:[#allocation2 + $0x122] sm:$0xff]
      %v1592 = vld [vmem:[#allocation2 + $0x12a] sm:$0xff]
      %v1593 = vld [vmem:[#allocation2 + $0x13a] sm:$0xff]
      %v1594 = vld [vmem:[#allocation2 + $0x142] sm:$0xff]
      %v1595 = vld [vmem:[#allocation2 + $0x152] sm:$0xff]
      %v1596 = vld [vmem:[#allocation2 + $0x15a] sm:$0xff]
      %v1597 = vld [vmem:[#allocation2 + $0x16a] sm:$0xff]
      %v1598 = vld [vmem:[#allocation2 + $0x172] sm:$0xff]
      %v1599 = vpack.c.bf16 %v1568, %v1567
      %v1600 = vpack.c.bf16 %v1570, %v1569
      %v1601 = vpack.c.bf16 %v1572, %v1571
      %v1602 = vpack.c.bf16 %v1574, %v1573
      %v1603 = vpack.c.bf16 %v1576, %v1575
      %v1604 = vpack.c.bf16 %v1578, %v1577
      %v1605 = vpack.c.bf16 %v1580, %v1579
      %v1606 = vpack.c.bf16 %v1582, %v1581
      %v1607 = vpack.c.bf16 %v1584, %v1583
      %v1608 = vpack.c.bf16 %v1586, %v1585
      %v1609 = vpack.c.bf16 %v1588, %v1587
      %v1610 = vpack.c.bf16 %v1590, %v1589
      %v1611 = vpack.c.bf16 %v1592, %v1591
      %v1612 = vpack.c.bf16 %v1594, %v1593
      %v1613 = vpack.c.bf16 %v1596, %v1595
      %v1614 = vpack.c.bf16 %v1598, %v1597
      %s1615 = scalar_lea.vmem %s3, 64
      %v1616 = vld [vmem:[%s1615] sm:$0xf]
      %v1617 = vld [vmem:[%s1615 + $0x4] sm:$0xf]
      %v1618 = vld [vmem:[%s1615 + $0x8] sm:$0xf]
      %v1619 = vld [vmem:[%s1615 + $0xc] sm:$0xf]
      %v1620 = vld [vmem:[%s1615 + $0x10] sm:$0xf]
      %v1621 = vld [vmem:[%s1615 + $0x14] sm:$0xf]
      %v1622 = vld [vmem:[%s1615 + $0x18] sm:$0xf]
      %v1623 = vld [vmem:[%s1615 + $0x1c] sm:$0xf]
      %v1632 = vunpack.c.l.b16 %v1616
      %v1633 = vunpack.c.l.b16 %v1617
      %v1634 = vunpack.c.l.b16 %v1618
      %v1635 = vunpack.c.l.b16 %v1619
      %v1636 = vunpack.c.l.b16 %v1620
      %v1637 = vunpack.c.l.b16 %v1621
      %v1638 = vunpack.c.l.b16 %v1622
      %v1639 = vunpack.c.l.b16 %v1623
      %v1640 = vpack.c.b16 %v1633, %v1632
      %v1641 = vpack.c.b16 %v1635, %v1634
      %v1642 = vpack.c.b16 %v1637, %v1636
      %v1643 = vpack.c.b16 %v1639, %v1638
      %v1649 = vsel %vm696, %v1599, 0
      %v1652 = vsel %vm696, %v1600, 0
      %v1655 = vsel %vm696, %v1601, 0
      %v1658 = vsel %vm696, %v1602, 0
      %v1661 = vsel %vm696, %v1603, 0
      %v1664 = vsel %vm696, %v1604, 0
      %v1667 = vsel %vm696, %v1605, 0
      %v1670 = vsel %vm696, %v1606, 0
      %v1673 = vsel %vm696, %v1607, 0
      %v1676 = vsel %vm696, %v1608, 0
      %v1679 = vsel %vm696, %v1609, 0
      %v1682 = vsel %vm696, %v1610, 0
      %v1685 = vsel %vm696, %v1611, 0
      %v1688 = vsel %vm696, %v1612, 0
      %v1691 = vsel %vm696, %v1613, 0
      %v1694 = vsel %vm696, %v1614, 0
      %1696 = vmatpush.bf16.msra.mxu0 0
      %1697 = vmatpush.bf16.msra.mxu0 0
      %1698 = vmatpush.bf16.msra.mxu0 0
      %1699 = vmatpush.bf16.msra.mxu0 0
      %1700 = vmatpush.bf16.msra.mxu0 %v1643
      %1701 = vmatpush.bf16.msra.mxu0 %v1642
      %1702 = vmatpush.bf16.msra.mxu0 %v1641
      %1703 = vmatpush.bf16.msra.mxu0 %v1640
      %1704 = vmatmul.bf16.gmra.mxu0 %v1649
      %v1705 = vpop.f32.mrf.mxu0
      %v1706 = vadd.f32 0.0, %v1705
      %v1707 = vpop.f32.mrf.mxu0
      %v1708 = vadd.f32 0.0, %v1707
      %1709 = vmatmul.bf16.gmra.mxu0 %v1652
      %v1710 = vpop.f32.mrf.mxu0
      %v1711 = vadd.f32 0.0, %v1710
      %v1712 = vpop.f32.mrf.mxu0
      %v1713 = vadd.f32 0.0, %v1712
      %1714 = vmatmul.bf16.gmra.mxu0 %v1655
      %v1715 = vpop.f32.mrf.mxu0
      %v1716 = vadd.f32 0.0, %v1715
      %v1717 = vpop.f32.mrf.mxu0
      %v1718 = vadd.f32 0.0, %v1717
      %1719 = vmatmul.bf16.gmra.mxu0 %v1658
      %v1720 = vpop.f32.mrf.mxu0
      %v1721 = vadd.f32 0.0, %v1720
      %v1722 = vpop.f32.mrf.mxu0
      %v1723 = vadd.f32 0.0, %v1722
      %1724 = vmatmul.bf16.gmra.mxu0 %v1661
      %v1725 = vpop.f32.mrf.mxu0
      %v1726 = vadd.f32 0.0, %v1725
      %v1727 = vpop.f32.mrf.mxu0
      %v1728 = vadd.f32 0.0, %v1727
      %1729 = vmatmul.bf16.gmra.mxu0 %v1664
      %v1730 = vpop.f32.mrf.mxu0
      %v1731 = vadd.f32 0.0, %v1730
      %v1732 = vpop.f32.mrf.mxu0
      %v1733 = vadd.f32 0.0, %v1732
      %1734 = vmatmul.bf16.gmra.mxu0 %v1667
      %v1735 = vpop.f32.mrf.mxu0
      %v1736 = vadd.f32 0.0, %v1735
      %v1737 = vpop.f32.mrf.mxu0
      %v1738 = vadd.f32 0.0, %v1737
      %1739 = vmatmul.bf16.gmra.mxu0 %v1670
      %v1740 = vpop.f32.mrf.mxu0
      %v1741 = vadd.f32 0.0, %v1740
      %v1742 = vpop.f32.mrf.mxu0
      %v1743 = vadd.f32 0.0, %v1742
      %1744 = vmatmul.bf16.gmra.mxu0 %v1673
      %v1745 = vpop.f32.mrf.mxu0
      %v1746 = vadd.f32 0.0, %v1745
      %v1747 = vpop.f32.mrf.mxu0
      %v1748 = vadd.f32 0.0, %v1747
      %1749 = vmatmul.bf16.gmra.mxu0 %v1676
      %v1750 = vpop.f32.mrf.mxu0
      %v1751 = vadd.f32 0.0, %v1750
      %v1752 = vpop.f32.mrf.mxu0
      %v1753 = vadd.f32 0.0, %v1752
      %1754 = vmatmul.bf16.gmra.mxu0 %v1679
      %v1755 = vpop.f32.mrf.mxu0
      %v1756 = vadd.f32 0.0, %v1755
      %v1757 = vpop.f32.mrf.mxu0
      %v1758 = vadd.f32 0.0, %v1757
      %1759 = vmatmul.bf16.gmra.mxu0 %v1682
      %v1760 = vpop.f32.mrf.mxu0
      %v1761 = vadd.f32 0.0, %v1760
      %v1762 = vpop.f32.mrf.mxu0
      %v1763 = vadd.f32 0.0, %v1762
      %1764 = vmatmul.bf16.gmra.mxu0 %v1685
      %v1765 = vpop.f32.mrf.mxu0
      %v1766 = vadd.f32 0.0, %v1765
      %v1767 = vpop.f32.mrf.mxu0
      %v1768 = vadd.f32 0.0, %v1767
      %1769 = vmatmul.bf16.gmra.mxu0 %v1688
      %v1770 = vpop.f32.mrf.mxu0
      %v1771 = vadd.f32 0.0, %v1770
      %v1772 = vpop.f32.mrf.mxu0
      %v1773 = vadd.f32 0.0, %v1772
      %1774 = vmatmul.bf16.gmra.mxu0 %v1691
      %v1775 = vpop.f32.mrf.mxu0
      %v1776 = vadd.f32 0.0, %v1775
      %v1777 = vpop.f32.mrf.mxu0
      %v1778 = vadd.f32 0.0, %v1777
      %1779 = vmatmul.bf16.gmra.mxu0 %v1694
      %v1780 = vpop.f32.mrf.mxu0
      %v1781 = vadd.f32 0.0, %v1780
      %v1782 = vpop.f32.mrf.mxu0
      %v1783 = vadd.f32 0.0, %v1782
      %1784 = vdwg.mxu0
      %v1785 = vadd.f32 %v1488, %v1706
      %v1786 = vadd.f32 %v1490, %v1708
      %v1787 = vadd.f32 %v1493, %v1711
      %v1788 = vadd.f32 %v1495, %v1713
      %v1789 = vadd.f32 %v1498, %v1716
      %v1790 = vadd.f32 %v1500, %v1718
      %v1791 = vadd.f32 %v1503, %v1721
      %v1792 = vadd.f32 %v1505, %v1723
      %v1793 = vadd.f32 %v1508, %v1726
      %v1794 = vadd.f32 %v1510, %v1728
      %v1795 = vadd.f32 %v1513, %v1731
      %v1796 = vadd.f32 %v1515, %v1733
      %v1797 = vadd.f32 %v1518, %v1736
      %v1798 = vadd.f32 %v1520, %v1738
      %v1799 = vadd.f32 %v1523, %v1741
      %v1800 = vadd.f32 %v1525, %v1743
      %v1801 = vadd.f32 %v1528, %v1746
      %v1802 = vadd.f32 %v1530, %v1748
      %v1803 = vadd.f32 %v1533, %v1751
      %v1804 = vadd.f32 %v1535, %v1753
      %v1805 = vadd.f32 %v1538, %v1756
      %v1806 = vadd.f32 %v1540, %v1758
      %v1807 = vadd.f32 %v1543, %v1761
      %v1808 = vadd.f32 %v1545, %v1763
      %v1809 = vadd.f32 %v1548, %v1766
      %v1810 = vadd.f32 %v1550, %v1768
      %v1811 = vadd.f32 %v1553, %v1771
      %v1812 = vadd.f32 %v1555, %v1773
      %v1813 = vadd.f32 %v1558, %v1776
      %v1814 = vadd.f32 %v1560, %v1778
      %v1815 = vadd.f32 %v1563, %v1781
      %v1816 = vadd.f32 %v1565, %v1783
      %v1817 = vld [vmem:[%s1099] sm:$0xff]
      %v1818 = vld [vmem:[%s1099 + $0x8] sm:$0xff]
      %v1819 = vld [vmem:[%s1099 + $0x18] sm:$0xff]
      %v1820 = vld [vmem:[%s1099 + $0x20] sm:$0xff]
      %v1821 = vld [vmem:[%s1099 + $0x30] sm:$0xff]
      %v1822 = vld [vmem:[%s1099 + $0x38] sm:$0xff]
      %v1823 = vld [vmem:[%s1099 + $0x48] sm:$0xff]
      %v1824 = vld [vmem:[%s1099 + $0x50] sm:$0xff]
      %v1825 = vld [vmem:[%s1099 + $0x60] sm:$0xff]
      %v1826 = vld [vmem:[%s1099 + $0x68] sm:$0xff]
      %v1827 = vld [vmem:[%s1099 + $0x78] sm:$0xff]
      %v1828 = vld [vmem:[%s1099 + $0x80] sm:$0xff]
      %v1829 = vld [vmem:[%s1099 + $0x90] sm:$0xff]
      %v1830 = vld [vmem:[%s1099 + $0x98] sm:$0xff]
      %v1831 = vld [vmem:[%s1099 + $0xa8] sm:$0xff]
      %v1832 = vld [vmem:[%s1099 + $0xb0] sm:$0xff]
      %v1833 = vld [vmem:[%s1099 + $0xc0] sm:$0xff]
      %v1834 = vld [vmem:[%s1099 + $0xc8] sm:$0xff]
      %v1835 = vld [vmem:[%s1099 + $0xd8] sm:$0xff]
      %v1836 = vld [vmem:[%s1099 + $0xe0] sm:$0xff]
      %v1837 = vld [vmem:[%s1099 + $0xf0] sm:$0xff]
      %v1838 = vld [vmem:[%s1099 + $0xf8] sm:$0xff]
      %v1839 = vld [vmem:[%s1099 + $0x108] sm:$0xff]
      %v1840 = vld [vmem:[%s1099 + $0x110] sm:$0xff]
      %v1841 = vld [vmem:[%s1099 + $0x120] sm:$0xff]
      %v1842 = vld [vmem:[%s1099 + $0x128] sm:$0xff]
      %v1843 = vld [vmem:[%s1099 + $0x138] sm:$0xff]
      %v1844 = vld [vmem:[%s1099 + $0x140] sm:$0xff]
      %v1845 = vld [vmem:[%s1099 + $0x150] sm:$0xff]
      %v1846 = vld [vmem:[%s1099 + $0x158] sm:$0xff]
      %v1847 = vld [vmem:[%s1099 + $0x168] sm:$0xff]
      %v1848 = vld [vmem:[%s1099 + $0x170] sm:$0xff]
      %v1849 = vpack.c.bf16 %v1818, %v1817
      %v1850 = vpack.c.bf16 %v1820, %v1819
      %v1851 = vpack.c.bf16 %v1822, %v1821
      %v1852 = vpack.c.bf16 %v1824, %v1823
      %v1853 = vpack.c.bf16 %v1826, %v1825
      %v1854 = vpack.c.bf16 %v1828, %v1827
      %v1855 = vpack.c.bf16 %v1830, %v1829
      %v1856 = vpack.c.bf16 %v1832, %v1831
      %v1857 = vpack.c.bf16 %v1834, %v1833
      %v1858 = vpack.c.bf16 %v1836, %v1835
      %v1859 = vpack.c.bf16 %v1838, %v1837
      %v1860 = vpack.c.bf16 %v1840, %v1839
      %v1861 = vpack.c.bf16 %v1842, %v1841
      %v1862 = vpack.c.bf16 %v1844, %v1843
      %v1863 = vpack.c.bf16 %v1846, %v1845
      %v1864 = vpack.c.bf16 %v1848, %v1847
      %s1865 = scalar_lea.vmem %s3, 96
      %v1866 = vld [vmem:[%s1865] sm:$0xf]
      %v1867 = vld [vmem:[%s1865 + $0x4] sm:$0xf]
      %v1868 = vld [vmem:[%s1865 + $0x8] sm:$0xf]
      %v1869 = vld [vmem:[%s1865 + $0xc] sm:$0xf]
      %v1870 = vld [vmem:[%s1865 + $0x10] sm:$0xf]
      %v1871 = vld [vmem:[%s1865 + $0x14] sm:$0xf]
      %v1872 = vld [vmem:[%s1865 + $0x18] sm:$0xf]
      %v1873 = vld [vmem:[%s1865 + $0x1c] sm:$0xf]
      %v1882 = vunpack.c.l.b16 %v1866
      %v1883 = vunpack.c.l.b16 %v1867
      %v1884 = vunpack.c.l.b16 %v1868
      %v1885 = vunpack.c.l.b16 %v1869
      %v1886 = vunpack.c.l.b16 %v1870
      %v1887 = vunpack.c.l.b16 %v1871
      %v1888 = vunpack.c.l.b16 %v1872
      %v1889 = vunpack.c.l.b16 %v1873
      %v1890 = vpack.c.b16 %v1883, %v1882
      %v1891 = vpack.c.b16 %v1885, %v1884
      %v1892 = vpack.c.b16 %v1887, %v1886
      %v1893 = vpack.c.b16 %v1889, %v1888
      %v1899 = vsel %vm696, %v1849, 0
      %v1902 = vsel %vm696, %v1850, 0
      %v1905 = vsel %vm696, %v1851, 0
      %v1908 = vsel %vm696, %v1852, 0
      %v1911 = vsel %vm696, %v1853, 0
      %v1914 = vsel %vm696, %v1854, 0
      %v1917 = vsel %vm696, %v1855, 0
      %v1920 = vsel %vm696, %v1856, 0
      %v1923 = vsel %vm696, %v1857, 0
      %v1926 = vsel %vm696, %v1858, 0
      %v1929 = vsel %vm696, %v1859, 0
      %v1932 = vsel %vm696, %v1860, 0
      %v1935 = vsel %vm696, %v1861, 0
      %v1938 = vsel %vm696, %v1862, 0
      %v1941 = vsel %vm696, %v1863, 0
      %v1944 = vsel %vm696, %v1864, 0
      %1946 = vmatpush.bf16.msra.mxu0 0
      %1947 = vmatpush.bf16.msra.mxu0 0
      %1948 = vmatpush.bf16.msra.mxu0 0
      %1949 = vmatpush.bf16.msra.mxu0 0
      %1950 = vmatpush.bf16.msra.mxu0 %v1893
      %1951 = vmatpush.bf16.msra.mxu0 %v1892
      %1952 = vmatpush.bf16.msra.mxu0 %v1891
      %1953 = vmatpush.bf16.msra.mxu0 %v1890
      %1954 = vmatmul.bf16.gmra.mxu0 %v1899
      %v1955 = vpop.f32.mrf.mxu0
      %v1956 = vadd.f32 0.0, %v1955
      %v1957 = vpop.f32.mrf.mxu0
      %v1958 = vadd.f32 0.0, %v1957
      %1959 = vmatmul.bf16.gmra.mxu0 %v1902
      %v1960 = vpop.f32.mrf.mxu0
      %v1961 = vadd.f32 0.0, %v1960
      %v1962 = vpop.f32.mrf.mxu0
      %v1963 = vadd.f32 0.0, %v1962
      %1964 = vmatmul.bf16.gmra.mxu0 %v1905
      %v1965 = vpop.f32.mrf.mxu0
      %v1966 = vadd.f32 0.0, %v1965
      %v1967 = vpop.f32.mrf.mxu0
      %v1968 = vadd.f32 0.0, %v1967
      %1969 = vmatmul.bf16.gmra.mxu0 %v1908
      %v1970 = vpop.f32.mrf.mxu0
      %v1971 = vadd.f32 0.0, %v1970
      %v1972 = vpop.f32.mrf.mxu0
      %v1973 = vadd.f32 0.0, %v1972
      %1974 = vmatmul.bf16.gmra.mxu0 %v1911
      %v1975 = vpop.f32.mrf.mxu0
      %v1976 = vadd.f32 0.0, %v1975
      %v1977 = vpop.f32.mrf.mxu0
      %v1978 = vadd.f32 0.0, %v1977
      %1979 = vmatmul.bf16.gmra.mxu0 %v1914
      %v1980 = vpop.f32.mrf.mxu0
      %v1981 = vadd.f32 0.0, %v1980
      %v1982 = vpop.f32.mrf.mxu0
      %v1983 = vadd.f32 0.0, %v1982
      %1984 = vmatmul.bf16.gmra.mxu0 %v1917
      %v1985 = vpop.f32.mrf.mxu0
      %v1986 = vadd.f32 0.0, %v1985
      %v1987 = vpop.f32.mrf.mxu0
      %v1988 = vadd.f32 0.0, %v1987
      %1989 = vmatmul.bf16.gmra.mxu0 %v1920
      %v1990 = vpop.f32.mrf.mxu0
      %v1991 = vadd.f32 0.0, %v1990
      %v1992 = vpop.f32.mrf.mxu0
      %v1993 = vadd.f32 0.0, %v1992
      %1994 = vmatmul.bf16.gmra.mxu0 %v1923
      %v1995 = vpop.f32.mrf.mxu0
      %v1996 = vadd.f32 0.0, %v1995
      %v1997 = vpop.f32.mrf.mxu0
      %v1998 = vadd.f32 0.0, %v1997
      %1999 = vmatmul.bf16.gmra.mxu0 %v1926
      %v2000 = vpop.f32.mrf.mxu0
      %v2001 = vadd.f32 0.0, %v2000
      %v2002 = vpop.f32.mrf.mxu0
      %v2003 = vadd.f32 0.0, %v2002
      %2004 = vmatmul.bf16.gmra.mxu0 %v1929
      %v2005 = vpop.f32.mrf.mxu0
      %v2006 = vadd.f32 0.0, %v2005
      %v2007 = vpop.f32.mrf.mxu0
      %v2008 = vadd.f32 0.0, %v2007
      %2009 = vmatmul.bf16.gmra.mxu0 %v1932
      %v2010 = vpop.f32.mrf.mxu0
      %v2011 = vadd.f32 0.0, %v2010
      %v2012 = vpop.f32.mrf.mxu0
      %v2013 = vadd.f32 0.0, %v2012
      %2014 = vmatmul.bf16.gmra.mxu0 %v1935
      %v2015 = vpop.f32.mrf.mxu0
      %v2016 = vadd.f32 0.0, %v2015
      %v2017 = vpop.f32.mrf.mxu0
      %v2018 = vadd.f32 0.0, %v2017
      %2019 = vmatmul.bf16.gmra.mxu0 %v1938
      %v2020 = vpop.f32.mrf.mxu0
      %v2021 = vadd.f32 0.0, %v2020
      %v2022 = vpop.f32.mrf.mxu0
      %v2023 = vadd.f32 0.0, %v2022
      %2024 = vmatmul.bf16.gmra.mxu0 %v1941
      %v2025 = vpop.f32.mrf.mxu0
      %v2026 = vadd.f32 0.0, %v2025
      %v2027 = vpop.f32.mrf.mxu0
      %v2028 = vadd.f32 0.0, %v2027
      %2029 = vmatmul.bf16.gmra.mxu0 %v1944
      %v2030 = vpop.f32.mrf.mxu0
      %v2031 = vadd.f32 0.0, %v2030
      %v2032 = vpop.f32.mrf.mxu0
      %v2033 = vadd.f32 0.0, %v2032
      %2034 = vdwg.mxu0
      %v2035 = vadd.f32 %v1785, %v1956
      %v2036 = vadd.f32 %v1786, %v1958
      %v2037 = vadd.f32 %v1787, %v1961
      %v2038 = vadd.f32 %v1788, %v1963
      %v2039 = vadd.f32 %v1789, %v1966
      %v2040 = vadd.f32 %v1790, %v1968
      %v2041 = vadd.f32 %v1791, %v1971
      %v2042 = vadd.f32 %v1792, %v1973
      %v2043 = vadd.f32 %v1793, %v1976
      %v2044 = vadd.f32 %v1794, %v1978
      %v2045 = vadd.f32 %v1795, %v1981
      %v2046 = vadd.f32 %v1796, %v1983
      %v2047 = vadd.f32 %v1797, %v1986
      %v2048 = vadd.f32 %v1798, %v1988
      %v2049 = vadd.f32 %v1799, %v1991
      %v2050 = vadd.f32 %v1800, %v1993
      %v2051 = vadd.f32 %v1801, %v1996
      %v2052 = vadd.f32 %v1802, %v1998
      %v2053 = vadd.f32 %v1803, %v2001
      %v2054 = vadd.f32 %v1804, %v2003
      %v2055 = vadd.f32 %v1805, %v2006
      %v2056 = vadd.f32 %v1806, %v2008
      %v2057 = vadd.f32 %v1807, %v2011
      %v2058 = vadd.f32 %v1808, %v2013
      %v2059 = vadd.f32 %v1809, %v2016
      %v2060 = vadd.f32 %v1810, %v2018
      %v2061 = vadd.f32 %v1811, %v2021
      %v2062 = vadd.f32 %v1812, %v2023
      %v2063 = vadd.f32 %v1813, %v2026
      %v2064 = vadd.f32 %v1814, %v2028
      %v2065 = vadd.f32 %v1815, %v2031
      %v2066 = vadd.f32 %v1816, %v2033
      %v2067 = vld [vmem:[%s1099 + $0x1] sm:$0xff]
      %v2068 = vld [vmem:[%s1099 + $0x9] sm:$0xff]
      %v2069 = vld [vmem:[%s1099 + $0x19] sm:$0xff]
      %v2070 = vld [vmem:[%s1099 + $0x21] sm:$0xff]
      %v2071 = vld [vmem:[%s1099 + $0x31] sm:$0xff]
      %v2072 = vld [vmem:[%s1099 + $0x39] sm:$0xff]
      %v2073 = vld [vmem:[%s1099 + $0x49] sm:$0xff]
      %v2074 = vld [vmem:[%s1099 + $0x51] sm:$0xff]
      %v2075 = vld [vmem:[%s1099 + $0x61] sm:$0xff]
      %v2076 = vld [vmem:[%s1099 + $0x69] sm:$0xff]
      %v2077 = vld [vmem:[%s1099 + $0x79] sm:$0xff]
      %v2078 = vld [vmem:[%s1099 + $0x81] sm:$0xff]
      %v2079 = vld [vmem:[%s1099 + $0x91] sm:$0xff]
      %v2080 = vld [vmem:[%s1099 + $0x99] sm:$0xff]
      %v2081 = vld [vmem:[%s1099 + $0xa9] sm:$0xff]
      %v2082 = vld [vmem:[%s1099 + $0xb1] sm:$0xff]
      %v2083 = vld [vmem:[%s1099 + $0xc1] sm:$0xff]
      %v2084 = vld [vmem:[%s1099 + $0xc9] sm:$0xff]
      %v2085 = vld [vmem:[%s1099 + $0xd9] sm:$0xff]
      %v2086 = vld [vmem:[%s1099 + $0xe1] sm:$0xff]
      %v2087 = vld [vmem:[%s1099 + $0xf1] sm:$0xff]
      %v2088 = vld [vmem:[%s1099 + $0xf9] sm:$0xff]
      %v2089 = vld [vmem:[%s1099 + $0x109] sm:$0xff]
      %v2090 = vld [vmem:[%s1099 + $0x111] sm:$0xff]
      %v2091 = vld [vmem:[%s1099 + $0x121] sm:$0xff]
      %v2092 = vld [vmem:[%s1099 + $0x129] sm:$0xff]
      %v2093 = vld [vmem:[%s1099 + $0x139] sm:$0xff]
      %v2094 = vld [vmem:[%s1099 + $0x141] sm:$0xff]
      %v2095 = vld [vmem:[%s1099 + $0x151] sm:$0xff]
      %v2096 = vld [vmem:[%s1099 + $0x159] sm:$0xff]
      %v2097 = vld [vmem:[%s1099 + $0x169] sm:$0xff]
      %v2098 = vld [vmem:[%s1099 + $0x171] sm:$0xff]
      %v2099 = vpack.c.bf16 %v2068, %v2067
      %v2100 = vpack.c.bf16 %v2070, %v2069
      %v2101 = vpack.c.bf16 %v2072, %v2071
      %v2102 = vpack.c.bf16 %v2074, %v2073
      %v2103 = vpack.c.bf16 %v2076, %v2075
      %v2104 = vpack.c.bf16 %v2078, %v2077
      %v2105 = vpack.c.bf16 %v2080, %v2079
      %v2106 = vpack.c.bf16 %v2082, %v2081
      %v2107 = vpack.c.bf16 %v2084, %v2083
      %v2108 = vpack.c.bf16 %v2086, %v2085
      %v2109 = vpack.c.bf16 %v2088, %v2087
      %v2110 = vpack.c.bf16 %v2090, %v2089
      %v2111 = vpack.c.bf16 %v2092, %v2091
      %v2112 = vpack.c.bf16 %v2094, %v2093
      %v2113 = vpack.c.bf16 %v2096, %v2095
      %v2114 = vpack.c.bf16 %v2098, %v2097
      %s2115 = scalar_lea.vmem %s3, 128
      %v2116 = vld [vmem:[%s2115] sm:$0xf]
      %v2117 = vld [vmem:[%s2115 + $0x4] sm:$0xf]
      %v2118 = vld [vmem:[%s2115 + $0x8] sm:$0xf]
      %v2119 = vld [vmem:[%s2115 + $0xc] sm:$0xf]
      %v2120 = vld [vmem:[%s2115 + $0x10] sm:$0xf]
      %v2121 = vld [vmem:[%s2115 + $0x14] sm:$0xf]
      %v2122 = vld [vmem:[%s2115 + $0x18] sm:$0xf]
      %v2123 = vld [vmem:[%s2115 + $0x1c] sm:$0xf]
      %v2132 = vunpack.c.l.b16 %v2116
      %v2133 = vunpack.c.l.b16 %v2117
      %v2134 = vunpack.c.l.b16 %v2118
      %v2135 = vunpack.c.l.b16 %v2119
      %v2136 = vunpack.c.l.b16 %v2120
      %v2137 = vunpack.c.l.b16 %v2121
      %v2138 = vunpack.c.l.b16 %v2122
      %v2139 = vunpack.c.l.b16 %v2123
      %v2140 = vpack.c.b16 %v2133, %v2132
      %v2141 = vpack.c.b16 %v2135, %v2134
      %v2142 = vpack.c.b16 %v2137, %v2136
      %v2143 = vpack.c.b16 %v2139, %v2138
      %v2149 = vsel %vm696, %v2099, 0
      %v2152 = vsel %vm696, %v2100, 0
      %v2155 = vsel %vm696, %v2101, 0
      %v2158 = vsel %vm696, %v2102, 0
      %v2161 = vsel %vm696, %v2103, 0
      %v2164 = vsel %vm696, %v2104, 0
      %v2167 = vsel %vm696, %v2105, 0
      %v2170 = vsel %vm696, %v2106, 0
      %v2173 = vsel %vm696, %v2107, 0
      %v2176 = vsel %vm696, %v2108, 0
      %v2179 = vsel %vm696, %v2109, 0
      %v2182 = vsel %vm696, %v2110, 0
      %v2185 = vsel %vm696, %v2111, 0
      %v2188 = vsel %vm696, %v2112, 0
      %v2191 = vsel %vm696, %v2113, 0
      %v2194 = vsel %vm696, %v2114, 0
      %2196 = vmatpush.bf16.msra.mxu0 0
      %2197 = vmatpush.bf16.msra.mxu0 0
      %2198 = vmatpush.bf16.msra.mxu0 0
      %2199 = vmatpush.bf16.msra.mxu0 0
      %2200 = vmatpush.bf16.msra.mxu0 %v2143
      %2201 = vmatpush.bf16.msra.mxu0 %v2142
      %2202 = vmatpush.bf16.msra.mxu0 %v2141
      %2203 = vmatpush.bf16.msra.mxu0 %v2140
      %2204 = vmatmul.bf16.gmra.mxu0 %v2149
      %v2205 = vpop.f32.mrf.mxu0
      %v2206 = vadd.f32 0.0, %v2205
      %v2207 = vpop.f32.mrf.mxu0
      %v2208 = vadd.f32 0.0, %v2207
      %2209 = vmatmul.bf16.gmra.mxu0 %v2152
      %v2210 = vpop.f32.mrf.mxu0
      %v2211 = vadd.f32 0.0, %v2210
      %v2212 = vpop.f32.mrf.mxu0
      %v2213 = vadd.f32 0.0, %v2212
      %2214 = vmatmul.bf16.gmra.mxu0 %v2155
      %v2215 = vpop.f32.mrf.mxu0
      %v2216 = vadd.f32 0.0, %v2215
      %v2217 = vpop.f32.mrf.mxu0
      %v2218 = vadd.f32 0.0, %v2217
      %2219 = vmatmul.bf16.gmra.mxu0 %v2158
      %v2220 = vpop.f32.mrf.mxu0
      %v2221 = vadd.f32 0.0, %v2220
      %v2222 = vpop.f32.mrf.mxu0
      %v2223 = vadd.f32 0.0, %v2222
      %2224 = vmatmul.bf16.gmra.mxu0 %v2161
      %v2225 = vpop.f32.mrf.mxu0
      %v2226 = vadd.f32 0.0, %v2225
      %v2227 = vpop.f32.mrf.mxu0
      %v2228 = vadd.f32 0.0, %v2227
      %2229 = vmatmul.bf16.gmra.mxu0 %v2164
      %v2230 = vpop.f32.mrf.mxu0
      %v2231 = vadd.f32 0.0, %v2230
      %v2232 = vpop.f32.mrf.mxu0
      %v2233 = vadd.f32 0.0, %v2232
      %2234 = vmatmul.bf16.gmra.mxu0 %v2167
      %v2235 = vpop.f32.mrf.mxu0
      %v2236 = vadd.f32 0.0, %v2235
      %v2237 = vpop.f32.mrf.mxu0
      %v2238 = vadd.f32 0.0, %v2237
      %2239 = vmatmul.bf16.gmra.mxu0 %v2170
      %v2240 = vpop.f32.mrf.mxu0
      %v2241 = vadd.f32 0.0, %v2240
      %v2242 = vpop.f32.mrf.mxu0
      %v2243 = vadd.f32 0.0, %v2242
      %2244 = vmatmul.bf16.gmra.mxu0 %v2173
      %v2245 = vpop.f32.mrf.mxu0
      %v2246 = vadd.f32 0.0, %v2245
      %v2247 = vpop.f32.mrf.mxu0
      %v2248 = vadd.f32 0.0, %v2247
      %2249 = vmatmul.bf16.gmra.mxu0 %v2176
      %v2250 = vpop.f32.mrf.mxu0
      %v2251 = vadd.f32 0.0, %v2250
      %v2252 = vpop.f32.mrf.mxu0
      %v2253 = vadd.f32 0.0, %v2252
      %2254 = vmatmul.bf16.gmra.mxu0 %v2179
      %v2255 = vpop.f32.mrf.mxu0
      %v2256 = vadd.f32 0.0, %v2255
      %v2257 = vpop.f32.mrf.mxu0
      %v2258 = vadd.f32 0.0, %v2257
      %2259 = vmatmul.bf16.gmra.mxu0 %v2182
      %v2260 = vpop.f32.mrf.mxu0
      %v2261 = vadd.f32 0.0, %v2260
      %v2262 = vpop.f32.mrf.mxu0
      %v2263 = vadd.f32 0.0, %v2262
      %2264 = vmatmul.bf16.gmra.mxu0 %v2185
      %v2265 = vpop.f32.mrf.mxu0
      %v2266 = vadd.f32 0.0, %v2265
      %v2267 = vpop.f32.mrf.mxu0
      %v2268 = vadd.f32 0.0, %v2267
      %2269 = vmatmul.bf16.gmra.mxu0 %v2188
      %v2270 = vpop.f32.mrf.mxu0
      %v2271 = vadd.f32 0.0, %v2270
      %v2272 = vpop.f32.mrf.mxu0
      %v2273 = vadd.f32 0.0, %v2272
      %2274 = vmatmul.bf16.gmra.mxu0 %v2191
      %v2275 = vpop.f32.mrf.mxu0
      %v2276 = vadd.f32 0.0, %v2275
      %v2277 = vpop.f32.mrf.mxu0
      %v2278 = vadd.f32 0.0, %v2277
      %2279 = vmatmul.bf16.gmra.mxu0 %v2194
      %v2280 = vpop.f32.mrf.mxu0
      %v2281 = vadd.f32 0.0, %v2280
      %v2282 = vpop.f32.mrf.mxu0
      %v2283 = vadd.f32 0.0, %v2282
      %2284 = vdwg.mxu0
      %v2285 = vadd.f32 %v2035, %v2206
      %v2286 = vadd.f32 %v2036, %v2208
      %v2287 = vadd.f32 %v2037, %v2211
      %v2288 = vadd.f32 %v2038, %v2213
      %v2289 = vadd.f32 %v2039, %v2216
      %v2290 = vadd.f32 %v2040, %v2218
      %v2291 = vadd.f32 %v2041, %v2221
      %v2292 = vadd.f32 %v2042, %v2223
      %v2293 = vadd.f32 %v2043, %v2226
      %v2294 = vadd.f32 %v2044, %v2228
      %v2295 = vadd.f32 %v2045, %v2231
      %v2296 = vadd.f32 %v2046, %v2233
      %v2297 = vadd.f32 %v2047, %v2236
      %v2298 = vadd.f32 %v2048, %v2238
      %v2299 = vadd.f32 %v2049, %v2241
      %v2300 = vadd.f32 %v2050, %v2243
      %v2301 = vadd.f32 %v2051, %v2246
      %v2302 = vadd.f32 %v2052, %v2248
      %v2303 = vadd.f32 %v2053, %v2251
      %v2304 = vadd.f32 %v2054, %v2253
      %v2305 = vadd.f32 %v2055, %v2256
      %v2306 = vadd.f32 %v2056, %v2258
      %v2307 = vadd.f32 %v2057, %v2261
      %v2308 = vadd.f32 %v2058, %v2263
      %v2309 = vadd.f32 %v2059, %v2266
      %v2310 = vadd.f32 %v2060, %v2268
      %v2311 = vadd.f32 %v2061, %v2271
      %v2312 = vadd.f32 %v2062, %v2273
      %v2313 = vadd.f32 %v2063, %v2276
      %v2314 = vadd.f32 %v2064, %v2278
      %v2315 = vadd.f32 %v2065, %v2281
      %v2316 = vadd.f32 %v2066, %v2283
      %v2317 = vld [vmem:[%s1099 + $0x2] sm:$0xff]
      %v2318 = vld [vmem:[%s1099 + $0xa] sm:$0xff]
      %v2319 = vld [vmem:[%s1099 + $0x1a] sm:$0xff]
      %v2320 = vld [vmem:[%s1099 + $0x22] sm:$0xff]
      %v2321 = vld [vmem:[%s1099 + $0x32] sm:$0xff]
      %v2322 = vld [vmem:[%s1099 + $0x3a] sm:$0xff]
      %v2323 = vld [vmem:[%s1099 + $0x4a] sm:$0xff]
      %v2324 = vld [vmem:[%s1099 + $0x52] sm:$0xff]
      %v2325 = vld [vmem:[%s1099 + $0x62] sm:$0xff]
      %v2326 = vld [vmem:[%s1099 + $0x6a] sm:$0xff]
      %v2327 = vld [vmem:[%s1099 + $0x7a] sm:$0xff]
      %v2328 = vld [vmem:[%s1099 + $0x82] sm:$0xff]
      %v2329 = vld [vmem:[%s1099 + $0x92] sm:$0xff]
      %v2330 = vld [vmem:[%s1099 + $0x9a] sm:$0xff]
      %v2331 = vld [vmem:[%s1099 + $0xaa] sm:$0xff]
      %v2332 = vld [vmem:[%s1099 + $0xb2] sm:$0xff]
      %v2333 = vld [vmem:[%s1099 + $0xc2] sm:$0xff]
      %v2334 = vld [vmem:[%s1099 + $0xca] sm:$0xff]
      %v2335 = vld [vmem:[%s1099 + $0xda] sm:$0xff]
      %v2336 = vld [vmem:[%s1099 + $0xe2] sm:$0xff]
      %v2337 = vld [vmem:[%s1099 + $0xf2] sm:$0xff]
      %v2338 = vld [vmem:[%s1099 + $0xfa] sm:$0xff]
      %v2339 = vld [vmem:[%s1099 + $0x10a] sm:$0xff]
      %v2340 = vld [vmem:[%s1099 + $0x112] sm:$0xff]
      %v2341 = vld [vmem:[%s1099 + $0x122] sm:$0xff]
      %v2342 = vld [vmem:[%s1099 + $0x12a] sm:$0xff]
      %v2343 = vld [vmem:[%s1099 + $0x13a] sm:$0xff]
      %v2344 = vld [vmem:[%s1099 + $0x142] sm:$0xff]
      %v2345 = vld [vmem:[%s1099 + $0x152] sm:$0xff]
      %v2346 = vld [vmem:[%s1099 + $0x15a] sm:$0xff]
      %v2347 = vld [vmem:[%s1099 + $0x16a] sm:$0xff]
      %v2348 = vld [vmem:[%s1099 + $0x172] sm:$0xff]
      %v2349 = vpack.c.bf16 %v2318, %v2317
      %v2350 = vpack.c.bf16 %v2320, %v2319
      %v2351 = vpack.c.bf16 %v2322, %v2321
      %v2352 = vpack.c.bf16 %v2324, %v2323
      %v2353 = vpack.c.bf16 %v2326, %v2325
      %v2354 = vpack.c.bf16 %v2328, %v2327
      %v2355 = vpack.c.bf16 %v2330, %v2329
      %v2356 = vpack.c.bf16 %v2332, %v2331
      %v2357 = vpack.c.bf16 %v2334, %v2333
      %v2358 = vpack.c.bf16 %v2336, %v2335
      %v2359 = vpack.c.bf16 %v2338, %v2337
      %v2360 = vpack.c.bf16 %v2340, %v2339
      %v2361 = vpack.c.bf16 %v2342, %v2341
      %v2362 = vpack.c.bf16 %v2344, %v2343
      %v2363 = vpack.c.bf16 %v2346, %v2345
      %v2364 = vpack.c.bf16 %v2348, %v2347
      %s2365 = scalar_lea.vmem %s3, 160
      %v2366 = vld [vmem:[%s2365] sm:$0xf]
      %v2367 = vld [vmem:[%s2365 + $0x4] sm:$0xf]
      %v2368 = vld [vmem:[%s2365 + $0x8] sm:$0xf]
      %v2369 = vld [vmem:[%s2365 + $0xc] sm:$0xf]
      %v2370 = vld [vmem:[%s2365 + $0x10] sm:$0xf]
      %v2371 = vld [vmem:[%s2365 + $0x14] sm:$0xf]
      %v2372 = vld [vmem:[%s2365 + $0x18] sm:$0xf]
      %v2373 = vld [vmem:[%s2365 + $0x1c] sm:$0xf]
      %v2382 = vunpack.c.l.b16 %v2366
      %v2383 = vunpack.c.l.b16 %v2367
      %v2384 = vunpack.c.l.b16 %v2368
      %v2385 = vunpack.c.l.b16 %v2369
      %v2386 = vunpack.c.l.b16 %v2370
      %v2387 = vunpack.c.l.b16 %v2371
      %v2388 = vunpack.c.l.b16 %v2372
      %v2389 = vunpack.c.l.b16 %v2373
      %v2390 = vpack.c.b16 %v2383, %v2382
      %v2391 = vpack.c.b16 %v2385, %v2384
      %v2392 = vpack.c.b16 %v2387, %v2386
      %v2393 = vpack.c.b16 %v2389, %v2388
      %v2399 = vsel %vm696, %v2349, 0
      %v2402 = vsel %vm696, %v2350, 0
      %v2405 = vsel %vm696, %v2351, 0
      %v2408 = vsel %vm696, %v2352, 0
      %v2411 = vsel %vm696, %v2353, 0
      %v2414 = vsel %vm696, %v2354, 0
      %v2417 = vsel %vm696, %v2355, 0
      %v2420 = vsel %vm696, %v2356, 0
      %v2423 = vsel %vm696, %v2357, 0
      %v2426 = vsel %vm696, %v2358, 0
      %v2429 = vsel %vm696, %v2359, 0
      %v2432 = vsel %vm696, %v2360, 0
      %v2435 = vsel %vm696, %v2361, 0
      %v2438 = vsel %vm696, %v2362, 0
      %v2441 = vsel %vm696, %v2363, 0
      %v2444 = vsel %vm696, %v2364, 0
      %2446 = vmatpush.bf16.msra.mxu0 0
      %2447 = vmatpush.bf16.msra.mxu0 0
      %2448 = vmatpush.bf16.msra.mxu0 0
      %2449 = vmatpush.bf16.msra.mxu0 0
      %2450 = vmatpush.bf16.msra.mxu0 %v2393
      %2451 = vmatpush.bf16.msra.mxu0 %v2392
      %2452 = vmatpush.bf16.msra.mxu0 %v2391
      %2453 = vmatpush.bf16.msra.mxu0 %v2390
      %2454 = vmatmul.bf16.gmra.mxu0 %v2399
      %v2455 = vpop.f32.mrf.mxu0
      %v2456 = vadd.f32 0.0, %v2455
      %v2457 = vpop.f32.mrf.mxu0
      %v2458 = vadd.f32 0.0, %v2457
      %2459 = vmatmul.bf16.gmra.mxu0 %v2402
      %v2460 = vpop.f32.mrf.mxu0
      %v2461 = vadd.f32 0.0, %v2460
      %v2462 = vpop.f32.mrf.mxu0
      %v2463 = vadd.f32 0.0, %v2462
      %2464 = vmatmul.bf16.gmra.mxu0 %v2405
      %v2465 = vpop.f32.mrf.mxu0
      %v2466 = vadd.f32 0.0, %v2465
      %v2467 = vpop.f32.mrf.mxu0
      %v2468 = vadd.f32 0.0, %v2467
      %2469 = vmatmul.bf16.gmra.mxu0 %v2408
      %v2470 = vpop.f32.mrf.mxu0
      %v2471 = vadd.f32 0.0, %v2470
      %v2472 = vpop.f32.mrf.mxu0
      %v2473 = vadd.f32 0.0, %v2472
      %2474 = vmatmul.bf16.gmra.mxu0 %v2411
      %v2475 = vpop.f32.mrf.mxu0
      %v2476 = vadd.f32 0.0, %v2475
      %v2477 = vpop.f32.mrf.mxu0
      %v2478 = vadd.f32 0.0, %v2477
      %2479 = vmatmul.bf16.gmra.mxu0 %v2414
      %v2480 = vpop.f32.mrf.mxu0
      %v2481 = vadd.f32 0.0, %v2480
      %v2482 = vpop.f32.mrf.mxu0
      %v2483 = vadd.f32 0.0, %v2482
      %2484 = vmatmul.bf16.gmra.mxu0 %v2417
      %v2485 = vpop.f32.mrf.mxu0
      %v2486 = vadd.f32 0.0, %v2485
      %v2487 = vpop.f32.mrf.mxu0
      %v2488 = vadd.f32 0.0, %v2487
      %2489 = vmatmul.bf16.gmra.mxu0 %v2420
      %v2490 = vpop.f32.mrf.mxu0
      %v2491 = vadd.f32 0.0, %v2490
      %v2492 = vpop.f32.mrf.mxu0
      %v2493 = vadd.f32 0.0, %v2492
      %2494 = vmatmul.bf16.gmra.mxu0 %v2423
      %v2495 = vpop.f32.mrf.mxu0
      %v2496 = vadd.f32 0.0, %v2495
      %v2497 = vpop.f32.mrf.mxu0
      %v2498 = vadd.f32 0.0, %v2497
      %2499 = vmatmul.bf16.gmra.mxu0 %v2426
      %v2500 = vpop.f32.mrf.mxu0
      %v2501 = vadd.f32 0.0, %v2500
      %v2502 = vpop.f32.mrf.mxu0
      %v2503 = vadd.f32 0.0, %v2502
      %2504 = vmatmul.bf16.gmra.mxu0 %v2429
      %v2505 = vpop.f32.mrf.mxu0
      %v2506 = vadd.f32 0.0, %v2505
      %v2507 = vpop.f32.mrf.mxu0
      %v2508 = vadd.f32 0.0, %v2507
      %2509 = vmatmul.bf16.gmra.mxu0 %v2432
      %v2510 = vpop.f32.mrf.mxu0
      %v2511 = vadd.f32 0.0, %v2510
      %v2512 = vpop.f32.mrf.mxu0
      %v2513 = vadd.f32 0.0, %v2512
      %2514 = vmatmul.bf16.gmra.mxu0 %v2435
      %v2515 = vpop.f32.mrf.mxu0
      %v2516 = vadd.f32 0.0, %v2515
      %v2517 = vpop.f32.mrf.mxu0
      %v2518 = vadd.f32 0.0, %v2517
      %2519 = vmatmul.bf16.gmra.mxu0 %v2438
      %v2520 = vpop.f32.mrf.mxu0
      %v2521 = vadd.f32 0.0, %v2520
      %v2522 = vpop.f32.mrf.mxu0
      %v2523 = vadd.f32 0.0, %v2522
      %2524 = vmatmul.bf16.gmra.mxu0 %v2441
      %v2525 = vpop.f32.mrf.mxu0
      %v2526 = vadd.f32 0.0, %v2525
      %v2527 = vpop.f32.mrf.mxu0
      %v2528 = vadd.f32 0.0, %v2527
      %2529 = vmatmul.bf16.gmra.mxu0 %v2444
      %v2530 = vpop.f32.mrf.mxu0
      %v2531 = vadd.f32 0.0, %v2530
      %v2532 = vpop.f32.mrf.mxu0
      %v2533 = vadd.f32 0.0, %v2532
      %2534 = vdwg.mxu0
      %v2535 = vadd.f32 %v2285, %v2456
      %v2536 = vadd.f32 %v2286, %v2458
      %v2537 = vadd.f32 %v2287, %v2461
      %v2538 = vadd.f32 %v2288, %v2463
      %v2539 = vadd.f32 %v2289, %v2466
      %v2540 = vadd.f32 %v2290, %v2468
      %v2541 = vadd.f32 %v2291, %v2471
      %v2542 = vadd.f32 %v2292, %v2473
      %v2543 = vadd.f32 %v2293, %v2476
      %v2544 = vadd.f32 %v2294, %v2478
      %v2545 = vadd.f32 %v2295, %v2481
      %v2546 = vadd.f32 %v2296, %v2483
      %v2547 = vadd.f32 %v2297, %v2486
      %v2548 = vadd.f32 %v2298, %v2488
      %v2549 = vadd.f32 %v2299, %v2491
      %v2550 = vadd.f32 %v2300, %v2493
      %v2551 = vadd.f32 %v2301, %v2496
      %v2552 = vadd.f32 %v2302, %v2498
      %v2553 = vadd.f32 %v2303, %v2501
      %v2554 = vadd.f32 %v2304, %v2503
      %v2555 = vadd.f32 %v2305, %v2506
      %v2556 = vadd.f32 %v2306, %v2508
      %v2557 = vadd.f32 %v2307, %v2511
      %v2558 = vadd.f32 %v2308, %v2513
      %v2559 = vadd.f32 %v2309, %v2516
      %v2560 = vadd.f32 %v2310, %v2518
      %v2561 = vadd.f32 %v2311, %v2521
      %v2562 = vadd.f32 %v2312, %v2523
      %v2563 = vadd.f32 %v2313, %v2526
      %v2564 = vadd.f32 %v2314, %v2528
      %v2565 = vadd.f32 %v2315, %v2531
      %v2566 = vadd.f32 %v2316, %v2533
      %s2567 = scalar_lea.vmem [#allocation2], 48
      %v2568 = vld [vmem:[%s2567] sm:$0xff]
      %v2569 = vld [vmem:[%s2567 + $0x8] sm:$0xff]
      %v2570 = vld [vmem:[%s2567 + $0x18] sm:$0xff]
      %v2571 = vld [vmem:[%s2567 + $0x20] sm:$0xff]
      %v2572 = vld [vmem:[%s2567 + $0x30] sm:$0xff]
      %v2573 = vld [vmem:[%s2567 + $0x38] sm:$0xff]
      %v2574 = vld [vmem:[%s2567 + $0x48] sm:$0xff]
      %v2575 = vld [vmem:[%s2567 + $0x50] sm:$0xff]
      %v2576 = vld [vmem:[%s2567 + $0x60] sm:$0xff]
      %v2577 = vld [vmem:[%s2567 + $0x68] sm:$0xff]
      %v2578 = vld [vmem:[%s2567 + $0x78] sm:$0xff]
      %v2579 = vld [vmem:[%s2567 + $0x80] sm:$0xff]
      %v2580 = vld [vmem:[%s2567 + $0x90] sm:$0xff]
      %v2581 = vld [vmem:[%s2567 + $0x98] sm:$0xff]
      %v2582 = vld [vmem:[%s2567 + $0xa8] sm:$0xff]
      %v2583 = vld [vmem:[%s2567 + $0xb0] sm:$0xff]
      %v2584 = vld [vmem:[%s2567 + $0xc0] sm:$0xff]
      %v2585 = vld [vmem:[%s2567 + $0xc8] sm:$0xff]
      %v2586 = vld [vmem:[%s2567 + $0xd8] sm:$0xff]
      %v2587 = vld [vmem:[%s2567 + $0xe0] sm:$0xff]
      %v2588 = vld [vmem:[%s2567 + $0xf0] sm:$0xff]
      %v2589 = vld [vmem:[%s2567 + $0xf8] sm:$0xff]
      %v2590 = vld [vmem:[%s2567 + $0x108] sm:$0xff]
      %v2591 = vld [vmem:[%s2567 + $0x110] sm:$0xff]
      %v2592 = vld [vmem:[%s2567 + $0x120] sm:$0xff]
      %v2593 = vld [vmem:[%s2567 + $0x128] sm:$0xff]
      %v2594 = vld [vmem:[%s2567 + $0x138] sm:$0xff]
      %v2595 = vld [vmem:[%s2567 + $0x140] sm:$0xff]
      %v2596 = vld [vmem:[%s2567 + $0x150] sm:$0xff]
      %v2597 = vld [vmem:[%s2567 + $0x158] sm:$0xff]
      %v2598 = vld [vmem:[%s2567 + $0x168] sm:$0xff]
      %v2599 = vld [vmem:[%s2567 + $0x170] sm:$0xff]
      %v2600 = vpack.c.bf16 %v2569, %v2568
      %v2601 = vpack.c.bf16 %v2571, %v2570
      %v2602 = vpack.c.bf16 %v2573, %v2572
      %v2603 = vpack.c.bf16 %v2575, %v2574
      %v2604 = vpack.c.bf16 %v2577, %v2576
      %v2605 = vpack.c.bf16 %v2579, %v2578
      %v2606 = vpack.c.bf16 %v2581, %v2580
      %v2607 = vpack.c.bf16 %v2583, %v2582
      %v2608 = vpack.c.bf16 %v2585, %v2584
      %v2609 = vpack.c.bf16 %v2587, %v2586
      %v2610 = vpack.c.bf16 %v2589, %v2588
      %v2611 = vpack.c.bf16 %v2591, %v2590
      %v2612 = vpack.c.bf16 %v2593, %v2592
      %v2613 = vpack.c.bf16 %v2595, %v2594
      %v2614 = vpack.c.bf16 %v2597, %v2596
      %v2615 = vpack.c.bf16 %v2599, %v2598
      %s2616 = scalar_lea.vmem %s3, 192
      %v2617 = vld [vmem:[%s2616] sm:$0xf]
      %v2618 = vld [vmem:[%s2616 + $0x4] sm:$0xf]
      %v2619 = vld [vmem:[%s2616 + $0x8] sm:$0xf]
      %v2620 = vld [vmem:[%s2616 + $0xc] sm:$0xf]
      %v2621 = vld [vmem:[%s2616 + $0x10] sm:$0xf]
      %v2622 = vld [vmem:[%s2616 + $0x14] sm:$0xf]
      %v2623 = vld [vmem:[%s2616 + $0x18] sm:$0xf]
      %v2624 = vld [vmem:[%s2616 + $0x1c] sm:$0xf]
      %v2633 = vunpack.c.l.b16 %v2617
      %v2634 = vunpack.c.l.b16 %v2618
      %v2635 = vunpack.c.l.b16 %v2619
      %v2636 = vunpack.c.l.b16 %v2620
      %v2637 = vunpack.c.l.b16 %v2621
      %v2638 = vunpack.c.l.b16 %v2622
      %v2639 = vunpack.c.l.b16 %v2623
      %v2640 = vunpack.c.l.b16 %v2624
      %v2641 = vpack.c.b16 %v2634, %v2633
      %v2642 = vpack.c.b16 %v2636, %v2635
      %v2643 = vpack.c.b16 %v2638, %v2637
      %v2644 = vpack.c.b16 %v2640, %v2639
      %v2650 = vsel %vm696, %v2600, 0
      %v2653 = vsel %vm696, %v2601, 0
      %v2656 = vsel %vm696, %v2602, 0
      %v2659 = vsel %vm696, %v2603, 0
      %v2662 = vsel %vm696, %v2604, 0
      %v2665 = vsel %vm696, %v2605, 0
      %v2668 = vsel %vm696, %v2606, 0
      %v2671 = vsel %vm696, %v2607, 0
      %v2674 = vsel %vm696, %v2608, 0
      %v2677 = vsel %vm696, %v2609, 0
      %v2680 = vsel %vm696, %v2610, 0
      %v2683 = vsel %vm696, %v2611, 0
      %v2686 = vsel %vm696, %v2612, 0
      %v2689 = vsel %vm696, %v2613, 0
      %v2692 = vsel %vm696, %v2614, 0
      %v2695 = vsel %vm696, %v2615, 0
      %2697 = vmatpush.bf16.msra.mxu0 0
      %2698 = vmatpush.bf16.msra.mxu0 0
      %2699 = vmatpush.bf16.msra.mxu0 0
      %2700 = vmatpush.bf16.msra.mxu0 0
      %2701 = vmatpush.bf16.msra.mxu0 %v2644
      %2702 = vmatpush.bf16.msra.mxu0 %v2643
      %2703 = vmatpush.bf16.msra.mxu0 %v2642
      %2704 = vmatpush.bf16.msra.mxu0 %v2641
      %2705 = vmatmul.bf16.gmra.mxu0 %v2650
      %v2706 = vpop.f32.mrf.mxu0
      %v2707 = vadd.f32 0.0, %v2706
      %v2708 = vpop.f32.mrf.mxu0
      %v2709 = vadd.f32 0.0, %v2708
      %2710 = vmatmul.bf16.gmra.mxu0 %v2653
      %v2711 = vpop.f32.mrf.mxu0
      %v2712 = vadd.f32 0.0, %v2711
      %v2713 = vpop.f32.mrf.mxu0
      %v2714 = vadd.f32 0.0, %v2713
      %2715 = vmatmul.bf16.gmra.mxu0 %v2656
      %v2716 = vpop.f32.mrf.mxu0
      %v2717 = vadd.f32 0.0, %v2716
      %v2718 = vpop.f32.mrf.mxu0
      %v2719 = vadd.f32 0.0, %v2718
      %2720 = vmatmul.bf16.gmra.mxu0 %v2659
      %v2721 = vpop.f32.mrf.mxu0
      %v2722 = vadd.f32 0.0, %v2721
      %v2723 = vpop.f32.mrf.mxu0
      %v2724 = vadd.f32 0.0, %v2723
      %2725 = vmatmul.bf16.gmra.mxu0 %v2662
      %v2726 = vpop.f32.mrf.mxu0
      %v2727 = vadd.f32 0.0, %v2726
      %v2728 = vpop.f32.mrf.mxu0
      %v2729 = vadd.f32 0.0, %v2728
      %2730 = vmatmul.bf16.gmra.mxu0 %v2665
      %v2731 = vpop.f32.mrf.mxu0
      %v2732 = vadd.f32 0.0, %v2731
      %v2733 = vpop.f32.mrf.mxu0
      %v2734 = vadd.f32 0.0, %v2733
      %2735 = vmatmul.bf16.gmra.mxu0 %v2668
      %v2736 = vpop.f32.mrf.mxu0
      %v2737 = vadd.f32 0.0, %v2736
      %v2738 = vpop.f32.mrf.mxu0
      %v2739 = vadd.f32 0.0, %v2738
      %2740 = vmatmul.bf16.gmra.mxu0 %v2671
      %v2741 = vpop.f32.mrf.mxu0
      %v2742 = vadd.f32 0.0, %v2741
      %v2743 = vpop.f32.mrf.mxu0
      %v2744 = vadd.f32 0.0, %v2743
      %2745 = vmatmul.bf16.gmra.mxu0 %v2674
      %v2746 = vpop.f32.mrf.mxu0
      %v2747 = vadd.f32 0.0, %v2746
      %v2748 = vpop.f32.mrf.mxu0
      %v2749 = vadd.f32 0.0, %v2748
      %2750 = vmatmul.bf16.gmra.mxu0 %v2677
      %v2751 = vpop.f32.mrf.mxu0
      %v2752 = vadd.f32 0.0, %v2751
      %v2753 = vpop.f32.mrf.mxu0
      %v2754 = vadd.f32 0.0, %v2753
      %2755 = vmatmul.bf16.gmra.mxu0 %v2680
      %v2756 = vpop.f32.mrf.mxu0
      %v2757 = vadd.f32 0.0, %v2756
      %v2758 = vpop.f32.mrf.mxu0
      %v2759 = vadd.f32 0.0, %v2758
      %2760 = vmatmul.bf16.gmra.mxu0 %v2683
      %v2761 = vpop.f32.mrf.mxu0
      %v2762 = vadd.f32 0.0, %v2761
      %v2763 = vpop.f32.mrf.mxu0
      %v2764 = vadd.f32 0.0, %v2763
      %2765 = vmatmul.bf16.gmra.mxu0 %v2686
      %v2766 = vpop.f32.mrf.mxu0
      %v2767 = vadd.f32 0.0, %v2766
      %v2768 = vpop.f32.mrf.mxu0
      %v2769 = vadd.f32 0.0, %v2768
      %2770 = vmatmul.bf16.gmra.mxu0 %v2689
      %v2771 = vpop.f32.mrf.mxu0
      %v2772 = vadd.f32 0.0, %v2771
      %v2773 = vpop.f32.mrf.mxu0
      %v2774 = vadd.f32 0.0, %v2773
      %2775 = vmatmul.bf16.gmra.mxu0 %v2692
      %v2776 = vpop.f32.mrf.mxu0
      %v2777 = vadd.f32 0.0, %v2776
      %v2778 = vpop.f32.mrf.mxu0
      %v2779 = vadd.f32 0.0, %v2778
      %2780 = vmatmul.bf16.gmra.mxu0 %v2695
      %v2781 = vpop.f32.mrf.mxu0
      %v2782 = vadd.f32 0.0, %v2781
      %v2783 = vpop.f32.mrf.mxu0
      %v2784 = vadd.f32 0.0, %v2783
      %2785 = vdwg.mxu0
      %v2786 = vadd.f32 %v2535, %v2707
      %v2787 = vadd.f32 %v2536, %v2709
      %v2788 = vadd.f32 %v2537, %v2712
      %v2789 = vadd.f32 %v2538, %v2714
      %v2790 = vadd.f32 %v2539, %v2717
      %v2791 = vadd.f32 %v2540, %v2719
      %v2792 = vadd.f32 %v2541, %v2722
      %v2793 = vadd.f32 %v2542, %v2724
      %v2794 = vadd.f32 %v2543, %v2727
      %v2795 = vadd.f32 %v2544, %v2729
      %v2796 = vadd.f32 %v2545, %v2732
      %v2797 = vadd.f32 %v2546, %v2734
      %v2798 = vadd.f32 %v2547, %v2737
      %v2799 = vadd.f32 %v2548, %v2739
      %v2800 = vadd.f32 %v2549, %v2742
      %v2801 = vadd.f32 %v2550, %v2744
      %v2802 = vadd.f32 %v2551, %v2747
      %v2803 = vadd.f32 %v2552, %v2749
      %v2804 = vadd.f32 %v2553, %v2752
      %v2805 = vadd.f32 %v2554, %v2754
      %v2806 = vadd.f32 %v2555, %v2757
      %v2807 = vadd.f32 %v2556, %v2759
      %v2808 = vadd.f32 %v2557, %v2762
      %v2809 = vadd.f32 %v2558, %v2764
      %v2810 = vadd.f32 %v2559, %v2767
      %v2811 = vadd.f32 %v2560, %v2769
      %v2812 = vadd.f32 %v2561, %v2772
      %v2813 = vadd.f32 %v2562, %v2774
      %v2814 = vadd.f32 %v2563, %v2777
      %v2815 = vadd.f32 %v2564, %v2779
      %v2816 = vadd.f32 %v2565, %v2782
      %v2817 = vadd.f32 %v2566, %v2784
      %v2818 = vld [vmem:[%s2567 + $0x1] sm:$0xff]
      %v2819 = vld [vmem:[%s2567 + $0x9] sm:$0xff]
      %v2820 = vld [vmem:[%s2567 + $0x19] sm:$0xff]
      %v2821 = vld [vmem:[%s2567 + $0x21] sm:$0xff]
      %v2822 = vld [vmem:[%s2567 + $0x31] sm:$0xff]
      %v2823 = vld [vmem:[%s2567 + $0x39] sm:$0xff]
      %v2824 = vld [vmem:[%s2567 + $0x49] sm:$0xff]
      %v2825 = vld [vmem:[%s2567 + $0x51] sm:$0xff]
      %v2826 = vld [vmem:[%s2567 + $0x61] sm:$0xff]
      %v2827 = vld [vmem:[%s2567 + $0x69] sm:$0xff]
      %v2828 = vld [vmem:[%s2567 + $0x79] sm:$0xff]
      %v2829 = vld [vmem:[%s2567 + $0x81] sm:$0xff]
      %v2830 = vld [vmem:[%s2567 + $0x91] sm:$0xff]
      %v2831 = vld [vmem:[%s2567 + $0x99] sm:$0xff]
      %v2832 = vld [vmem:[%s2567 + $0xa9] sm:$0xff]
      %v2833 = vld [vmem:[%s2567 + $0xb1] sm:$0xff]
      %v2834 = vld [vmem:[%s2567 + $0xc1] sm:$0xff]
      %v2835 = vld [vmem:[%s2567 + $0xc9] sm:$0xff]
      %v2836 = vld [vmem:[%s2567 + $0xd9] sm:$0xff]
      %v2837 = vld [vmem:[%s2567 + $0xe1] sm:$0xff]
      %v2838 = vld [vmem:[%s2567 + $0xf1] sm:$0xff]
      %v2839 = vld [vmem:[%s2567 + $0xf9] sm:$0xff]
      %v2840 = vld [vmem:[%s2567 + $0x109] sm:$0xff]
      %v2841 = vld [vmem:[%s2567 + $0x111] sm:$0xff]
      %v2842 = vld [vmem:[%s2567 + $0x121] sm:$0xff]
      %v2843 = vld [vmem:[%s2567 + $0x129] sm:$0xff]
      %v2844 = vld [vmem:[%s2567 + $0x139] sm:$0xff]
      %v2845 = vld [vmem:[%s2567 + $0x141] sm:$0xff]
      %v2846 = vld [vmem:[%s2567 + $0x151] sm:$0xff]
      %v2847 = vld [vmem:[%s2567 + $0x159] sm:$0xff]
      %v2848 = vld [vmem:[%s2567 + $0x169] sm:$0xff]
      %v2849 = vld [vmem:[%s2567 + $0x171] sm:$0xff]
      %v2850 = vpack.c.bf16 %v2819, %v2818
      %v2851 = vpack.c.bf16 %v2821, %v2820
      %v2852 = vpack.c.bf16 %v2823, %v2822
      %v2853 = vpack.c.bf16 %v2825, %v2824
      %v2854 = vpack.c.bf16 %v2827, %v2826
      %v2855 = vpack.c.bf16 %v2829, %v2828
      %v2856 = vpack.c.bf16 %v2831, %v2830
      %v2857 = vpack.c.bf16 %v2833, %v2832
      %v2858 = vpack.c.bf16 %v2835, %v2834
      %v2859 = vpack.c.bf16 %v2837, %v2836
      %v2860 = vpack.c.bf16 %v2839, %v2838
      %v2861 = vpack.c.bf16 %v2841, %v2840
      %v2862 = vpack.c.bf16 %v2843, %v2842
      %v2863 = vpack.c.bf16 %v2845, %v2844
      %v2864 = vpack.c.bf16 %v2847, %v2846
      %v2865 = vpack.c.bf16 %v2849, %v2848
      %s2866 = scalar_lea.vmem %s3, 224
      %v2867 = vld [vmem:[%s2866] sm:$0xf]
      %v2868 = vld [vmem:[%s2866 + $0x4] sm:$0xf]
      %v2869 = vld [vmem:[%s2866 + $0x8] sm:$0xf]
      %v2870 = vld [vmem:[%s2866 + $0xc] sm:$0xf]
      %v2871 = vld [vmem:[%s2866 + $0x10] sm:$0xf]
      %v2872 = vld [vmem:[%s2866 + $0x14] sm:$0xf]
      %v2873 = vld [vmem:[%s2866 + $0x18] sm:$0xf]
      %v2874 = vld [vmem:[%s2866 + $0x1c] sm:$0xf]
      %v2883 = vunpack.c.l.b16 %v2867
      %v2884 = vunpack.c.l.b16 %v2868
      %v2885 = vunpack.c.l.b16 %v2869
      %v2886 = vunpack.c.l.b16 %v2870
      %v2887 = vunpack.c.l.b16 %v2871
      %v2888 = vunpack.c.l.b16 %v2872
      %v2889 = vunpack.c.l.b16 %v2873
      %v2890 = vunpack.c.l.b16 %v2874
      %v2891 = vpack.c.b16 %v2884, %v2883
      %v2892 = vpack.c.b16 %v2886, %v2885
      %v2893 = vpack.c.b16 %v2888, %v2887
      %v2894 = vpack.c.b16 %v2890, %v2889
      %v2900 = vsel %vm696, %v2850, 0
      %v2903 = vsel %vm696, %v2851, 0
      %v2906 = vsel %vm696, %v2852, 0
      %v2909 = vsel %vm696, %v2853, 0
      %v2912 = vsel %vm696, %v2854, 0
      %v2915 = vsel %vm696, %v2855, 0
      %v2918 = vsel %vm696, %v2856, 0
      %v2921 = vsel %vm696, %v2857, 0
      %v2924 = vsel %vm696, %v2858, 0
      %v2927 = vsel %vm696, %v2859, 0
      %v2930 = vsel %vm696, %v2860, 0
      %v2933 = vsel %vm696, %v2861, 0
      %v2936 = vsel %vm696, %v2862, 0
      %v2939 = vsel %vm696, %v2863, 0
      %v2942 = vsel %vm696, %v2864, 0
      %v2945 = vsel %vm696, %v2865, 0
      %2947 = vmatpush.bf16.msra.mxu0 0
      %2948 = vmatpush.bf16.msra.mxu0 0
      %2949 = vmatpush.bf16.msra.mxu0 0
      %2950 = vmatpush.bf16.msra.mxu0 0
      %2951 = vmatpush.bf16.msra.mxu0 %v2894
      %2952 = vmatpush.bf16.msra.mxu0 %v2893
      %2953 = vmatpush.bf16.msra.mxu0 %v2892
      %2954 = vmatpush.bf16.msra.mxu0 %v2891
      %2955 = vmatmul.bf16.gmra.mxu0 %v2900
      %v2956 = vpop.f32.mrf.mxu0
      %v2957 = vadd.f32 0.0, %v2956
      %v2958 = vpop.f32.mrf.mxu0
      %v2959 = vadd.f32 0.0, %v2958
      %2960 = vmatmul.bf16.gmra.mxu0 %v2903
      %v2961 = vpop.f32.mrf.mxu0
      %v2962 = vadd.f32 0.0, %v2961
      %v2963 = vpop.f32.mrf.mxu0
      %v2964 = vadd.f32 0.0, %v2963
      %2965 = vmatmul.bf16.gmra.mxu0 %v2906
      %v2966 = vpop.f32.mrf.mxu0
      %v2967 = vadd.f32 0.0, %v2966
      %v2968 = vpop.f32.mrf.mxu0
      %v2969 = vadd.f32 0.0, %v2968
      %2970 = vmatmul.bf16.gmra.mxu0 %v2909
      %v2971 = vpop.f32.mrf.mxu0
      %v2972 = vadd.f32 0.0, %v2971
      %v2973 = vpop.f32.mrf.mxu0
      %v2974 = vadd.f32 0.0, %v2973
      %2975 = vmatmul.bf16.gmra.mxu0 %v2912
      %v2976 = vpop.f32.mrf.mxu0
      %v2977 = vadd.f32 0.0, %v2976
      %v2978 = vpop.f32.mrf.mxu0
      %v2979 = vadd.f32 0.0, %v2978
      %2980 = vmatmul.bf16.gmra.mxu0 %v2915
      %v2981 = vpop.f32.mrf.mxu0
      %v2982 = vadd.f32 0.0, %v2981
      %v2983 = vpop.f32.mrf.mxu0
      %v2984 = vadd.f32 0.0, %v2983
      %2985 = vmatmul.bf16.gmra.mxu0 %v2918
      %v2986 = vpop.f32.mrf.mxu0
      %v2987 = vadd.f32 0.0, %v2986
      %v2988 = vpop.f32.mrf.mxu0
      %v2989 = vadd.f32 0.0, %v2988
      %2990 = vmatmul.bf16.gmra.mxu0 %v2921
      %v2991 = vpop.f32.mrf.mxu0
      %v2992 = vadd.f32 0.0, %v2991
      %v2993 = vpop.f32.mrf.mxu0
      %v2994 = vadd.f32 0.0, %v2993
      %2995 = vmatmul.bf16.gmra.mxu0 %v2924
      %v2996 = vpop.f32.mrf.mxu0
      %v2997 = vadd.f32 0.0, %v2996
      %v2998 = vpop.f32.mrf.mxu0
      %v2999 = vadd.f32 0.0, %v2998
      %3000 = vmatmul.bf16.gmra.mxu0 %v2927
      %v3001 = vpop.f32.mrf.mxu0
      %v3002 = vadd.f32 0.0, %v3001
      %v3003 = vpop.f32.mrf.mxu0
      %v3004 = vadd.f32 0.0, %v3003
      %3005 = vmatmul.bf16.gmra.mxu0 %v2930
      %v3006 = vpop.f32.mrf.mxu0
      %v3007 = vadd.f32 0.0, %v3006
      %v3008 = vpop.f32.mrf.mxu0
      %v3009 = vadd.f32 0.0, %v3008
      %3010 = vmatmul.bf16.gmra.mxu0 %v2933
      %v3011 = vpop.f32.mrf.mxu0
      %v3012 = vadd.f32 0.0, %v3011
      %v3013 = vpop.f32.mrf.mxu0
      %v3014 = vadd.f32 0.0, %v3013
      %3015 = vmatmul.bf16.gmra.mxu0 %v2936
      %v3016 = vpop.f32.mrf.mxu0
      %v3017 = vadd.f32 0.0, %v3016
      %v3018 = vpop.f32.mrf.mxu0
      %v3019 = vadd.f32 0.0, %v3018
      %3020 = vmatmul.bf16.gmra.mxu0 %v2939
      %v3021 = vpop.f32.mrf.mxu0
      %v3022 = vadd.f32 0.0, %v3021
      %v3023 = vpop.f32.mrf.mxu0
      %v3024 = vadd.f32 0.0, %v3023
      %3025 = vmatmul.bf16.gmra.mxu0 %v2942
      %v3026 = vpop.f32.mrf.mxu0
      %v3027 = vadd.f32 0.0, %v3026
      %v3028 = vpop.f32.mrf.mxu0
      %v3029 = vadd.f32 0.0, %v3028
      %3030 = vmatmul.bf16.gmra.mxu0 %v2945
      %v3031 = vpop.f32.mrf.mxu0
      %v3032 = vadd.f32 0.0, %v3031
      %v3033 = vpop.f32.mrf.mxu0
      %v3034 = vadd.f32 0.0, %v3033
      %3035 = vdwg.mxu0
      %v3036 = vadd.f32 %v2786, %v2957
      %v3037 = vadd.f32 %v2787, %v2959
      %v3038 = vadd.f32 %v2788, %v2962
      %v3039 = vadd.f32 %v2789, %v2964
      %v3040 = vadd.f32 %v2790, %v2967
      %v3041 = vadd.f32 %v2791, %v2969
      %v3042 = vadd.f32 %v2792, %v2972
      %v3043 = vadd.f32 %v2793, %v2974
      %v3044 = vadd.f32 %v2794, %v2977
      %v3045 = vadd.f32 %v2795, %v2979
      %v3046 = vadd.f32 %v2796, %v2982
      %v3047 = vadd.f32 %v2797, %v2984
      %v3048 = vadd.f32 %v2798, %v2987
      %v3049 = vadd.f32 %v2799, %v2989
      %v3050 = vadd.f32 %v2800, %v2992
      %v3051 = vadd.f32 %v2801, %v2994
      %v3052 = vadd.f32 %v2802, %v2997
      %v3053 = vadd.f32 %v2803, %v2999
      %v3054 = vadd.f32 %v2804, %v3002
      %v3055 = vadd.f32 %v2805, %v3004
      %v3056 = vadd.f32 %v2806, %v3007
      %v3057 = vadd.f32 %v2807, %v3009
      %v3058 = vadd.f32 %v2808, %v3012
      %v3059 = vadd.f32 %v2809, %v3014
      %v3060 = vadd.f32 %v2810, %v3017
      %v3061 = vadd.f32 %v2811, %v3019
      %v3062 = vadd.f32 %v2812, %v3022
      %v3063 = vadd.f32 %v2813, %v3024
      %v3064 = vadd.f32 %v2814, %v3027
      %v3065 = vadd.f32 %v2815, %v3029
      %v3066 = vadd.f32 %v2816, %v3032
      %v3067 = vadd.f32 %v2817, %v3034
      %v3068 = vld [vmem:[%s2567 + $0x2] sm:$0xff]
      %v3069 = vld [vmem:[%s2567 + $0xa] sm:$0xff]
      %v3070 = vld [vmem:[%s2567 + $0x1a] sm:$0xff]
      %v3071 = vld [vmem:[%s2567 + $0x22] sm:$0xff]
      %v3072 = vld [vmem:[%s2567 + $0x32] sm:$0xff]
      %v3073 = vld [vmem:[%s2567 + $0x3a] sm:$0xff]
      %v3074 = vld [vmem:[%s2567 + $0x4a] sm:$0xff]
      %v3075 = vld [vmem:[%s2567 + $0x52] sm:$0xff]
      %v3076 = vld [vmem:[%s2567 + $0x62] sm:$0xff]
      %v3077 = vld [vmem:[%s2567 + $0x6a] sm:$0xff]
      %v3078 = vld [vmem:[%s2567 + $0x7a] sm:$0xff]
      %v3079 = vld [vmem:[%s2567 + $0x82] sm:$0xff]
      %v3080 = vld [vmem:[%s2567 + $0x92] sm:$0xff]
      %v3081 = vld [vmem:[%s2567 + $0x9a] sm:$0xff]
      %v3082 = vld [vmem:[%s2567 + $0xaa] sm:$0xff]
      %v3083 = vld [vmem:[%s2567 + $0xb2] sm:$0xff]
      %v3084 = vld [vmem:[%s2567 + $0xc2] sm:$0xff]
      %v3085 = vld [vmem:[%s2567 + $0xca] sm:$0xff]
      %v3086 = vld [vmem:[%s2567 + $0xda] sm:$0xff]
      %v3087 = vld [vmem:[%s2567 + $0xe2] sm:$0xff]
      %v3088 = vld [vmem:[%s2567 + $0xf2] sm:$0xff]
      %v3089 = vld [vmem:[%s2567 + $0xfa] sm:$0xff]
      %v3090 = vld [vmem:[%s2567 + $0x10a] sm:$0xff]
      %v3091 = vld [vmem:[%s2567 + $0x112] sm:$0xff]
      %v3092 = vld [vmem:[%s2567 + $0x122] sm:$0xff]
      %v3093 = vld [vmem:[%s2567 + $0x12a] sm:$0xff]
      %v3094 = vld [vmem:[%s2567 + $0x13a] sm:$0xff]
      %v3095 = vld [vmem:[%s2567 + $0x142] sm:$0xff]
      %v3096 = vld [vmem:[%s2567 + $0x152] sm:$0xff]
      %v3097 = vld [vmem:[%s2567 + $0x15a] sm:$0xff]
      %v3098 = vld [vmem:[%s2567 + $0x16a] sm:$0xff]
      %v3099 = vld [vmem:[%s2567 + $0x172] sm:$0xff]
      %v3100 = vpack.c.bf16 %v3069, %v3068
      %v3101 = vpack.c.bf16 %v3071, %v3070
      %v3102 = vpack.c.bf16 %v3073, %v3072
      %v3103 = vpack.c.bf16 %v3075, %v3074
      %v3104 = vpack.c.bf16 %v3077, %v3076
      %v3105 = vpack.c.bf16 %v3079, %v3078
      %v3106 = vpack.c.bf16 %v3081, %v3080
      %v3107 = vpack.c.bf16 %v3083, %v3082
      %v3108 = vpack.c.bf16 %v3085, %v3084
      %v3109 = vpack.c.bf16 %v3087, %v3086
      %v3110 = vpack.c.bf16 %v3089, %v3088
      %v3111 = vpack.c.bf16 %v3091, %v3090
      %v3112 = vpack.c.bf16 %v3093, %v3092
      %v3113 = vpack.c.bf16 %v3095, %v3094
      %v3114 = vpack.c.bf16 %v3097, %v3096
      %v3115 = vpack.c.bf16 %v3099, %v3098
      %s3116 = scalar_lea.vmem %s3, 256
      %v3117 = vld [vmem:[%s3116] sm:$0xf]
      %v3118 = vld [vmem:[%s3116 + $0x4] sm:$0xf]
      %v3119 = vld [vmem:[%s3116 + $0x8] sm:$0xf]
      %v3120 = vld [vmem:[%s3116 + $0xc] sm:$0xf]
      %v3121 = vld [vmem:[%s3116 + $0x10] sm:$0xf]
      %v3122 = vld [vmem:[%s3116 + $0x14] sm:$0xf]
      %v3123 = vld [vmem:[%s3116 + $0x18] sm:$0xf]
      %v3124 = vld [vmem:[%s3116 + $0x1c] sm:$0xf]
      %v3133 = vunpack.c.l.b16 %v3117
      %v3134 = vunpack.c.l.b16 %v3118
      %v3135 = vunpack.c.l.b16 %v3119
      %v3136 = vunpack.c.l.b16 %v3120
      %v3137 = vunpack.c.l.b16 %v3121
      %v3138 = vunpack.c.l.b16 %v3122
      %v3139 = vunpack.c.l.b16 %v3123
      %v3140 = vunpack.c.l.b16 %v3124
      %v3141 = vpack.c.b16 %v3134, %v3133
      %v3142 = vpack.c.b16 %v3136, %v3135
      %v3143 = vpack.c.b16 %v3138, %v3137
      %v3144 = vpack.c.b16 %v3140, %v3139
      %v3150 = vsel %vm696, %v3100, 0
      %v3153 = vsel %vm696, %v3101, 0
      %v3156 = vsel %vm696, %v3102, 0
      %v3159 = vsel %vm696, %v3103, 0
      %v3162 = vsel %vm696, %v3104, 0
      %v3165 = vsel %vm696, %v3105, 0
      %v3168 = vsel %vm696, %v3106, 0
      %v3171 = vsel %vm696, %v3107, 0
      %v3174 = vsel %vm696, %v3108, 0
      %v3177 = vsel %vm696, %v3109, 0
      %v3180 = vsel %vm696, %v3110, 0
      %v3183 = vsel %vm696, %v3111, 0
      %v3186 = vsel %vm696, %v3112, 0
      %v3189 = vsel %vm696, %v3113, 0
      %v3192 = vsel %vm696, %v3114, 0
      %v3195 = vsel %vm696, %v3115, 0
      %3197 = vmatpush.bf16.msra.mxu0 0
      %3198 = vmatpush.bf16.msra.mxu0 0
      %3199 = vmatpush.bf16.msra.mxu0 0
      %3200 = vmatpush.bf16.msra.mxu0 0
      %3201 = vmatpush.bf16.msra.mxu0 %v3144
      %3202 = vmatpush.bf16.msra.mxu0 %v3143
      %3203 = vmatpush.bf16.msra.mxu0 %v3142
      %3204 = vmatpush.bf16.msra.mxu0 %v3141
      %3205 = vmatmul.bf16.gmra.mxu0 %v3150
      %v3206 = vpop.f32.mrf.mxu0
      %v3207 = vadd.f32 0.0, %v3206
      %v3208 = vpop.f32.mrf.mxu0
      %v3209 = vadd.f32 0.0, %v3208
      %3210 = vmatmul.bf16.gmra.mxu0 %v3153
      %v3211 = vpop.f32.mrf.mxu0
      %v3212 = vadd.f32 0.0, %v3211
      %v3213 = vpop.f32.mrf.mxu0
      %v3214 = vadd.f32 0.0, %v3213
      %3215 = vmatmul.bf16.gmra.mxu0 %v3156
      %v3216 = vpop.f32.mrf.mxu0
      %v3217 = vadd.f32 0.0, %v3216
      %v3218 = vpop.f32.mrf.mxu0
      %v3219 = vadd.f32 0.0, %v3218
      %3220 = vmatmul.bf16.gmra.mxu0 %v3159
      %v3221 = vpop.f32.mrf.mxu0
      %v3222 = vadd.f32 0.0, %v3221
      %v3223 = vpop.f32.mrf.mxu0
      %v3224 = vadd.f32 0.0, %v3223
      %3225 = vmatmul.bf16.gmra.mxu0 %v3162
      %v3226 = vpop.f32.mrf.mxu0
      %v3227 = vadd.f32 0.0, %v3226
      %v3228 = vpop.f32.mrf.mxu0
      %v3229 = vadd.f32 0.0, %v3228
      %3230 = vmatmul.bf16.gmra.mxu0 %v3165
      %v3231 = vpop.f32.mrf.mxu0
      %v3232 = vadd.f32 0.0, %v3231
      %v3233 = vpop.f32.mrf.mxu0
      %v3234 = vadd.f32 0.0, %v3233
      %3235 = vmatmul.bf16.gmra.mxu0 %v3168
      %v3236 = vpop.f32.mrf.mxu0
      %v3237 = vadd.f32 0.0, %v3236
      %v3238 = vpop.f32.mrf.mxu0
      %v3239 = vadd.f32 0.0, %v3238
      %3240 = vmatmul.bf16.gmra.mxu0 %v3171
      %v3241 = vpop.f32.mrf.mxu0
      %v3242 = vadd.f32 0.0, %v3241
      %v3243 = vpop.f32.mrf.mxu0
      %v3244 = vadd.f32 0.0, %v3243
      %3245 = vmatmul.bf16.gmra.mxu0 %v3174
      %v3246 = vpop.f32.mrf.mxu0
      %v3247 = vadd.f32 0.0, %v3246
      %v3248 = vpop.f32.mrf.mxu0
      %v3249 = vadd.f32 0.0, %v3248
      %3250 = vmatmul.bf16.gmra.mxu0 %v3177
      %v3251 = vpop.f32.mrf.mxu0
      %v3252 = vadd.f32 0.0, %v3251
      %v3253 = vpop.f32.mrf.mxu0
      %v3254 = vadd.f32 0.0, %v3253
      %3255 = vmatmul.bf16.gmra.mxu0 %v3180
      %v3256 = vpop.f32.mrf.mxu0
      %v3257 = vadd.f32 0.0, %v3256
      %v3258 = vpop.f32.mrf.mxu0
      %v3259 = vadd.f32 0.0, %v3258
      %3260 = vmatmul.bf16.gmra.mxu0 %v3183
      %v3261 = vpop.f32.mrf.mxu0
      %v3262 = vadd.f32 0.0, %v3261
      %v3263 = vpop.f32.mrf.mxu0
      %v3264 = vadd.f32 0.0, %v3263
      %3265 = vmatmul.bf16.gmra.mxu0 %v3186
      %v3266 = vpop.f32.mrf.mxu0
      %v3267 = vadd.f32 0.0, %v3266
      %v3268 = vpop.f32.mrf.mxu0
      %v3269 = vadd.f32 0.0, %v3268
      %3270 = vmatmul.bf16.gmra.mxu0 %v3189
      %v3271 = vpop.f32.mrf.mxu0
      %v3272 = vadd.f32 0.0, %v3271
      %v3273 = vpop.f32.mrf.mxu0
      %v3274 = vadd.f32 0.0, %v3273
      %3275 = vmatmul.bf16.gmra.mxu0 %v3192
      %v3276 = vpop.f32.mrf.mxu0
      %v3277 = vadd.f32 0.0, %v3276
      %v3278 = vpop.f32.mrf.mxu0
      %v3279 = vadd.f32 0.0, %v3278
      %3280 = vmatmul.bf16.gmra.mxu0 %v3195
      %v3281 = vpop.f32.mrf.mxu0
      %v3282 = vadd.f32 0.0, %v3281
      %v3283 = vpop.f32.mrf.mxu0
      %v3284 = vadd.f32 0.0, %v3283
      %3285 = vdwg.mxu0
      %v3286 = vadd.f32 %v3036, %v3207
      %v3287 = vadd.f32 %v3037, %v3209
      %v3288 = vadd.f32 %v3038, %v3212
      %v3289 = vadd.f32 %v3039, %v3214
      %v3290 = vadd.f32 %v3040, %v3217
      %v3291 = vadd.f32 %v3041, %v3219
      %v3292 = vadd.f32 %v3042, %v3222
      %v3293 = vadd.f32 %v3043, %v3224
      %v3294 = vadd.f32 %v3044, %v3227
      %v3295 = vadd.f32 %v3045, %v3229
      %v3296 = vadd.f32 %v3046, %v3232
      %v3297 = vadd.f32 %v3047, %v3234
      %v3298 = vadd.f32 %v3048, %v3237
      %v3299 = vadd.f32 %v3049, %v3239
      %v3300 = vadd.f32 %v3050, %v3242
      %v3301 = vadd.f32 %v3051, %v3244
      %v3302 = vadd.f32 %v3052, %v3247
      %v3303 = vadd.f32 %v3053, %v3249
      %v3304 = vadd.f32 %v3054, %v3252
      %v3305 = vadd.f32 %v3055, %v3254
      %v3306 = vadd.f32 %v3056, %v3257
      %v3307 = vadd.f32 %v3057, %v3259
      %v3308 = vadd.f32 %v3058, %v3262
      %v3309 = vadd.f32 %v3059, %v3264
      %v3310 = vadd.f32 %v3060, %v3267
      %v3311 = vadd.f32 %v3061, %v3269
      %v3312 = vadd.f32 %v3062, %v3272
      %v3313 = vadd.f32 %v3063, %v3274
      %v3314 = vadd.f32 %v3064, %v3277
      %v3315 = vadd.f32 %v3065, %v3279
      %v3316 = vadd.f32 %v3066, %v3282
      %v3317 = vadd.f32 %v3067, %v3284
      %v3318 = vld [vmem:[%s4] sm:$0x1]
      %v3320 = vperm.slane %v3318, 0
      %v3322 = vadd.f32 %v3286, %v3320
      %v3323 = vadd.f32 %v3287, %v3320
      %v3324 = vadd.f32 %v3288, %v3320
      %v3325 = vadd.f32 %v3289, %v3320
      %v3326 = vadd.f32 %v3290, %v3320
      %v3327 = vadd.f32 %v3291, %v3320
      %v3328 = vadd.f32 %v3292, %v3320
      %v3329 = vadd.f32 %v3293, %v3320
      %v3330 = vadd.f32 %v3294, %v3320
      %v3331 = vadd.f32 %v3295, %v3320
      %v3332 = vadd.f32 %v3296, %v3320
      %v3333 = vadd.f32 %v3297, %v3320
      %v3334 = vadd.f32 %v3298, %v3320
      %v3335 = vadd.f32 %v3299, %v3320
      %v3336 = vadd.f32 %v3300, %v3320
      %v3337 = vadd.f32 %v3301, %v3320
      %v3338 = vadd.f32 %v3302, %v3320
      %v3339 = vadd.f32 %v3303, %v3320
      %v3340 = vadd.f32 %v3304, %v3320
      %v3341 = vadd.f32 %v3305, %v3320
      %v3342 = vadd.f32 %v3306, %v3320
      %v3343 = vadd.f32 %v3307, %v3320
      %v3344 = vadd.f32 %v3308, %v3320
      %v3345 = vadd.f32 %v3309, %v3320
      %v3346 = vadd.f32 %v3310, %v3320
      %v3347 = vadd.f32 %v3311, %v3320
      %v3348 = vadd.f32 %v3312, %v3320
      %v3349 = vadd.f32 %v3313, %v3320
      %v3350 = vadd.f32 %v3314, %v3320
      %v3351 = vadd.f32 %v3315, %v3320
      %v3352 = vadd.f32 %v3316, %v3320
      %v3353 = vadd.f32 %v3317, %v3320
      %v3354 = vmax.f32 %v3322, 0.0
      %v3355 = vmax.f32 %v3323, 0.0
      %v3356 = vmax.f32 %v3324, 0.0
      %v3357 = vmax.f32 %v3325, 0.0
      %v3358 = vmax.f32 %v3326, 0.0
      %v3359 = vmax.f32 %v3327, 0.0
      %v3360 = vmax.f32 %v3328, 0.0
      %v3361 = vmax.f32 %v3329, 0.0
      %v3362 = vmax.f32 %v3330, 0.0
      %v3363 = vmax.f32 %v3331, 0.0
      %v3364 = vmax.f32 %v3332, 0.0
      %v3365 = vmax.f32 %v3333, 0.0
      %v3366 = vmax.f32 %v3334, 0.0
      %v3367 = vmax.f32 %v3335, 0.0
      %v3368 = vmax.f32 %v3336, 0.0
      %v3369 = vmax.f32 %v3337, 0.0
      %v3370 = vmax.f32 %v3338, 0.0
      %v3371 = vmax.f32 %v3339, 0.0
      %v3372 = vmax.f32 %v3340, 0.0
      %v3373 = vmax.f32 %v3341, 0.0
      %v3374 = vmax.f32 %v3342, 0.0
      %v3375 = vmax.f32 %v3343, 0.0
      %v3376 = vmax.f32 %v3344, 0.0
      %v3377 = vmax.f32 %v3345, 0.0
      %v3378 = vmax.f32 %v3346, 0.0
      %v3379 = vmax.f32 %v3347, 0.0
      %v3380 = vmax.f32 %v3348, 0.0
      %v3381 = vmax.f32 %v3349, 0.0
      %v3382 = vmax.f32 %v3350, 0.0
      %v3383 = vmax.f32 %v3351, 0.0
      %v3384 = vmax.f32 %v3352, 0.0
      %v3385 = vmax.f32 %v3353, 0.0
      %vm3386 = vcmask 392192
      %3387 = vst.msk [vmem:[#allocation3] sm:$0xff] %vm3386, 0.0
      %3388 = vst.msk [vmem:[#allocation3 + $0x8] sm:$0xff] %vm3386, 0.0
      %vm3389 = vcmask 386048
      %3390 = vst.msk [vmem:[#allocation3 + $0x10] sm:$0x3] %vm3389, 0.0
      %3391 = vst.msk [vmem:[#allocation3 + $0x18] sm:$0xff] %vm3386, 0.0
      %3392 = vst.msk [vmem:[#allocation3 + $0x20] sm:$0xff] %vm3386, 0.0
      %3393 = vst.msk [vmem:[#allocation3 + $0x28] sm:$0x3] %vm3389, 0.0
      %3394 = vst.msk [vmem:[#allocation3 + $0x30] sm:$0xff] %vm3386, 0.0
      %3395 = vst.msk [vmem:[#allocation3 + $0x38] sm:$0xff] %vm3386, 0.0
      %3396 = vst.msk [vmem:[#allocation3 + $0x40] sm:$0x3] %vm3389, 0.0
      %3397 = vst.msk [vmem:[#allocation3 + $0x48] sm:$0xff] %vm3386, 0.0
      %3398 = vst.msk [vmem:[#allocation3 + $0x50] sm:$0xff] %vm3386, 0.0
      %3399 = vst.msk [vmem:[#allocation3 + $0x58] sm:$0x3] %vm3389, 0.0
      %3400 = vst.msk [vmem:[#allocation3 + $0x60] sm:$0xff] %vm3386, 0.0
      %3401 = vst.msk [vmem:[#allocation3 + $0x68] sm:$0xff] %vm3386, 0.0
      %3402 = vst.msk [vmem:[#allocation3 + $0x70] sm:$0x3] %vm3389, 0.0
      %3403 = vst.msk [vmem:[#allocation3 + $0x78] sm:$0xff] %vm3386, 0.0
      %3404 = vst.msk [vmem:[#allocation3 + $0x80] sm:$0xff] %vm3386, 0.0
      %3405 = vst.msk [vmem:[#allocation3 + $0x88] sm:$0x3] %vm3389, 0.0
      %3406 = vst.msk [vmem:[#allocation3 + $0x90] sm:$0xff] %vm3386, 0.0
      %3407 = vst.msk [vmem:[#allocation3 + $0x98] sm:$0xff] %vm3386, 0.0
      %3408 = vst.msk [vmem:[#allocation3 + $0xa0] sm:$0x3] %vm3389, 0.0
      %3409 = vst.msk [vmem:[#allocation3 + $0xa8] sm:$0xff] %vm3386, 0.0
      %3410 = vst.msk [vmem:[#allocation3 + $0xb0] sm:$0xff] %vm3386, 0.0
      %3411 = vst.msk [vmem:[#allocation3 + $0xb8] sm:$0x3] %vm3389, 0.0
      %3412 = vst.msk [vmem:[#allocation3 + $0xc0] sm:$0xff] %vm3386, 0.0
      %3413 = vst.msk [vmem:[#allocation3 + $0xc8] sm:$0xff] %vm3386, 0.0
      %3414 = vst.msk [vmem:[#allocation3 + $0xd0] sm:$0x3] %vm3389, 0.0
      %3415 = vst.msk [vmem:[#allocation3 + $0xd8] sm:$0xff] %vm3386, 0.0
      %3416 = vst.msk [vmem:[#allocation3 + $0xe0] sm:$0xff] %vm3386, 0.0
      %3417 = vst.msk [vmem:[#allocation3 + $0xe8] sm:$0x3] %vm3389, 0.0
      %3418 = vst.msk [vmem:[#allocation3 + $0xf0] sm:$0xff] %vm3386, 0.0
      %3419 = vst.msk [vmem:[#allocation3 + $0xf8] sm:$0xff] %vm3386, 0.0
      %3420 = vst.msk [vmem:[#allocation3 + $0x100] sm:$0x3] %vm3389, 0.0
      %3421 = vst.msk [vmem:[#allocation3 + $0x108] sm:$0xff] %vm3386, 0.0
      %3422 = vst.msk [vmem:[#allocation3 + $0x110] sm:$0xff] %vm3386, 0.0
      %3423 = vst.msk [vmem:[#allocation3 + $0x118] sm:$0x3] %vm3389, 0.0
      %3424 = vst.msk [vmem:[#allocation3 + $0x120] sm:$0xff] %vm3386, 0.0
      %3425 = vst.msk [vmem:[#allocation3 + $0x128] sm:$0xff] %vm3386, 0.0
      %3426 = vst.msk [vmem:[#allocation3 + $0x130] sm:$0x3] %vm3389, 0.0
      %3427 = vst.msk [vmem:[#allocation3 + $0x138] sm:$0xff] %vm3386, 0.0
      %3428 = vst.msk [vmem:[#allocation3 + $0x140] sm:$0xff] %vm3386, 0.0
      %3429 = vst.msk [vmem:[#allocation3 + $0x148] sm:$0x3] %vm3389, 0.0
      %3430 = vst.msk [vmem:[#allocation3 + $0x150] sm:$0xff] %vm3386, 0.0
      %3431 = vst.msk [vmem:[#allocation3 + $0x158] sm:$0xff] %vm3386, 0.0
      %3432 = vst.msk [vmem:[#allocation3 + $0x160] sm:$0x3] %vm3389, 0.0
      %3433 = vst.msk [vmem:[#allocation3 + $0x168] sm:$0xff] %vm3386, 0.0
      %3434 = vst.msk [vmem:[#allocation3 + $0x170] sm:$0xff] %vm3386, 0.0
      %3435 = vst.msk [vmem:[#allocation3 + $0x178] sm:$0x3] %vm3389, 0.0
      %3436 = vst.msk [vmem:[#allocation3 + $0x180] sm:$0xff] %vm3386, 0.0
      %3437 = vst.msk [vmem:[#allocation3 + $0x188] sm:$0xff] %vm3386, 0.0
      %3438 = vst.msk [vmem:[#allocation3 + $0x190] sm:$0x3] %vm3389, 0.0
      %3439 = vst.msk [vmem:[#allocation3 + $0x198] sm:$0xff] %vm3386, 0.0
      %3440 = vst.msk [vmem:[#allocation3 + $0x1a0] sm:$0xff] %vm3386, 0.0
      %3441 = vst.msk [vmem:[#allocation3 + $0x1a8] sm:$0x3] %vm3389, 0.0
      %3474 = vrot.lane.b32.xlu0 %v3354, 96
      %v3475 = vpop.permute.xlu0 %3474
      %3476 = vrot.lane.b32.xlu0 %v3355, 96
      %v3477 = vpop.permute.xlu0 %3476
      %3478 = vrot.lane.b32.xlu0 %v3356, 96
      %v3479 = vpop.permute.xlu0 %3478
      %3480 = vrot.lane.b32.xlu0 %v3357, 96
      %v3481 = vpop.permute.xlu0 %3480
      %3482 = vrot.lane.b32.xlu0 %v3358, 96
      %v3483 = vpop.permute.xlu0 %3482
      %3484 = vrot.lane.b32.xlu0 %v3359, 96
      %v3485 = vpop.permute.xlu0 %3484
      %3486 = vrot.lane.b32.xlu0 %v3360, 96
      %v3487 = vpop.permute.xlu0 %3486
      %3488 = vrot.lane.b32.xlu0 %v3361, 96
      %v3489 = vpop.permute.xlu0 %3488
      %3490 = vrot.lane.b32.xlu0 %v3362, 96
      %v3491 = vpop.permute.xlu0 %3490
      %3492 = vrot.lane.b32.xlu0 %v3363, 96
      %v3493 = vpop.permute.xlu0 %3492
      %3494 = vrot.lane.b32.xlu0 %v3364, 96
      %v3495 = vpop.permute.xlu0 %3494
      %3496 = vrot.lane.b32.xlu0 %v3365, 96
      %v3497 = vpop.permute.xlu0 %3496
      %3498 = vrot.lane.b32.xlu0 %v3366, 96
      %v3499 = vpop.permute.xlu0 %3498
      %3500 = vrot.lane.b32.xlu0 %v3367, 96
      %v3501 = vpop.permute.xlu0 %3500
      %3502 = vrot.lane.b32.xlu0 %v3368, 96
      %v3503 = vpop.permute.xlu0 %3502
      %3504 = vrot.lane.b32.xlu0 %v3369, 96
      %v3505 = vpop.permute.xlu0 %3504
      %3506 = vrot.lane.b32.xlu0 %v3370, 96
      %v3507 = vpop.permute.xlu0 %3506
      %3508 = vrot.lane.b32.xlu0 %v3371, 96
      %v3509 = vpop.permute.xlu0 %3508
      %3510 = vrot.lane.b32.xlu0 %v3372, 96
      %v3511 = vpop.permute.xlu0 %3510
      %3512 = vrot.lane.b32.xlu0 %v3373, 96
      %v3513 = vpop.permute.xlu0 %3512
      %3514 = vrot.lane.b32.xlu0 %v3374, 96
      %v3515 = vpop.permute.xlu0 %3514
      %3516 = vrot.lane.b32.xlu0 %v3375, 96
      %v3517 = vpop.permute.xlu0 %3516
      %3518 = vrot.lane.b32.xlu0 %v3376, 96
      %v3519 = vpop.permute.xlu0 %3518
      %3520 = vrot.lane.b32.xlu0 %v3377, 96
      %v3521 = vpop.permute.xlu0 %3520
      %3522 = vrot.lane.b32.xlu0 %v3378, 96
      %v3523 = vpop.permute.xlu0 %3522
      %3524 = vrot.lane.b32.xlu0 %v3379, 96
      %v3525 = vpop.permute.xlu0 %3524
      %3526 = vrot.lane.b32.xlu0 %v3380, 96
      %v3527 = vpop.permute.xlu0 %3526
      %3528 = vrot.lane.b32.xlu0 %v3381, 96
      %v3529 = vpop.permute.xlu0 %3528
      %3530 = vrot.lane.b32.xlu0 %v3382, 96
      %v3531 = vpop.permute.xlu0 %3530
      %3532 = vrot.lane.b32.xlu0 %v3383, 96
      %v3533 = vpop.permute.xlu0 %3532
      %3534 = vrot.lane.b32.xlu0 %v3384, 96
      %v3535 = vpop.permute.xlu0 %3534
      %3536 = vrot.lane.b32.xlu0 %v3385, 96
      %v3537 = vpop.permute.xlu0 %3536
      %s3570 = scalar_lea.vmem [#allocation3], 24
      %3571 = vst.msk [vmem:[%s3570 + $0x1] sm:$0xff] %vm3386, %v3475
      %3572 = vst.msk [vmem:[%s3570 + $0x9] sm:$0xff] %vm3386, %v3477
      %3573 = vst.msk [vmem:[%s3570 + $0x19] sm:$0xff] %vm3386, %v3479
      %3574 = vst.msk [vmem:[%s3570 + $0x21] sm:$0xff] %vm3386, %v3481
      %3575 = vst.msk [vmem:[%s3570 + $0x31] sm:$0xff] %vm3386, %v3483
      %3576 = vst.msk [vmem:[%s3570 + $0x39] sm:$0xff] %vm3386, %v3485
      %3577 = vst.msk [vmem:[%s3570 + $0x49] sm:$0xff] %vm3386, %v3487
      %3578 = vst.msk [vmem:[%s3570 + $0x51] sm:$0xff] %vm3386, %v3489
      %3579 = vst.msk [vmem:[%s3570 + $0x61] sm:$0xff] %vm3386, %v3491
      %3580 = vst.msk [vmem:[%s3570 + $0x69] sm:$0xff] %vm3386, %v3493
      %3581 = vst.msk [vmem:[%s3570 + $0x79] sm:$0xff] %vm3386, %v3495
      %3582 = vst.msk [vmem:[%s3570 + $0x81] sm:$0xff] %vm3386, %v3497
      %3583 = vst.msk [vmem:[%s3570 + $0x91] sm:$0xff] %vm3386, %v3499
      %3584 = vst.msk [vmem:[%s3570 + $0x99] sm:$0xff] %vm3386, %v3501
      %3585 = vst.msk [vmem:[%s3570 + $0xa9] sm:$0xff] %vm3386, %v3503
      %3586 = vst.msk [vmem:[%s3570 + $0xb1] sm:$0xff] %vm3386, %v3505
      %3587 = vst.msk [vmem:[%s3570 + $0xc1] sm:$0xff] %vm3386, %v3507
      %3588 = vst.msk [vmem:[%s3570 + $0xc9] sm:$0xff] %vm3386, %v3509
      %3589 = vst.msk [vmem:[%s3570 + $0xd9] sm:$0xff] %vm3386, %v3511
      %3590 = vst.msk [vmem:[%s3570 + $0xe1] sm:$0xff] %vm3386, %v3513
      %3591 = vst.msk [vmem:[%s3570 + $0xf1] sm:$0xff] %vm3386, %v3515
      %3592 = vst.msk [vmem:[%s3570 + $0xf9] sm:$0xff] %vm3386, %v3517
      %3593 = vst.msk [vmem:[%s3570 + $0x109] sm:$0xff] %vm3386, %v3519
      %3594 = vst.msk [vmem:[%s3570 + $0x111] sm:$0xff] %vm3386, %v3521
      %3595 = vst.msk [vmem:[%s3570 + $0x121] sm:$0xff] %vm3386, %v3523
      %3596 = vst.msk [vmem:[%s3570 + $0x129] sm:$0xff] %vm3386, %v3525
      %3597 = vst.msk [vmem:[%s3570 + $0x139] sm:$0xff] %vm3386, %v3527
      %3598 = vst.msk [vmem:[%s3570 + $0x141] sm:$0xff] %vm3386, %v3529
      %3599 = vst.msk [vmem:[%s3570 + $0x151] sm:$0xff] %vm3386, %v3531
      %3600 = vst.msk [vmem:[%s3570 + $0x159] sm:$0xff] %vm3386, %v3533
      %3601 = vst.msk [vmem:[%s3570 + $0x169] sm:$0xff] %vm3386, %v3535
      %3602 = vst.msk [vmem:[%s3570 + $0x171] sm:$0xff] %vm3386, %v3537
      %v3603 = vld [vmem:[#allocation3] sm:$0xff]
      %v3604 = vld [vmem:[#allocation3 + $0x8] sm:$0xff]
      %v3605 = vld [vmem:[#allocation3 + $0x18] sm:$0xff]
      %v3606 = vld [vmem:[#allocation3 + $0x20] sm:$0xff]
      %v3607 = vld [vmem:[#allocation3 + $0x30] sm:$0xff]
      %v3608 = vld [vmem:[#allocation3 + $0x38] sm:$0xff]
      %v3609 = vld [vmem:[#allocation3 + $0x48] sm:$0xff]
      %v3610 = vld [vmem:[#allocation3 + $0x50] sm:$0xff]
      %v3611 = vld [vmem:[#allocation3 + $0x60] sm:$0xff]
      %v3612 = vld [vmem:[#allocation3 + $0x68] sm:$0xff]
      %v3613 = vld [vmem:[#allocation3 + $0x78] sm:$0xff]
      %v3614 = vld [vmem:[#allocation3 + $0x80] sm:$0xff]
      %v3615 = vld [vmem:[#allocation3 + $0x90] sm:$0xff]
      %v3616 = vld [vmem:[#allocation3 + $0x98] sm:$0xff]
      %v3617 = vld [vmem:[#allocation3 + $0xa8] sm:$0xff]
      %v3618 = vld [vmem:[#allocation3 + $0xb0] sm:$0xff]
      %v3619 = vld [vmem:[#allocation3 + $0xc0] sm:$0xff]
      %v3620 = vld [vmem:[#allocation3 + $0xc8] sm:$0xff]
      %v3621 = vld [vmem:[#allocation3 + $0xd8] sm:$0xff]
      %v3622 = vld [vmem:[#allocation3 + $0xe0] sm:$0xff]
      %v3623 = vld [vmem:[#allocation3 + $0xf0] sm:$0xff]
      %v3624 = vld [vmem:[#allocation3 + $0xf8] sm:$0xff]
      %v3625 = vld [vmem:[#allocation3 + $0x108] sm:$0xff]
      %v3626 = vld [vmem:[#allocation3 + $0x110] sm:$0xff]
      %v3627 = vld [vmem:[#allocation3 + $0x120] sm:$0xff]
      %v3628 = vld [vmem:[#allocation3 + $0x128] sm:$0xff]
      %v3629 = vld [vmem:[#allocation3 + $0x138] sm:$0xff]
      %v3630 = vld [vmem:[#allocation3 + $0x140] sm:$0xff]
      %v3631 = vld [vmem:[#allocation3 + $0x150] sm:$0xff]
      %v3632 = vld [vmem:[#allocation3 + $0x158] sm:$0xff]
      %v3633 = vld [vmem:[#allocation3 + $0x168] sm:$0xff]
      %v3634 = vld [vmem:[#allocation3 + $0x170] sm:$0xff]
      %v3635 = vpack.c.bf16 %v3604, %v3603
      %v3636 = vpack.c.bf16 %v3606, %v3605
      %v3637 = vpack.c.bf16 %v3608, %v3607
      %v3638 = vpack.c.bf16 %v3610, %v3609
      %v3639 = vpack.c.bf16 %v3612, %v3611
      %v3640 = vpack.c.bf16 %v3614, %v3613
      %v3641 = vpack.c.bf16 %v3616, %v3615
      %v3642 = vpack.c.bf16 %v3618, %v3617
      %v3643 = vpack.c.bf16 %v3620, %v3619
      %v3644 = vpack.c.bf16 %v3622, %v3621
      %v3645 = vpack.c.bf16 %v3624, %v3623
      %v3646 = vpack.c.bf16 %v3626, %v3625
      %v3647 = vpack.c.bf16 %v3628, %v3627
      %v3648 = vpack.c.bf16 %v3630, %v3629
      %v3649 = vpack.c.bf16 %v3632, %v3631
      %v3650 = vpack.c.bf16 %v3634, %v3633
      %v3651 = vld [vmem:[%s5] sm:$0xf]
      %v3652 = vld [vmem:[%s5 + $0x4] sm:$0xf]
      %v3653 = vld [vmem:[%s5 + $0x8] sm:$0xf]
      %v3654 = vld [vmem:[%s5 + $0xc] sm:$0xf]
      %v3655 = vld [vmem:[%s5 + $0x10] sm:$0xf]
      %v3656 = vld [vmem:[%s5 + $0x14] sm:$0xf]
      %v3657 = vld [vmem:[#allocation3 + $0x1] sm:$0xff]
      %v3658 = vld [vmem:[#allocation3 + $0x9] sm:$0xff]
      %v3659 = vld [vmem:[#allocation3 + $0x19] sm:$0xff]
      %v3660 = vld [vmem:[#allocation3 + $0x21] sm:$0xff]
      %v3661 = vld [vmem:[#allocation3 + $0x31] sm:$0xff]
      %v3662 = vld [vmem:[#allocation3 + $0x39] sm:$0xff]
      %v3663 = vld [vmem:[#allocation3 + $0x49] sm:$0xff]
      %v3664 = vld [vmem:[#allocation3 + $0x51] sm:$0xff]
      %v3665 = vld [vmem:[#allocation3 + $0x61] sm:$0xff]
      %v3666 = vld [vmem:[#allocation3 + $0x69] sm:$0xff]
      %v3667 = vld [vmem:[#allocation3 + $0x79] sm:$0xff]
      %v3668 = vld [vmem:[#allocation3 + $0x81] sm:$0xff]
      %v3669 = vld [vmem:[#allocation3 + $0x91] sm:$0xff]
      %v3670 = vld [vmem:[#allocation3 + $0x99] sm:$0xff]
      %v3671 = vld [vmem:[#allocation3 + $0xa9] sm:$0xff]
      %v3672 = vld [vmem:[#allocation3 + $0xb1] sm:$0xff]
      %v3673 = vld [vmem:[#allocation3 + $0xc1] sm:$0xff]
      %v3674 = vld [vmem:[#allocation3 + $0xc9] sm:$0xff]
      %v3675 = vld [vmem:[#allocation3 + $0xd9] sm:$0xff]
      %v3676 = vld [vmem:[#allocation3 + $0xe1] sm:$0xff]
      %v3677 = vld [vmem:[#allocation3 + $0xf1] sm:$0xff]
      %v3678 = vld [vmem:[#allocation3 + $0xf9] sm:$0xff]
      %v3679 = vld [vmem:[#allocation3 + $0x109] sm:$0xff]
      %v3680 = vld [vmem:[#allocation3 + $0x111] sm:$0xff]
      %v3681 = vld [vmem:[#allocation3 + $0x121] sm:$0xff]
      %v3682 = vld [vmem:[#allocation3 + $0x129] sm:$0xff]
      %v3683 = vld [vmem:[#allocation3 + $0x139] sm:$0xff]
      %v3684 = vld [vmem:[#allocation3 + $0x141] sm:$0xff]
      %v3685 = vld [vmem:[#allocation3 + $0x151] sm:$0xff]
      %v3686 = vld [vmem:[#allocation3 + $0x159] sm:$0xff]
      %v3687 = vld [vmem:[#allocation3 + $0x169] sm:$0xff]
      %v3688 = vld [vmem:[#allocation3 + $0x171] sm:$0xff]
      %v3689 = vpack.c.bf16 %v3658, %v3657
      %v3690 = vpack.c.bf16 %v3660, %v3659
      %v3691 = vpack.c.bf16 %v3662, %v3661
      %v3692 = vpack.c.bf16 %v3664, %v3663
      %v3693 = vpack.c.bf16 %v3666, %v3665
      %v3694 = vpack.c.bf16 %v3668, %v3667
      %v3695 = vpack.c.bf16 %v3670, %v3669
      %v3696 = vpack.c.bf16 %v3672, %v3671
      %v3697 = vpack.c.bf16 %v3674, %v3673
      %v3698 = vpack.c.bf16 %v3676, %v3675
      %v3699 = vpack.c.bf16 %v3678, %v3677
      %v3700 = vpack.c.bf16 %v3680, %v3679
      %v3701 = vpack.c.bf16 %v3682, %v3681
      %v3702 = vpack.c.bf16 %v3684, %v3683
      %v3703 = vpack.c.bf16 %v3686, %v3685
      %v3704 = vpack.c.bf16 %v3688, %v3687
      %s3705 = scalar_lea.vmem %s5, 24
      %v3706 = vld [vmem:[%s3705] sm:$0xf]
      %v3707 = vld [vmem:[%s3705 + $0x4] sm:$0xf]
      %v3708 = vld [vmem:[%s3705 + $0x8] sm:$0xf]
      %v3709 = vld [vmem:[%s3705 + $0xc] sm:$0xf]
      %v3710 = vld [vmem:[%s3705 + $0x10] sm:$0xf]
      %v3711 = vld [vmem:[%s3705 + $0x14] sm:$0xf]
      %v3718 = vunpack.c.l.b16 %v3706
      %v3719 = vunpack.c.l.b16 %v3707
      %v3720 = vunpack.c.l.b16 %v3708
      %v3721 = vunpack.c.l.b16 %v3709
      %v3722 = vunpack.c.l.b16 %v3710
      %v3723 = vunpack.c.l.b16 %v3711
      %v3724 = vpack.c.b16 %v3719, %v3718
      %v3725 = vpack.c.b16 %v3721, %v3720
      %v3726 = vpack.c.b16 %v3723, %v3722
      %v3731 = vsel %vm3386, %v3689, 0
      %v3734 = vsel %vm3386, %v3690, 0
      %v3737 = vsel %vm3386, %v3691, 0
      %v3740 = vsel %vm3386, %v3692, 0
      %v3743 = vsel %vm3386, %v3693, 0
      %v3746 = vsel %vm3386, %v3694, 0
      %v3749 = vsel %vm3386, %v3695, 0
      %v3752 = vsel %vm3386, %v3696, 0
      %v3755 = vsel %vm3386, %v3697, 0
      %v3758 = vsel %vm3386, %v3698, 0
      %v3761 = vsel %vm3386, %v3699, 0
      %v3764 = vsel %vm3386, %v3700, 0
      %v3767 = vsel %vm3386, %v3701, 0
      %v3770 = vsel %vm3386, %v3702, 0
      %v3773 = vsel %vm3386, %v3703, 0
      %v3776 = vsel %vm3386, %v3704, 0
      %3778 = vmatpush.bf16.msra.mxu0 0
      %3779 = vmatpush.bf16.msra.mxu0 0
      %3780 = vmatpush.bf16.msra.mxu0 0
      %3781 = vmatpush.bf16.msra.mxu0 0
      %3782 = vmatpush.bf16.msra.mxu0 0
      %3783 = vmatpush.bf16.msra.mxu0 %v3726
      %3784 = vmatpush.bf16.msra.mxu0 %v3725
      %3785 = vmatpush.bf16.msra.mxu0 %v3724
      %3786 = vmatmul.bf16.gmra.mxu0 %v3731
      %v3787 = vpop.f32.mrf.mxu0
      %v3788 = vadd.f32 0.0, %v3787
      %v3789 = vpop.f32.mrf.mxu0
      %v3790 = vadd.f32 0.0, %v3789
      %3791 = vmatmul.bf16.gmra.mxu0 %v3734
      %v3792 = vpop.f32.mrf.mxu0
      %v3793 = vadd.f32 0.0, %v3792
      %v3794 = vpop.f32.mrf.mxu0
      %v3795 = vadd.f32 0.0, %v3794
      %3796 = vmatmul.bf16.gmra.mxu0 %v3737
      %v3797 = vpop.f32.mrf.mxu0
      %v3798 = vadd.f32 0.0, %v3797
      %v3799 = vpop.f32.mrf.mxu0
      %v3800 = vadd.f32 0.0, %v3799
      %3801 = vmatmul.bf16.gmra.mxu0 %v3740
      %v3802 = vpop.f32.mrf.mxu0
      %v3803 = vadd.f32 0.0, %v3802
      %v3804 = vpop.f32.mrf.mxu0
      %v3805 = vadd.f32 0.0, %v3804
      %3806 = vmatmul.bf16.gmra.mxu0 %v3743
      %v3807 = vpop.f32.mrf.mxu0
      %v3808 = vadd.f32 0.0, %v3807
      %v3809 = vpop.f32.mrf.mxu0
      %v3810 = vadd.f32 0.0, %v3809
      %3811 = vmatmul.bf16.gmra.mxu0 %v3746
      %v3812 = vpop.f32.mrf.mxu0
      %v3813 = vadd.f32 0.0, %v3812
      %v3814 = vpop.f32.mrf.mxu0
      %v3815 = vadd.f32 0.0, %v3814
      %3816 = vmatmul.bf16.gmra.mxu0 %v3749
      %v3817 = vpop.f32.mrf.mxu0
      %v3818 = vadd.f32 0.0, %v3817
      %v3819 = vpop.f32.mrf.mxu0
      %v3820 = vadd.f32 0.0, %v3819
      %3821 = vmatmul.bf16.gmra.mxu0 %v3752
      %v3822 = vpop.f32.mrf.mxu0
      %v3823 = vadd.f32 0.0, %v3822
      %v3824 = vpop.f32.mrf.mxu0
      %v3825 = vadd.f32 0.0, %v3824
      %3826 = vmatmul.bf16.gmra.mxu0 %v3755
      %v3827 = vpop.f32.mrf.mxu0
      %v3828 = vadd.f32 0.0, %v3827
      %v3829 = vpop.f32.mrf.mxu0
      %v3830 = vadd.f32 0.0, %v3829
      %3831 = vmatmul.bf16.gmra.mxu0 %v3758
      %v3832 = vpop.f32.mrf.mxu0
      %v3833 = vadd.f32 0.0, %v3832
      %v3834 = vpop.f32.mrf.mxu0
      %v3835 = vadd.f32 0.0, %v3834
      %3836 = vmatmul.bf16.gmra.mxu0 %v3761
      %v3837 = vpop.f32.mrf.mxu0
      %v3838 = vadd.f32 0.0, %v3837
      %v3839 = vpop.f32.mrf.mxu0
      %v3840 = vadd.f32 0.0, %v3839
      %3841 = vmatmul.bf16.gmra.mxu0 %v3764
      %v3842 = vpop.f32.mrf.mxu0
      %v3843 = vadd.f32 0.0, %v3842
      %v3844 = vpop.f32.mrf.mxu0
      %v3845 = vadd.f32 0.0, %v3844
      %3846 = vmatmul.bf16.gmra.mxu0 %v3767
      %v3847 = vpop.f32.mrf.mxu0
      %v3848 = vadd.f32 0.0, %v3847
      %v3849 = vpop.f32.mrf.mxu0
      %v3850 = vadd.f32 0.0, %v3849
      %3851 = vmatmul.bf16.gmra.mxu0 %v3770
      %v3852 = vpop.f32.mrf.mxu0
      %v3853 = vadd.f32 0.0, %v3852
      %v3854 = vpop.f32.mrf.mxu0
      %v3855 = vadd.f32 0.0, %v3854
      %3856 = vmatmul.bf16.gmra.mxu0 %v3773
      %v3857 = vpop.f32.mrf.mxu0
      %v3858 = vadd.f32 0.0, %v3857
      %v3859 = vpop.f32.mrf.mxu0
      %v3860 = vadd.f32 0.0, %v3859
      %3861 = vmatmul.bf16.gmra.mxu0 %v3776
      %v3862 = vpop.f32.mrf.mxu0
      %v3863 = vadd.f32 0.0, %v3862
      %v3864 = vpop.f32.mrf.mxu0
      %v3865 = vadd.f32 0.0, %v3864
      %3866 = vdwg.mxu0
      %v3873 = vunpack.c.l.b16 %v3651
      %v3874 = vunpack.c.l.b16 %v3652
      %v3875 = vunpack.c.l.b16 %v3653
      %v3876 = vunpack.c.l.b16 %v3654
      %v3877 = vunpack.c.l.b16 %v3655
      %v3878 = vunpack.c.l.b16 %v3656
      %v3879 = vpack.c.b16 %v3874, %v3873
      %v3880 = vpack.c.b16 %v3876, %v3875
      %v3881 = vpack.c.b16 %v3878, %v3877
      %v3886 = vsel %vm3386, %v3635, 0
      %v3889 = vsel %vm3386, %v3636, 0
      %v3892 = vsel %vm3386, %v3637, 0
      %v3895 = vsel %vm3386, %v3638, 0
      %v3898 = vsel %vm3386, %v3639, 0
      %v3901 = vsel %vm3386, %v3640, 0
      %v3904 = vsel %vm3386, %v3641, 0
      %v3907 = vsel %vm3386, %v3642, 0
      %v3910 = vsel %vm3386, %v3643, 0
      %v3913 = vsel %vm3386, %v3644, 0
      %v3916 = vsel %vm3386, %v3645, 0
      %v3919 = vsel %vm3386, %v3646, 0
      %v3922 = vsel %vm3386, %v3647, 0
      %v3925 = vsel %vm3386, %v3648, 0
      %v3928 = vsel %vm3386, %v3649, 0
      %v3931 = vsel %vm3386, %v3650, 0
      %3933 = vmatpush.bf16.msra.mxu0 0
      %3934 = vmatpush.bf16.msra.mxu0 0
      %3935 = vmatpush.bf16.msra.mxu0 0
      %3936 = vmatpush.bf16.msra.mxu0 0
      %3937 = vmatpush.bf16.msra.mxu0 0
      %3938 = vmatpush.bf16.msra.mxu0 %v3881
      %3939 = vmatpush.bf16.msra.mxu0 %v3880
      %3940 = vmatpush.bf16.msra.mxu0 %v3879
      %3941 = vmatmul.bf16.gmra.mxu0 %v3886
      %v3942 = vpop.f32.mrf.mxu0
      %v3943 = vadd.f32 %v3788, %v3942
      %v3944 = vpop.f32.mrf.mxu0
      %v3945 = vadd.f32 %v3790, %v3944
      %3946 = vmatmul.bf16.gmra.mxu0 %v3889
      %v3947 = vpop.f32.mrf.mxu0
      %v3948 = vadd.f32 %v3793, %v3947
      %v3949 = vpop.f32.mrf.mxu0
      %v3950 = vadd.f32 %v3795, %v3949
      %3951 = vmatmul.bf16.gmra.mxu0 %v3892
      %v3952 = vpop.f32.mrf.mxu0
      %v3953 = vadd.f32 %v3798, %v3952
      %v3954 = vpop.f32.mrf.mxu0
      %v3955 = vadd.f32 %v3800, %v3954
      %3956 = vmatmul.bf16.gmra.mxu0 %v3895
      %v3957 = vpop.f32.mrf.mxu0
      %v3958 = vadd.f32 %v3803, %v3957
      %v3959 = vpop.f32.mrf.mxu0
      %v3960 = vadd.f32 %v3805, %v3959
      %3961 = vmatmul.bf16.gmra.mxu0 %v3898
      %v3962 = vpop.f32.mrf.mxu0
      %v3963 = vadd.f32 %v3808, %v3962
      %v3964 = vpop.f32.mrf.mxu0
      %v3965 = vadd.f32 %v3810, %v3964
      %3966 = vmatmul.bf16.gmra.mxu0 %v3901
      %v3967 = vpop.f32.mrf.mxu0
      %v3968 = vadd.f32 %v3813, %v3967
      %v3969 = vpop.f32.mrf.mxu0
      %v3970 = vadd.f32 %v3815, %v3969
      %3971 = vmatmul.bf16.gmra.mxu0 %v3904
      %v3972 = vpop.f32.mrf.mxu0
      %v3973 = vadd.f32 %v3818, %v3972
      %v3974 = vpop.f32.mrf.mxu0
      %v3975 = vadd.f32 %v3820, %v3974
      %3976 = vmatmul.bf16.gmra.mxu0 %v3907
      %v3977 = vpop.f32.mrf.mxu0
      %v3978 = vadd.f32 %v3823, %v3977
      %v3979 = vpop.f32.mrf.mxu0
      %v3980 = vadd.f32 %v3825, %v3979
      %3981 = vmatmul.bf16.gmra.mxu0 %v3910
      %v3982 = vpop.f32.mrf.mxu0
      %v3983 = vadd.f32 %v3828, %v3982
      %v3984 = vpop.f32.mrf.mxu0
      %v3985 = vadd.f32 %v3830, %v3984
      %3986 = vmatmul.bf16.gmra.mxu0 %v3913
      %v3987 = vpop.f32.mrf.mxu0
      %v3988 = vadd.f32 %v3833, %v3987
      %v3989 = vpop.f32.mrf.mxu0
      %v3990 = vadd.f32 %v3835, %v3989
      %3991 = vmatmul.bf16.gmra.mxu0 %v3916
      %v3992 = vpop.f32.mrf.mxu0
      %v3993 = vadd.f32 %v3838, %v3992
      %v3994 = vpop.f32.mrf.mxu0
      %v3995 = vadd.f32 %v3840, %v3994
      %3996 = vmatmul.bf16.gmra.mxu0 %v3919
      %v3997 = vpop.f32.mrf.mxu0
      %v3998 = vadd.f32 %v3843, %v3997
      %v3999 = vpop.f32.mrf.mxu0
      %v4000 = vadd.f32 %v3845, %v3999
      %4001 = vmatmul.bf16.gmra.mxu0 %v3922
      %v4002 = vpop.f32.mrf.mxu0
      %v4003 = vadd.f32 %v3848, %v4002
      %v4004 = vpop.f32.mrf.mxu0
      %v4005 = vadd.f32 %v3850, %v4004
      %4006 = vmatmul.bf16.gmra.mxu0 %v3925
      %v4007 = vpop.f32.mrf.mxu0
      %v4008 = vadd.f32 %v3853, %v4007
      %v4009 = vpop.f32.mrf.mxu0
      %v4010 = vadd.f32 %v3855, %v4009
      %4011 = vmatmul.bf16.gmra.mxu0 %v3928
      %v4012 = vpop.f32.mrf.mxu0
      %v4013 = vadd.f32 %v3858, %v4012
      %v4014 = vpop.f32.mrf.mxu0
      %v4015 = vadd.f32 %v3860, %v4014
      %4016 = vmatmul.bf16.gmra.mxu0 %v3931
      %v4017 = vpop.f32.mrf.mxu0
      %v4018 = vadd.f32 %v3863, %v4017
      %v4019 = vpop.f32.mrf.mxu0
      %v4020 = vadd.f32 %v3865, %v4019
      %4021 = vdwg.mxu0
      %v4022 = vld [vmem:[#allocation3 + $0x2] sm:$0xff]
      %v4023 = vld [vmem:[#allocation3 + $0xa] sm:$0xff]
      %v4024 = vld [vmem:[#allocation3 + $0x1a] sm:$0xff]
      %v4025 = vld [vmem:[#allocation3 + $0x22] sm:$0xff]
      %v4026 = vld [vmem:[#allocation3 + $0x32] sm:$0xff]
      %v4027 = vld [vmem:[#allocation3 + $0x3a] sm:$0xff]
      %v4028 = vld [vmem:[#allocation3 + $0x4a] sm:$0xff]
      %v4029 = vld [vmem:[#allocation3 + $0x52] sm:$0xff]
      %v4030 = vld [vmem:[#allocation3 + $0x62] sm:$0xff]
      %v4031 = vld [vmem:[#allocation3 + $0x6a] sm:$0xff]
      %v4032 = vld [vmem:[#allocation3 + $0x7a] sm:$0xff]
      %v4033 = vld [vmem:[#allocation3 + $0x82] sm:$0xff]
      %v4034 = vld [vmem:[#allocation3 + $0x92] sm:$0xff]
      %v4035 = vld [vmem:[#allocation3 + $0x9a] sm:$0xff]
      %v4036 = vld [vmem:[#allocation3 + $0xaa] sm:$0xff]
      %v4037 = vld [vmem:[#allocation3 + $0xb2] sm:$0xff]
      %v4038 = vld [vmem:[#allocation3 + $0xc2] sm:$0xff]
      %v4039 = vld [vmem:[#allocation3 + $0xca] sm:$0xff]
      %v4040 = vld [vmem:[#allocation3 + $0xda] sm:$0xff]
      %v4041 = vld [vmem:[#allocation3 + $0xe2] sm:$0xff]
      %v4042 = vld [vmem:[#allocation3 + $0xf2] sm:$0xff]
      %v4043 = vld [vmem:[#allocation3 + $0xfa] sm:$0xff]
      %v4044 = vld [vmem:[#allocation3 + $0x10a] sm:$0xff]
      %v4045 = vld [vmem:[#allocation3 + $0x112] sm:$0xff]
      %v4046 = vld [vmem:[#allocation3 + $0x122] sm:$0xff]
      %v4047 = vld [vmem:[#allocation3 + $0x12a] sm:$0xff]
      %v4048 = vld [vmem:[#allocation3 + $0x13a] sm:$0xff]
      %v4049 = vld [vmem:[#allocation3 + $0x142] sm:$0xff]
      %v4050 = vld [vmem:[#allocation3 + $0x152] sm:$0xff]
      %v4051 = vld [vmem:[#allocation3 + $0x15a] sm:$0xff]
      %v4052 = vld [vmem:[#allocation3 + $0x16a] sm:$0xff]
      %v4053 = vld [vmem:[#allocation3 + $0x172] sm:$0xff]
      %v4054 = vpack.c.bf16 %v4023, %v4022
      %v4055 = vpack.c.bf16 %v4025, %v4024
      %v4056 = vpack.c.bf16 %v4027, %v4026
      %v4057 = vpack.c.bf16 %v4029, %v4028
      %v4058 = vpack.c.bf16 %v4031, %v4030
      %v4059 = vpack.c.bf16 %v4033, %v4032
      %v4060 = vpack.c.bf16 %v4035, %v4034
      %v4061 = vpack.c.bf16 %v4037, %v4036
      %v4062 = vpack.c.bf16 %v4039, %v4038
      %v4063 = vpack.c.bf16 %v4041, %v4040
      %v4064 = vpack.c.bf16 %v4043, %v4042
      %v4065 = vpack.c.bf16 %v4045, %v4044
      %v4066 = vpack.c.bf16 %v4047, %v4046
      %v4067 = vpack.c.bf16 %v4049, %v4048
      %v4068 = vpack.c.bf16 %v4051, %v4050
      %v4069 = vpack.c.bf16 %v4053, %v4052
      %s4070 = scalar_lea.vmem %s5, 48
      %v4071 = vld [vmem:[%s4070] sm:$0xf]
      %v4072 = vld [vmem:[%s4070 + $0x4] sm:$0xf]
      %v4073 = vld [vmem:[%s4070 + $0x8] sm:$0xf]
      %v4074 = vld [vmem:[%s4070 + $0xc] sm:$0xf]
      %v4075 = vld [vmem:[%s4070 + $0x10] sm:$0xf]
      %v4076 = vld [vmem:[%s4070 + $0x14] sm:$0xf]
      %v4083 = vunpack.c.l.b16 %v4071
      %v4084 = vunpack.c.l.b16 %v4072
      %v4085 = vunpack.c.l.b16 %v4073
      %v4086 = vunpack.c.l.b16 %v4074
      %v4087 = vunpack.c.l.b16 %v4075
      %v4088 = vunpack.c.l.b16 %v4076
      %v4089 = vpack.c.b16 %v4084, %v4083
      %v4090 = vpack.c.b16 %v4086, %v4085
      %v4091 = vpack.c.b16 %v4088, %v4087
      %v4096 = vsel %vm3386, %v4054, 0
      %v4099 = vsel %vm3386, %v4055, 0
      %v4102 = vsel %vm3386, %v4056, 0
      %v4105 = vsel %vm3386, %v4057, 0
      %v4108 = vsel %vm3386, %v4058, 0
      %v4111 = vsel %vm3386, %v4059, 0
      %v4114 = vsel %vm3386, %v4060, 0
      %v4117 = vsel %vm3386, %v4061, 0
      %v4120 = vsel %vm3386, %v4062, 0
      %v4123 = vsel %vm3386, %v4063, 0
      %v4126 = vsel %vm3386, %v4064, 0
      %v4129 = vsel %vm3386, %v4065, 0
      %v4132 = vsel %vm3386, %v4066, 0
      %v4135 = vsel %vm3386, %v4067, 0
      %v4138 = vsel %vm3386, %v4068, 0
      %v4141 = vsel %vm3386, %v4069, 0
      %4143 = vmatpush.bf16.msra.mxu0 0
      %4144 = vmatpush.bf16.msra.mxu0 0
      %4145 = vmatpush.bf16.msra.mxu0 0
      %4146 = vmatpush.bf16.msra.mxu0 0
      %4147 = vmatpush.bf16.msra.mxu0 0
      %4148 = vmatpush.bf16.msra.mxu0 %v4091
      %4149 = vmatpush.bf16.msra.mxu0 %v4090
      %4150 = vmatpush.bf16.msra.mxu0 %v4089
      %4151 = vmatmul.bf16.gmra.mxu0 %v4096
      %v4152 = vpop.f32.mrf.mxu0
      %v4153 = vadd.f32 0.0, %v4152
      %v4154 = vpop.f32.mrf.mxu0
      %v4155 = vadd.f32 0.0, %v4154
      %4156 = vmatmul.bf16.gmra.mxu0 %v4099
      %v4157 = vpop.f32.mrf.mxu0
      %v4158 = vadd.f32 0.0, %v4157
      %v4159 = vpop.f32.mrf.mxu0
      %v4160 = vadd.f32 0.0, %v4159
      %4161 = vmatmul.bf16.gmra.mxu0 %v4102
      %v4162 = vpop.f32.mrf.mxu0
      %v4163 = vadd.f32 0.0, %v4162
      %v4164 = vpop.f32.mrf.mxu0
      %v4165 = vadd.f32 0.0, %v4164
      %4166 = vmatmul.bf16.gmra.mxu0 %v4105
      %v4167 = vpop.f32.mrf.mxu0
      %v4168 = vadd.f32 0.0, %v4167
      %v4169 = vpop.f32.mrf.mxu0
      %v4170 = vadd.f32 0.0, %v4169
      %4171 = vmatmul.bf16.gmra.mxu0 %v4108
      %v4172 = vpop.f32.mrf.mxu0
      %v4173 = vadd.f32 0.0, %v4172
      %v4174 = vpop.f32.mrf.mxu0
      %v4175 = vadd.f32 0.0, %v4174
      %4176 = vmatmul.bf16.gmra.mxu0 %v4111
      %v4177 = vpop.f32.mrf.mxu0
      %v4178 = vadd.f32 0.0, %v4177
      %v4179 = vpop.f32.mrf.mxu0
      %v4180 = vadd.f32 0.0, %v4179
      %4181 = vmatmul.bf16.gmra.mxu0 %v4114
      %v4182 = vpop.f32.mrf.mxu0
      %v4183 = vadd.f32 0.0, %v4182
      %v4184 = vpop.f32.mrf.mxu0
      %v4185 = vadd.f32 0.0, %v4184
      %4186 = vmatmul.bf16.gmra.mxu0 %v4117
      %v4187 = vpop.f32.mrf.mxu0
      %v4188 = vadd.f32 0.0, %v4187
      %v4189 = vpop.f32.mrf.mxu0
      %v4190 = vadd.f32 0.0, %v4189
      %4191 = vmatmul.bf16.gmra.mxu0 %v4120
      %v4192 = vpop.f32.mrf.mxu0
      %v4193 = vadd.f32 0.0, %v4192
      %v4194 = vpop.f32.mrf.mxu0
      %v4195 = vadd.f32 0.0, %v4194
      %4196 = vmatmul.bf16.gmra.mxu0 %v4123
      %v4197 = vpop.f32.mrf.mxu0
      %v4198 = vadd.f32 0.0, %v4197
      %v4199 = vpop.f32.mrf.mxu0
      %v4200 = vadd.f32 0.0, %v4199
      %4201 = vmatmul.bf16.gmra.mxu0 %v4126
      %v4202 = vpop.f32.mrf.mxu0
      %v4203 = vadd.f32 0.0, %v4202
      %v4204 = vpop.f32.mrf.mxu0
      %v4205 = vadd.f32 0.0, %v4204
      %4206 = vmatmul.bf16.gmra.mxu0 %v4129
      %v4207 = vpop.f32.mrf.mxu0
      %v4208 = vadd.f32 0.0, %v4207
      %v4209 = vpop.f32.mrf.mxu0
      %v4210 = vadd.f32 0.0, %v4209
      %4211 = vmatmul.bf16.gmra.mxu0 %v4132
      %v4212 = vpop.f32.mrf.mxu0
      %v4213 = vadd.f32 0.0, %v4212
      %v4214 = vpop.f32.mrf.mxu0
      %v4215 = vadd.f32 0.0, %v4214
      %4216 = vmatmul.bf16.gmra.mxu0 %v4135
      %v4217 = vpop.f32.mrf.mxu0
      %v4218 = vadd.f32 0.0, %v4217
      %v4219 = vpop.f32.mrf.mxu0
      %v4220 = vadd.f32 0.0, %v4219
      %4221 = vmatmul.bf16.gmra.mxu0 %v4138
      %v4222 = vpop.f32.mrf.mxu0
      %v4223 = vadd.f32 0.0, %v4222
      %v4224 = vpop.f32.mrf.mxu0
      %v4225 = vadd.f32 0.0, %v4224
      %4226 = vmatmul.bf16.gmra.mxu0 %v4141
      %v4227 = vpop.f32.mrf.mxu0
      %v4228 = vadd.f32 0.0, %v4227
      %v4229 = vpop.f32.mrf.mxu0
      %v4230 = vadd.f32 0.0, %v4229
      %4231 = vdwg.mxu0
      %v4232 = vadd.f32 %v3943, %v4153
      %v4233 = vadd.f32 %v3945, %v4155
      %v4234 = vadd.f32 %v3948, %v4158
      %v4235 = vadd.f32 %v3950, %v4160
      %v4236 = vadd.f32 %v3953, %v4163
      %v4237 = vadd.f32 %v3955, %v4165
      %v4238 = vadd.f32 %v3958, %v4168
      %v4239 = vadd.f32 %v3960, %v4170
      %v4240 = vadd.f32 %v3963, %v4173
      %v4241 = vadd.f32 %v3965, %v4175
      %v4242 = vadd.f32 %v3968, %v4178
      %v4243 = vadd.f32 %v3970, %v4180
      %v4244 = vadd.f32 %v3973, %v4183
      %v4245 = vadd.f32 %v3975, %v4185
      %v4246 = vadd.f32 %v3978, %v4188
      %v4247 = vadd.f32 %v3980, %v4190
      %v4248 = vadd.f32 %v3983, %v4193
      %v4249 = vadd.f32 %v3985, %v4195
      %v4250 = vadd.f32 %v3988, %v4198
      %v4251 = vadd.f32 %v3990, %v4200
      %v4252 = vadd.f32 %v3993, %v4203
      %v4253 = vadd.f32 %v3995, %v4205
      %v4254 = vadd.f32 %v3998, %v4208
      %v4255 = vadd.f32 %v4000, %v4210
      %v4256 = vadd.f32 %v4003, %v4213
      %v4257 = vadd.f32 %v4005, %v4215
      %v4258 = vadd.f32 %v4008, %v4218
      %v4259 = vadd.f32 %v4010, %v4220
      %v4260 = vadd.f32 %v4013, %v4223
      %v4261 = vadd.f32 %v4015, %v4225
      %v4262 = vadd.f32 %v4018, %v4228
      %v4263 = vadd.f32 %v4020, %v4230
      %v4264 = vld [vmem:[%s3570] sm:$0xff]
      %v4265 = vld [vmem:[%s3570 + $0x8] sm:$0xff]
      %v4266 = vld [vmem:[%s3570 + $0x18] sm:$0xff]
      %v4267 = vld [vmem:[%s3570 + $0x20] sm:$0xff]
      %v4268 = vld [vmem:[%s3570 + $0x30] sm:$0xff]
      %v4269 = vld [vmem:[%s3570 + $0x38] sm:$0xff]
      %v4270 = vld [vmem:[%s3570 + $0x48] sm:$0xff]
      %v4271 = vld [vmem:[%s3570 + $0x50] sm:$0xff]
      %v4272 = vld [vmem:[%s3570 + $0x60] sm:$0xff]
      %v4273 = vld [vmem:[%s3570 + $0x68] sm:$0xff]
      %v4274 = vld [vmem:[%s3570 + $0x78] sm:$0xff]
      %v4275 = vld [vmem:[%s3570 + $0x80] sm:$0xff]
      %v4276 = vld [vmem:[%s3570 + $0x90] sm:$0xff]
      %v4277 = vld [vmem:[%s3570 + $0x98] sm:$0xff]
      %v4278 = vld [vmem:[%s3570 + $0xa8] sm:$0xff]
      %v4279 = vld [vmem:[%s3570 + $0xb0] sm:$0xff]
      %v4280 = vld [vmem:[%s3570 + $0xc0] sm:$0xff]
      %v4281 = vld [vmem:[%s3570 + $0xc8] sm:$0xff]
      %v4282 = vld [vmem:[%s3570 + $0xd8] sm:$0xff]
      %v4283 = vld [vmem:[%s3570 + $0xe0] sm:$0xff]
      %v4284 = vld [vmem:[%s3570 + $0xf0] sm:$0xff]
      %v4285 = vld [vmem:[%s3570 + $0xf8] sm:$0xff]
      %v4286 = vld [vmem:[%s3570 + $0x108] sm:$0xff]
      %v4287 = vld [vmem:[%s3570 + $0x110] sm:$0xff]
      %v4288 = vld [vmem:[%s3570 + $0x120] sm:$0xff]
      %v4289 = vld [vmem:[%s3570 + $0x128] sm:$0xff]
      %v4290 = vld [vmem:[%s3570 + $0x138] sm:$0xff]
      %v4291 = vld [vmem:[%s3570 + $0x140] sm:$0xff]
      %v4292 = vld [vmem:[%s3570 + $0x150] sm:$0xff]
      %v4293 = vld [vmem:[%s3570 + $0x158] sm:$0xff]
      %v4294 = vld [vmem:[%s3570 + $0x168] sm:$0xff]
      %v4295 = vld [vmem:[%s3570 + $0x170] sm:$0xff]
      %v4296 = vpack.c.bf16 %v4265, %v4264
      %v4297 = vpack.c.bf16 %v4267, %v4266
      %v4298 = vpack.c.bf16 %v4269, %v4268
      %v4299 = vpack.c.bf16 %v4271, %v4270
      %v4300 = vpack.c.bf16 %v4273, %v4272
      %v4301 = vpack.c.bf16 %v4275, %v4274
      %v4302 = vpack.c.bf16 %v4277, %v4276
      %v4303 = vpack.c.bf16 %v4279, %v4278
      %v4304 = vpack.c.bf16 %v4281, %v4280
      %v4305 = vpack.c.bf16 %v4283, %v4282
      %v4306 = vpack.c.bf16 %v4285, %v4284
      %v4307 = vpack.c.bf16 %v4287, %v4286
      %v4308 = vpack.c.bf16 %v4289, %v4288
      %v4309 = vpack.c.bf16 %v4291, %v4290
      %v4310 = vpack.c.bf16 %v4293, %v4292
      %v4311 = vpack.c.bf16 %v4295, %v4294
      %s4312 = scalar_lea.vmem %s5, 72
      %v4313 = vld [vmem:[%s4312] sm:$0xf]
      %v4314 = vld [vmem:[%s4312 + $0x4] sm:$0xf]
      %v4315 = vld [vmem:[%s4312 + $0x8] sm:$0xf]
      %v4316 = vld [vmem:[%s4312 + $0xc] sm:$0xf]
      %v4317 = vld [vmem:[%s4312 + $0x10] sm:$0xf]
      %v4318 = vld [vmem:[%s4312 + $0x14] sm:$0xf]
      %v4325 = vunpack.c.l.b16 %v4313
      %v4326 = vunpack.c.l.b16 %v4314
      %v4327 = vunpack.c.l.b16 %v4315
      %v4328 = vunpack.c.l.b16 %v4316
      %v4329 = vunpack.c.l.b16 %v4317
      %v4330 = vunpack.c.l.b16 %v4318
      %v4331 = vpack.c.b16 %v4326, %v4325
      %v4332 = vpack.c.b16 %v4328, %v4327
      %v4333 = vpack.c.b16 %v4330, %v4329
      %v4338 = vsel %vm3386, %v4296, 0
      %v4341 = vsel %vm3386, %v4297, 0
      %v4344 = vsel %vm3386, %v4298, 0
      %v4347 = vsel %vm3386, %v4299, 0
      %v4350 = vsel %vm3386, %v4300, 0
      %v4353 = vsel %vm3386, %v4301, 0
      %v4356 = vsel %vm3386, %v4302, 0
      %v4359 = vsel %vm3386, %v4303, 0
      %v4362 = vsel %vm3386, %v4304, 0
      %v4365 = vsel %vm3386, %v4305, 0
      %v4368 = vsel %vm3386, %v4306, 0
      %v4371 = vsel %vm3386, %v4307, 0
      %v4374 = vsel %vm3386, %v4308, 0
      %v4377 = vsel %vm3386, %v4309, 0
      %v4380 = vsel %vm3386, %v4310, 0
      %v4383 = vsel %vm3386, %v4311, 0
      %4385 = vmatpush.bf16.msra.mxu0 0
      %4386 = vmatpush.bf16.msra.mxu0 0
      %4387 = vmatpush.bf16.msra.mxu0 0
      %4388 = vmatpush.bf16.msra.mxu0 0
      %4389 = vmatpush.bf16.msra.mxu0 0
      %4390 = vmatpush.bf16.msra.mxu0 %v4333
      %4391 = vmatpush.bf16.msra.mxu0 %v4332
      %4392 = vmatpush.bf16.msra.mxu0 %v4331
      %4393 = vmatmul.bf16.gmra.mxu0 %v4338
      %v4394 = vpop.f32.mrf.mxu0
      %v4395 = vadd.f32 0.0, %v4394
      %v4396 = vpop.f32.mrf.mxu0
      %v4397 = vadd.f32 0.0, %v4396
      %4398 = vmatmul.bf16.gmra.mxu0 %v4341
      %v4399 = vpop.f32.mrf.mxu0
      %v4400 = vadd.f32 0.0, %v4399
      %v4401 = vpop.f32.mrf.mxu0
      %v4402 = vadd.f32 0.0, %v4401
      %4403 = vmatmul.bf16.gmra.mxu0 %v4344
      %v4404 = vpop.f32.mrf.mxu0
      %v4405 = vadd.f32 0.0, %v4404
      %v4406 = vpop.f32.mrf.mxu0
      %v4407 = vadd.f32 0.0, %v4406
      %4408 = vmatmul.bf16.gmra.mxu0 %v4347
      %v4409 = vpop.f32.mrf.mxu0
      %v4410 = vadd.f32 0.0, %v4409
      %v4411 = vpop.f32.mrf.mxu0
      %v4412 = vadd.f32 0.0, %v4411
      %4413 = vmatmul.bf16.gmra.mxu0 %v4350
      %v4414 = vpop.f32.mrf.mxu0
      %v4415 = vadd.f32 0.0, %v4414
      %v4416 = vpop.f32.mrf.mxu0
      %v4417 = vadd.f32 0.0, %v4416
      %4418 = vmatmul.bf16.gmra.mxu0 %v4353
      %v4419 = vpop.f32.mrf.mxu0
      %v4420 = vadd.f32 0.0, %v4419
      %v4421 = vpop.f32.mrf.mxu0
      %v4422 = vadd.f32 0.0, %v4421
      %4423 = vmatmul.bf16.gmra.mxu0 %v4356
      %v4424 = vpop.f32.mrf.mxu0
      %v4425 = vadd.f32 0.0, %v4424
      %v4426 = vpop.f32.mrf.mxu0
      %v4427 = vadd.f32 0.0, %v4426
      %4428 = vmatmul.bf16.gmra.mxu0 %v4359
      %v4429 = vpop.f32.mrf.mxu0
      %v4430 = vadd.f32 0.0, %v4429
      %v4431 = vpop.f32.mrf.mxu0
      %v4432 = vadd.f32 0.0, %v4431
      %4433 = vmatmul.bf16.gmra.mxu0 %v4362
      %v4434 = vpop.f32.mrf.mxu0
      %v4435 = vadd.f32 0.0, %v4434
      %v4436 = vpop.f32.mrf.mxu0
      %v4437 = vadd.f32 0.0, %v4436
      %4438 = vmatmul.bf16.gmra.mxu0 %v4365
      %v4439 = vpop.f32.mrf.mxu0
      %v4440 = vadd.f32 0.0, %v4439
      %v4441 = vpop.f32.mrf.mxu0
      %v4442 = vadd.f32 0.0, %v4441
      %4443 = vmatmul.bf16.gmra.mxu0 %v4368
      %v4444 = vpop.f32.mrf.mxu0
      %v4445 = vadd.f32 0.0, %v4444
      %v4446 = vpop.f32.mrf.mxu0
      %v4447 = vadd.f32 0.0, %v4446
      %4448 = vmatmul.bf16.gmra.mxu0 %v4371
      %v4449 = vpop.f32.mrf.mxu0
      %v4450 = vadd.f32 0.0, %v4449
      %v4451 = vpop.f32.mrf.mxu0
      %v4452 = vadd.f32 0.0, %v4451
      %4453 = vmatmul.bf16.gmra.mxu0 %v4374
      %v4454 = vpop.f32.mrf.mxu0
      %v4455 = vadd.f32 0.0, %v4454
      %v4456 = vpop.f32.mrf.mxu0
      %v4457 = vadd.f32 0.0, %v4456
      %4458 = vmatmul.bf16.gmra.mxu0 %v4377
      %v4459 = vpop.f32.mrf.mxu0
      %v4460 = vadd.f32 0.0, %v4459
      %v4461 = vpop.f32.mrf.mxu0
      %v4462 = vadd.f32 0.0, %v4461
      %4463 = vmatmul.bf16.gmra.mxu0 %v4380
      %v4464 = vpop.f32.mrf.mxu0
      %v4465 = vadd.f32 0.0, %v4464
      %v4466 = vpop.f32.mrf.mxu0
      %v4467 = vadd.f32 0.0, %v4466
      %4468 = vmatmul.bf16.gmra.mxu0 %v4383
      %v4469 = vpop.f32.mrf.mxu0
      %v4470 = vadd.f32 0.0, %v4469
      %v4471 = vpop.f32.mrf.mxu0
      %v4472 = vadd.f32 0.0, %v4471
      %4473 = vdwg.mxu0
      %v4474 = vadd.f32 %v4232, %v4395
      %v4475 = vadd.f32 %v4233, %v4397
      %v4476 = vadd.f32 %v4234, %v4400
      %v4477 = vadd.f32 %v4235, %v4402
      %v4478 = vadd.f32 %v4236, %v4405
      %v4479 = vadd.f32 %v4237, %v4407
      %v4480 = vadd.f32 %v4238, %v4410
      %v4481 = vadd.f32 %v4239, %v4412
      %v4482 = vadd.f32 %v4240, %v4415
      %v4483 = vadd.f32 %v4241, %v4417
      %v4484 = vadd.f32 %v4242, %v4420
      %v4485 = vadd.f32 %v4243, %v4422
      %v4486 = vadd.f32 %v4244, %v4425
      %v4487 = vadd.f32 %v4245, %v4427
      %v4488 = vadd.f32 %v4246, %v4430
      %v4489 = vadd.f32 %v4247, %v4432
      %v4490 = vadd.f32 %v4248, %v4435
      %v4491 = vadd.f32 %v4249, %v4437
      %v4492 = vadd.f32 %v4250, %v4440
      %v4493 = vadd.f32 %v4251, %v4442
      %v4494 = vadd.f32 %v4252, %v4445
      %v4495 = vadd.f32 %v4253, %v4447
      %v4496 = vadd.f32 %v4254, %v4450
      %v4497 = vadd.f32 %v4255, %v4452
      %v4498 = vadd.f32 %v4256, %v4455
      %v4499 = vadd.f32 %v4257, %v4457
      %v4500 = vadd.f32 %v4258, %v4460
      %v4501 = vadd.f32 %v4259, %v4462
      %v4502 = vadd.f32 %v4260, %v4465
      %v4503 = vadd.f32 %v4261, %v4467
      %v4504 = vadd.f32 %v4262, %v4470
      %v4505 = vadd.f32 %v4263, %v4472
      %v4506 = vld [vmem:[%s3570 + $0x1] sm:$0xff]
      %v4507 = vld [vmem:[%s3570 + $0x9] sm:$0xff]
      %v4508 = vld [vmem:[%s3570 + $0x19] sm:$0xff]
      %v4509 = vld [vmem:[%s3570 + $0x21] sm:$0xff]
      %v4510 = vld [vmem:[%s3570 + $0x31] sm:$0xff]
      %v4511 = vld [vmem:[%s3570 + $0x39] sm:$0xff]
      %v4512 = vld [vmem:[%s3570 + $0x49] sm:$0xff]
      %v4513 = vld [vmem:[%s3570 + $0x51] sm:$0xff]
      %v4514 = vld [vmem:[%s3570 + $0x61] sm:$0xff]
      %v4515 = vld [vmem:[%s3570 + $0x69] sm:$0xff]
      %v4516 = vld [vmem:[%s3570 + $0x79] sm:$0xff]
      %v4517 = vld [vmem:[%s3570 + $0x81] sm:$0xff]
      %v4518 = vld [vmem:[%s3570 + $0x91] sm:$0xff]
      %v4519 = vld [vmem:[%s3570 + $0x99] sm:$0xff]
      %v4520 = vld [vmem:[%s3570 + $0xa9] sm:$0xff]
      %v4521 = vld [vmem:[%s3570 + $0xb1] sm:$0xff]
      %v4522 = vld [vmem:[%s3570 + $0xc1] sm:$0xff]
      %v4523 = vld [vmem:[%s3570 + $0xc9] sm:$0xff]
      %v4524 = vld [vmem:[%s3570 + $0xd9] sm:$0xff]
      %v4525 = vld [vmem:[%s3570 + $0xe1] sm:$0xff]
      %v4526 = vld [vmem:[%s3570 + $0xf1] sm:$0xff]
      %v4527 = vld [vmem:[%s3570 + $0xf9] sm:$0xff]
      %v4528 = vld [vmem:[%s3570 + $0x109] sm:$0xff]
      %v4529 = vld [vmem:[%s3570 + $0x111] sm:$0xff]
      %v4530 = vld [vmem:[%s3570 + $0x121] sm:$0xff]
      %v4531 = vld [vmem:[%s3570 + $0x129] sm:$0xff]
      %v4532 = vld [vmem:[%s3570 + $0x139] sm:$0xff]
      %v4533 = vld [vmem:[%s3570 + $0x141] sm:$0xff]
      %v4534 = vld [vmem:[%s3570 + $0x151] sm:$0xff]
      %v4535 = vld [vmem:[%s3570 + $0x159] sm:$0xff]
      %v4536 = vld [vmem:[%s3570 + $0x169] sm:$0xff]
      %v4537 = vld [vmem:[%s3570 + $0x171] sm:$0xff]
      %v4538 = vpack.c.bf16 %v4507, %v4506
      %v4539 = vpack.c.bf16 %v4509, %v4508
      %v4540 = vpack.c.bf16 %v4511, %v4510
      %v4541 = vpack.c.bf16 %v4513, %v4512
      %v4542 = vpack.c.bf16 %v4515, %v4514
      %v4543 = vpack.c.bf16 %v4517, %v4516
      %v4544 = vpack.c.bf16 %v4519, %v4518
      %v4545 = vpack.c.bf16 %v4521, %v4520
      %v4546 = vpack.c.bf16 %v4523, %v4522
      %v4547 = vpack.c.bf16 %v4525, %v4524
      %v4548 = vpack.c.bf16 %v4527, %v4526
      %v4549 = vpack.c.bf16 %v4529, %v4528
      %v4550 = vpack.c.bf16 %v4531, %v4530
      %v4551 = vpack.c.bf16 %v4533, %v4532
      %v4552 = vpack.c.bf16 %v4535, %v4534
      %v4553 = vpack.c.bf16 %v4537, %v4536
      %s4554 = scalar_lea.vmem %s5, 96
      %v4555 = vld [vmem:[%s4554] sm:$0xf]
      %v4556 = vld [vmem:[%s4554 + $0x4] sm:$0xf]
      %v4557 = vld [vmem:[%s4554 + $0x8] sm:$0xf]
      %v4558 = vld [vmem:[%s4554 + $0xc] sm:$0xf]
      %v4559 = vld [vmem:[%s4554 + $0x10] sm:$0xf]
      %v4560 = vld [vmem:[%s4554 + $0x14] sm:$0xf]
      %v4567 = vunpack.c.l.b16 %v4555
      %v4568 = vunpack.c.l.b16 %v4556
      %v4569 = vunpack.c.l.b16 %v4557
      %v4570 = vunpack.c.l.b16 %v4558
      %v4571 = vunpack.c.l.b16 %v4559
      %v4572 = vunpack.c.l.b16 %v4560
      %v4573 = vpack.c.b16 %v4568, %v4567
      %v4574 = vpack.c.b16 %v4570, %v4569
      %v4575 = vpack.c.b16 %v4572, %v4571
      %v4580 = vsel %vm3386, %v4538, 0
      %v4583 = vsel %vm3386, %v4539, 0
      %v4586 = vsel %vm3386, %v4540, 0
      %v4589 = vsel %vm3386, %v4541, 0
      %v4592 = vsel %vm3386, %v4542, 0
      %v4595 = vsel %vm3386, %v4543, 0
      %v4598 = vsel %vm3386, %v4544, 0
      %v4601 = vsel %vm3386, %v4545, 0
      %v4604 = vsel %vm3386, %v4546, 0
      %v4607 = vsel %vm3386, %v4547, 0
      %v4610 = vsel %vm3386, %v4548, 0
      %v4613 = vsel %vm3386, %v4549, 0
      %v4616 = vsel %vm3386, %v4550, 0
      %v4619 = vsel %vm3386, %v4551, 0
      %v4622 = vsel %vm3386, %v4552, 0
      %v4625 = vsel %vm3386, %v4553, 0
      %4627 = vmatpush.bf16.msra.mxu0 0
      %4628 = vmatpush.bf16.msra.mxu0 0
      %4629 = vmatpush.bf16.msra.mxu0 0
      %4630 = vmatpush.bf16.msra.mxu0 0
      %4631 = vmatpush.bf16.msra.mxu0 0
      %4632 = vmatpush.bf16.msra.mxu0 %v4575
      %4633 = vmatpush.bf16.msra.mxu0 %v4574
      %4634 = vmatpush.bf16.msra.mxu0 %v4573
      %4635 = vmatmul.bf16.gmra.mxu0 %v4580
      %v4636 = vpop.f32.mrf.mxu0
      %v4637 = vadd.f32 0.0, %v4636
      %v4638 = vpop.f32.mrf.mxu0
      %v4639 = vadd.f32 0.0, %v4638
      %4640 = vmatmul.bf16.gmra.mxu0 %v4583
      %v4641 = vpop.f32.mrf.mxu0
      %v4642 = vadd.f32 0.0, %v4641
      %v4643 = vpop.f32.mrf.mxu0
      %v4644 = vadd.f32 0.0, %v4643
      %4645 = vmatmul.bf16.gmra.mxu0 %v4586
      %v4646 = vpop.f32.mrf.mxu0
      %v4647 = vadd.f32 0.0, %v4646
      %v4648 = vpop.f32.mrf.mxu0
      %v4649 = vadd.f32 0.0, %v4648
      %4650 = vmatmul.bf16.gmra.mxu0 %v4589
      %v4651 = vpop.f32.mrf.mxu0
      %v4652 = vadd.f32 0.0, %v4651
      %v4653 = vpop.f32.mrf.mxu0
      %v4654 = vadd.f32 0.0, %v4653
      %4655 = vmatmul.bf16.gmra.mxu0 %v4592
      %v4656 = vpop.f32.mrf.mxu0
      %v4657 = vadd.f32 0.0, %v4656
      %v4658 = vpop.f32.mrf.mxu0
      %v4659 = vadd.f32 0.0, %v4658
      %4660 = vmatmul.bf16.gmra.mxu0 %v4595
      %v4661 = vpop.f32.mrf.mxu0
      %v4662 = vadd.f32 0.0, %v4661
      %v4663 = vpop.f32.mrf.mxu0
      %v4664 = vadd.f32 0.0, %v4663
      %4665 = vmatmul.bf16.gmra.mxu0 %v4598
      %v4666 = vpop.f32.mrf.mxu0
      %v4667 = vadd.f32 0.0, %v4666
      %v4668 = vpop.f32.mrf.mxu0
      %v4669 = vadd.f32 0.0, %v4668
      %4670 = vmatmul.bf16.gmra.mxu0 %v4601
      %v4671 = vpop.f32.mrf.mxu0
      %v4672 = vadd.f32 0.0, %v4671
      %v4673 = vpop.f32.mrf.mxu0
      %v4674 = vadd.f32 0.0, %v4673
      %4675 = vmatmul.bf16.gmra.mxu0 %v4604
      %v4676 = vpop.f32.mrf.mxu0
      %v4677 = vadd.f32 0.0, %v4676
      %v4678 = vpop.f32.mrf.mxu0
      %v4679 = vadd.f32 0.0, %v4678
      %4680 = vmatmul.bf16.gmra.mxu0 %v4607
      %v4681 = vpop.f32.mrf.mxu0
      %v4682 = vadd.f32 0.0, %v4681
      %v4683 = vpop.f32.mrf.mxu0
      %v4684 = vadd.f32 0.0, %v4683
      %4685 = vmatmul.bf16.gmra.mxu0 %v4610
      %v4686 = vpop.f32.mrf.mxu0
      %v4687 = vadd.f32 0.0, %v4686
      %v4688 = vpop.f32.mrf.mxu0
      %v4689 = vadd.f32 0.0, %v4688
      %4690 = vmatmul.bf16.gmra.mxu0 %v4613
      %v4691 = vpop.f32.mrf.mxu0
      %v4692 = vadd.f32 0.0, %v4691
      %v4693 = vpop.f32.mrf.mxu0
      %v4694 = vadd.f32 0.0, %v4693
      %4695 = vmatmul.bf16.gmra.mxu0 %v4616
      %v4696 = vpop.f32.mrf.mxu0
      %v4697 = vadd.f32 0.0, %v4696
      %v4698 = vpop.f32.mrf.mxu0
      %v4699 = vadd.f32 0.0, %v4698
      %4700 = vmatmul.bf16.gmra.mxu0 %v4619
      %v4701 = vpop.f32.mrf.mxu0
      %v4702 = vadd.f32 0.0, %v4701
      %v4703 = vpop.f32.mrf.mxu0
      %v4704 = vadd.f32 0.0, %v4703
      %4705 = vmatmul.bf16.gmra.mxu0 %v4622
      %v4706 = vpop.f32.mrf.mxu0
      %v4707 = vadd.f32 0.0, %v4706
      %v4708 = vpop.f32.mrf.mxu0
      %v4709 = vadd.f32 0.0, %v4708
      %4710 = vmatmul.bf16.gmra.mxu0 %v4625
      %v4711 = vpop.f32.mrf.mxu0
      %v4712 = vadd.f32 0.0, %v4711
      %v4713 = vpop.f32.mrf.mxu0
      %v4714 = vadd.f32 0.0, %v4713
      %4715 = vdwg.mxu0
      %v4716 = vadd.f32 %v4474, %v4637
      %v4717 = vadd.f32 %v4475, %v4639
      %v4718 = vadd.f32 %v4476, %v4642
      %v4719 = vadd.f32 %v4477, %v4644
      %v4720 = vadd.f32 %v4478, %v4647
      %v4721 = vadd.f32 %v4479, %v4649
      %v4722 = vadd.f32 %v4480, %v4652
      %v4723 = vadd.f32 %v4481, %v4654
      %v4724 = vadd.f32 %v4482, %v4657
      %v4725 = vadd.f32 %v4483, %v4659
      %v4726 = vadd.f32 %v4484, %v4662
      %v4727 = vadd.f32 %v4485, %v4664
      %v4728 = vadd.f32 %v4486, %v4667
      %v4729 = vadd.f32 %v4487, %v4669
      %v4730 = vadd.f32 %v4488, %v4672
      %v4731 = vadd.f32 %v4489, %v4674
      %v4732 = vadd.f32 %v4490, %v4677
      %v4733 = vadd.f32 %v4491, %v4679
      %v4734 = vadd.f32 %v4492, %v4682
      %v4735 = vadd.f32 %v4493, %v4684
      %v4736 = vadd.f32 %v4494, %v4687
      %v4737 = vadd.f32 %v4495, %v4689
      %v4738 = vadd.f32 %v4496, %v4692
      %v4739 = vadd.f32 %v4497, %v4694
      %v4740 = vadd.f32 %v4498, %v4697
      %v4741 = vadd.f32 %v4499, %v4699
      %v4742 = vadd.f32 %v4500, %v4702
      %v4743 = vadd.f32 %v4501, %v4704
      %v4744 = vadd.f32 %v4502, %v4707
      %v4745 = vadd.f32 %v4503, %v4709
      %v4746 = vadd.f32 %v4504, %v4712
      %v4747 = vadd.f32 %v4505, %v4714
      %v4748 = vld [vmem:[%s3570 + $0x2] sm:$0xff]
      %v4749 = vld [vmem:[%s3570 + $0xa] sm:$0xff]
      %v4750 = vld [vmem:[%s3570 + $0x1a] sm:$0xff]
      %v4751 = vld [vmem:[%s3570 + $0x22] sm:$0xff]
      %v4752 = vld [vmem:[%s3570 + $0x32] sm:$0xff]
      %v4753 = vld [vmem:[%s3570 + $0x3a] sm:$0xff]
      %v4754 = vld [vmem:[%s3570 + $0x4a] sm:$0xff]
      %v4755 = vld [vmem:[%s3570 + $0x52] sm:$0xff]
      %v4756 = vld [vmem:[%s3570 + $0x62] sm:$0xff]
      %v4757 = vld [vmem:[%s3570 + $0x6a] sm:$0xff]
      %v4758 = vld [vmem:[%s3570 + $0x7a] sm:$0xff]
      %v4759 = vld [vmem:[%s3570 + $0x82] sm:$0xff]
      %v4760 = vld [vmem:[%s3570 + $0x92] sm:$0xff]
      %v4761 = vld [vmem:[%s3570 + $0x9a] sm:$0xff]
      %v4762 = vld [vmem:[%s3570 + $0xaa] sm:$0xff]
      %v4763 = vld [vmem:[%s3570 + $0xb2] sm:$0xff]
      %v4764 = vld [vmem:[%s3570 + $0xc2] sm:$0xff]
      %v4765 = vld [vmem:[%s3570 + $0xca] sm:$0xff]
      %v4766 = vld [vmem:[%s3570 + $0xda] sm:$0xff]
      %v4767 = vld [vmem:[%s3570 + $0xe2] sm:$0xff]
      %v4768 = vld [vmem:[%s3570 + $0xf2] sm:$0xff]
      %v4769 = vld [vmem:[%s3570 + $0xfa] sm:$0xff]
      %v4770 = vld [vmem:[%s3570 + $0x10a] sm:$0xff]
      %v4771 = vld [vmem:[%s3570 + $0x112] sm:$0xff]
      %v4772 = vld [vmem:[%s3570 + $0x122] sm:$0xff]
      %v4773 = vld [vmem:[%s3570 + $0x12a] sm:$0xff]
      %v4774 = vld [vmem:[%s3570 + $0x13a] sm:$0xff]
      %v4775 = vld [vmem:[%s3570 + $0x142] sm:$0xff]
      %v4776 = vld [vmem:[%s3570 + $0x152] sm:$0xff]
      %v4777 = vld [vmem:[%s3570 + $0x15a] sm:$0xff]
      %v4778 = vld [vmem:[%s3570 + $0x16a] sm:$0xff]
      %v4779 = vld [vmem:[%s3570 + $0x172] sm:$0xff]
      %v4780 = vpack.c.bf16 %v4749, %v4748
      %v4781 = vpack.c.bf16 %v4751, %v4750
      %v4782 = vpack.c.bf16 %v4753, %v4752
      %v4783 = vpack.c.bf16 %v4755, %v4754
      %v4784 = vpack.c.bf16 %v4757, %v4756
      %v4785 = vpack.c.bf16 %v4759, %v4758
      %v4786 = vpack.c.bf16 %v4761, %v4760
      %v4787 = vpack.c.bf16 %v4763, %v4762
      %v4788 = vpack.c.bf16 %v4765, %v4764
      %v4789 = vpack.c.bf16 %v4767, %v4766
      %v4790 = vpack.c.bf16 %v4769, %v4768
      %v4791 = vpack.c.bf16 %v4771, %v4770
      %v4792 = vpack.c.bf16 %v4773, %v4772
      %v4793 = vpack.c.bf16 %v4775, %v4774
      %v4794 = vpack.c.bf16 %v4777, %v4776
      %v4795 = vpack.c.bf16 %v4779, %v4778
      %s4796 = scalar_lea.vmem %s5, 120
      %v4797 = vld [vmem:[%s4796] sm:$0xf]
      %v4798 = vld [vmem:[%s4796 + $0x4] sm:$0xf]
      %v4799 = vld [vmem:[%s4796 + $0x8] sm:$0xf]
      %v4800 = vld [vmem:[%s4796 + $0xc] sm:$0xf]
      %v4801 = vld [vmem:[%s4796 + $0x10] sm:$0xf]
      %v4802 = vld [vmem:[%s4796 + $0x14] sm:$0xf]
      %v4809 = vunpack.c.l.b16 %v4797
      %v4810 = vunpack.c.l.b16 %v4798
      %v4811 = vunpack.c.l.b16 %v4799
      %v4812 = vunpack.c.l.b16 %v4800
      %v4813 = vunpack.c.l.b16 %v4801
      %v4814 = vunpack.c.l.b16 %v4802
      %v4815 = vpack.c.b16 %v4810, %v4809
      %v4816 = vpack.c.b16 %v4812, %v4811
      %v4817 = vpack.c.b16 %v4814, %v4813
      %v4822 = vsel %vm3386, %v4780, 0
      %v4825 = vsel %vm3386, %v4781, 0
      %v4828 = vsel %vm3386, %v4782, 0
      %v4831 = vsel %vm3386, %v4783, 0
      %v4834 = vsel %vm3386, %v4784, 0
      %v4837 = vsel %vm3386, %v4785, 0
      %v4840 = vsel %vm3386, %v4786, 0
      %v4843 = vsel %vm3386, %v4787, 0
      %v4846 = vsel %vm3386, %v4788, 0
      %v4849 = vsel %vm3386, %v4789, 0
      %v4852 = vsel %vm3386, %v4790, 0
      %v4855 = vsel %vm3386, %v4791, 0
      %v4858 = vsel %vm3386, %v4792, 0
      %v4861 = vsel %vm3386, %v4793, 0
      %v4864 = vsel %vm3386, %v4794, 0
      %v4867 = vsel %vm3386, %v4795, 0
      %4869 = vmatpush.bf16.msra.mxu0 0
      %4870 = vmatpush.bf16.msra.mxu0 0
      %4871 = vmatpush.bf16.msra.mxu0 0
      %4872 = vmatpush.bf16.msra.mxu0 0
      %4873 = vmatpush.bf16.msra.mxu0 0
      %4874 = vmatpush.bf16.msra.mxu0 %v4817
      %4875 = vmatpush.bf16.msra.mxu0 %v4816
      %4876 = vmatpush.bf16.msra.mxu0 %v4815
      %4877 = vmatmul.bf16.gmra.mxu0 %v4822
      %v4878 = vpop.f32.mrf.mxu0
      %v4879 = vadd.f32 0.0, %v4878
      %v4880 = vpop.f32.mrf.mxu0
      %v4881 = vadd.f32 0.0, %v4880
      %4882 = vmatmul.bf16.gmra.mxu0 %v4825
      %v4883 = vpop.f32.mrf.mxu0
      %v4884 = vadd.f32 0.0, %v4883
      %v4885 = vpop.f32.mrf.mxu0
      %v4886 = vadd.f32 0.0, %v4885
      %4887 = vmatmul.bf16.gmra.mxu0 %v4828
      %v4888 = vpop.f32.mrf.mxu0
      %v4889 = vadd.f32 0.0, %v4888
      %v4890 = vpop.f32.mrf.mxu0
      %v4891 = vadd.f32 0.0, %v4890
      %4892 = vmatmul.bf16.gmra.mxu0 %v4831
      %v4893 = vpop.f32.mrf.mxu0
      %v4894 = vadd.f32 0.0, %v4893
      %v4895 = vpop.f32.mrf.mxu0
      %v4896 = vadd.f32 0.0, %v4895
      %4897 = vmatmul.bf16.gmra.mxu0 %v4834
      %v4898 = vpop.f32.mrf.mxu0
      %v4899 = vadd.f32 0.0, %v4898
      %v4900 = vpop.f32.mrf.mxu0
      %v4901 = vadd.f32 0.0, %v4900
      %4902 = vmatmul.bf16.gmra.mxu0 %v4837
      %v4903 = vpop.f32.mrf.mxu0
      %v4904 = vadd.f32 0.0, %v4903
      %v4905 = vpop.f32.mrf.mxu0
      %v4906 = vadd.f32 0.0, %v4905
      %4907 = vmatmul.bf16.gmra.mxu0 %v4840
      %v4908 = vpop.f32.mrf.mxu0
      %v4909 = vadd.f32 0.0, %v4908
      %v4910 = vpop.f32.mrf.mxu0
      %v4911 = vadd.f32 0.0, %v4910
      %4912 = vmatmul.bf16.gmra.mxu0 %v4843
      %v4913 = vpop.f32.mrf.mxu0
      %v4914 = vadd.f32 0.0, %v4913
      %v4915 = vpop.f32.mrf.mxu0
      %v4916 = vadd.f32 0.0, %v4915
      %4917 = vmatmul.bf16.gmra.mxu0 %v4846
      %v4918 = vpop.f32.mrf.mxu0
      %v4919 = vadd.f32 0.0, %v4918
      %v4920 = vpop.f32.mrf.mxu0
      %v4921 = vadd.f32 0.0, %v4920
      %4922 = vmatmul.bf16.gmra.mxu0 %v4849
      %v4923 = vpop.f32.mrf.mxu0
      %v4924 = vadd.f32 0.0, %v4923
      %v4925 = vpop.f32.mrf.mxu0
      %v4926 = vadd.f32 0.0, %v4925
      %4927 = vmatmul.bf16.gmra.mxu0 %v4852
      %v4928 = vpop.f32.mrf.mxu0
      %v4929 = vadd.f32 0.0, %v4928
      %v4930 = vpop.f32.mrf.mxu0
      %v4931 = vadd.f32 0.0, %v4930
      %4932 = vmatmul.bf16.gmra.mxu0 %v4855
      %v4933 = vpop.f32.mrf.mxu0
      %v4934 = vadd.f32 0.0, %v4933
      %v4935 = vpop.f32.mrf.mxu0
      %v4936 = vadd.f32 0.0, %v4935
      %4937 = vmatmul.bf16.gmra.mxu0 %v4858
      %v4938 = vpop.f32.mrf.mxu0
      %v4939 = vadd.f32 0.0, %v4938
      %v4940 = vpop.f32.mrf.mxu0
      %v4941 = vadd.f32 0.0, %v4940
      %4942 = vmatmul.bf16.gmra.mxu0 %v4861
      %v4943 = vpop.f32.mrf.mxu0
      %v4944 = vadd.f32 0.0, %v4943
      %v4945 = vpop.f32.mrf.mxu0
      %v4946 = vadd.f32 0.0, %v4945
      %4947 = vmatmul.bf16.gmra.mxu0 %v4864
      %v4948 = vpop.f32.mrf.mxu0
      %v4949 = vadd.f32 0.0, %v4948
      %v4950 = vpop.f32.mrf.mxu0
      %v4951 = vadd.f32 0.0, %v4950
      %4952 = vmatmul.bf16.gmra.mxu0 %v4867
      %v4953 = vpop.f32.mrf.mxu0
      %v4954 = vadd.f32 0.0, %v4953
      %v4955 = vpop.f32.mrf.mxu0
      %v4956 = vadd.f32 0.0, %v4955
      %4957 = vdwg.mxu0
      %v4958 = vadd.f32 %v4716, %v4879
      %v4959 = vadd.f32 %v4717, %v4881
      %v4960 = vadd.f32 %v4718, %v4884
      %v4961 = vadd.f32 %v4719, %v4886
      %v4962 = vadd.f32 %v4720, %v4889
      %v4963 = vadd.f32 %v4721, %v4891
      %v4964 = vadd.f32 %v4722, %v4894
      %v4965 = vadd.f32 %v4723, %v4896
      %v4966 = vadd.f32 %v4724, %v4899
      %v4967 = vadd.f32 %v4725, %v4901
      %v4968 = vadd.f32 %v4726, %v4904
      %v4969 = vadd.f32 %v4727, %v4906
      %v4970 = vadd.f32 %v4728, %v4909
      %v4971 = vadd.f32 %v4729, %v4911
      %v4972 = vadd.f32 %v4730, %v4914
      %v4973 = vadd.f32 %v4731, %v4916
      %v4974 = vadd.f32 %v4732, %v4919
      %v4975 = vadd.f32 %v4733, %v4921
      %v4976 = vadd.f32 %v4734, %v4924
      %v4977 = vadd.f32 %v4735, %v4926
      %v4978 = vadd.f32 %v4736, %v4929
      %v4979 = vadd.f32 %v4737, %v4931
      %v4980 = vadd.f32 %v4738, %v4934
      %v4981 = vadd.f32 %v4739, %v4936
      %v4982 = vadd.f32 %v4740, %v4939
      %v4983 = vadd.f32 %v4741, %v4941
      %v4984 = vadd.f32 %v4742, %v4944
      %v4985 = vadd.f32 %v4743, %v4946
      %v4986 = vadd.f32 %v4744, %v4949
      %v4987 = vadd.f32 %v4745, %v4951
      %v4988 = vadd.f32 %v4746, %v4954
      %v4989 = vadd.f32 %v4747, %v4956
      %s4990 = scalar_lea.vmem [#allocation3], 48
      %v4991 = vld [vmem:[%s4990] sm:$0xff]
      %v4992 = vld [vmem:[%s4990 + $0x8] sm:$0xff]
      %v4993 = vld [vmem:[%s4990 + $0x18] sm:$0xff]
      %v4994 = vld [vmem:[%s4990 + $0x20] sm:$0xff]
      %v4995 = vld [vmem:[%s4990 + $0x30] sm:$0xff]
      %v4996 = vld [vmem:[%s4990 + $0x38] sm:$0xff]
      %v4997 = vld [vmem:[%s4990 + $0x48] sm:$0xff]
      %v4998 = vld [vmem:[%s4990 + $0x50] sm:$0xff]
      %v4999 = vld [vmem:[%s4990 + $0x60] sm:$0xff]
      %v5000 = vld [vmem:[%s4990 + $0x68] sm:$0xff]
      %v5001 = vld [vmem:[%s4990 + $0x78] sm:$0xff]
      %v5002 = vld [vmem:[%s4990 + $0x80] sm:$0xff]
      %v5003 = vld [vmem:[%s4990 + $0x90] sm:$0xff]
      %v5004 = vld [vmem:[%s4990 + $0x98] sm:$0xff]
      %v5005 = vld [vmem:[%s4990 + $0xa8] sm:$0xff]
      %v5006 = vld [vmem:[%s4990 + $0xb0] sm:$0xff]
      %v5007 = vld [vmem:[%s4990 + $0xc0] sm:$0xff]
      %v5008 = vld [vmem:[%s4990 + $0xc8] sm:$0xff]
      %v5009 = vld [vmem:[%s4990 + $0xd8] sm:$0xff]
      %v5010 = vld [vmem:[%s4990 + $0xe0] sm:$0xff]
      %v5011 = vld [vmem:[%s4990 + $0xf0] sm:$0xff]
      %v5012 = vld [vmem:[%s4990 + $0xf8] sm:$0xff]
      %v5013 = vld [vmem:[%s4990 + $0x108] sm:$0xff]
      %v5014 = vld [vmem:[%s4990 + $0x110] sm:$0xff]
      %v5015 = vld [vmem:[%s4990 + $0x120] sm:$0xff]
      %v5016 = vld [vmem:[%s4990 + $0x128] sm:$0xff]
      %v5017 = vld [vmem:[%s4990 + $0x138] sm:$0xff]
      %v5018 = vld [vmem:[%s4990 + $0x140] sm:$0xff]
      %v5019 = vld [vmem:[%s4990 + $0x150] sm:$0xff]
      %v5020 = vld [vmem:[%s4990 + $0x158] sm:$0xff]
      %v5021 = vld [vmem:[%s4990 + $0x168] sm:$0xff]
      %v5022 = vld [vmem:[%s4990 + $0x170] sm:$0xff]
      %v5023 = vpack.c.bf16 %v4992, %v4991
      %v5024 = vpack.c.bf16 %v4994, %v4993
      %v5025 = vpack.c.bf16 %v4996, %v4995
      %v5026 = vpack.c.bf16 %v4998, %v4997
      %v5027 = vpack.c.bf16 %v5000, %v4999
      %v5028 = vpack.c.bf16 %v5002, %v5001
      %v5029 = vpack.c.bf16 %v5004, %v5003
      %v5030 = vpack.c.bf16 %v5006, %v5005
      %v5031 = vpack.c.bf16 %v5008, %v5007
      %v5032 = vpack.c.bf16 %v5010, %v5009
      %v5033 = vpack.c.bf16 %v5012, %v5011
      %v5034 = vpack.c.bf16 %v5014, %v5013
      %v5035 = vpack.c.bf16 %v5016, %v5015
      %v5036 = vpack.c.bf16 %v5018, %v5017
      %v5037 = vpack.c.bf16 %v5020, %v5019
      %v5038 = vpack.c.bf16 %v5022, %v5021
      %s5039 = scalar_lea.vmem %s5, 144
      %v5040 = vld [vmem:[%s5039] sm:$0xf]
      %v5041 = vld [vmem:[%s5039 + $0x4] sm:$0xf]
      %v5042 = vld [vmem:[%s5039 + $0x8] sm:$0xf]
      %v5043 = vld [vmem:[%s5039 + $0xc] sm:$0xf]
      %v5044 = vld [vmem:[%s5039 + $0x10] sm:$0xf]
      %v5045 = vld [vmem:[%s5039 + $0x14] sm:$0xf]
      %v5052 = vunpack.c.l.b16 %v5040
      %v5053 = vunpack.c.l.b16 %v5041
      %v5054 = vunpack.c.l.b16 %v5042
      %v5055 = vunpack.c.l.b16 %v5043
      %v5056 = vunpack.c.l.b16 %v5044
      %v5057 = vunpack.c.l.b16 %v5045
      %v5058 = vpack.c.b16 %v5053, %v5052
      %v5059 = vpack.c.b16 %v5055, %v5054
      %v5060 = vpack.c.b16 %v5057, %v5056
      %v5065 = vsel %vm3386, %v5023, 0
      %v5068 = vsel %vm3386, %v5024, 0
      %v5071 = vsel %vm3386, %v5025, 0
      %v5074 = vsel %vm3386, %v5026, 0
      %v5077 = vsel %vm3386, %v5027, 0
      %v5080 = vsel %vm3386, %v5028, 0
      %v5083 = vsel %vm3386, %v5029, 0
      %v5086 = vsel %vm3386, %v5030, 0
      %v5089 = vsel %vm3386, %v5031, 0
      %v5092 = vsel %vm3386, %v5032, 0
      %v5095 = vsel %vm3386, %v5033, 0
      %v5098 = vsel %vm3386, %v5034, 0
      %v5101 = vsel %vm3386, %v5035, 0
      %v5104 = vsel %vm3386, %v5036, 0
      %v5107 = vsel %vm3386, %v5037, 0
      %v5110 = vsel %vm3386, %v5038, 0
      %5112 = vmatpush.bf16.msra.mxu0 0
      %5113 = vmatpush.bf16.msra.mxu0 0
      %5114 = vmatpush.bf16.msra.mxu0 0
      %5115 = vmatpush.bf16.msra.mxu0 0
      %5116 = vmatpush.bf16.msra.mxu0 0
      %5117 = vmatpush.bf16.msra.mxu0 %v5060
      %5118 = vmatpush.bf16.msra.mxu0 %v5059
      %5119 = vmatpush.bf16.msra.mxu0 %v5058
      %5120 = vmatmul.bf16.gmra.mxu0 %v5065
      %v5121 = vpop.f32.mrf.mxu0
      %v5122 = vadd.f32 0.0, %v5121
      %v5123 = vpop.f32.mrf.mxu0
      %v5124 = vadd.f32 0.0, %v5123
      %5125 = vmatmul.bf16.gmra.mxu0 %v5068
      %v5126 = vpop.f32.mrf.mxu0
      %v5127 = vadd.f32 0.0, %v5126
      %v5128 = vpop.f32.mrf.mxu0
      %v5129 = vadd.f32 0.0, %v5128
      %5130 = vmatmul.bf16.gmra.mxu0 %v5071
      %v5131 = vpop.f32.mrf.mxu0
      %v5132 = vadd.f32 0.0, %v5131
      %v5133 = vpop.f32.mrf.mxu0
      %v5134 = vadd.f32 0.0, %v5133
      %5135 = vmatmul.bf16.gmra.mxu0 %v5074
      %v5136 = vpop.f32.mrf.mxu0
      %v5137 = vadd.f32 0.0, %v5136
      %v5138 = vpop.f32.mrf.mxu0
      %v5139 = vadd.f32 0.0, %v5138
      %5140 = vmatmul.bf16.gmra.mxu0 %v5077
      %v5141 = vpop.f32.mrf.mxu0
      %v5142 = vadd.f32 0.0, %v5141
      %v5143 = vpop.f32.mrf.mxu0
      %v5144 = vadd.f32 0.0, %v5143
      %5145 = vmatmul.bf16.gmra.mxu0 %v5080
      %v5146 = vpop.f32.mrf.mxu0
      %v5147 = vadd.f32 0.0, %v5146
      %v5148 = vpop.f32.mrf.mxu0
      %v5149 = vadd.f32 0.0, %v5148
      %5150 = vmatmul.bf16.gmra.mxu0 %v5083
      %v5151 = vpop.f32.mrf.mxu0
      %v5152 = vadd.f32 0.0, %v5151
      %v5153 = vpop.f32.mrf.mxu0
      %v5154 = vadd.f32 0.0, %v5153
      %5155 = vmatmul.bf16.gmra.mxu0 %v5086
      %v5156 = vpop.f32.mrf.mxu0
      %v5157 = vadd.f32 0.0, %v5156
      %v5158 = vpop.f32.mrf.mxu0
      %v5159 = vadd.f32 0.0, %v5158
      %5160 = vmatmul.bf16.gmra.mxu0 %v5089
      %v5161 = vpop.f32.mrf.mxu0
      %v5162 = vadd.f32 0.0, %v5161
      %v5163 = vpop.f32.mrf.mxu0
      %v5164 = vadd.f32 0.0, %v5163
      %5165 = vmatmul.bf16.gmra.mxu0 %v5092
      %v5166 = vpop.f32.mrf.mxu0
      %v5167 = vadd.f32 0.0, %v5166
      %v5168 = vpop.f32.mrf.mxu0
      %v5169 = vadd.f32 0.0, %v5168
      %5170 = vmatmul.bf16.gmra.mxu0 %v5095
      %v5171 = vpop.f32.mrf.mxu0
      %v5172 = vadd.f32 0.0, %v5171
      %v5173 = vpop.f32.mrf.mxu0
      %v5174 = vadd.f32 0.0, %v5173
      %5175 = vmatmul.bf16.gmra.mxu0 %v5098
      %v5176 = vpop.f32.mrf.mxu0
      %v5177 = vadd.f32 0.0, %v5176
      %v5178 = vpop.f32.mrf.mxu0
      %v5179 = vadd.f32 0.0, %v5178
      %5180 = vmatmul.bf16.gmra.mxu0 %v5101
      %v5181 = vpop.f32.mrf.mxu0
      %v5182 = vadd.f32 0.0, %v5181
      %v5183 = vpop.f32.mrf.mxu0
      %v5184 = vadd.f32 0.0, %v5183
      %5185 = vmatmul.bf16.gmra.mxu0 %v5104
      %v5186 = vpop.f32.mrf.mxu0
      %v5187 = vadd.f32 0.0, %v5186
      %v5188 = vpop.f32.mrf.mxu0
      %v5189 = vadd.f32 0.0, %v5188
      %5190 = vmatmul.bf16.gmra.mxu0 %v5107
      %v5191 = vpop.f32.mrf.mxu0
      %v5192 = vadd.f32 0.0, %v5191
      %v5193 = vpop.f32.mrf.mxu0
      %v5194 = vadd.f32 0.0, %v5193
      %5195 = vmatmul.bf16.gmra.mxu0 %v5110
      %v5196 = vpop.f32.mrf.mxu0
      %v5197 = vadd.f32 0.0, %v5196
      %v5198 = vpop.f32.mrf.mxu0
      %v5199 = vadd.f32 0.0, %v5198
      %5200 = vdwg.mxu0
      %v5201 = vadd.f32 %v4958, %v5122
      %v5202 = vadd.f32 %v4959, %v5124
      %v5203 = vadd.f32 %v4960, %v5127
      %v5204 = vadd.f32 %v4961, %v5129
      %v5205 = vadd.f32 %v4962, %v5132
      %v5206 = vadd.f32 %v4963, %v5134
      %v5207 = vadd.f32 %v4964, %v5137
      %v5208 = vadd.f32 %v4965, %v5139
      %v5209 = vadd.f32 %v4966, %v5142
      %v5210 = vadd.f32 %v4967, %v5144
      %v5211 = vadd.f32 %v4968, %v5147
      %v5212 = vadd.f32 %v4969, %v5149
      %v5213 = vadd.f32 %v4970, %v5152
      %v5214 = vadd.f32 %v4971, %v5154
      %v5215 = vadd.f32 %v4972, %v5157
      %v5216 = vadd.f32 %v4973, %v5159
      %v5217 = vadd.f32 %v4974, %v5162
      %v5218 = vadd.f32 %v4975, %v5164
      %v5219 = vadd.f32 %v4976, %v5167
      %v5220 = vadd.f32 %v4977, %v5169
      %v5221 = vadd.f32 %v4978, %v5172
      %v5222 = vadd.f32 %v4979, %v5174
      %v5223 = vadd.f32 %v4980, %v5177
      %v5224 = vadd.f32 %v4981, %v5179
      %v5225 = vadd.f32 %v4982, %v5182
      %v5226 = vadd.f32 %v4983, %v5184
      %v5227 = vadd.f32 %v4984, %v5187
      %v5228 = vadd.f32 %v4985, %v5189
      %v5229 = vadd.f32 %v4986, %v5192
      %v5230 = vadd.f32 %v4987, %v5194
      %v5231 = vadd.f32 %v4988, %v5197
      %v5232 = vadd.f32 %v4989, %v5199
      %v5233 = vld [vmem:[%s4990 + $0x1] sm:$0xff]
      %v5234 = vld [vmem:[%s4990 + $0x9] sm:$0xff]
      %v5235 = vld [vmem:[%s4990 + $0x19] sm:$0xff]
      %v5236 = vld [vmem:[%s4990 + $0x21] sm:$0xff]
      %v5237 = vld [vmem:[%s4990 + $0x31] sm:$0xff]
      %v5238 = vld [vmem:[%s4990 + $0x39] sm:$0xff]
      %v5239 = vld [vmem:[%s4990 + $0x49] sm:$0xff]
      %v5240 = vld [vmem:[%s4990 + $0x51] sm:$0xff]
      %v5241 = vld [vmem:[%s4990 + $0x61] sm:$0xff]
      %v5242 = vld [vmem:[%s4990 + $0x69] sm:$0xff]
      %v5243 = vld [vmem:[%s4990 + $0x79] sm:$0xff]
      %v5244 = vld [vmem:[%s4990 + $0x81] sm:$0xff]
      %v5245 = vld [vmem:[%s4990 + $0x91] sm:$0xff]
      %v5246 = vld [vmem:[%s4990 + $0x99] sm:$0xff]
      %v5247 = vld [vmem:[%s4990 + $0xa9] sm:$0xff]
      %v5248 = vld [vmem:[%s4990 + $0xb1] sm:$0xff]
      %v5249 = vld [vmem:[%s4990 + $0xc1] sm:$0xff]
      %v5250 = vld [vmem:[%s4990 + $0xc9] sm:$0xff]
      %v5251 = vld [vmem:[%s4990 + $0xd9] sm:$0xff]
      %v5252 = vld [vmem:[%s4990 + $0xe1] sm:$0xff]
      %v5253 = vld [vmem:[%s4990 + $0xf1] sm:$0xff]
      %v5254 = vld [vmem:[%s4990 + $0xf9] sm:$0xff]
      %v5255 = vld [vmem:[%s4990 + $0x109] sm:$0xff]
      %v5256 = vld [vmem:[%s4990 + $0x111] sm:$0xff]
      %v5257 = vld [vmem:[%s4990 + $0x121] sm:$0xff]
      %v5258 = vld [vmem:[%s4990 + $0x129] sm:$0xff]
      %v5259 = vld [vmem:[%s4990 + $0x139] sm:$0xff]
      %v5260 = vld [vmem:[%s4990 + $0x141] sm:$0xff]
      %v5261 = vld [vmem:[%s4990 + $0x151] sm:$0xff]
      %v5262 = vld [vmem:[%s4990 + $0x159] sm:$0xff]
      %v5263 = vld [vmem:[%s4990 + $0x169] sm:$0xff]
      %v5264 = vld [vmem:[%s4990 + $0x171] sm:$0xff]
      %v5265 = vpack.c.bf16 %v5234, %v5233
      %v5266 = vpack.c.bf16 %v5236, %v5235
      %v5267 = vpack.c.bf16 %v5238, %v5237
      %v5268 = vpack.c.bf16 %v5240, %v5239
      %v5269 = vpack.c.bf16 %v5242, %v5241
      %v5270 = vpack.c.bf16 %v5244, %v5243
      %v5271 = vpack.c.bf16 %v5246, %v5245
      %v5272 = vpack.c.bf16 %v5248, %v5247
      %v5273 = vpack.c.bf16 %v5250, %v5249
      %v5274 = vpack.c.bf16 %v5252, %v5251
      %v5275 = vpack.c.bf16 %v5254, %v5253
      %v5276 = vpack.c.bf16 %v5256, %v5255
      %v5277 = vpack.c.bf16 %v5258, %v5257
      %v5278 = vpack.c.bf16 %v5260, %v5259
      %v5279 = vpack.c.bf16 %v5262, %v5261
      %v5280 = vpack.c.bf16 %v5264, %v5263
      %s5281 = scalar_lea.vmem %s5, 168
      %v5282 = vld [vmem:[%s5281] sm:$0xf]
      %v5283 = vld [vmem:[%s5281 + $0x4] sm:$0xf]
      %v5284 = vld [vmem:[%s5281 + $0x8] sm:$0xf]
      %v5285 = vld [vmem:[%s5281 + $0xc] sm:$0xf]
      %v5286 = vld [vmem:[%s5281 + $0x10] sm:$0xf]
      %v5287 = vld [vmem:[%s5281 + $0x14] sm:$0xf]
      %v5294 = vunpack.c.l.b16 %v5282
      %v5295 = vunpack.c.l.b16 %v5283
      %v5296 = vunpack.c.l.b16 %v5284
      %v5297 = vunpack.c.l.b16 %v5285
      %v5298 = vunpack.c.l.b16 %v5286
      %v5299 = vunpack.c.l.b16 %v5287
      %v5300 = vpack.c.b16 %v5295, %v5294
      %v5301 = vpack.c.b16 %v5297, %v5296
      %v5302 = vpack.c.b16 %v5299, %v5298
      %v5307 = vsel %vm3386, %v5265, 0
      %v5310 = vsel %vm3386, %v5266, 0
      %v5313 = vsel %vm3386, %v5267, 0
      %v5316 = vsel %vm3386, %v5268, 0
      %v5319 = vsel %vm3386, %v5269, 0
      %v5322 = vsel %vm3386, %v5270, 0
      %v5325 = vsel %vm3386, %v5271, 0
      %v5328 = vsel %vm3386, %v5272, 0
      %v5331 = vsel %vm3386, %v5273, 0
      %v5334 = vsel %vm3386, %v5274, 0
      %v5337 = vsel %vm3386, %v5275, 0
      %v5340 = vsel %vm3386, %v5276, 0
      %v5343 = vsel %vm3386, %v5277, 0
      %v5346 = vsel %vm3386, %v5278, 0
      %v5349 = vsel %vm3386, %v5279, 0
      %v5352 = vsel %vm3386, %v5280, 0
      %5354 = vmatpush.bf16.msra.mxu0 0
      %5355 = vmatpush.bf16.msra.mxu0 0
      %5356 = vmatpush.bf16.msra.mxu0 0
      %5357 = vmatpush.bf16.msra.mxu0 0
      %5358 = vmatpush.bf16.msra.mxu0 0
      %5359 = vmatpush.bf16.msra.mxu0 %v5302
      %5360 = vmatpush.bf16.msra.mxu0 %v5301
      %5361 = vmatpush.bf16.msra.mxu0 %v5300
      %5362 = vmatmul.bf16.gmra.mxu0 %v5307
      %v5363 = vpop.f32.mrf.mxu0
      %v5364 = vadd.f32 0.0, %v5363
      %v5365 = vpop.f32.mrf.mxu0
      %v5366 = vadd.f32 0.0, %v5365
      %5367 = vmatmul.bf16.gmra.mxu0 %v5310
      %v5368 = vpop.f32.mrf.mxu0
      %v5369 = vadd.f32 0.0, %v5368
      %v5370 = vpop.f32.mrf.mxu0
      %v5371 = vadd.f32 0.0, %v5370
      %5372 = vmatmul.bf16.gmra.mxu0 %v5313
      %v5373 = vpop.f32.mrf.mxu0
      %v5374 = vadd.f32 0.0, %v5373
      %v5375 = vpop.f32.mrf.mxu0
      %v5376 = vadd.f32 0.0, %v5375
      %5377 = vmatmul.bf16.gmra.mxu0 %v5316
      %v5378 = vpop.f32.mrf.mxu0
      %v5379 = vadd.f32 0.0, %v5378
      %v5380 = vpop.f32.mrf.mxu0
      %v5381 = vadd.f32 0.0, %v5380
      %5382 = vmatmul.bf16.gmra.mxu0 %v5319
      %v5383 = vpop.f32.mrf.mxu0
      %v5384 = vadd.f32 0.0, %v5383
      %v5385 = vpop.f32.mrf.mxu0
      %v5386 = vadd.f32 0.0, %v5385
      %5387 = vmatmul.bf16.gmra.mxu0 %v5322
      %v5388 = vpop.f32.mrf.mxu0
      %v5389 = vadd.f32 0.0, %v5388
      %v5390 = vpop.f32.mrf.mxu0
      %v5391 = vadd.f32 0.0, %v5390
      %5392 = vmatmul.bf16.gmra.mxu0 %v5325
      %v5393 = vpop.f32.mrf.mxu0
      %v5394 = vadd.f32 0.0, %v5393
      %v5395 = vpop.f32.mrf.mxu0
      %v5396 = vadd.f32 0.0, %v5395
      %5397 = vmatmul.bf16.gmra.mxu0 %v5328
      %v5398 = vpop.f32.mrf.mxu0
      %v5399 = vadd.f32 0.0, %v5398
      %v5400 = vpop.f32.mrf.mxu0
      %v5401 = vadd.f32 0.0, %v5400
      %5402 = vmatmul.bf16.gmra.mxu0 %v5331
      %v5403 = vpop.f32.mrf.mxu0
      %v5404 = vadd.f32 0.0, %v5403
      %v5405 = vpop.f32.mrf.mxu0
      %v5406 = vadd.f32 0.0, %v5405
      %5407 = vmatmul.bf16.gmra.mxu0 %v5334
      %v5408 = vpop.f32.mrf.mxu0
      %v5409 = vadd.f32 0.0, %v5408
      %v5410 = vpop.f32.mrf.mxu0
      %v5411 = vadd.f32 0.0, %v5410
      %5412 = vmatmul.bf16.gmra.mxu0 %v5337
      %v5413 = vpop.f32.mrf.mxu0
      %v5414 = vadd.f32 0.0, %v5413
      %v5415 = vpop.f32.mrf.mxu0
      %v5416 = vadd.f32 0.0, %v5415
      %5417 = vmatmul.bf16.gmra.mxu0 %v5340
      %v5418 = vpop.f32.mrf.mxu0
      %v5419 = vadd.f32 0.0, %v5418
      %v5420 = vpop.f32.mrf.mxu0
      %v5421 = vadd.f32 0.0, %v5420
      %5422 = vmatmul.bf16.gmra.mxu0 %v5343
      %v5423 = vpop.f32.mrf.mxu0
      %v5424 = vadd.f32 0.0, %v5423
      %v5425 = vpop.f32.mrf.mxu0
      %v5426 = vadd.f32 0.0, %v5425
      %5427 = vmatmul.bf16.gmra.mxu0 %v5346
      %v5428 = vpop.f32.mrf.mxu0
      %v5429 = vadd.f32 0.0, %v5428
      %v5430 = vpop.f32.mrf.mxu0
      %v5431 = vadd.f32 0.0, %v5430
      %5432 = vmatmul.bf16.gmra.mxu0 %v5349
      %v5433 = vpop.f32.mrf.mxu0
      %v5434 = vadd.f32 0.0, %v5433
      %v5435 = vpop.f32.mrf.mxu0
      %v5436 = vadd.f32 0.0, %v5435
      %5437 = vmatmul.bf16.gmra.mxu0 %v5352
      %v5438 = vpop.f32.mrf.mxu0
      %v5439 = vadd.f32 0.0, %v5438
      %v5440 = vpop.f32.mrf.mxu0
      %v5441 = vadd.f32 0.0, %v5440
      %5442 = vdwg.mxu0
      %v5443 = vadd.f32 %v5201, %v5364
      %v5444 = vadd.f32 %v5202, %v5366
      %v5445 = vadd.f32 %v5203, %v5369
      %v5446 = vadd.f32 %v5204, %v5371
      %v5447 = vadd.f32 %v5205, %v5374
      %v5448 = vadd.f32 %v5206, %v5376
      %v5449 = vadd.f32 %v5207, %v5379
      %v5450 = vadd.f32 %v5208, %v5381
      %v5451 = vadd.f32 %v5209, %v5384
      %v5452 = vadd.f32 %v5210, %v5386
      %v5453 = vadd.f32 %v5211, %v5389
      %v5454 = vadd.f32 %v5212, %v5391
      %v5455 = vadd.f32 %v5213, %v5394
      %v5456 = vadd.f32 %v5214, %v5396
      %v5457 = vadd.f32 %v5215, %v5399
      %v5458 = vadd.f32 %v5216, %v5401
      %v5459 = vadd.f32 %v5217, %v5404
      %v5460 = vadd.f32 %v5218, %v5406
      %v5461 = vadd.f32 %v5219, %v5409
      %v5462 = vadd.f32 %v5220, %v5411
      %v5463 = vadd.f32 %v5221, %v5414
      %v5464 = vadd.f32 %v5222, %v5416
      %v5465 = vadd.f32 %v5223, %v5419
      %v5466 = vadd.f32 %v5224, %v5421
      %v5467 = vadd.f32 %v5225, %v5424
      %v5468 = vadd.f32 %v5226, %v5426
      %v5469 = vadd.f32 %v5227, %v5429
      %v5470 = vadd.f32 %v5228, %v5431
      %v5471 = vadd.f32 %v5229, %v5434
      %v5472 = vadd.f32 %v5230, %v5436
      %v5473 = vadd.f32 %v5231, %v5439
      %v5474 = vadd.f32 %v5232, %v5441
      %v5475 = vld [vmem:[%s4990 + $0x2] sm:$0xff]
      %v5476 = vld [vmem:[%s4990 + $0xa] sm:$0xff]
      %v5477 = vld [vmem:[%s4990 + $0x1a] sm:$0xff]
      %v5478 = vld [vmem:[%s4990 + $0x22] sm:$0xff]
      %v5479 = vld [vmem:[%s4990 + $0x32] sm:$0xff]
      %v5480 = vld [vmem:[%s4990 + $0x3a] sm:$0xff]
      %v5481 = vld [vmem:[%s4990 + $0x4a] sm:$0xff]
      %v5482 = vld [vmem:[%s4990 + $0x52] sm:$0xff]
      %v5483 = vld [vmem:[%s4990 + $0x62] sm:$0xff]
      %v5484 = vld [vmem:[%s4990 + $0x6a] sm:$0xff]
      %v5485 = vld [vmem:[%s4990 + $0x7a] sm:$0xff]
      %v5486 = vld [vmem:[%s4990 + $0x82] sm:$0xff]
      %v5487 = vld [vmem:[%s4990 + $0x92] sm:$0xff]
      %v5488 = vld [vmem:[%s4990 + $0x9a] sm:$0xff]
      %v5489 = vld [vmem:[%s4990 + $0xaa] sm:$0xff]
      %v5490 = vld [vmem:[%s4990 + $0xb2] sm:$0xff]
      %v5491 = vld [vmem:[%s4990 + $0xc2] sm:$0xff]
      %v5492 = vld [vmem:[%s4990 + $0xca] sm:$0xff]
      %v5493 = vld [vmem:[%s4990 + $0xda] sm:$0xff]
      %v5494 = vld [vmem:[%s4990 + $0xe2] sm:$0xff]
      %v5495 = vld [vmem:[%s4990 + $0xf2] sm:$0xff]
      %v5496 = vld [vmem:[%s4990 + $0xfa] sm:$0xff]
      %v5497 = vld [vmem:[%s4990 + $0x10a] sm:$0xff]
      %v5498 = vld [vmem:[%s4990 + $0x112] sm:$0xff]
      %v5499 = vld [vmem:[%s4990 + $0x122] sm:$0xff]
      %v5500 = vld [vmem:[%s4990 + $0x12a] sm:$0xff]
      %v5501 = vld [vmem:[%s4990 + $0x13a] sm:$0xff]
      %v5502 = vld [vmem:[%s4990 + $0x142] sm:$0xff]
      %v5503 = vld [vmem:[%s4990 + $0x152] sm:$0xff]
      %v5504 = vld [vmem:[%s4990 + $0x15a] sm:$0xff]
      %v5505 = vld [vmem:[%s4990 + $0x16a] sm:$0xff]
      %v5506 = vld [vmem:[%s4990 + $0x172] sm:$0xff]
      %v5507 = vpack.c.bf16 %v5476, %v5475
      %v5508 = vpack.c.bf16 %v5478, %v5477
      %v5509 = vpack.c.bf16 %v5480, %v5479
      %v5510 = vpack.c.bf16 %v5482, %v5481
      %v5511 = vpack.c.bf16 %v5484, %v5483
      %v5512 = vpack.c.bf16 %v5486, %v5485
      %v5513 = vpack.c.bf16 %v5488, %v5487
      %v5514 = vpack.c.bf16 %v5490, %v5489
      %v5515 = vpack.c.bf16 %v5492, %v5491
      %v5516 = vpack.c.bf16 %v5494, %v5493
      %v5517 = vpack.c.bf16 %v5496, %v5495
      %v5518 = vpack.c.bf16 %v5498, %v5497
      %v5519 = vpack.c.bf16 %v5500, %v5499
      %v5520 = vpack.c.bf16 %v5502, %v5501
      %v5521 = vpack.c.bf16 %v5504, %v5503
      %v5522 = vpack.c.bf16 %v5506, %v5505
      %s5523 = scalar_lea.vmem %s5, 192
      %v5524 = vld [vmem:[%s5523] sm:$0xf]
      %v5525 = vld [vmem:[%s5523 + $0x4] sm:$0xf]
      %v5526 = vld [vmem:[%s5523 + $0x8] sm:$0xf]
      %v5527 = vld [vmem:[%s5523 + $0xc] sm:$0xf]
      %v5528 = vld [vmem:[%s5523 + $0x10] sm:$0xf]
      %v5529 = vld [vmem:[%s5523 + $0x14] sm:$0xf]
      %v5536 = vunpack.c.l.b16 %v5524
      %v5537 = vunpack.c.l.b16 %v5525
      %v5538 = vunpack.c.l.b16 %v5526
      %v5539 = vunpack.c.l.b16 %v5527
      %v5540 = vunpack.c.l.b16 %v5528
      %v5541 = vunpack.c.l.b16 %v5529
      %v5542 = vpack.c.b16 %v5537, %v5536
      %v5543 = vpack.c.b16 %v5539, %v5538
      %v5544 = vpack.c.b16 %v5541, %v5540
      %v5549 = vsel %vm3386, %v5507, 0
      %v5552 = vsel %vm3386, %v5508, 0
      %v5555 = vsel %vm3386, %v5509, 0
      %v5558 = vsel %vm3386, %v5510, 0
      %v5561 = vsel %vm3386, %v5511, 0
      %v5564 = vsel %vm3386, %v5512, 0
      %v5567 = vsel %vm3386, %v5513, 0
      %v5570 = vsel %vm3386, %v5514, 0
      %v5573 = vsel %vm3386, %v5515, 0
      %v5576 = vsel %vm3386, %v5516, 0
      %v5579 = vsel %vm3386, %v5517, 0
      %v5582 = vsel %vm3386, %v5518, 0
      %v5585 = vsel %vm3386, %v5519, 0
      %v5588 = vsel %vm3386, %v5520, 0
      %v5591 = vsel %vm3386, %v5521, 0
      %v5594 = vsel %vm3386, %v5522, 0
      %5596 = vmatpush.bf16.msra.mxu0 0
      %5597 = vmatpush.bf16.msra.mxu0 0
      %5598 = vmatpush.bf16.msra.mxu0 0
      %5599 = vmatpush.bf16.msra.mxu0 0
      %5600 = vmatpush.bf16.msra.mxu0 0
      %5601 = vmatpush.bf16.msra.mxu0 %v5544
      %5602 = vmatpush.bf16.msra.mxu0 %v5543
      %5603 = vmatpush.bf16.msra.mxu0 %v5542
      %5604 = vmatmul.bf16.gmra.mxu0 %v5549
      %v5605 = vpop.f32.mrf.mxu0
      %v5606 = vadd.f32 0.0, %v5605
      %v5607 = vpop.f32.mrf.mxu0
      %v5608 = vadd.f32 0.0, %v5607
      %5609 = vmatmul.bf16.gmra.mxu0 %v5552
      %v5610 = vpop.f32.mrf.mxu0
      %v5611 = vadd.f32 0.0, %v5610
      %v5612 = vpop.f32.mrf.mxu0
      %v5613 = vadd.f32 0.0, %v5612
      %5614 = vmatmul.bf16.gmra.mxu0 %v5555
      %v5615 = vpop.f32.mrf.mxu0
      %v5616 = vadd.f32 0.0, %v5615
      %v5617 = vpop.f32.mrf.mxu0
      %v5618 = vadd.f32 0.0, %v5617
      %5619 = vmatmul.bf16.gmra.mxu0 %v5558
      %v5620 = vpop.f32.mrf.mxu0
      %v5621 = vadd.f32 0.0, %v5620
      %v5622 = vpop.f32.mrf.mxu0
      %v5623 = vadd.f32 0.0, %v5622
      %5624 = vmatmul.bf16.gmra.mxu0 %v5561
      %v5625 = vpop.f32.mrf.mxu0
      %v5626 = vadd.f32 0.0, %v5625
      %v5627 = vpop.f32.mrf.mxu0
      %v5628 = vadd.f32 0.0, %v5627
      %5629 = vmatmul.bf16.gmra.mxu0 %v5564
      %v5630 = vpop.f32.mrf.mxu0
      %v5631 = vadd.f32 0.0, %v5630
      %v5632 = vpop.f32.mrf.mxu0
      %v5633 = vadd.f32 0.0, %v5632
      %5634 = vmatmul.bf16.gmra.mxu0 %v5567
      %v5635 = vpop.f32.mrf.mxu0
      %v5636 = vadd.f32 0.0, %v5635
      %v5637 = vpop.f32.mrf.mxu0
      %v5638 = vadd.f32 0.0, %v5637
      %5639 = vmatmul.bf16.gmra.mxu0 %v5570
      %v5640 = vpop.f32.mrf.mxu0
      %v5641 = vadd.f32 0.0, %v5640
      %v5642 = vpop.f32.mrf.mxu0
      %v5643 = vadd.f32 0.0, %v5642
      %5644 = vmatmul.bf16.gmra.mxu0 %v5573
      %v5645 = vpop.f32.mrf.mxu0
      %v5646 = vadd.f32 0.0, %v5645
      %v5647 = vpop.f32.mrf.mxu0
      %v5648 = vadd.f32 0.0, %v5647
      %5649 = vmatmul.bf16.gmra.mxu0 %v5576
      %v5650 = vpop.f32.mrf.mxu0
      %v5651 = vadd.f32 0.0, %v5650
      %v5652 = vpop.f32.mrf.mxu0
      %v5653 = vadd.f32 0.0, %v5652
      %5654 = vmatmul.bf16.gmra.mxu0 %v5579
      %v5655 = vpop.f32.mrf.mxu0
      %v5656 = vadd.f32 0.0, %v5655
      %v5657 = vpop.f32.mrf.mxu0
      %v5658 = vadd.f32 0.0, %v5657
      %5659 = vmatmul.bf16.gmra.mxu0 %v5582
      %v5660 = vpop.f32.mrf.mxu0
      %v5661 = vadd.f32 0.0, %v5660
      %v5662 = vpop.f32.mrf.mxu0
      %v5663 = vadd.f32 0.0, %v5662
      %5664 = vmatmul.bf16.gmra.mxu0 %v5585
      %v5665 = vpop.f32.mrf.mxu0
      %v5666 = vadd.f32 0.0, %v5665
      %v5667 = vpop.f32.mrf.mxu0
      %v5668 = vadd.f32 0.0, %v5667
      %5669 = vmatmul.bf16.gmra.mxu0 %v5588
      %v5670 = vpop.f32.mrf.mxu0
      %v5671 = vadd.f32 0.0, %v5670
      %v5672 = vpop.f32.mrf.mxu0
      %v5673 = vadd.f32 0.0, %v5672
      %5674 = vmatmul.bf16.gmra.mxu0 %v5591
      %v5675 = vpop.f32.mrf.mxu0
      %v5676 = vadd.f32 0.0, %v5675
      %v5677 = vpop.f32.mrf.mxu0
      %v5678 = vadd.f32 0.0, %v5677
      %5679 = vmatmul.bf16.gmra.mxu0 %v5594
      %v5680 = vpop.f32.mrf.mxu0
      %v5681 = vadd.f32 0.0, %v5680
      %v5682 = vpop.f32.mrf.mxu0
      %v5683 = vadd.f32 0.0, %v5682
      %5684 = vdwg.mxu0
      %v5685 = vadd.f32 %v5443, %v5606
      %v5686 = vadd.f32 %v5444, %v5608
      %v5687 = vadd.f32 %v5445, %v5611
      %v5688 = vadd.f32 %v5446, %v5613
      %v5689 = vadd.f32 %v5447, %v5616
      %v5690 = vadd.f32 %v5448, %v5618
      %v5691 = vadd.f32 %v5449, %v5621
      %v5692 = vadd.f32 %v5450, %v5623
      %v5693 = vadd.f32 %v5451, %v5626
      %v5694 = vadd.f32 %v5452, %v5628
      %v5695 = vadd.f32 %v5453, %v5631
      %v5696 = vadd.f32 %v5454, %v5633
      %v5697 = vadd.f32 %v5455, %v5636
      %v5698 = vadd.f32 %v5456, %v5638
      %v5699 = vadd.f32 %v5457, %v5641
      %v5700 = vadd.f32 %v5458, %v5643
      %v5701 = vadd.f32 %v5459, %v5646
      %v5702 = vadd.f32 %v5460, %v5648
      %v5703 = vadd.f32 %v5461, %v5651
      %v5704 = vadd.f32 %v5462, %v5653
      %v5705 = vadd.f32 %v5463, %v5656
      %v5706 = vadd.f32 %v5464, %v5658
      %v5707 = vadd.f32 %v5465, %v5661
      %v5708 = vadd.f32 %v5466, %v5663
      %v5709 = vadd.f32 %v5467, %v5666
      %v5710 = vadd.f32 %v5468, %v5668
      %v5711 = vadd.f32 %v5469, %v5671
      %v5712 = vadd.f32 %v5470, %v5673
      %v5713 = vadd.f32 %v5471, %v5676
      %v5714 = vadd.f32 %v5472, %v5678
      %v5715 = vadd.f32 %v5473, %v5681
      %v5716 = vadd.f32 %v5474, %v5683
      %v5717 = vld [vmem:[%s6] sm:$0x1]
      %v5719 = vperm.slane %v5717, 0
      %v5721 = vadd.f32 %v5685, %v5719
      %v5722 = vadd.f32 %v5686, %v5719
      %v5723 = vadd.f32 %v5687, %v5719
      %v5724 = vadd.f32 %v5688, %v5719
      %v5725 = vadd.f32 %v5689, %v5719
      %v5726 = vadd.f32 %v5690, %v5719
      %v5727 = vadd.f32 %v5691, %v5719
      %v5728 = vadd.f32 %v5692, %v5719
      %v5729 = vadd.f32 %v5693, %v5719
      %v5730 = vadd.f32 %v5694, %v5719
      %v5731 = vadd.f32 %v5695, %v5719
      %v5732 = vadd.f32 %v5696, %v5719
      %v5733 = vadd.f32 %v5697, %v5719
      %v5734 = vadd.f32 %v5698, %v5719
      %v5735 = vadd.f32 %v5699, %v5719
      %v5736 = vadd.f32 %v5700, %v5719
      %v5737 = vadd.f32 %v5701, %v5719
      %v5738 = vadd.f32 %v5702, %v5719
      %v5739 = vadd.f32 %v5703, %v5719
      %v5740 = vadd.f32 %v5704, %v5719
      %v5741 = vadd.f32 %v5705, %v5719
      %v5742 = vadd.f32 %v5706, %v5719
      %v5743 = vadd.f32 %v5707, %v5719
      %v5744 = vadd.f32 %v5708, %v5719
      %v5745 = vadd.f32 %v5709, %v5719
      %v5746 = vadd.f32 %v5710, %v5719
      %v5747 = vadd.f32 %v5711, %v5719
      %v5748 = vadd.f32 %v5712, %v5719
      %v5749 = vadd.f32 %v5713, %v5719
      %v5750 = vadd.f32 %v5714, %v5719
      %v5751 = vadd.f32 %v5715, %v5719
      %v5752 = vadd.f32 %v5716, %v5719
      %v5753 = vmax.f32 %v5721, 0.0
      %v5754 = vmax.f32 %v5722, 0.0
      %v5755 = vmax.f32 %v5723, 0.0
      %v5756 = vmax.f32 %v5724, 0.0
      %v5757 = vmax.f32 %v5725, 0.0
      %v5758 = vmax.f32 %v5726, 0.0
      %v5759 = vmax.f32 %v5727, 0.0
      %v5760 = vmax.f32 %v5728, 0.0
      %v5761 = vmax.f32 %v5729, 0.0
      %v5762 = vmax.f32 %v5730, 0.0
      %v5763 = vmax.f32 %v5731, 0.0
      %v5764 = vmax.f32 %v5732, 0.0
      %v5765 = vmax.f32 %v5733, 0.0
      %v5766 = vmax.f32 %v5734, 0.0
      %v5767 = vmax.f32 %v5735, 0.0
      %v5768 = vmax.f32 %v5736, 0.0
      %v5769 = vmax.f32 %v5737, 0.0
      %v5770 = vmax.f32 %v5738, 0.0
      %v5771 = vmax.f32 %v5739, 0.0
      %v5772 = vmax.f32 %v5740, 0.0
      %v5773 = vmax.f32 %v5741, 0.0
      %v5774 = vmax.f32 %v5742, 0.0
      %v5775 = vmax.f32 %v5743, 0.0
      %v5776 = vmax.f32 %v5744, 0.0
      %v5777 = vmax.f32 %v5745, 0.0
      %v5778 = vmax.f32 %v5746, 0.0
      %v5779 = vmax.f32 %v5747, 0.0
      %v5780 = vmax.f32 %v5748, 0.0
      %v5781 = vmax.f32 %v5749, 0.0
      %v5782 = vmax.f32 %v5750, 0.0
      %v5783 = vmax.f32 %v5751, 0.0
      %v5784 = vmax.f32 %v5752, 0.0
      %v5785 = vpack.c.bf16 %v1013, %v1012
      %v5786 = vpack.c.bf16 %v1015, %v1014
      %v5787 = vpack.c.bf16 %v1017, %v1016
      %v5788 = vpack.c.bf16 %v1019, %v1018
      %v5789 = vpack.c.bf16 %v1021, %v1020
      %v5790 = vpack.c.bf16 %v1023, %v1022
      %v5791 = vpack.c.bf16 %v1025, %v1024
      %v5792 = vpack.c.bf16 %v1027, %v1026
      %v5793 = vpack.c.bf16 %v1029, %v1028
      %v5794 = vpack.c.bf16 %v1031, %v1030
      %v5795 = vpack.c.bf16 %v1033, %v1032
      %v5796 = vpack.c.bf16 %v1035, %v1034
      %v5797 = vpack.c.bf16 %v1037, %v1036
      %v5798 = vpack.c.bf16 %v1039, %v1038
      %v5799 = vpack.c.bf16 %v1041, %v1040
      %v5800 = vpack.c.bf16 %v1043, %v1042
      %v5801 = vld [vmem:[%s7] sm:$0xff]
      %v5802 = vld [vmem:[%s7 + $0x8] sm:$0xf]
      %v5803 = vld [vmem:[%s7 + $0xc] sm:$0xff]
      %v5804 = vld [vmem:[%s7 + $0x14] sm:$0xf]
      %v5805 = vld [vmem:[%s7 + $0x18] sm:$0xff]
      %v5806 = vld [vmem:[%s7 + $0x20] sm:$0xf]
      %v5807 = vld [vmem:[%s7 + $0x24] sm:$0xff]
      %v5808 = vld [vmem:[%s7 + $0x2c] sm:$0xf]
      %v5809 = vpack.c.bf16 %v3355, %v3354
      %v5810 = vpack.c.bf16 %v3357, %v3356
      %v5811 = vpack.c.bf16 %v3359, %v3358
      %v5812 = vpack.c.bf16 %v3361, %v3360
      %v5813 = vpack.c.bf16 %v3363, %v3362
      %v5814 = vpack.c.bf16 %v3365, %v3364
      %v5815 = vpack.c.bf16 %v3367, %v3366
      %v5816 = vpack.c.bf16 %v3369, %v3368
      %v5817 = vpack.c.bf16 %v3371, %v3370
      %v5818 = vpack.c.bf16 %v3373, %v3372
      %v5819 = vpack.c.bf16 %v3375, %v3374
      %v5820 = vpack.c.bf16 %v3377, %v3376
      %v5821 = vpack.c.bf16 %v3379, %v3378
      %v5822 = vpack.c.bf16 %v3381, %v3380
      %v5823 = vpack.c.bf16 %v3383, %v3382
      %v5824 = vpack.c.bf16 %v3385, %v3384
      %v5825 = vld [vmem:[%s8] sm:$0xff]
      %v5826 = vld [vmem:[%s8 + $0x8] sm:$0xf]
      %v5827 = vld [vmem:[%s8 + $0xc] sm:$0xff]
      %v5828 = vld [vmem:[%s8 + $0x14] sm:$0xf]
      %v5829 = vld [vmem:[%s8 + $0x18] sm:$0xff]
      %v5830 = vld [vmem:[%s8 + $0x20] sm:$0xf]
      %v5831 = vld [vmem:[%s8 + $0x24] sm:$0xff]
      %v5832 = vld [vmem:[%s8 + $0x2c] sm:$0xf]
      %v5841 = vunpack.c.l.b16 %v5825
      %v5842 = vunpack.c.h.b16 %v5825
      %v5843 = vunpack.c.l.b16 %v5826
      %v5844 = vunpack.c.l.b16 %v5827
      %v5845 = vunpack.c.h.b16 %v5827
      %v5846 = vunpack.c.l.b16 %v5828
      %v5847 = vunpack.c.l.b16 %v5829
      %v5848 = vunpack.c.h.b16 %v5829
      %v5849 = vunpack.c.l.b16 %v5830
      %v5850 = vunpack.c.l.b16 %v5831
      %v5851 = vunpack.c.h.b16 %v5831
      %v5852 = vunpack.c.l.b16 %v5832
      %v5853 = vpack.c.b16 %v5844, %v5841
      %v5854 = vpack.c.b16 %v5845, %v5842
      %v5855 = vpack.c.b16 %v5846, %v5843
      %v5856 = vpack.c.b16 %v5850, %v5847
      %v5857 = vpack.c.b16 %v5851, %v5848
      %v5858 = vpack.c.b16 %v5852, %v5849
      %vm5865 = vcmask 261120
      %v5867 = vsel %vm5865, %v5809, 0
      %v5870 = vsel %vm5865, %v5810, 0
      %v5873 = vsel %vm5865, %v5811, 0
      %v5876 = vsel %vm5865, %v5812, 0
      %v5879 = vsel %vm5865, %v5813, 0
      %v5882 = vsel %vm5865, %v5814, 0
      %v5885 = vsel %vm5865, %v5815, 0
      %v5888 = vsel %vm5865, %v5816, 0
      %v5891 = vsel %vm5865, %v5817, 0
      %v5894 = vsel %vm5865, %v5818, 0
      %v5897 = vsel %vm5865, %v5819, 0
      %v5900 = vsel %vm5865, %v5820, 0
      %v5903 = vsel %vm5865, %v5821, 0
      %v5906 = vsel %vm5865, %v5822, 0
      %v5909 = vsel %vm5865, %v5823, 0
      %v5912 = vsel %vm5865, %v5824, 0
      %5914 = vmatpush.bf16.msra.mxu0 0
      %5915 = vmatpush.bf16.msra.mxu0 0
      %5916 = vmatpush.bf16.msra.mxu0 0
      %5917 = vmatpush.bf16.msra.mxu0 0
      %5918 = vmatpush.bf16.msra.mxu0 0
      %5919 = vmatpush.bf16.msra.mxu0 0
      %5920 = vmatpush.bf16.msra.mxu0 %v5856
      %5921 = vmatpush.bf16.msra.mxu0 %v5853
      %5922 = vmatmul.bf16.gmra.mxu0 %v5867
      %v5923 = vpop.f32.mrf.mxu0
      %v5924 = vadd.f32 0.0, %v5923
      %v5925 = vpop.f32.mrf.mxu0
      %v5926 = vadd.f32 0.0, %v5925
      %5927 = vmatmul.bf16.gmra.mxu0 %v5870
      %v5928 = vpop.f32.mrf.mxu0
      %v5929 = vadd.f32 0.0, %v5928
      %v5930 = vpop.f32.mrf.mxu0
      %v5931 = vadd.f32 0.0, %v5930
      %5932 = vmatmul.bf16.gmra.mxu0 %v5873
      %v5933 = vpop.f32.mrf.mxu0
      %v5934 = vadd.f32 0.0, %v5933
      %v5935 = vpop.f32.mrf.mxu0
      %v5936 = vadd.f32 0.0, %v5935
      %5937 = vmatmul.bf16.gmra.mxu0 %v5876
      %v5938 = vpop.f32.mrf.mxu0
      %v5939 = vadd.f32 0.0, %v5938
      %v5940 = vpop.f32.mrf.mxu0
      %v5941 = vadd.f32 0.0, %v5940
      %5942 = vmatmul.bf16.gmra.mxu0 %v5879
      %v5943 = vpop.f32.mrf.mxu0
      %v5944 = vadd.f32 0.0, %v5943
      %v5945 = vpop.f32.mrf.mxu0
      %v5946 = vadd.f32 0.0, %v5945
      %5947 = vmatmul.bf16.gmra.mxu0 %v5882
      %v5948 = vpop.f32.mrf.mxu0
      %v5949 = vadd.f32 0.0, %v5948
      %v5950 = vpop.f32.mrf.mxu0
      %v5951 = vadd.f32 0.0, %v5950
      %5952 = vmatmul.bf16.gmra.mxu0 %v5885
      %v5953 = vpop.f32.mrf.mxu0
      %v5954 = vadd.f32 0.0, %v5953
      %v5955 = vpop.f32.mrf.mxu0
      %v5956 = vadd.f32 0.0, %v5955
      %5957 = vmatmul.bf16.gmra.mxu0 %v5888
      %v5958 = vpop.f32.mrf.mxu0
      %v5959 = vadd.f32 0.0, %v5958
      %v5960 = vpop.f32.mrf.mxu0
      %v5961 = vadd.f32 0.0, %v5960
      %5962 = vmatmul.bf16.gmra.mxu0 %v5891
      %v5963 = vpop.f32.mrf.mxu0
      %v5964 = vadd.f32 0.0, %v5963
      %v5965 = vpop.f32.mrf.mxu0
      %v5966 = vadd.f32 0.0, %v5965
      %5967 = vmatmul.bf16.gmra.mxu0 %v5894
      %v5968 = vpop.f32.mrf.mxu0
      %v5969 = vadd.f32 0.0, %v5968
      %v5970 = vpop.f32.mrf.mxu0
      %v5971 = vadd.f32 0.0, %v5970
      %5972 = vmatmul.bf16.gmra.mxu0 %v5897
      %v5973 = vpop.f32.mrf.mxu0
      %v5974 = vadd.f32 0.0, %v5973
      %v5975 = vpop.f32.mrf.mxu0
      %v5976 = vadd.f32 0.0, %v5975
      %5977 = vmatmul.bf16.gmra.mxu0 %v5900
      %v5978 = vpop.f32.mrf.mxu0
      %v5979 = vadd.f32 0.0, %v5978
      %v5980 = vpop.f32.mrf.mxu0
      %v5981 = vadd.f32 0.0, %v5980
      %5982 = vmatmul.bf16.gmra.mxu0 %v5903
      %v5983 = vpop.f32.mrf.mxu0
      %v5984 = vadd.f32 0.0, %v5983
      %v5985 = vpop.f32.mrf.mxu0
      %v5986 = vadd.f32 0.0, %v5985
      %5987 = vmatmul.bf16.gmra.mxu0 %v5906
      %v5988 = vpop.f32.mrf.mxu0
      %v5989 = vadd.f32 0.0, %v5988
      %v5990 = vpop.f32.mrf.mxu0
      %v5991 = vadd.f32 0.0, %v5990
      %5992 = vmatmul.bf16.gmra.mxu0 %v5909
      %v5993 = vpop.f32.mrf.mxu0
      %v5994 = vadd.f32 0.0, %v5993
      %v5995 = vpop.f32.mrf.mxu0
      %v5996 = vadd.f32 0.0, %v5995
      %5997 = vmatmul.bf16.gmra.mxu0 %v5912
      %v5998 = vpop.f32.mrf.mxu0
      %v5999 = vadd.f32 0.0, %v5998
      %v6000 = vpop.f32.mrf.mxu0
      %v6001 = vadd.f32 0.0, %v6000
      %6002 = vdwg.mxu0
      %6003 = vmatpush.bf16.msra.mxu0 0
      %6004 = vmatpush.bf16.msra.mxu0 0
      %6005 = vmatpush.bf16.msra.mxu0 0
      %6006 = vmatpush.bf16.msra.mxu0 0
      %6007 = vmatpush.bf16.msra.mxu0 0
      %6008 = vmatpush.bf16.msra.mxu0 0
      %6009 = vmatpush.bf16.msra.mxu0 %v5857
      %6010 = vmatpush.bf16.msra.mxu0 %v5854
      %6011 = vmatmul.bf16.gmra.mxu0 %v5867
      %v6012 = vpop.f32.mrf.mxu0
      %v6013 = vadd.f32 0.0, %v6012
      %v6014 = vpop.f32.mrf.mxu0
      %v6015 = vadd.f32 0.0, %v6014
      %6016 = vmatmul.bf16.gmra.mxu0 %v5870
      %v6017 = vpop.f32.mrf.mxu0
      %v6018 = vadd.f32 0.0, %v6017
      %v6019 = vpop.f32.mrf.mxu0
      %v6020 = vadd.f32 0.0, %v6019
      %6021 = vmatmul.bf16.gmra.mxu0 %v5873
      %v6022 = vpop.f32.mrf.mxu0
      %v6023 = vadd.f32 0.0, %v6022
      %v6024 = vpop.f32.mrf.mxu0
      %v6025 = vadd.f32 0.0, %v6024
      %6026 = vmatmul.bf16.gmra.mxu0 %v5876
      %v6027 = vpop.f32.mrf.mxu0
      %v6028 = vadd.f32 0.0, %v6027
      %v6029 = vpop.f32.mrf.mxu0
      %v6030 = vadd.f32 0.0, %v6029
      %6031 = vmatmul.bf16.gmra.mxu0 %v5879
      %v6032 = vpop.f32.mrf.mxu0
      %v6033 = vadd.f32 0.0, %v6032
      %v6034 = vpop.f32.mrf.mxu0
      %v6035 = vadd.f32 0.0, %v6034
      %6036 = vmatmul.bf16.gmra.mxu0 %v5882
      %v6037 = vpop.f32.mrf.mxu0
      %v6038 = vadd.f32 0.0, %v6037
      %v6039 = vpop.f32.mrf.mxu0
      %v6040 = vadd.f32 0.0, %v6039
      %6041 = vmatmul.bf16.gmra.mxu0 %v5885
      %v6042 = vpop.f32.mrf.mxu0
      %v6043 = vadd.f32 0.0, %v6042
      %v6044 = vpop.f32.mrf.mxu0
      %v6045 = vadd.f32 0.0, %v6044
      %6046 = vmatmul.bf16.gmra.mxu0 %v5888
      %v6047 = vpop.f32.mrf.mxu0
      %v6048 = vadd.f32 0.0, %v6047
      %v6049 = vpop.f32.mrf.mxu0
      %v6050 = vadd.f32 0.0, %v6049
      %6051 = vmatmul.bf16.gmra.mxu0 %v5891
      %v6052 = vpop.f32.mrf.mxu0
      %v6053 = vadd.f32 0.0, %v6052
      %v6054 = vpop.f32.mrf.mxu0
      %v6055 = vadd.f32 0.0, %v6054
      %6056 = vmatmul.bf16.gmra.mxu0 %v5894
      %v6057 = vpop.f32.mrf.mxu0
      %v6058 = vadd.f32 0.0, %v6057
      %v6059 = vpop.f32.mrf.mxu0
      %v6060 = vadd.f32 0.0, %v6059
      %6061 = vmatmul.bf16.gmra.mxu0 %v5897
      %v6062 = vpop.f32.mrf.mxu0
      %v6063 = vadd.f32 0.0, %v6062
      %v6064 = vpop.f32.mrf.mxu0
      %v6065 = vadd.f32 0.0, %v6064
      %6066 = vmatmul.bf16.gmra.mxu0 %v5900
      %v6067 = vpop.f32.mrf.mxu0
      %v6068 = vadd.f32 0.0, %v6067
      %v6069 = vpop.f32.mrf.mxu0
      %v6070 = vadd.f32 0.0, %v6069
      %6071 = vmatmul.bf16.gmra.mxu0 %v5903
      %v6072 = vpop.f32.mrf.mxu0
      %v6073 = vadd.f32 0.0, %v6072
      %v6074 = vpop.f32.mrf.mxu0
      %v6075 = vadd.f32 0.0, %v6074
      %6076 = vmatmul.bf16.gmra.mxu0 %v5906
      %v6077 = vpop.f32.mrf.mxu0
      %v6078 = vadd.f32 0.0, %v6077
      %v6079 = vpop.f32.mrf.mxu0
      %v6080 = vadd.f32 0.0, %v6079
      %6081 = vmatmul.bf16.gmra.mxu0 %v5909
      %v6082 = vpop.f32.mrf.mxu0
      %v6083 = vadd.f32 0.0, %v6082
      %v6084 = vpop.f32.mrf.mxu0
      %v6085 = vadd.f32 0.0, %v6084
      %6086 = vmatmul.bf16.gmra.mxu0 %v5912
      %v6087 = vpop.f32.mrf.mxu0
      %v6088 = vadd.f32 0.0, %v6087
      %v6089 = vpop.f32.mrf.mxu0
      %v6090 = vadd.f32 0.0, %v6089
      %6091 = vdwg.mxu0
      %6092 = vmatpush.bf16.msra.mxu0 0
      %6093 = vmatpush.bf16.msra.mxu0 0
      %6094 = vmatpush.bf16.msra.mxu0 0
      %6095 = vmatpush.bf16.msra.mxu0 0
      %6096 = vmatpush.bf16.msra.mxu0 0
      %6097 = vmatpush.bf16.msra.mxu0 0
      %6098 = vmatpush.bf16.msra.mxu0 %v5858
      %6099 = vmatpush.bf16.msra.mxu0 %v5855
      %6100 = vmatmul.bf16.gmra.mxu0 %v5867
      %v6101 = vpop.f32.mrf.mxu0
      %v6102 = vadd.f32 0.0, %v6101
      %v6103 = vpop.f32.mrf.mxu0
      %v6104 = vadd.f32 0.0, %v6103
      %6105 = vmatmul.bf16.gmra.mxu0 %v5870
      %v6106 = vpop.f32.mrf.mxu0
      %v6107 = vadd.f32 0.0, %v6106
      %v6108 = vpop.f32.mrf.mxu0
      %v6109 = vadd.f32 0.0, %v6108
      %6110 = vmatmul.bf16.gmra.mxu0 %v5873
      %v6111 = vpop.f32.mrf.mxu0
      %v6112 = vadd.f32 0.0, %v6111
      %v6113 = vpop.f32.mrf.mxu0
      %v6114 = vadd.f32 0.0, %v6113
      %6115 = vmatmul.bf16.gmra.mxu0 %v5876
      %v6116 = vpop.f32.mrf.mxu0
      %v6117 = vadd.f32 0.0, %v6116
      %v6118 = vpop.f32.mrf.mxu0
      %v6119 = vadd.f32 0.0, %v6118
      %6120 = vmatmul.bf16.gmra.mxu0 %v5879
      %v6121 = vpop.f32.mrf.mxu0
      %v6122 = vadd.f32 0.0, %v6121
      %v6123 = vpop.f32.mrf.mxu0
      %v6124 = vadd.f32 0.0, %v6123
      %6125 = vmatmul.bf16.gmra.mxu0 %v5882
      %v6126 = vpop.f32.mrf.mxu0
      %v6127 = vadd.f32 0.0, %v6126
      %v6128 = vpop.f32.mrf.mxu0
      %v6129 = vadd.f32 0.0, %v6128
      %6130 = vmatmul.bf16.gmra.mxu0 %v5885
      %v6131 = vpop.f32.mrf.mxu0
      %v6132 = vadd.f32 0.0, %v6131
      %v6133 = vpop.f32.mrf.mxu0
      %v6134 = vadd.f32 0.0, %v6133
      %6135 = vmatmul.bf16.gmra.mxu0 %v5888
      %v6136 = vpop.f32.mrf.mxu0
      %v6137 = vadd.f32 0.0, %v6136
      %v6138 = vpop.f32.mrf.mxu0
      %v6139 = vadd.f32 0.0, %v6138
      %6140 = vmatmul.bf16.gmra.mxu0 %v5891
      %v6141 = vpop.f32.mrf.mxu0
      %v6142 = vadd.f32 0.0, %v6141
      %v6143 = vpop.f32.mrf.mxu0
      %v6144 = vadd.f32 0.0, %v6143
      %6145 = vmatmul.bf16.gmra.mxu0 %v5894
      %v6146 = vpop.f32.mrf.mxu0
      %v6147 = vadd.f32 0.0, %v6146
      %v6148 = vpop.f32.mrf.mxu0
      %v6149 = vadd.f32 0.0, %v6148
      %6150 = vmatmul.bf16.gmra.mxu0 %v5897
      %v6151 = vpop.f32.mrf.mxu0
      %v6152 = vadd.f32 0.0, %v6151
      %v6153 = vpop.f32.mrf.mxu0
      %v6154 = vadd.f32 0.0, %v6153
      %6155 = vmatmul.bf16.gmra.mxu0 %v5900
      %v6156 = vpop.f32.mrf.mxu0
      %v6157 = vadd.f32 0.0, %v6156
      %v6158 = vpop.f32.mrf.mxu0
      %v6159 = vadd.f32 0.0, %v6158
      %6160 = vmatmul.bf16.gmra.mxu0 %v5903
      %v6161 = vpop.f32.mrf.mxu0
      %v6162 = vadd.f32 0.0, %v6161
      %v6163 = vpop.f32.mrf.mxu0
      %v6164 = vadd.f32 0.0, %v6163
      %6165 = vmatmul.bf16.gmra.mxu0 %v5906
      %v6166 = vpop.f32.mrf.mxu0
      %v6167 = vadd.f32 0.0, %v6166
      %v6168 = vpop.f32.mrf.mxu0
      %v6169 = vadd.f32 0.0, %v6168
      %6170 = vmatmul.bf16.gmra.mxu0 %v5909
      %v6171 = vpop.f32.mrf.mxu0
      %v6172 = vadd.f32 0.0, %v6171
      %v6173 = vpop.f32.mrf.mxu0
      %v6174 = vadd.f32 0.0, %v6173
      %6175 = vmatmul.bf16.gmra.mxu0 %v5912
      %v6176 = vpop.f32.mrf.mxu0
      %v6177 = vadd.f32 0.0, %v6176
      %v6178 = vpop.f32.mrf.mxu0
      %v6179 = vadd.f32 0.0, %v6178
      %6180 = vdwg.mxu0
      %6197 = vrot.lane.b32.xlu0 %v5785, 64
      %v6198 = vpop.permute.xlu0 %6197
      %6199 = vrot.lane.b32.xlu0 %v5786, 64
      %v6200 = vpop.permute.xlu0 %6199
      %6201 = vrot.lane.b32.xlu0 %v5787, 64
      %v6202 = vpop.permute.xlu0 %6201
      %6203 = vrot.lane.b32.xlu0 %v5788, 64
      %v6204 = vpop.permute.xlu0 %6203
      %6205 = vrot.lane.b32.xlu0 %v5789, 64
      %v6206 = vpop.permute.xlu0 %6205
      %6207 = vrot.lane.b32.xlu0 %v5790, 64
      %v6208 = vpop.permute.xlu0 %6207
      %6209 = vrot.lane.b32.xlu0 %v5791, 64
      %v6210 = vpop.permute.xlu0 %6209
      %6211 = vrot.lane.b32.xlu0 %v5792, 64
      %v6212 = vpop.permute.xlu0 %6211
      %6213 = vrot.lane.b32.xlu0 %v5793, 64
      %v6214 = vpop.permute.xlu0 %6213
      %6215 = vrot.lane.b32.xlu0 %v5794, 64
      %v6216 = vpop.permute.xlu0 %6215
      %6217 = vrot.lane.b32.xlu0 %v5795, 64
      %v6218 = vpop.permute.xlu0 %6217
      %6219 = vrot.lane.b32.xlu0 %v5796, 64
      %v6220 = vpop.permute.xlu0 %6219
      %6221 = vrot.lane.b32.xlu0 %v5797, 64
      %v6222 = vpop.permute.xlu0 %6221
      %6223 = vrot.lane.b32.xlu0 %v5798, 64
      %v6224 = vpop.permute.xlu0 %6223
      %6225 = vrot.lane.b32.xlu0 %v5799, 64
      %v6226 = vpop.permute.xlu0 %6225
      %6227 = vrot.lane.b32.xlu0 %v5800, 64
      %v6228 = vpop.permute.xlu0 %6227
      %v6237 = vunpack.c.l.b16 %v5801
      %v6238 = vunpack.c.h.b16 %v5801
      %v6239 = vunpack.c.l.b16 %v5802
      %v6240 = vunpack.c.l.b16 %v5803
      %v6241 = vunpack.c.h.b16 %v5803
      %v6242 = vunpack.c.l.b16 %v5804
      %v6243 = vunpack.c.l.b16 %v5805
      %v6244 = vunpack.c.h.b16 %v5805
      %v6245 = vunpack.c.l.b16 %v5806
      %v6246 = vunpack.c.l.b16 %v5807
      %v6247 = vunpack.c.h.b16 %v5807
      %v6248 = vunpack.c.l.b16 %v5808
      %v6249 = vpack.c.b16 %v6240, %v6237
      %v6250 = vpack.c.b16 %v6241, %v6238
      %v6251 = vpack.c.b16 %v6242, %v6239
      %v6252 = vpack.c.b16 %v6246, %v6243
      %v6253 = vpack.c.b16 %v6247, %v6244
      %v6254 = vpack.c.b16 %v6248, %v6245
      %v6262 = vsel %vm5865, %v6198, 0
      %v6265 = vsel %vm5865, %v6200, 0
      %v6268 = vsel %vm5865, %v6202, 0
      %v6271 = vsel %vm5865, %v6204, 0
      %v6274 = vsel %vm5865, %v6206, 0
      %v6277 = vsel %vm5865, %v6208, 0
      %v6280 = vsel %vm5865, %v6210, 0
      %v6283 = vsel %vm5865, %v6212, 0
      %v6286 = vsel %vm5865, %v6214, 0
      %v6289 = vsel %vm5865, %v6216, 0
      %v6292 = vsel %vm5865, %v6218, 0
      %v6295 = vsel %vm5865, %v6220, 0
      %v6298 = vsel %vm5865, %v6222, 0
      %v6301 = vsel %vm5865, %v6224, 0
      %v6304 = vsel %vm5865, %v6226, 0
      %v6307 = vsel %vm5865, %v6228, 0
      %6309 = vmatpush.bf16.msra.mxu0 0
      %6310 = vmatpush.bf16.msra.mxu0 0
      %6311 = vmatpush.bf16.msra.mxu0 0
      %6312 = vmatpush.bf16.msra.mxu0 0
      %6313 = vmatpush.bf16.msra.mxu0 0
      %6314 = vmatpush.bf16.msra.mxu0 0
      %6315 = vmatpush.bf16.msra.mxu0 %v6252
      %6316 = vmatpush.bf16.msra.mxu0 %v6249
      %6317 = vmatmul.bf16.gmra.mxu0 %v6262
      %v6318 = vpop.f32.mrf.mxu0
      %v6319 = vadd.f32 %v5924, %v6318
      %v6320 = vpop.f32.mrf.mxu0
      %v6321 = vadd.f32 %v5926, %v6320
      %6322 = vmatmul.bf16.gmra.mxu0 %v6265
      %v6323 = vpop.f32.mrf.mxu0
      %v6324 = vadd.f32 %v5929, %v6323
      %v6325 = vpop.f32.mrf.mxu0
      %v6326 = vadd.f32 %v5931, %v6325
      %6327 = vmatmul.bf16.gmra.mxu0 %v6268
      %v6328 = vpop.f32.mrf.mxu0
      %v6329 = vadd.f32 %v5934, %v6328
      %v6330 = vpop.f32.mrf.mxu0
      %v6331 = vadd.f32 %v5936, %v6330
      %6332 = vmatmul.bf16.gmra.mxu0 %v6271
      %v6333 = vpop.f32.mrf.mxu0
      %v6334 = vadd.f32 %v5939, %v6333
      %v6335 = vpop.f32.mrf.mxu0
      %v6336 = vadd.f32 %v5941, %v6335
      %6337 = vmatmul.bf16.gmra.mxu0 %v6274
      %v6338 = vpop.f32.mrf.mxu0
      %v6339 = vadd.f32 %v5944, %v6338
      %v6340 = vpop.f32.mrf.mxu0
      %v6341 = vadd.f32 %v5946, %v6340
      %6342 = vmatmul.bf16.gmra.mxu0 %v6277
      %v6343 = vpop.f32.mrf.mxu0
      %v6344 = vadd.f32 %v5949, %v6343
      %v6345 = vpop.f32.mrf.mxu0
      %v6346 = vadd.f32 %v5951, %v6345
      %6347 = vmatmul.bf16.gmra.mxu0 %v6280
      %v6348 = vpop.f32.mrf.mxu0
      %v6349 = vadd.f32 %v5954, %v6348
      %v6350 = vpop.f32.mrf.mxu0
      %v6351 = vadd.f32 %v5956, %v6350
      %6352 = vmatmul.bf16.gmra.mxu0 %v6283
      %v6353 = vpop.f32.mrf.mxu0
      %v6354 = vadd.f32 %v5959, %v6353
      %v6355 = vpop.f32.mrf.mxu0
      %v6356 = vadd.f32 %v5961, %v6355
      %6357 = vmatmul.bf16.gmra.mxu0 %v6286
      %v6358 = vpop.f32.mrf.mxu0
      %v6359 = vadd.f32 %v5964, %v6358
      %v6360 = vpop.f32.mrf.mxu0
      %v6361 = vadd.f32 %v5966, %v6360
      %6362 = vmatmul.bf16.gmra.mxu0 %v6289
      %v6363 = vpop.f32.mrf.mxu0
      %v6364 = vadd.f32 %v5969, %v6363
      %v6365 = vpop.f32.mrf.mxu0
      %v6366 = vadd.f32 %v5971, %v6365
      %6367 = vmatmul.bf16.gmra.mxu0 %v6292
      %v6368 = vpop.f32.mrf.mxu0
      %v6369 = vadd.f32 %v5974, %v6368
      %v6370 = vpop.f32.mrf.mxu0
      %v6371 = vadd.f32 %v5976, %v6370
      %6372 = vmatmul.bf16.gmra.mxu0 %v6295
      %v6373 = vpop.f32.mrf.mxu0
      %v6374 = vadd.f32 %v5979, %v6373
      %v6375 = vpop.f32.mrf.mxu0
      %v6376 = vadd.f32 %v5981, %v6375
      %6377 = vmatmul.bf16.gmra.mxu0 %v6298
      %v6378 = vpop.f32.mrf.mxu0
      %v6379 = vadd.f32 %v5984, %v6378
      %v6380 = vpop.f32.mrf.mxu0
      %v6381 = vadd.f32 %v5986, %v6380
      %6382 = vmatmul.bf16.gmra.mxu0 %v6301
      %v6383 = vpop.f32.mrf.mxu0
      %v6384 = vadd.f32 %v5989, %v6383
      %v6385 = vpop.f32.mrf.mxu0
      %v6386 = vadd.f32 %v5991, %v6385
      %6387 = vmatmul.bf16.gmra.mxu0 %v6304
      %v6388 = vpop.f32.mrf.mxu0
      %v6389 = vadd.f32 %v5994, %v6388
      %v6390 = vpop.f32.mrf.mxu0
      %v6391 = vadd.f32 %v5996, %v6390
      %6392 = vmatmul.bf16.gmra.mxu0 %v6307
      %v6393 = vpop.f32.mrf.mxu0
      %v6394 = vadd.f32 %v5999, %v6393
      %v6395 = vpop.f32.mrf.mxu0
      %v6396 = vadd.f32 %v6001, %v6395
      %6397 = vdwg.mxu0
      %6398 = vmatpush.bf16.msra.mxu0 0
      %6399 = vmatpush.bf16.msra.mxu0 0
      %6400 = vmatpush.bf16.msra.mxu0 0
      %6401 = vmatpush.bf16.msra.mxu0 0
      %6402 = vmatpush.bf16.msra.mxu0 0
      %6403 = vmatpush.bf16.msra.mxu0 0
      %6404 = vmatpush.bf16.msra.mxu0 %v6253
      %6405 = vmatpush.bf16.msra.mxu0 %v6250
      %6406 = vmatmul.bf16.gmra.mxu0 %v6262
      %v6407 = vpop.f32.mrf.mxu0
      %v6408 = vadd.f32 %v6013, %v6407
      %v6409 = vpop.f32.mrf.mxu0
      %v6410 = vadd.f32 %v6015, %v6409
      %6411 = vmatmul.bf16.gmra.mxu0 %v6265
      %v6412 = vpop.f32.mrf.mxu0
      %v6413 = vadd.f32 %v6018, %v6412
      %v6414 = vpop.f32.mrf.mxu0
      %v6415 = vadd.f32 %v6020, %v6414
      %6416 = vmatmul.bf16.gmra.mxu0 %v6268
      %v6417 = vpop.f32.mrf.mxu0
      %v6418 = vadd.f32 %v6023, %v6417
      %v6419 = vpop.f32.mrf.mxu0
      %v6420 = vadd.f32 %v6025, %v6419
      %6421 = vmatmul.bf16.gmra.mxu0 %v6271
      %v6422 = vpop.f32.mrf.mxu0
      %v6423 = vadd.f32 %v6028, %v6422
      %v6424 = vpop.f32.mrf.mxu0
      %v6425 = vadd.f32 %v6030, %v6424
      %6426 = vmatmul.bf16.gmra.mxu0 %v6274
      %v6427 = vpop.f32.mrf.mxu0
      %v6428 = vadd.f32 %v6033, %v6427
      %v6429 = vpop.f32.mrf.mxu0
      %v6430 = vadd.f32 %v6035, %v6429
      %6431 = vmatmul.bf16.gmra.mxu0 %v6277
      %v6432 = vpop.f32.mrf.mxu0
      %v6433 = vadd.f32 %v6038, %v6432
      %v6434 = vpop.f32.mrf.mxu0
      %v6435 = vadd.f32 %v6040, %v6434
      %6436 = vmatmul.bf16.gmra.mxu0 %v6280
      %v6437 = vpop.f32.mrf.mxu0
      %v6438 = vadd.f32 %v6043, %v6437
      %v6439 = vpop.f32.mrf.mxu0
      %v6440 = vadd.f32 %v6045, %v6439
      %6441 = vmatmul.bf16.gmra.mxu0 %v6283
      %v6442 = vpop.f32.mrf.mxu0
      %v6443 = vadd.f32 %v6048, %v6442
      %v6444 = vpop.f32.mrf.mxu0
      %v6445 = vadd.f32 %v6050, %v6444
      %6446 = vmatmul.bf16.gmra.mxu0 %v6286
      %v6447 = vpop.f32.mrf.mxu0
      %v6448 = vadd.f32 %v6053, %v6447
      %v6449 = vpop.f32.mrf.mxu0
      %v6450 = vadd.f32 %v6055, %v6449
      %6451 = vmatmul.bf16.gmra.mxu0 %v6289
      %v6452 = vpop.f32.mrf.mxu0
      %v6453 = vadd.f32 %v6058, %v6452
      %v6454 = vpop.f32.mrf.mxu0
      %v6455 = vadd.f32 %v6060, %v6454
      %6456 = vmatmul.bf16.gmra.mxu0 %v6292
      %v6457 = vpop.f32.mrf.mxu0
      %v6458 = vadd.f32 %v6063, %v6457
      %v6459 = vpop.f32.mrf.mxu0
      %v6460 = vadd.f32 %v6065, %v6459
      %6461 = vmatmul.bf16.gmra.mxu0 %v6295
      %v6462 = vpop.f32.mrf.mxu0
      %v6463 = vadd.f32 %v6068, %v6462
      %v6464 = vpop.f32.mrf.mxu0
      %v6465 = vadd.f32 %v6070, %v6464
      %6466 = vmatmul.bf16.gmra.mxu0 %v6298
      %v6467 = vpop.f32.mrf.mxu0
      %v6468 = vadd.f32 %v6073, %v6467
      %v6469 = vpop.f32.mrf.mxu0
      %v6470 = vadd.f32 %v6075, %v6469
      %6471 = vmatmul.bf16.gmra.mxu0 %v6301
      %v6472 = vpop.f32.mrf.mxu0
      %v6473 = vadd.f32 %v6078, %v6472
      %v6474 = vpop.f32.mrf.mxu0
      %v6475 = vadd.f32 %v6080, %v6474
      %6476 = vmatmul.bf16.gmra.mxu0 %v6304
      %v6477 = vpop.f32.mrf.mxu0
      %v6478 = vadd.f32 %v6083, %v6477
      %v6479 = vpop.f32.mrf.mxu0
      %v6480 = vadd.f32 %v6085, %v6479
      %6481 = vmatmul.bf16.gmra.mxu0 %v6307
      %v6482 = vpop.f32.mrf.mxu0
      %v6483 = vadd.f32 %v6088, %v6482
      %v6484 = vpop.f32.mrf.mxu0
      %v6485 = vadd.f32 %v6090, %v6484
      %6486 = vdwg.mxu0
      %6487 = vmatpush.bf16.msra.mxu0 0
      %6488 = vmatpush.bf16.msra.mxu0 0
      %6489 = vmatpush.bf16.msra.mxu0 0
      %6490 = vmatpush.bf16.msra.mxu0 0
      %6491 = vmatpush.bf16.msra.mxu0 0
      %6492 = vmatpush.bf16.msra.mxu0 0
      %6493 = vmatpush.bf16.msra.mxu0 %v6254
      %6494 = vmatpush.bf16.msra.mxu0 %v6251
      %6495 = vmatmul.bf16.gmra.mxu0 %v6262
      %v6496 = vpop.f32.mrf.mxu0
      %v6497 = vadd.f32 %v6102, %v6496
      %v6498 = vpop.f32.mrf.mxu0
      %v6499 = vadd.f32 %v6104, %v6498
      %6500 = vmatmul.bf16.gmra.mxu0 %v6265
      %v6501 = vpop.f32.mrf.mxu0
      %v6502 = vadd.f32 %v6107, %v6501
      %v6503 = vpop.f32.mrf.mxu0
      %v6504 = vadd.f32 %v6109, %v6503
      %6505 = vmatmul.bf16.gmra.mxu0 %v6268
      %v6506 = vpop.f32.mrf.mxu0
      %v6507 = vadd.f32 %v6112, %v6506
      %v6508 = vpop.f32.mrf.mxu0
      %v6509 = vadd.f32 %v6114, %v6508
      %6510 = vmatmul.bf16.gmra.mxu0 %v6271
      %v6511 = vpop.f32.mrf.mxu0
      %v6512 = vadd.f32 %v6117, %v6511
      %v6513 = vpop.f32.mrf.mxu0
      %v6514 = vadd.f32 %v6119, %v6513
      %6515 = vmatmul.bf16.gmra.mxu0 %v6274
      %v6516 = vpop.f32.mrf.mxu0
      %v6517 = vadd.f32 %v6122, %v6516
      %v6518 = vpop.f32.mrf.mxu0
      %v6519 = vadd.f32 %v6124, %v6518
      %6520 = vmatmul.bf16.gmra.mxu0 %v6277
      %v6521 = vpop.f32.mrf.mxu0
      %v6522 = vadd.f32 %v6127, %v6521
      %v6523 = vpop.f32.mrf.mxu0
      %v6524 = vadd.f32 %v6129, %v6523
      %6525 = vmatmul.bf16.gmra.mxu0 %v6280
      %v6526 = vpop.f32.mrf.mxu0
      %v6527 = vadd.f32 %v6132, %v6526
      %v6528 = vpop.f32.mrf.mxu0
      %v6529 = vadd.f32 %v6134, %v6528
      %6530 = vmatmul.bf16.gmra.mxu0 %v6283
      %v6531 = vpop.f32.mrf.mxu0
      %v6532 = vadd.f32 %v6137, %v6531
      %v6533 = vpop.f32.mrf.mxu0
      %v6534 = vadd.f32 %v6139, %v6533
      %6535 = vmatmul.bf16.gmra.mxu0 %v6286
      %v6536 = vpop.f32.mrf.mxu0
      %v6537 = vadd.f32 %v6142, %v6536
      %v6538 = vpop.f32.mrf.mxu0
      %v6539 = vadd.f32 %v6144, %v6538
      %6540 = vmatmul.bf16.gmra.mxu0 %v6289
      %v6541 = vpop.f32.mrf.mxu0
      %v6542 = vadd.f32 %v6147, %v6541
      %v6543 = vpop.f32.mrf.mxu0
      %v6544 = vadd.f32 %v6149, %v6543
      %6545 = vmatmul.bf16.gmra.mxu0 %v6292
      %v6546 = vpop.f32.mrf.mxu0
      %v6547 = vadd.f32 %v6152, %v6546
      %v6548 = vpop.f32.mrf.mxu0
      %v6549 = vadd.f32 %v6154, %v6548
      %6550 = vmatmul.bf16.gmra.mxu0 %v6295
      %v6551 = vpop.f32.mrf.mxu0
      %v6552 = vadd.f32 %v6157, %v6551
      %v6553 = vpop.f32.mrf.mxu0
      %v6554 = vadd.f32 %v6159, %v6553
      %6555 = vmatmul.bf16.gmra.mxu0 %v6298
      %v6556 = vpop.f32.mrf.mxu0
      %v6557 = vadd.f32 %v6162, %v6556
      %v6558 = vpop.f32.mrf.mxu0
      %v6559 = vadd.f32 %v6164, %v6558
      %6560 = vmatmul.bf16.gmra.mxu0 %v6301
      %v6561 = vpop.f32.mrf.mxu0
      %v6562 = vadd.f32 %v6167, %v6561
      %v6563 = vpop.f32.mrf.mxu0
      %v6564 = vadd.f32 %v6169, %v6563
      %6565 = vmatmul.bf16.gmra.mxu0 %v6304
      %v6566 = vpop.f32.mrf.mxu0
      %v6567 = vadd.f32 %v6172, %v6566
      %v6568 = vpop.f32.mrf.mxu0
      %v6569 = vadd.f32 %v6174, %v6568
      %6570 = vmatmul.bf16.gmra.mxu0 %v6307
      %v6571 = vpop.f32.mrf.mxu0
      %v6572 = vadd.f32 %v6177, %v6571
      %v6573 = vpop.f32.mrf.mxu0
      %v6574 = vadd.f32 %v6179, %v6573
      %6575 = vdwg.mxu0
      %v6576 = vpack.c.bf16 %v5754, %v5753
      %v6577 = vpack.c.bf16 %v5756, %v5755
      %v6578 = vpack.c.bf16 %v5758, %v5757
      %v6579 = vpack.c.bf16 %v5760, %v5759
      %v6580 = vpack.c.bf16 %v5762, %v5761
      %v6581 = vpack.c.bf16 %v5764, %v5763
      %v6582 = vpack.c.bf16 %v5766, %v5765
      %v6583 = vpack.c.bf16 %v5768, %v5767
      %v6584 = vpack.c.bf16 %v5770, %v5769
      %v6585 = vpack.c.bf16 %v5772, %v5771
      %v6586 = vpack.c.bf16 %v5774, %v5773
      %v6587 = vpack.c.bf16 %v5776, %v5775
      %v6588 = vpack.c.bf16 %v5778, %v5777
      %v6589 = vpack.c.bf16 %v5780, %v5779
      %v6590 = vpack.c.bf16 %v5782, %v5781
      %v6591 = vpack.c.bf16 %v5784, %v5783
      %v6592 = vld [vmem:[%s9] sm:$0xff]
      %v6593 = vld [vmem:[%s9 + $0x8] sm:$0xf]
      %v6594 = vld [vmem:[%s9 + $0xc] sm:$0xff]
      %v6595 = vld [vmem:[%s9 + $0x14] sm:$0xf]
      %v6596 = vld [vmem:[%s9 + $0x18] sm:$0xff]
      %v6597 = vld [vmem:[%s9 + $0x20] sm:$0xf]
      %v6598 = vld [vmem:[%s9 + $0x24] sm:$0xff]
      %v6599 = vld [vmem:[%s9 + $0x2c] sm:$0xf]
      %v6600 = vld [vmem:[%s9 + $0x30] sm:$0xff]
      %v6601 = vld [vmem:[%s9 + $0x38] sm:$0xf]
      %v6602 = vld [vmem:[%s9 + $0x3c] sm:$0xff]
      %v6603 = vld [vmem:[%s9 + $0x44] sm:$0xf]
      %v6604 = vld [vmem:[%s9 + $0x48] sm:$0xff]
      %v6605 = vld [vmem:[%s9 + $0x50] sm:$0xf]
      %v6606 = vld [vmem:[%s9 + $0x54] sm:$0xff]
      %v6607 = vld [vmem:[%s9 + $0x5c] sm:$0xf]
      %v6624 = vunpack.c.l.b16 %v6592
      %v6625 = vunpack.c.h.b16 %v6592
      %v6626 = vunpack.c.l.b16 %v6593
      %v6627 = vunpack.c.l.b16 %v6594
      %v6628 = vunpack.c.h.b16 %v6594
      %v6629 = vunpack.c.l.b16 %v6595
      %v6630 = vunpack.c.l.b16 %v6596
      %v6631 = vunpack.c.h.b16 %v6596
      %v6632 = vunpack.c.l.b16 %v6597
      %v6633 = vunpack.c.l.b16 %v6598
      %v6634 = vunpack.c.h.b16 %v6598
      %v6635 = vunpack.c.l.b16 %v6599
      %v6636 = vunpack.c.l.b16 %v6600
      %v6637 = vunpack.c.h.b16 %v6600
      %v6638 = vunpack.c.l.b16 %v6601
      %v6639 = vunpack.c.l.b16 %v6602
      %v6640 = vunpack.c.h.b16 %v6602
      %v6641 = vunpack.c.l.b16 %v6603
      %v6642 = vunpack.c.l.b16 %v6604
      %v6643 = vunpack.c.h.b16 %v6604
      %v6644 = vunpack.c.l.b16 %v6605
      %v6645 = vunpack.c.l.b16 %v6606
      %v6646 = vunpack.c.h.b16 %v6606
      %v6647 = vunpack.c.l.b16 %v6607
      %v6648 = vpack.c.b16 %v6627, %v6624
      %v6649 = vpack.c.b16 %v6628, %v6625
      %v6650 = vpack.c.b16 %v6629, %v6626
      %v6651 = vpack.c.b16 %v6633, %v6630
      %v6652 = vpack.c.b16 %v6634, %v6631
      %v6653 = vpack.c.b16 %v6635, %v6632
      %v6654 = vpack.c.b16 %v6639, %v6636
      %v6655 = vpack.c.b16 %v6640, %v6637
      %v6656 = vpack.c.b16 %v6641, %v6638
      %v6657 = vpack.c.b16 %v6645, %v6642
      %v6658 = vpack.c.b16 %v6646, %v6643
      %v6659 = vpack.c.b16 %v6647, %v6644
      %v6673 = vsel %vm696, %v6576, 0
      %v6676 = vsel %vm696, %v6577, 0
      %v6679 = vsel %vm696, %v6578, 0
      %v6682 = vsel %vm696, %v6579, 0
      %v6685 = vsel %vm696, %v6580, 0
      %v6688 = vsel %vm696, %v6581, 0
      %v6691 = vsel %vm696, %v6582, 0
      %v6694 = vsel %vm696, %v6583, 0
      %v6697 = vsel %vm696, %v6584, 0
      %v6700 = vsel %vm696, %v6585, 0
      %v6703 = vsel %vm696, %v6586, 0
      %v6706 = vsel %vm696, %v6587, 0
      %v6709 = vsel %vm696, %v6588, 0
      %v6712 = vsel %vm696, %v6589, 0
      %v6715 = vsel %vm696, %v6590, 0
      %v6718 = vsel %vm696, %v6591, 0
      %6720 = vmatpush.bf16.msra.mxu0 0
      %6721 = vmatpush.bf16.msra.mxu0 0
      %6722 = vmatpush.bf16.msra.mxu0 0
      %6723 = vmatpush.bf16.msra.mxu0 0
      %6724 = vmatpush.bf16.msra.mxu0 %v6657
      %6725 = vmatpush.bf16.msra.mxu0 %v6654
      %6726 = vmatpush.bf16.msra.mxu0 %v6651
      %6727 = vmatpush.bf16.msra.mxu0 %v6648
      %6728 = vmatmul.bf16.gmra.mxu0 %v6673
      %v6729 = vpop.f32.mrf.mxu0
      %v6730 = vadd.f32 0.0, %v6729
      %v6731 = vpop.f32.mrf.mxu0
      %v6732 = vadd.f32 0.0, %v6731
      %6733 = vmatmul.bf16.gmra.mxu0 %v6676
      %v6734 = vpop.f32.mrf.mxu0
      %v6735 = vadd.f32 0.0, %v6734
      %v6736 = vpop.f32.mrf.mxu0
      %v6737 = vadd.f32 0.0, %v6736
      %6738 = vmatmul.bf16.gmra.mxu0 %v6679
      %v6739 = vpop.f32.mrf.mxu0
      %v6740 = vadd.f32 0.0, %v6739
      %v6741 = vpop.f32.mrf.mxu0
      %v6742 = vadd.f32 0.0, %v6741
      %6743 = vmatmul.bf16.gmra.mxu0 %v6682
      %v6744 = vpop.f32.mrf.mxu0
      %v6745 = vadd.f32 0.0, %v6744
      %v6746 = vpop.f32.mrf.mxu0
      %v6747 = vadd.f32 0.0, %v6746
      %6748 = vmatmul.bf16.gmra.mxu0 %v6685
      %v6749 = vpop.f32.mrf.mxu0
      %v6750 = vadd.f32 0.0, %v6749
      %v6751 = vpop.f32.mrf.mxu0
      %v6752 = vadd.f32 0.0, %v6751
      %6753 = vmatmul.bf16.gmra.mxu0 %v6688
      %v6754 = vpop.f32.mrf.mxu0
      %v6755 = vadd.f32 0.0, %v6754
      %v6756 = vpop.f32.mrf.mxu0
      %v6757 = vadd.f32 0.0, %v6756
      %6758 = vmatmul.bf16.gmra.mxu0 %v6691
      %v6759 = vpop.f32.mrf.mxu0
      %v6760 = vadd.f32 0.0, %v6759
      %v6761 = vpop.f32.mrf.mxu0
      %v6762 = vadd.f32 0.0, %v6761
      %6763 = vmatmul.bf16.gmra.mxu0 %v6694
      %v6764 = vpop.f32.mrf.mxu0
      %v6765 = vadd.f32 0.0, %v6764
      %v6766 = vpop.f32.mrf.mxu0
      %v6767 = vadd.f32 0.0, %v6766
      %6768 = vmatmul.bf16.gmra.mxu0 %v6697
      %v6769 = vpop.f32.mrf.mxu0
      %v6770 = vadd.f32 0.0, %v6769
      %v6771 = vpop.f32.mrf.mxu0
      %v6772 = vadd.f32 0.0, %v6771
      %6773 = vmatmul.bf16.gmra.mxu0 %v6700
      %v6774 = vpop.f32.mrf.mxu0
      %v6775 = vadd.f32 0.0, %v6774
      %v6776 = vpop.f32.mrf.mxu0
      %v6777 = vadd.f32 0.0, %v6776
      %6778 = vmatmul.bf16.gmra.mxu0 %v6703
      %v6779 = vpop.f32.mrf.mxu0
      %v6780 = vadd.f32 0.0, %v6779
      %v6781 = vpop.f32.mrf.mxu0
      %v6782 = vadd.f32 0.0, %v6781
      %6783 = vmatmul.bf16.gmra.mxu0 %v6706
      %v6784 = vpop.f32.mrf.mxu0
      %v6785 = vadd.f32 0.0, %v6784
      %v6786 = vpop.f32.mrf.mxu0
      %v6787 = vadd.f32 0.0, %v6786
      %6788 = vmatmul.bf16.gmra.mxu0 %v6709
      %v6789 = vpop.f32.mrf.mxu0
      %v6790 = vadd.f32 0.0, %v6789
      %v6791 = vpop.f32.mrf.mxu0
      %v6792 = vadd.f32 0.0, %v6791
      %6793 = vmatmul.bf16.gmra.mxu0 %v6712
      %v6794 = vpop.f32.mrf.mxu0
      %v6795 = vadd.f32 0.0, %v6794
      %v6796 = vpop.f32.mrf.mxu0
      %v6797 = vadd.f32 0.0, %v6796
      %6798 = vmatmul.bf16.gmra.mxu0 %v6715
      %v6799 = vpop.f32.mrf.mxu0
      %v6800 = vadd.f32 0.0, %v6799
      %v6801 = vpop.f32.mrf.mxu0
      %v6802 = vadd.f32 0.0, %v6801
      %6803 = vmatmul.bf16.gmra.mxu0 %v6718
      %v6804 = vpop.f32.mrf.mxu0
      %v6805 = vadd.f32 0.0, %v6804
      %v6806 = vpop.f32.mrf.mxu0
      %v6807 = vadd.f32 0.0, %v6806
      %6808 = vdwg.mxu0
      %6809 = vmatpush.bf16.msra.mxu0 0
      %6810 = vmatpush.bf16.msra.mxu0 0
      %6811 = vmatpush.bf16.msra.mxu0 0
      %6812 = vmatpush.bf16.msra.mxu0 0
      %6813 = vmatpush.bf16.msra.mxu0 %v6658
      %6814 = vmatpush.bf16.msra.mxu0 %v6655
      %6815 = vmatpush.bf16.msra.mxu0 %v6652
      %6816 = vmatpush.bf16.msra.mxu0 %v6649
      %6817 = vmatmul.bf16.gmra.mxu0 %v6673
      %v6818 = vpop.f32.mrf.mxu0
      %v6819 = vadd.f32 0.0, %v6818
      %v6820 = vpop.f32.mrf.mxu0
      %v6821 = vadd.f32 0.0, %v6820
      %6822 = vmatmul.bf16.gmra.mxu0 %v6676
      %v6823 = vpop.f32.mrf.mxu0
      %v6824 = vadd.f32 0.0, %v6823
      %v6825 = vpop.f32.mrf.mxu0
      %v6826 = vadd.f32 0.0, %v6825
      %6827 = vmatmul.bf16.gmra.mxu0 %v6679
      %v6828 = vpop.f32.mrf.mxu0
      %v6829 = vadd.f32 0.0, %v6828
      %v6830 = vpop.f32.mrf.mxu0
      %v6831 = vadd.f32 0.0, %v6830
      %6832 = vmatmul.bf16.gmra.mxu0 %v6682
      %v6833 = vpop.f32.mrf.mxu0
      %v6834 = vadd.f32 0.0, %v6833
      %v6835 = vpop.f32.mrf.mxu0
      %v6836 = vadd.f32 0.0, %v6835
      %6837 = vmatmul.bf16.gmra.mxu0 %v6685
      %v6838 = vpop.f32.mrf.mxu0
      %v6839 = vadd.f32 0.0, %v6838
      %v6840 = vpop.f32.mrf.mxu0
      %v6841 = vadd.f32 0.0, %v6840
      %6842 = vmatmul.bf16.gmra.mxu0 %v6688
      %v6843 = vpop.f32.mrf.mxu0
      %v6844 = vadd.f32 0.0, %v6843
      %v6845 = vpop.f32.mrf.mxu0
      %v6846 = vadd.f32 0.0, %v6845
      %6847 = vmatmul.bf16.gmra.mxu0 %v6691
      %v6848 = vpop.f32.mrf.mxu0
      %v6849 = vadd.f32 0.0, %v6848
      %v6850 = vpop.f32.mrf.mxu0
      %v6851 = vadd.f32 0.0, %v6850
      %6852 = vmatmul.bf16.gmra.mxu0 %v6694
      %v6853 = vpop.f32.mrf.mxu0
      %v6854 = vadd.f32 0.0, %v6853
      %v6855 = vpop.f32.mrf.mxu0
      %v6856 = vadd.f32 0.0, %v6855
      %6857 = vmatmul.bf16.gmra.mxu0 %v6697
      %v6858 = vpop.f32.mrf.mxu0
      %v6859 = vadd.f32 0.0, %v6858
      %v6860 = vpop.f32.mrf.mxu0
      %v6861 = vadd.f32 0.0, %v6860
      %6862 = vmatmul.bf16.gmra.mxu0 %v6700
      %v6863 = vpop.f32.mrf.mxu0
      %v6864 = vadd.f32 0.0, %v6863
      %v6865 = vpop.f32.mrf.mxu0
      %v6866 = vadd.f32 0.0, %v6865
      %6867 = vmatmul.bf16.gmra.mxu0 %v6703
      %v6868 = vpop.f32.mrf.mxu0
      %v6869 = vadd.f32 0.0, %v6868
      %v6870 = vpop.f32.mrf.mxu0
      %v6871 = vadd.f32 0.0, %v6870
      %6872 = vmatmul.bf16.gmra.mxu0 %v6706
      %v6873 = vpop.f32.mrf.mxu0
      %v6874 = vadd.f32 0.0, %v6873
      %v6875 = vpop.f32.mrf.mxu0
      %v6876 = vadd.f32 0.0, %v6875
      %6877 = vmatmul.bf16.gmra.mxu0 %v6709
      %v6878 = vpop.f32.mrf.mxu0
      %v6879 = vadd.f32 0.0, %v6878
      %v6880 = vpop.f32.mrf.mxu0
      %v6881 = vadd.f32 0.0, %v6880
      %6882 = vmatmul.bf16.gmra.mxu0 %v6712
      %v6883 = vpop.f32.mrf.mxu0
      %v6884 = vadd.f32 0.0, %v6883
      %v6885 = vpop.f32.mrf.mxu0
      %v6886 = vadd.f32 0.0, %v6885
      %6887 = vmatmul.bf16.gmra.mxu0 %v6715
      %v6888 = vpop.f32.mrf.mxu0
      %v6889 = vadd.f32 0.0, %v6888
      %v6890 = vpop.f32.mrf.mxu0
      %v6891 = vadd.f32 0.0, %v6890
      %6892 = vmatmul.bf16.gmra.mxu0 %v6718
      %v6893 = vpop.f32.mrf.mxu0
      %v6894 = vadd.f32 0.0, %v6893
      %v6895 = vpop.f32.mrf.mxu0
      %v6896 = vadd.f32 0.0, %v6895
      %6897 = vdwg.mxu0
      %6898 = vmatpush.bf16.msra.mxu0 0
      %6899 = vmatpush.bf16.msra.mxu0 0
      %6900 = vmatpush.bf16.msra.mxu0 0
      %6901 = vmatpush.bf16.msra.mxu0 0
      %6902 = vmatpush.bf16.msra.mxu0 %v6659
      %6903 = vmatpush.bf16.msra.mxu0 %v6656
      %6904 = vmatpush.bf16.msra.mxu0 %v6653
      %6905 = vmatpush.bf16.msra.mxu0 %v6650
      %6906 = vmatmul.bf16.gmra.mxu0 %v6673
      %v6907 = vpop.f32.mrf.mxu0
      %v6908 = vadd.f32 0.0, %v6907
      %v6909 = vpop.f32.mrf.mxu0
      %v6910 = vadd.f32 0.0, %v6909
      %6911 = vmatmul.bf16.gmra.mxu0 %v6676
      %v6912 = vpop.f32.mrf.mxu0
      %v6913 = vadd.f32 0.0, %v6912
      %v6914 = vpop.f32.mrf.mxu0
      %v6915 = vadd.f32 0.0, %v6914
      %6916 = vmatmul.bf16.gmra.mxu0 %v6679
      %v6917 = vpop.f32.mrf.mxu0
      %v6918 = vadd.f32 0.0, %v6917
      %v6919 = vpop.f32.mrf.mxu0
      %v6920 = vadd.f32 0.0, %v6919
      %6921 = vmatmul.bf16.gmra.mxu0 %v6682
      %v6922 = vpop.f32.mrf.mxu0
      %v6923 = vadd.f32 0.0, %v6922
      %v6924 = vpop.f32.mrf.mxu0
      %v6925 = vadd.f32 0.0, %v6924
      %6926 = vmatmul.bf16.gmra.mxu0 %v6685
      %v6927 = vpop.f32.mrf.mxu0
      %v6928 = vadd.f32 0.0, %v6927
      %v6929 = vpop.f32.mrf.mxu0
      %v6930 = vadd.f32 0.0, %v6929
      %6931 = vmatmul.bf16.gmra.mxu0 %v6688
      %v6932 = vpop.f32.mrf.mxu0
      %v6933 = vadd.f32 0.0, %v6932
      %v6934 = vpop.f32.mrf.mxu0
      %v6935 = vadd.f32 0.0, %v6934
      %6936 = vmatmul.bf16.gmra.mxu0 %v6691
      %v6937 = vpop.f32.mrf.mxu0
      %v6938 = vadd.f32 0.0, %v6937
      %v6939 = vpop.f32.mrf.mxu0
      %v6940 = vadd.f32 0.0, %v6939
      %6941 = vmatmul.bf16.gmra.mxu0 %v6694
      %v6942 = vpop.f32.mrf.mxu0
      %v6943 = vadd.f32 0.0, %v6942
      %v6944 = vpop.f32.mrf.mxu0
      %v6945 = vadd.f32 0.0, %v6944
      %6946 = vmatmul.bf16.gmra.mxu0 %v6697
      %v6947 = vpop.f32.mrf.mxu0
      %v6948 = vadd.f32 0.0, %v6947
      %v6949 = vpop.f32.mrf.mxu0
      %v6950 = vadd.f32 0.0, %v6949
      %6951 = vmatmul.bf16.gmra.mxu0 %v6700
      %v6952 = vpop.f32.mrf.mxu0
      %v6953 = vadd.f32 0.0, %v6952
      %v6954 = vpop.f32.mrf.mxu0
      %v6955 = vadd.f32 0.0, %v6954
      %6956 = vmatmul.bf16.gmra.mxu0 %v6703
      %v6957 = vpop.f32.mrf.mxu0
      %v6958 = vadd.f32 0.0, %v6957
      %v6959 = vpop.f32.mrf.mxu0
      %v6960 = vadd.f32 0.0, %v6959
      %6961 = vmatmul.bf16.gmra.mxu0 %v6706
      %v6962 = vpop.f32.mrf.mxu0
      %v6963 = vadd.f32 0.0, %v6962
      %v6964 = vpop.f32.mrf.mxu0
      %v6965 = vadd.f32 0.0, %v6964
      %6966 = vmatmul.bf16.gmra.mxu0 %v6709
      %v6967 = vpop.f32.mrf.mxu0
      %v6968 = vadd.f32 0.0, %v6967
      %v6969 = vpop.f32.mrf.mxu0
      %v6970 = vadd.f32 0.0, %v6969
      %6971 = vmatmul.bf16.gmra.mxu0 %v6712
      %v6972 = vpop.f32.mrf.mxu0
      %v6973 = vadd.f32 0.0, %v6972
      %v6974 = vpop.f32.mrf.mxu0
      %v6975 = vadd.f32 0.0, %v6974
      %6976 = vmatmul.bf16.gmra.mxu0 %v6715
      %v6977 = vpop.f32.mrf.mxu0
      %v6978 = vadd.f32 0.0, %v6977
      %v6979 = vpop.f32.mrf.mxu0
      %v6980 = vadd.f32 0.0, %v6979
      %6981 = vmatmul.bf16.gmra.mxu0 %v6718
      %v6982 = vpop.f32.mrf.mxu0
      %v6983 = vadd.f32 0.0, %v6982
      %v6984 = vpop.f32.mrf.mxu0
      %v6985 = vadd.f32 0.0, %v6984
      %6986 = vdwg.mxu0
      %v6987 = vadd.f32 %v6319, %v6730
      %v6988 = vadd.f32 %v6408, %v6819
      %v6989 = vadd.f32 %v6497, %v6908
      %v6990 = vadd.f32 %v6321, %v6732
      %v6991 = vadd.f32 %v6410, %v6821
      %v6992 = vadd.f32 %v6499, %v6910
      %v6993 = vadd.f32 %v6324, %v6735
      %v6994 = vadd.f32 %v6413, %v6824
      %v6995 = vadd.f32 %v6502, %v6913
      %v6996 = vadd.f32 %v6326, %v6737
      %v6997 = vadd.f32 %v6415, %v6826
      %v6998 = vadd.f32 %v6504, %v6915
      %v6999 = vadd.f32 %v6329, %v6740
      %v7000 = vadd.f32 %v6418, %v6829
      %v7001 = vadd.f32 %v6507, %v6918
      %v7002 = vadd.f32 %v6331, %v6742
      %v7003 = vadd.f32 %v6420, %v6831
      %v7004 = vadd.f32 %v6509, %v6920
      %v7005 = vadd.f32 %v6334, %v6745
      %v7006 = vadd.f32 %v6423, %v6834
      %v7007 = vadd.f32 %v6512, %v6923
      %v7008 = vadd.f32 %v6336, %v6747
      %v7009 = vadd.f32 %v6425, %v6836
      %v7010 = vadd.f32 %v6514, %v6925
      %v7011 = vadd.f32 %v6339, %v6750
      %v7012 = vadd.f32 %v6428, %v6839
      %v7013 = vadd.f32 %v6517, %v6928
      %v7014 = vadd.f32 %v6341, %v6752
      %v7015 = vadd.f32 %v6430, %v6841
      %v7016 = vadd.f32 %v6519, %v6930
      %v7017 = vadd.f32 %v6344, %v6755
      %v7018 = vadd.f32 %v6433, %v6844
      %v7019 = vadd.f32 %v6522, %v6933
      %v7020 = vadd.f32 %v6346, %v6757
      %v7021 = vadd.f32 %v6435, %v6846
      %v7022 = vadd.f32 %v6524, %v6935
      %v7023 = vadd.f32 %v6349, %v6760
      %v7024 = vadd.f32 %v6438, %v6849
      %v7025 = vadd.f32 %v6527, %v6938
      %v7026 = vadd.f32 %v6351, %v6762
      %v7027 = vadd.f32 %v6440, %v6851
      %v7028 = vadd.f32 %v6529, %v6940
      %v7029 = vadd.f32 %v6354, %v6765
      %v7030 = vadd.f32 %v6443, %v6854
      %v7031 = vadd.f32 %v6532, %v6943
      %v7032 = vadd.f32 %v6356, %v6767
      %v7033 = vadd.f32 %v6445, %v6856
      %v7034 = vadd.f32 %v6534, %v6945
      %v7035 = vadd.f32 %v6359, %v6770
      %v7036 = vadd.f32 %v6448, %v6859
      %v7037 = vadd.f32 %v6537, %v6948
      %v7038 = vadd.f32 %v6361, %v6772
      %v7039 = vadd.f32 %v6450, %v6861
      %v7040 = vadd.f32 %v6539, %v6950
      %v7041 = vadd.f32 %v6364, %v6775
      %v7042 = vadd.f32 %v6453, %v6864
      %v7043 = vadd.f32 %v6542, %v6953
      %v7044 = vadd.f32 %v6366, %v6777
      %v7045 = vadd.f32 %v6455, %v6866
      %v7046 = vadd.f32 %v6544, %v6955
      %v7047 = vadd.f32 %v6369, %v6780
      %v7048 = vadd.f32 %v6458, %v6869
      %v7049 = vadd.f32 %v6547, %v6958
      %v7050 = vadd.f32 %v6371, %v6782
      %v7051 = vadd.f32 %v6460, %v6871
      %v7052 = vadd.f32 %v6549, %v6960
      %v7053 = vadd.f32 %v6374, %v6785
      %v7054 = vadd.f32 %v6463, %v6874
      %v7055 = vadd.f32 %v6552, %v6963
      %v7056 = vadd.f32 %v6376, %v6787
      %v7057 = vadd.f32 %v6465, %v6876
      %v7058 = vadd.f32 %v6554, %v6965
      %v7059 = vadd.f32 %v6379, %v6790
      %v7060 = vadd.f32 %v6468, %v6879
      %v7061 = vadd.f32 %v6557, %v6968
      %v7062 = vadd.f32 %v6381, %v6792
      %v7063 = vadd.f32 %v6470, %v6881
      %v7064 = vadd.f32 %v6559, %v6970
      %v7065 = vadd.f32 %v6384, %v6795
      %v7066 = vadd.f32 %v6473, %v6884
      %v7067 = vadd.f32 %v6562, %v6973
      %v7068 = vadd.f32 %v6386, %v6797
      %v7069 = vadd.f32 %v6475, %v6886
      %v7070 = vadd.f32 %v6564, %v6975
      %v7071 = vadd.f32 %v6389, %v6800
      %v7072 = vadd.f32 %v6478, %v6889
      %v7073 = vadd.f32 %v6567, %v6978
      %v7074 = vadd.f32 %v6391, %v6802
      %v7075 = vadd.f32 %v6480, %v6891
      %v7076 = vadd.f32 %v6569, %v6980
      %v7077 = vadd.f32 %v6394, %v6805
      %v7078 = vadd.f32 %v6483, %v6894
      %v7079 = vadd.f32 %v6572, %v6983
      %v7080 = vadd.f32 %v6396, %v6807
      %v7081 = vadd.f32 %v6485, %v6896
      %v7082 = vadd.f32 %v6574, %v6985
      %v7083 = vld [vmem:[%s10] sm:$0x7]
      %v7085 = vperm.slane %v7083, 0
      %v7086 = vperm.slane %v7083, 1
      %v7087 = vperm.slane %v7083, 2
      %v7091 = vadd.f32 %v6987, %v7085
      %v7092 = vadd.f32 %v6988, %v7086
      %v7093 = vadd.f32 %v6989, %v7087
      %v7094 = vadd.f32 %v6990, %v7085
      %v7095 = vadd.f32 %v6991, %v7086
      %v7096 = vadd.f32 %v6992, %v7087
      %v7097 = vadd.f32 %v6993, %v7085
      %v7098 = vadd.f32 %v6994, %v7086
      %v7099 = vadd.f32 %v6995, %v7087
      %v7100 = vadd.f32 %v6996, %v7085
      %v7101 = vadd.f32 %v6997, %v7086
      %v7102 = vadd.f32 %v6998, %v7087
      %v7103 = vadd.f32 %v6999, %v7085
      %v7104 = vadd.f32 %v7000, %v7086
      %v7105 = vadd.f32 %v7001, %v7087
      %v7106 = vadd.f32 %v7002, %v7085
      %v7107 = vadd.f32 %v7003, %v7086
      %v7108 = vadd.f32 %v7004, %v7087
      %v7109 = vadd.f32 %v7005, %v7085
      %v7110 = vadd.f32 %v7006, %v7086
      %v7111 = vadd.f32 %v7007, %v7087
      %v7112 = vadd.f32 %v7008, %v7085
      %v7113 = vadd.f32 %v7009, %v7086
      %v7114 = vadd.f32 %v7010, %v7087
      %v7115 = vadd.f32 %v7011, %v7085
      %v7116 = vadd.f32 %v7012, %v7086
      %v7117 = vadd.f32 %v7013, %v7087
      %v7118 = vadd.f32 %v7014, %v7085
      %v7119 = vadd.f32 %v7015, %v7086
      %v7120 = vadd.f32 %v7016, %v7087
      %v7121 = vadd.f32 %v7017, %v7085
      %v7122 = vadd.f32 %v7018, %v7086
      %v7123 = vadd.f32 %v7019, %v7087
      %v7124 = vadd.f32 %v7020, %v7085
      %v7125 = vadd.f32 %v7021, %v7086
      %v7126 = vadd.f32 %v7022, %v7087
      %v7127 = vadd.f32 %v7023, %v7085
      %v7128 = vadd.f32 %v7024, %v7086
      %v7129 = vadd.f32 %v7025, %v7087
      %v7130 = vadd.f32 %v7026, %v7085
      %v7131 = vadd.f32 %v7027, %v7086
      %v7132 = vadd.f32 %v7028, %v7087
      %v7133 = vadd.f32 %v7029, %v7085
      %v7134 = vadd.f32 %v7030, %v7086
      %v7135 = vadd.f32 %v7031, %v7087
      %v7136 = vadd.f32 %v7032, %v7085
      %v7137 = vadd.f32 %v7033, %v7086
      %v7138 = vadd.f32 %v7034, %v7087
      %v7139 = vadd.f32 %v7035, %v7085
      %v7140 = vadd.f32 %v7036, %v7086
      %v7141 = vadd.f32 %v7037, %v7087
      %v7142 = vadd.f32 %v7038, %v7085
      %v7143 = vadd.f32 %v7039, %v7086
      %v7144 = vadd.f32 %v7040, %v7087
      %v7145 = vadd.f32 %v7041, %v7085
      %v7146 = vadd.f32 %v7042, %v7086
      %v7147 = vadd.f32 %v7043, %v7087
      %v7148 = vadd.f32 %v7044, %v7085
      %v7149 = vadd.f32 %v7045, %v7086
      %v7150 = vadd.f32 %v7046, %v7087
      %v7151 = vadd.f32 %v7047, %v7085
      %v7152 = vadd.f32 %v7048, %v7086
      %v7153 = vadd.f32 %v7049, %v7087
      %v7154 = vadd.f32 %v7050, %v7085
      %v7155 = vadd.f32 %v7051, %v7086
      %v7156 = vadd.f32 %v7052, %v7087
      %v7157 = vadd.f32 %v7053, %v7085
      %v7158 = vadd.f32 %v7054, %v7086
      %v7159 = vadd.f32 %v7055, %v7087
      %v7160 = vadd.f32 %v7056, %v7085
      %v7161 = vadd.f32 %v7057, %v7086
      %v7162 = vadd.f32 %v7058, %v7087
      %v7163 = vadd.f32 %v7059, %v7085
      %v7164 = vadd.f32 %v7060, %v7086
      %v7165 = vadd.f32 %v7061, %v7087
      %v7166 = vadd.f32 %v7062, %v7085
      %v7167 = vadd.f32 %v7063, %v7086
      %v7168 = vadd.f32 %v7064, %v7087
      %v7169 = vadd.f32 %v7065, %v7085
      %v7170 = vadd.f32 %v7066, %v7086
      %v7171 = vadd.f32 %v7067, %v7087
      %v7172 = vadd.f32 %v7068, %v7085
      %v7173 = vadd.f32 %v7069, %v7086
      %v7174 = vadd.f32 %v7070, %v7087
      %v7175 = vadd.f32 %v7071, %v7085
      %v7176 = vadd.f32 %v7072, %v7086
      %v7177 = vadd.f32 %v7073, %v7087
      %v7178 = vadd.f32 %v7074, %v7085
      %v7179 = vadd.f32 %v7075, %v7086
      %v7180 = vadd.f32 %v7076, %v7087
      %v7181 = vadd.f32 %v7077, %v7085
      %v7182 = vadd.f32 %v7078, %v7086
      %v7183 = vadd.f32 %v7079, %v7087
      %v7184 = vadd.f32 %v7080, %v7085
      %v7185 = vadd.f32 %v7081, %v7086
      %v7186 = vadd.f32 %v7082, %v7087
      %v7187 = vadd.f32 %v7091, %v388
      %v7188 = vadd.f32 %v7092, %v389
      %v7189 = vadd.f32 %v7093, %v390
      %v7190 = vadd.f32 %v7094, %v391
      %v7191 = vadd.f32 %v7095, %v392
      %v7192 = vadd.f32 %v7096, %v393
      %v7193 = vadd.f32 %v7097, %v394
      %v7194 = vadd.f32 %v7098, %v395
      %v7195 = vadd.f32 %v7099, %v396
      %v7196 = vadd.f32 %v7100, %v397
      %v7197 = vadd.f32 %v7101, %v398
      %v7198 = vadd.f32 %v7102, %v399
      %v7199 = vadd.f32 %v7103, %v400
      %v7200 = vadd.f32 %v7104, %v401
      %v7201 = vadd.f32 %v7105, %v402
      %v7202 = vadd.f32 %v7106, %v403
      %v7203 = vadd.f32 %v7107, %v404
      %v7204 = vadd.f32 %v7108, %v405
      %v7205 = vadd.f32 %v7109, %v406
      %v7206 = vadd.f32 %v7110, %v407
      %v7207 = vadd.f32 %v7111, %v408
      %v7208 = vadd.f32 %v7112, %v409
      %v7209 = vadd.f32 %v7113, %v410
      %v7210 = vadd.f32 %v7114, %v411
      %v7211 = vadd.f32 %v7115, %v412
      %v7212 = vadd.f32 %v7116, %v413
      %v7213 = vadd.f32 %v7117, %v414
      %v7214 = vadd.f32 %v7118, %v415
      %v7215 = vadd.f32 %v7119, %v416
      %v7216 = vadd.f32 %v7120, %v417
      %v7217 = vadd.f32 %v7121, %v418
      %v7218 = vadd.f32 %v7122, %v419
      %v7219 = vadd.f32 %v7123, %v420
      %v7220 = vadd.f32 %v7124, %v421
      %v7221 = vadd.f32 %v7125, %v422
      %v7222 = vadd.f32 %v7126, %v423
      %v7223 = vadd.f32 %v7127, %v424
      %v7224 = vadd.f32 %v7128, %v425
      %v7225 = vadd.f32 %v7129, %v426
      %v7226 = vadd.f32 %v7130, %v427
      %v7227 = vadd.f32 %v7131, %v428
      %v7228 = vadd.f32 %v7132, %v429
      %v7229 = vadd.f32 %v7133, %v430
      %v7230 = vadd.f32 %v7134, %v431
      %v7231 = vadd.f32 %v7135, %v432
      %v7232 = vadd.f32 %v7136, %v433
      %v7233 = vadd.f32 %v7137, %v434
      %v7234 = vadd.f32 %v7138, %v435
      %v7235 = vadd.f32 %v7139, %v436
      %v7236 = vadd.f32 %v7140, %v437
      %v7237 = vadd.f32 %v7141, %v438
      %v7238 = vadd.f32 %v7142, %v439
      %v7239 = vadd.f32 %v7143, %v440
      %v7240 = vadd.f32 %v7144, %v441
      %v7241 = vadd.f32 %v7145, %v442
      %v7242 = vadd.f32 %v7146, %v443
      %v7243 = vadd.f32 %v7147, %v444
      %v7244 = vadd.f32 %v7148, %v445
      %v7245 = vadd.f32 %v7149, %v446
      %v7246 = vadd.f32 %v7150, %v447
      %v7247 = vadd.f32 %v7151, %v448
      %v7248 = vadd.f32 %v7152, %v449
      %v7249 = vadd.f32 %v7153, %v450
      %v7250 = vadd.f32 %v7154, %v451
      %v7251 = vadd.f32 %v7155, %v452
      %v7252 = vadd.f32 %v7156, %v453
      %v7253 = vadd.f32 %v7157, %v454
      %v7254 = vadd.f32 %v7158, %v455
      %v7255 = vadd.f32 %v7159, %v456
      %v7256 = vadd.f32 %v7160, %v457
      %v7257 = vadd.f32 %v7161, %v458
      %v7258 = vadd.f32 %v7162, %v459
      %v7259 = vadd.f32 %v7163, %v460
      %v7260 = vadd.f32 %v7164, %v461
      %v7261 = vadd.f32 %v7165, %v462
      %v7262 = vadd.f32 %v7166, %v463
      %v7263 = vadd.f32 %v7167, %v464
      %v7264 = vadd.f32 %v7168, %v465
      %v7265 = vadd.f32 %v7169, %v466
      %v7266 = vadd.f32 %v7170, %v467
      %v7267 = vadd.f32 %v7171, %v468
      %v7268 = vadd.f32 %v7172, %v469
      %v7269 = vadd.f32 %v7173, %v470
      %v7270 = vadd.f32 %v7174, %v471
      %v7271 = vadd.f32 %v7175, %v472
      %v7272 = vadd.f32 %v7176, %v473
      %v7273 = vadd.f32 %v7177, %v474
      %v7274 = vadd.f32 %v7178, %v475
      %v7275 = vadd.f32 %v7179, %v476
      %v7276 = vadd.f32 %v7180, %v477
      %v7277 = vadd.f32 %v7181, %v478
      %v7278 = vadd.f32 %v7182, %v479
      %v7279 = vadd.f32 %v7183, %v480
      %v7280 = vadd.f32 %v7184, %v481
      %v7281 = vadd.f32 %v7185, %v482
      %v7282 = vadd.f32 %v7186, %v483
      %v7283 = vmax.f32 %v7187, 0.0
      %v7284 = vmax.f32 %v7188, 0.0
      %v7285 = vmax.f32 %v7189, 0.0
      %v7286 = vmax.f32 %v7190, 0.0
      %v7287 = vmax.f32 %v7191, 0.0
      %v7288 = vmax.f32 %v7192, 0.0
      %v7289 = vmax.f32 %v7193, 0.0
      %v7290 = vmax.f32 %v7194, 0.0
      %v7291 = vmax.f32 %v7195, 0.0
      %v7292 = vmax.f32 %v7196, 0.0
      %v7293 = vmax.f32 %v7197, 0.0
      %v7294 = vmax.f32 %v7198, 0.0
      %v7295 = vmax.f32 %v7199, 0.0
      %v7296 = vmax.f32 %v7200, 0.0
      %v7297 = vmax.f32 %v7201, 0.0
      %v7298 = vmax.f32 %v7202, 0.0
      %v7299 = vmax.f32 %v7203, 0.0
      %v7300 = vmax.f32 %v7204, 0.0
      %v7301 = vmax.f32 %v7205, 0.0
      %v7302 = vmax.f32 %v7206, 0.0
      %v7303 = vmax.f32 %v7207, 0.0
      %v7304 = vmax.f32 %v7208, 0.0
      %v7305 = vmax.f32 %v7209, 0.0
      %v7306 = vmax.f32 %v7210, 0.0
      %v7307 = vmax.f32 %v7211, 0.0
      %v7308 = vmax.f32 %v7212, 0.0
      %v7309 = vmax.f32 %v7213, 0.0
      %v7310 = vmax.f32 %v7214, 0.0
      %v7311 = vmax.f32 %v7215, 0.0
      %v7312 = vmax.f32 %v7216, 0.0
      %v7313 = vmax.f32 %v7217, 0.0
      %v7314 = vmax.f32 %v7218, 0.0
      %v7315 = vmax.f32 %v7219, 0.0
      %v7316 = vmax.f32 %v7220, 0.0
      %v7317 = vmax.f32 %v7221, 0.0
      %v7318 = vmax.f32 %v7222, 0.0
      %v7319 = vmax.f32 %v7223, 0.0
      %v7320 = vmax.f32 %v7224, 0.0
      %v7321 = vmax.f32 %v7225, 0.0
      %v7322 = vmax.f32 %v7226, 0.0
      %v7323 = vmax.f32 %v7227, 0.0
      %v7324 = vmax.f32 %v7228, 0.0
      %v7325 = vmax.f32 %v7229, 0.0
      %v7326 = vmax.f32 %v7230, 0.0
      %v7327 = vmax.f32 %v7231, 0.0
      %v7328 = vmax.f32 %v7232, 0.0
      %v7329 = vmax.f32 %v7233, 0.0
      %v7330 = vmax.f32 %v7234, 0.0
      %v7331 = vmax.f32 %v7235, 0.0
      %v7332 = vmax.f32 %v7236, 0.0
      %v7333 = vmax.f32 %v7237, 0.0
      %v7334 = vmax.f32 %v7238, 0.0
      %v7335 = vmax.f32 %v7239, 0.0
      %v7336 = vmax.f32 %v7240, 0.0
      %v7337 = vmax.f32 %v7241, 0.0
      %v7338 = vmax.f32 %v7242, 0.0
      %v7339 = vmax.f32 %v7243, 0.0
      %v7340 = vmax.f32 %v7244, 0.0
      %v7341 = vmax.f32 %v7245, 0.0
      %v7342 = vmax.f32 %v7246, 0.0
      %v7343 = vmax.f32 %v7247, 0.0
      %v7344 = vmax.f32 %v7248, 0.0
      %v7345 = vmax.f32 %v7249, 0.0
      %v7346 = vmax.f32 %v7250, 0.0
      %v7347 = vmax.f32 %v7251, 0.0
      %v7348 = vmax.f32 %v7252, 0.0
      %v7349 = vmax.f32 %v7253, 0.0
      %v7350 = vmax.f32 %v7254, 0.0
      %v7351 = vmax.f32 %v7255, 0.0
      %v7352 = vmax.f32 %v7256, 0.0
      %v7353 = vmax.f32 %v7257, 0.0
      %v7354 = vmax.f32 %v7258, 0.0
      %v7355 = vmax.f32 %v7259, 0.0
      %v7356 = vmax.f32 %v7260, 0.0
      %v7357 = vmax.f32 %v7261, 0.0
      %v7358 = vmax.f32 %v7262, 0.0
      %v7359 = vmax.f32 %v7263, 0.0
      %v7360 = vmax.f32 %v7264, 0.0
      %v7361 = vmax.f32 %v7265, 0.0
      %v7362 = vmax.f32 %v7266, 0.0
      %v7363 = vmax.f32 %v7267, 0.0
      %v7364 = vmax.f32 %v7268, 0.0
      %v7365 = vmax.f32 %v7269, 0.0
      %v7366 = vmax.f32 %v7270, 0.0
      %v7367 = vmax.f32 %v7271, 0.0
      %v7368 = vmax.f32 %v7272, 0.0
      %v7369 = vmax.f32 %v7273, 0.0
      %v7370 = vmax.f32 %v7274, 0.0
      %v7371 = vmax.f32 %v7275, 0.0
      %v7372 = vmax.f32 %v7276, 0.0
      %v7373 = vmax.f32 %v7277, 0.0
      %v7374 = vmax.f32 %v7278, 0.0
      %v7375 = vmax.f32 %v7279, 0.0
      %v7376 = vmax.f32 %v7280, 0.0
      %v7377 = vmax.f32 %v7281, 0.0
      %v7378 = vmax.f32 %v7282, 0.0
      %7379 = vst [vmem:[%s386] sm:$0xff] %v7283
      %7380 = vst [vmem:[%s386 + $0x8] sm:$0xff] %v7284
      %7381 = vst.msk [vmem:[%s386 + $0x10] sm:$0xff] %vm696, %v7285
      %7382 = vst [vmem:[%s386 + $0x18] sm:$0xff] %v7286
      %7383 = vst [vmem:[%s386 + $0x20] sm:$0xff] %v7287
      %7384 = vst.msk [vmem:[%s386 + $0x28] sm:$0xff] %vm696, %v7288
      %7385 = vst [vmem:[%s386 + $0x30] sm:$0xff] %v7289
      %7386 = vst [vmem:[%s386 + $0x38] sm:$0xff] %v7290
      %7387 = vst.msk [vmem:[%s386 + $0x40] sm:$0xff] %vm696, %v7291
      %7388 = vst [vmem:[%s386 + $0x48] sm:$0xff] %v7292
      %7389 = vst [vmem:[%s386 + $0x50] sm:$0xff] %v7293
      %7390 = vst.msk [vmem:[%s386 + $0x58] sm:$0xff] %vm696, %v7294
      %7391 = vst [vmem:[%s386 + $0x60] sm:$0xff] %v7295
      %7392 = vst [vmem:[%s386 + $0x68] sm:$0xff] %v7296
      %7393 = vst.msk [vmem:[%s386 + $0x70] sm:$0xff] %vm696, %v7297
      %7394 = vst [vmem:[%s386 + $0x78] sm:$0xff] %v7298
      %7395 = vst [vmem:[%s386 + $0x80] sm:$0xff] %v7299
      %7396 = vst.msk [vmem:[%s386 + $0x88] sm:$0xff] %vm696, %v7300
      %7397 = vst [vmem:[%s386 + $0x90] sm:$0xff] %v7301
      %7398 = vst [vmem:[%s386 + $0x98] sm:$0xff] %v7302
      %7399 = vst.msk [vmem:[%s386 + $0xa0] sm:$0xff] %vm696, %v7303
      %7400 = vst [vmem:[%s386 + $0xa8] sm:$0xff] %v7304
      %7401 = vst [vmem:[%s386 + $0xb0] sm:$0xff] %v7305
      %7402 = vst.msk [vmem:[%s386 + $0xb8] sm:$0xff] %vm696, %v7306
      %7403 = vst [vmem:[%s386 + $0xc0] sm:$0xff] %v7307
      %7404 = vst [vmem:[%s386 + $0xc8] sm:$0xff] %v7308
      %7405 = vst.msk [vmem:[%s386 + $0xd0] sm:$0xff] %vm696, %v7309
      %7406 = vst [vmem:[%s386 + $0xd8] sm:$0xff] %v7310
      %7407 = vst [vmem:[%s386 + $0xe0] sm:$0xff] %v7311
      %7408 = vst.msk [vmem:[%s386 + $0xe8] sm:$0xff] %vm696, %v7312
      %7409 = vst [vmem:[%s386 + $0xf0] sm:$0xff] %v7313
      %7410 = vst [vmem:[%s386 + $0xf8] sm:$0xff] %v7314
      %7411 = vst.msk [vmem:[%s386 + $0x100] sm:$0xff] %vm696, %v7315
      %7412 = vst [vmem:[%s386 + $0x108] sm:$0xff] %v7316
      %7413 = vst [vmem:[%s386 + $0x110] sm:$0xff] %v7317
      %7414 = vst.msk [vmem:[%s386 + $0x118] sm:$0xff] %vm696, %v7318
      %7415 = vst [vmem:[%s386 + $0x120] sm:$0xff] %v7319
      %7416 = vst [vmem:[%s386 + $0x128] sm:$0xff] %v7320
      %7417 = vst.msk [vmem:[%s386 + $0x130] sm:$0xff] %vm696, %v7321
      %7418 = vst [vmem:[%s386 + $0x138] sm:$0xff] %v7322
      %7419 = vst [vmem:[%s386 + $0x140] sm:$0xff] %v7323
      %7420 = vst.msk [vmem:[%s386 + $0x148] sm:$0xff] %vm696, %v7324
      %7421 = vst [vmem:[%s386 + $0x150] sm:$0xff] %v7325
      %7422 = vst [vmem:[%s386 + $0x158] sm:$0xff] %v7326
      %7423 = vst.msk [vmem:[%s386 + $0x160] sm:$0xff] %vm696, %v7327
      %7424 = vst [vmem:[%s386 + $0x168] sm:$0xff] %v7328
      %7425 = vst [vmem:[%s386 + $0x170] sm:$0xff] %v7329
      %7426 = vst.msk [vmem:[%s386 + $0x178] sm:$0xff] %vm696, %v7330
      %7427 = vst [vmem:[%s386 + $0x180] sm:$0xff] %v7331
      %7428 = vst [vmem:[%s386 + $0x188] sm:$0xff] %v7332
      %7429 = vst.msk [vmem:[%s386 + $0x190] sm:$0xff] %vm696, %v7333
      %7430 = vst [vmem:[%s386 + $0x198] sm:$0xff] %v7334
      %7431 = vst [vmem:[%s386 + $0x1a0] sm:$0xff] %v7335
      %7432 = vst.msk [vmem:[%s386 + $0x1a8] sm:$0xff] %vm696, %v7336
      %7433 = vst [vmem:[%s386 + $0x1b0] sm:$0xff] %v7337
      %7434 = vst [vmem:[%s386 + $0x1b8] sm:$0xff] %v7338
      %7435 = vst.msk [vmem:[%s386 + $0x1c0] sm:$0xff] %vm696, %v7339
      %7436 = vst [vmem:[%s386 + $0x1c8] sm:$0xff] %v7340
      %7437 = vst [vmem:[%s386 + $0x1d0] sm:$0xff] %v7341
      %7438 = vst.msk [vmem:[%s386 + $0x1d8] sm:$0xff] %vm696, %v7342
      %7439 = vst [vmem:[%s386 + $0x1e0] sm:$0xff] %v7343
      %7440 = vst [vmem:[%s386 + $0x1e8] sm:$0xff] %v7344
      %7441 = vst.msk [vmem:[%s386 + $0x1f0] sm:$0xff] %vm696, %v7345
      %7442 = vst [vmem:[%s386 + $0x1f8] sm:$0xff] %v7346
      %7443 = vst [vmem:[%s386 + $0x200] sm:$0xff] %v7347
      %7444 = vst.msk [vmem:[%s386 + $0x208] sm:$0xff] %vm696, %v7348
      %7445 = vst [vmem:[%s386 + $0x210] sm:$0xff] %v7349
      %7446 = vst [vmem:[%s386 + $0x218] sm:$0xff] %v7350
      %7447 = vst.msk [vmem:[%s386 + $0x220] sm:$0xff] %vm696, %v7351
      %7448 = vst [vmem:[%s386 + $0x228] sm:$0xff] %v7352
      %7449 = vst [vmem:[%s386 + $0x230] sm:$0xff] %v7353
      %7450 = vst.msk [vmem:[%s386 + $0x238] sm:$0xff] %vm696, %v7354
      %7451 = vst [vmem:[%s386 + $0x240] sm:$0xff] %v7355
      %7452 = vst [vmem:[%s386 + $0x248] sm:$0xff] %v7356
      %7453 = vst.msk [vmem:[%s386 + $0x250] sm:$0xff] %vm696, %v7357
      %7454 = vst [vmem:[%s386 + $0x258] sm:$0xff] %v7358
      %7455 = vst [vmem:[%s386 + $0x260] sm:$0xff] %v7359
      %7456 = vst.msk [vmem:[%s386 + $0x268] sm:$0xff] %vm696, %v7360
      %7457 = vst [vmem:[%s386 + $0x270] sm:$0xff] %v7361
      %7458 = vst [vmem:[%s386 + $0x278] sm:$0xff] %v7362
      %7459 = vst.msk [vmem:[%s386 + $0x280] sm:$0xff] %vm696, %v7363
      %7460 = vst [vmem:[%s386 + $0x288] sm:$0xff] %v7364
      %7461 = vst [vmem:[%s386 + $0x290] sm:$0xff] %v7365
      %7462 = vst.msk [vmem:[%s386 + $0x298] sm:$0xff] %vm696, %v7366
      %7463 = vst [vmem:[%s386 + $0x2a0] sm:$0xff] %v7367
      %7464 = vst [vmem:[%s386 + $0x2a8] sm:$0xff] %v7368
      %7465 = vst.msk [vmem:[%s386 + $0x2b0] sm:$0xff] %vm696, %v7369
      %7466 = vst [vmem:[%s386 + $0x2b8] sm:$0xff] %v7370
      %7467 = vst [vmem:[%s386 + $0x2c0] sm:$0xff] %v7371
      %7468 = vst.msk [vmem:[%s386 + $0x2c8] sm:$0xff] %vm696, %v7372
      %7469 = vst [vmem:[%s386 + $0x2d0] sm:$0xff] %v7373
      %7470 = vst [vmem:[%s386 + $0x2d8] sm:$0xff] %v7374
      %7471 = vst.msk [vmem:[%s386 + $0x2e0] sm:$0xff] %vm696, %v7375
      %7472 = vst [vmem:[%s386 + $0x2e8] sm:$0xff] %v7376
      %7473 = vst [vmem:[%s386 + $0x2f0] sm:$0xff] %v7377
      %7474 = vst.msk [vmem:[%s386 + $0x2f8] sm:$0xff] %vm696, %v7378
      %p7475 = scmp.lt.s32.totalorder %s22, 1
      %s7476 = scalar_select %p7475, %s22, 1
      %s7477 = smul.addr %s7476, 96
      %s7478 = smul.addr %s7477, 8
      %s7479 = scalar_lea.vmem %s11, %s7478
      // Predicated region
      $region65: #{tpu_custom_call.1} parent=63 // pred_check
        %p7480 = pneg %p276
      $region66: #{tpu_custom_call.1} parent=63 // pred_check_branch
        %7482 = sbr.rel (%p7480) target = $region68
      $region67: #{tpu_custom_call.1} parent=63 // pred_region
        _
      $region68: #{tpu_custom_call.1} parent=63 // pred_fallthru
        _
    $region64: #{tpu_custom_call.1} parent=5 // pred_fallthru
      _
    %p7483 = scmp.le.s32.totalorder 2, %s17
    // Predicated region
    $region69: #{tpu_custom_call.1} parent=5 // pred_check
      %p7484 = pneg %p7483
    $region70: #{tpu_custom_call.1} parent=5 // pred_check_branch
      %7486 = sbr.rel (%p7484) target = $region72
    $region71: #{tpu_custom_call.1} parent=5 // pred_region
      %s7487 = ssub.s32 %s17, 2
      // Predicated region
      $region73: #{tpu_custom_call.1} parent=71 // pred_check
        %p7488 = pneg %p282
      $region74: #{tpu_custom_call.1} parent=71 // pred_check_branch
        %7490 = sbr.rel (%p7488) target = $region76
      $region75: #{tpu_custom_call.1} parent=71 // pred_region
        %p7491 = scmp.lt.s32.totalorder %s23, 1
        %s7492 = scalar_select %p7491, %s23, 1
        %s7493 = smul.addr %s7492, 96
        %s7494 = smul.addr %s7493, 8
        %s7495 = scalar_lea.vmem %s11, %s7494
      $region76: #{tpu_custom_call.1} parent=71 // pred_fallthru
        _
    $region72: #{tpu_custom_call.1} parent=5 // pred_fallthru
      _
  $region6: #{tpu_custom_call.1} parent=0 // loop_footer
    %s21 = sadd.s32 1, %s17
  $region7: #{tpu_custom_call.1} parent=0 // loop_footer_branch
    %16 = sbr.rel target = $region3
  $region8: #{tpu_custom_call.1} parent=0 // loop_exit
    _

</llo_original>
